<compile_context>
chip_gen: v6e
topology: v6e:2x2x1
jax: 0.10.0
libtpu: 0.0.40
codegen_flags: <defaults>
</compile_context>

<pallas_src>
import jax
import jax.numpy as jnp
from jax.experimental import pallas as pl
from jax.experimental.pallas import tpu as pltpu

# ---- small synthetic shapes (consistent with the module's forward) -------------------
B = 2              # batch
C_IN = 1           # spectrogram channels (HawkEars takes 1-channel spectrograms)
H = W = 16         # spatial
C_STEM = 32        # stem conv width
EMB_DIM = 2048     # embedding dim (fixed by the module: Linear(2048, num_classes))
NUM_CLASSES = 10
NC_PAD = 128       # lane-dense logits width (sliced back to NUM_CLASSES in the wrapper)
K_TAPS = 9 * C_IN  # im2col contraction dim for the 3x3 stem conv
M = B * H * W      # total spatial rows processed per kernel invocation


# ---------------------------------------------------------------------------------------
# Fused kernel (single invocation, no grid):
#   stem conv (im2col matmul) + folded-BN/ReLU
#   -> 1x1 conv to EMB_DIM + ReLU
#   -> global average pool (f32 reshape + mean, in-kernel)
#   -> classifier logits (+ bias), lane-padded
# ---------------------------------------------------------------------------------------
def _fused_kernel(xt_ref, w1_ref, b1_ref, w2_ref, b2_ref, wc_ref, bc_ref,
                  emb_ref, logit_ref):
    # xt_ref   : (M, K_TAPS)        bf16   im2col patches for the whole batch
    # w1_ref   : (K_TAPS, C_STEM)   bf16   stem conv weight, BN scale folded in
    # b1_ref   : (1, C_STEM)        f32    folded BN bias
    # w2_ref   : (C_STEM, EMB_DIM)  bf16   1x1 conv weight
    # b2_ref   : (1, EMB_DIM)       f32
    # wc_ref   : (EMB_DIM, NC_PAD)  bf16   classifier weight, lane-padded
    # bc_ref   : (1, NC_PAD)        f32    classifier bias, lane-padded
    # emb_ref  : (B, EMB_DIM)       f32    embeddings
    # logit_ref: (B, NC_PAD)        f32    logits (padded; sliced in wrapper)

    # stem conv as an im2col matmul (bf16 x bf16 -> f32), folded BN + ReLU in f32
    h1 = jnp.dot(xt_ref[...], w1_ref[...], preferred_element_type=jnp.float32)
    h1 = jnp.maximum(h1 + b1_ref[...], 0.0)                          # (M, C_STEM)

    # 1x1 conv to EMB_DIM + ReLU (f32 epilogue)
    h2 = jnp.dot(h1.astype(jnp.bfloat16), w2_ref[...],
                 preferred_element_type=jnp.float32)
    h2 = jnp.maximum(h2 + b2_ref[...], 0.0)                          # (M, EMB_DIM) f32

    # global average pool in f32: split leading dim (no lane crossing), reduce H*W rows
    emb = jnp.mean(h2.reshape(B, H * W, EMB_DIM), axis=1)            # (B, EMB_DIM) f32
    emb_ref[...] = emb

    # classifier: bias folded in-kernel; wrapper only slices off the lane padding
    logit_ref[...] = jnp.dot(emb.astype(jnp.bfloat16), wc_ref[...],
                             preferred_element_type=jnp.float32) + bc_ref[...]


# ---------------------------------------------------------------------------------------
# Glue: im2col of the NHWC input for a 3x3, stride-1, pad-1 convolution
# ---------------------------------------------------------------------------------------
def _im2col_3x3(x_nhwc):
    xp = jnp.pad(x_nhwc, ((0, 0), (1, 1), (1, 1), (0, 0)))
    taps = [xp[:, dh:dh + H, dw:dw + W, :] for dh in range(3) for dw in range(3)]
    # (B, H, W, 9, C_IN): tap order (dh, dw, c_in) matches w1.reshape(9*C_IN, C_STEM)
    patches = jnp.stack(taps, axis=3)
    return patches.reshape(M, K_TAPS)


def init_params(key):
    k0, k1, k2 = jax.random.split(key, 3)
    w1 = jax.random.normal(k0, (3, 3, C_IN, C_STEM), jnp.float32) * 0.1
    s1 = jnp.ones((C_STEM,), jnp.float32)            # folded BN scale
    b1 = jnp.zeros((C_STEM,), jnp.float32)           # folded BN bias
    w2 = jax.random.normal(k1, (C_STEM, EMB_DIM), jnp.float32) * 0.05
    b2 = jnp.zeros((EMB_DIM,), jnp.float32)
    wc = jax.random.normal(k2, (EMB_DIM, NUM_CLASSES), jnp.float32) * 0.02
    bc = jnp.zeros((NUM_CLASSES,), jnp.float32)

    # ---- inference-time preparation (done once, off the hot path) --------------------
    # fold BN scale into the conv weight, flatten to im2col layout, cast MXU operands
    # to bf16 (accumulation stays f32 inside the kernel), lane-pad the classifier.
    w1_folded = (w1 * s1).reshape(K_TAPS, C_STEM).astype(jnp.bfloat16)
    wc_pad = jnp.zeros((EMB_DIM, NC_PAD), jnp.float32).at[:, :NUM_CLASSES].set(wc)
    bc_pad = jnp.zeros((1, NC_PAD), jnp.float32).at[:, :NUM_CLASSES].set(bc)
    return {
        "w1": w1_folded,                              # (K_TAPS, C_STEM)   bf16
        "b1": b1.reshape(1, C_STEM),                  # (1, C_STEM)        f32
        "w2": w2.astype(jnp.bfloat16),                # (C_STEM, EMB_DIM)  bf16
        "b2": b2.reshape(1, EMB_DIM),                 # (1, EMB_DIM)       f32
        "wc": wc_pad.astype(jnp.bfloat16),            # (EMB_DIM, NC_PAD)  bf16
        "bc": bc_pad,                                 # (1, NC_PAD)        f32
    }


@jax.jit
def hawkears_one_forward(x_nchw, params):
    """Returns (embeddings, logits). Accepts PyTorch-layout NCHW float input."""
    x_nhwc = jnp.transpose(x_nchw, (0, 2, 3, 1)).astype(jnp.float32)
    x_taps = _im2col_3x3(x_nhwc).astype(jnp.bfloat16)                 # (M, K_TAPS)

    flops = (2 * M * (K_TAPS * C_STEM + C_STEM * EMB_DIM)   # stem + 1x1 conv matmuls
             + B * H * W * EMB_DIM                           # pooling reduction
             + 2 * B * EMB_DIM * NC_PAD)                     # classifier matmul
    bytes_accessed = (M * K_TAPS * 2 + K_TAPS * C_STEM * 2 + C_STEM * 4
                      + C_STEM * EMB_DIM * 2 + EMB_DIM * 4
                      + EMB_DIM * NC_PAD * 2 + NC_PAD * 4
                      + B * EMB_DIM * 4 + B * NC_PAD * 4)

    emb, logits_pad = pl.pallas_call(
        _fused_kernel,
        out_shape=(jax.ShapeDtypeStruct((B, EMB_DIM), jnp.float32),
                   jax.ShapeDtypeStruct((B, NC_PAD), jnp.float32)),
        cost_estimate=pl.CostEstimate(flops=flops, transcendentals=0,
                                      bytes_accessed=bytes_accessed),
    )(x_taps, params["w1"], params["b1"], params["w2"], params["b2"],
      params["wc"], params["bc"])

    # only wrapper-side op on the hot path: drop the lane padding
    logits = logits_pad[:, :NUM_CLASSES]
    return emb, logits


if __name__ == "__main__":
    key = jax.random.PRNGKey(0)
    k_x, k_p = jax.random.split(key)
    x = jax.random.normal(k_x, (B, C_IN, H, W), jnp.float32)  # NCHW, like PyTorch
    params = init_params(k_p)

    embeddings, logits = hawkears_one_forward(x, params)
    jax.block_until_ready((embeddings, logits))

    assert embeddings.shape == (B, EMB_DIM)
    assert logits.shape == (B, NUM_CLASSES)
    print("KERNEL_OK")
</pallas_src>

<mosaic_0001>
module attributes {stable_mosaic.version = 11 : i64} {
  func.func @_fused_kernel(%arg0: memref<512x9xbf16, #tpu.memory_space<vmem>>, %arg1: memref<9x32xbf16, #tpu.memory_space<vmem>>, %arg2: memref<1x32xf32, #tpu.memory_space<vmem>>, %arg3: memref<32x2048xbf16, #tpu.memory_space<vmem>>, %arg4: memref<1x2048xf32, #tpu.memory_space<vmem>>, %arg5: memref<2048x128xbf16, #tpu.memory_space<vmem>>, %arg6: memref<1x128xf32, #tpu.memory_space<vmem>>, %arg7: memref<2x2048xf32, #tpu.memory_space<vmem>>, %arg8: memref<2x128xf32, #tpu.memory_space<vmem>>) attributes {dimension_semantics = [], scalar_prefetch = 0 : i64, scratch_operands = 0 : i64, tpu.core_type = #tpu.core_type<tc>} {
    %c0 = arith.constant 0 : index
    %c0_0 = arith.constant 0 : index
    %0 = vector.load %arg0[%c0, %c0_0] : memref<512x9xbf16, #tpu.memory_space<vmem>>, vector<512x9xbf16>
    %c0_1 = arith.constant 0 : index
    %c0_2 = arith.constant 0 : index
    %1 = vector.load %arg1[%c0_1, %c0_2] : memref<9x32xbf16, #tpu.memory_space<vmem>>, vector<9x32xbf16>
    %cst = arith.constant dense<0.000000e+00> : vector<512x32xf32>
    %2 = tpu.matmul %0, %1, %cst {dimension_numbers = #tpu.dot_dimension_numbers<[1], [0], [0], [1], [0, 0, 1, 1], [], []>} : vector<512x9xbf16>, vector<9x32xbf16>, vector<512x32xf32> -> vector<512x32xf32>
    %c0_3 = arith.constant 0 : index
    %c0_4 = arith.constant 0 : index
    %3 = vector.load %arg2[%c0_3, %c0_4] : memref<1x32xf32, #tpu.memory_space<vmem>>, vector<1x32xf32>
    %4 = vector.broadcast %3 : vector<1x32xf32> to vector<512x32xf32>
    %5 = arith.addf %2, %4 : vector<512x32xf32>
    %cst_5 = arith.constant 0.000000e+00 : f32
    %6 = vector.broadcast %cst_5 : f32 to vector<512x32xf32>
    %7 = arith.maximumf %5, %6 : vector<512x32xf32>
    %8 = arith.truncf %7 : vector<512x32xf32> to vector<512x32xbf16>
    %c0_6 = arith.constant 0 : index
    %c0_7 = arith.constant 0 : index
    %9 = vector.load %arg3[%c0_6, %c0_7] : memref<32x2048xbf16, #tpu.memory_space<vmem>>, vector<32x2048xbf16>
    %cst_8 = arith.constant dense<0.000000e+00> : vector<512x2048xf32>
    %10 = tpu.matmul %8, %9, %cst_8 {dimension_numbers = #tpu.dot_dimension_numbers<[1], [0], [0], [1], [0, 0, 1, 1], [], []>} : vector<512x32xbf16>, vector<32x2048xbf16>, vector<512x2048xf32> -> vector<512x2048xf32>
    %c0_9 = arith.constant 0 : index
    %c0_10 = arith.constant 0 : index
    %11 = vector.load %arg4[%c0_9, %c0_10] : memref<1x2048xf32, #tpu.memory_space<vmem>>, vector<1x2048xf32>
    %12 = vector.broadcast %11 : vector<1x2048xf32> to vector<512x2048xf32>
    %13 = arith.addf %10, %12 : vector<512x2048xf32>
    %cst_11 = arith.constant 0.000000e+00 : f32
    %14 = vector.broadcast %cst_11 : f32 to vector<512x2048xf32>
    %15 = arith.maximumf %13, %14 : vector<512x2048xf32>
    %16 = vector.shape_cast %15 : vector<512x2048xf32> to vector<2x256x2048xf32>
    %cst_12 = arith.constant dense<0.000000e+00> : vector<2x2048xf32>
    %17 = vector.multi_reduction <add>, %16, %cst_12 [1] : vector<2x256x2048xf32> to vector<2x2048xf32>
    %cst_13 = arith.constant 2.560000e+02 : f32
    %18 = vector.broadcast %cst_13 : f32 to vector<2x2048xf32>
    %19 = arith.divf %17, %18 : vector<2x2048xf32>
    %c0_14 = arith.constant 0 : index
    %c0_15 = arith.constant 0 : index
    %20 = vector.load %arg7[%c0_14, %c0_15] : memref<2x2048xf32, #tpu.memory_space<vmem>>, vector<2x2048xf32>
    tpu.vector_store %arg7[%c0_14, %c0_15], %19 {strides = array<i32>} : memref<2x2048xf32, #tpu.memory_space<vmem>>, vector<2x2048xf32>,
    %21 = arith.truncf %19 : vector<2x2048xf32> to vector<2x2048xbf16>
    %c0_16 = arith.constant 0 : index
    %c0_17 = arith.constant 0 : index
    %22 = vector.load %arg5[%c0_16, %c0_17] : memref<2048x128xbf16, #tpu.memory_space<vmem>>, vector<2048x128xbf16>
    %cst_18 = arith.constant dense<0.000000e+00> : vector<2x128xf32>
    %23 = tpu.matmul %21, %22, %cst_18 {dimension_numbers = #tpu.dot_dimension_numbers<[1], [0], [0], [1], [0, 0, 1, 1], [], []>} : vector<2x2048xbf16>, vector<2048x128xbf16>, vector<2x128xf32> -> vector<2x128xf32>
    %c0_19 = arith.constant 0 : index
    %c0_20 = arith.constant 0 : index
    %24 = vector.load %arg6[%c0_19, %c0_20] : memref<1x128xf32, #tpu.memory_space<vmem>>, vector<1x128xf32>
    %25 = vector.broadcast %24 : vector<1x128xf32> to vector<2x128xf32>
    %26 = arith.addf %23, %25 : vector<2x128xf32>
    %c0_21 = arith.constant 0 : index
    %c0_22 = arith.constant 0 : index
    %27 = vector.load %arg8[%c0_21, %c0_22] : memref<2x128xf32, #tpu.memory_space<vmem>>, vector<2x128xf32>
    tpu.vector_store %arg8[%c0_21, %c0_22], %26 {strides = array<i32>} : memref<2x128xf32, #tpu.memory_space<vmem>>, vector<2x128xf32>,
    return
  }
}

</mosaic_0001>

<llo_original>
// kernel: hawkears_one_forward.1
$region0: #{hawkears_one_forward.1}
  #allocation0 [shape = 'u32[]', space=smem, size = 0x4, offset = 0x4, fixed_abs, tag = 'smem constant byte address 0x4 - core index']
  #allocation1 [shape = 'u32[144,128]{1,0:T(1,128)}', space=vmem, size = 0x12000, scoped, tag = 'internal scratch']
  %s0 = inlined_call_operand.vmem [shape: bf16[512,9], index: 0, kind: input, shape index: {}]
  %s1 = inlined_call_operand.vmem [shape: bf16[9,32], index: 1, kind: input, shape index: {}]
  %s2 = inlined_call_operand.vmem [shape: f32[1,32], index: 2, kind: input, shape index: {}]
  %s3 = inlined_call_operand.vmem [shape: bf16[32,2048], index: 3, kind: input, shape index: {}]
  %s4 = inlined_call_operand.vmem [shape: f32[1,2048], index: 4, kind: input, shape index: {}]
  %s5 = inlined_call_operand.hbm [shape: bf16[2048,128], index: 5, kind: input, shape index: {}]
  %s6 = inlined_call_operand.vmem [shape: f32[1,128], index: 6, kind: input, shape index: {}]
  %s7 = inlined_call_operand.hbm [shape: f32[2,2048], index: 7, kind: output, shape index: {0}]
  %s8 = inlined_call_operand.hbm [shape: f32[2,128], index: 8, kind: output, shape index: {1}]
  %9 = xla_tuple %s7, %s8
  %s10 = sld [smem:[#allocation0]]
  $region50: #{hawkears_one_forward.1} parent=0
    _
  %s12 = ssub.s32 1, %s10
  %s13 = scalar_select 0, %s12, %s10
  $region1: #{hawkears_one_forward.1} parent=0
    #allocation2 [shape = 'u8[524288]{0}', space=vmem, size = 0x80000, scoped, tag = 'input window, operand 5, single buffered']
    #allocation3 [shape = 's32[1]{0}', space=sflag, size = 0x4, scoped, tag = 'scoped memory for hawkears_one_forward.1']
    #allocation4 [shape = 's32[1]{0}', space=sflag, size = 0x4, scoped, tag = 'scoped memory for hawkears_one_forward.1']
    #allocation5 [shape = 'u8[16384]{0}', space=vmem, size = 0x4000, scoped, tag = 'output window, operand 0, single buffered']
    #allocation6 [shape = 'u8[1024]{0}', space=vmem, size = 0x400, scoped, tag = 'output window, operand 1, single buffered']
    #allocation7 [shape = 's32[1]{0}', space=sflag, size = 0x4, scoped, tag = 'scoped memory for hawkears_one_forward.1']
    %14 = vsyncpa [#allocation3], 0
    %15 = vsyncpa [#allocation4], 0
    %16 = vsyncpa [#allocation7], 0
    // Predicated region
    $region2: #{hawkears_one_forward.1} parent=1 // pred_check
      _
    $region3: #{hawkears_one_forward.1} parent=1 // pred_check_branch
      %18 = sbr.rel (0) target = $region5
    $region4: #{hawkears_one_forward.1} parent=1 // pred_region
      _
    $region5: #{hawkears_one_forward.1} parent=1 // pred_fallthru
      _
    // Predicated region
    $region6: #{hawkears_one_forward.1} parent=1 // pred_check
      _
    $region7: #{hawkears_one_forward.1} parent=1 // pred_check_branch
      %20 = sbr.rel (0) target = $region9
    $region8: #{hawkears_one_forward.1} parent=1 // pred_region
      _
    $region9: #{hawkears_one_forward.1} parent=1 // pred_fallthru
      _
    // Predicated region
    $region10: #{hawkears_one_forward.1} parent=1 // pred_check
      _
    $region11: #{hawkears_one_forward.1} parent=1 // pred_check_branch
      %22 = sbr.rel (0) target = $region13
    $region12: #{hawkears_one_forward.1} parent=1 // pred_region
      _
    $region13: #{hawkears_one_forward.1} parent=1 // pred_fallthru
      _
    // Predicated region
    $region14: #{hawkears_one_forward.1} parent=1 // pred_check
      _
    $region15: #{hawkears_one_forward.1} parent=1 // pred_check_branch
      %24 = sbr.rel (0) target = $region17
    $region16: #{hawkears_one_forward.1} parent=1 // pred_region
      _
    $region17: #{hawkears_one_forward.1} parent=1 // pred_fallthru
      _
    // Predicated region
    $region18: #{hawkears_one_forward.1} parent=1 // pred_check
      _
    $region19: #{hawkears_one_forward.1} parent=1 // pred_check_branch
      %26 = sbr.rel (0) target = $region21
    $region20: #{hawkears_one_forward.1} parent=1 // pred_region
      _
    $region21: #{hawkears_one_forward.1} parent=1 // pred_fallthru
      _
    // Predicated region
    $region22: #{hawkears_one_forward.1} parent=1 // pred_check
      _
    $region23: #{hawkears_one_forward.1} parent=1 // pred_check_branch
      %28 = sbr.rel (0) target = $region25
    $region24: #{hawkears_one_forward.1} parent=1 // pred_region
      %s30 = ssub.s32 16384, 16384
      %31 = vsyncadd [#allocation3], %s30
      %s32 = sshll.u32 [#allocation2], 4
      %s33 = int_to_ptr.vmem [resolvable:$true] %s32
      %38 = dma.hbm_to_vmem [thread:$0]  %s5, 16384, %s33, [#allocation3], 64, 64, 4
    $region25: #{hawkears_one_forward.1} parent=1 // pred_fallthru
      _
    // Predicated region
    $region26: #{hawkears_one_forward.1} parent=1 // pred_check
      _
    $region27: #{hawkears_one_forward.1} parent=1 // pred_check_branch
      %40 = sbr.rel (0) target = $region29
    $region28: #{hawkears_one_forward.1} parent=1 // pred_region
      _
    $region29: #{hawkears_one_forward.1} parent=1 // pred_fallthru
      _
    // Predicated region
    $region30: #{hawkears_one_forward.1} parent=1 // pred_check
      _
    $region31: #{hawkears_one_forward.1} parent=1 // pred_check_branch
      %42 = sbr.rel (0) target = $region33
    $region32: #{hawkears_one_forward.1} parent=1 // pred_region
      %43 = dma.done [#allocation3], 16384
    $region33: #{hawkears_one_forward.1} parent=1 // pred_fallthru
      _
    %v45 = vld [vmem:[%s0] sm:$0xf]
    %v46 = vld [vmem:[%s0 + $0x4] sm:$0xf]
    %v47 = vld [vmem:[%s0 + $0x8] sm:$0xf]
    %v48 = vld [vmem:[%s0 + $0xc] sm:$0xf]
    %v49 = vld [vmem:[%s0 + $0x10] sm:$0xf]
    %v50 = vld [vmem:[%s0 + $0x14] sm:$0xf]
    %v51 = vld [vmem:[%s0 + $0x18] sm:$0xf]
    %v52 = vld [vmem:[%s0 + $0x1c] sm:$0xf]
    %v53 = vld [vmem:[%s0 + $0x20] sm:$0xf]
    %v54 = vld [vmem:[%s0 + $0x24] sm:$0xf]
    %v55 = vld [vmem:[%s0 + $0x28] sm:$0xf]
    %v56 = vld [vmem:[%s0 + $0x2c] sm:$0xf]
    %v57 = vld [vmem:[%s0 + $0x30] sm:$0xf]
    %v58 = vld [vmem:[%s0 + $0x34] sm:$0xf]
    %v59 = vld [vmem:[%s0 + $0x38] sm:$0xf]
    %v60 = vld [vmem:[%s0 + $0x3c] sm:$0xf]
    %v61 = vld [vmem:[%s0 + $0x40] sm:$0xf]
    %v62 = vld [vmem:[%s0 + $0x44] sm:$0xf]
    %v63 = vld [vmem:[%s0 + $0x48] sm:$0xf]
    %v64 = vld [vmem:[%s0 + $0x4c] sm:$0xf]
    %v65 = vld [vmem:[%s0 + $0x50] sm:$0xf]
    %v66 = vld [vmem:[%s0 + $0x54] sm:$0xf]
    %v67 = vld [vmem:[%s0 + $0x58] sm:$0xf]
    %v68 = vld [vmem:[%s0 + $0x5c] sm:$0xf]
    %v69 = vld [vmem:[%s0 + $0x60] sm:$0xf]
    %v70 = vld [vmem:[%s0 + $0x64] sm:$0xf]
    %v71 = vld [vmem:[%s0 + $0x68] sm:$0xf]
    %v72 = vld [vmem:[%s0 + $0x6c] sm:$0xf]
    %v73 = vld [vmem:[%s0 + $0x70] sm:$0xf]
    %v74 = vld [vmem:[%s0 + $0x74] sm:$0xf]
    %v75 = vld [vmem:[%s0 + $0x78] sm:$0xf]
    %v76 = vld [vmem:[%s0 + $0x7c] sm:$0xf]
    %v77 = vld [vmem:[%s0 + $0x80] sm:$0xf]
    %v78 = vld [vmem:[%s0 + $0x84] sm:$0xf]
    %v79 = vld [vmem:[%s0 + $0x88] sm:$0xf]
    %v80 = vld [vmem:[%s0 + $0x8c] sm:$0xf]
    %v81 = vld [vmem:[%s0 + $0x90] sm:$0xf]
    %v82 = vld [vmem:[%s0 + $0x94] sm:$0xf]
    %v83 = vld [vmem:[%s0 + $0x98] sm:$0xf]
    %v84 = vld [vmem:[%s0 + $0x9c] sm:$0xf]
    %v85 = vld [vmem:[%s0 + $0xa0] sm:$0xf]
    %v86 = vld [vmem:[%s0 + $0xa4] sm:$0xf]
    %v87 = vld [vmem:[%s0 + $0xa8] sm:$0xf]
    %v88 = vld [vmem:[%s0 + $0xac] sm:$0xf]
    %v89 = vld [vmem:[%s0 + $0xb0] sm:$0xf]
    %v90 = vld [vmem:[%s0 + $0xb4] sm:$0xf]
    %v91 = vld [vmem:[%s0 + $0xb8] sm:$0xf]
    %v92 = vld [vmem:[%s0 + $0xbc] sm:$0xf]
    %v93 = vld [vmem:[%s0 + $0xc0] sm:$0xf]
    %v94 = vld [vmem:[%s0 + $0xc4] sm:$0xf]
    %v95 = vld [vmem:[%s0 + $0xc8] sm:$0xf]
    %v96 = vld [vmem:[%s0 + $0xcc] sm:$0xf]
    %v97 = vld [vmem:[%s0 + $0xd0] sm:$0xf]
    %v98 = vld [vmem:[%s0 + $0xd4] sm:$0xf]
    %v99 = vld [vmem:[%s0 + $0xd8] sm:$0xf]
    %v100 = vld [vmem:[%s0 + $0xdc] sm:$0xf]
    %v101 = vld [vmem:[%s0 + $0xe0] sm:$0xf]
    %v102 = vld [vmem:[%s0 + $0xe4] sm:$0xf]
    %v103 = vld [vmem:[%s0 + $0xe8] sm:$0xf]
    %v104 = vld [vmem:[%s0 + $0xec] sm:$0xf]
    %v105 = vld [vmem:[%s0 + $0xf0] sm:$0xf]
    %v106 = vld [vmem:[%s0 + $0xf4] sm:$0xf]
    %v107 = vld [vmem:[%s0 + $0xf8] sm:$0xf]
    %v108 = vld [vmem:[%s0 + $0xfc] sm:$0xf]
    %v109 = vld [vmem:[%s1] sm:$0xf]
    %v110 = vld [vmem:[%s1 + $0x4] sm:$0x1]
    %v111 = vld [vmem:[%s2] sm:$0x1]
    %v113 = vlaneseq
    %v114 = vshrl.u32 %v113, 7
    %v115 = vsub.s32 0, %v114
    %v116 = vrot.slane %v111, %v115
    %v182 = vunpack.c.l.b16 %v45
    %v183 = vunpack.c.l.b16 %v46
    %v184 = vunpack.c.l.b16 %v47
    %v185 = vunpack.c.l.b16 %v48
    %v186 = vunpack.c.l.b16 %v49
    %v187 = vunpack.c.l.b16 %v50
    %v188 = vunpack.c.l.b16 %v51
    %v189 = vunpack.c.l.b16 %v52
    %v190 = vunpack.c.l.b16 %v53
    %v191 = vunpack.c.l.b16 %v54
    %v192 = vunpack.c.l.b16 %v55
    %v193 = vunpack.c.l.b16 %v56
    %v194 = vunpack.c.l.b16 %v57
    %v195 = vunpack.c.l.b16 %v58
    %v196 = vunpack.c.l.b16 %v59
    %v197 = vunpack.c.l.b16 %v60
    %v198 = vunpack.c.l.b16 %v61
    %v199 = vunpack.c.l.b16 %v62
    %v200 = vunpack.c.l.b16 %v63
    %v201 = vunpack.c.l.b16 %v64
    %v202 = vunpack.c.l.b16 %v65
    %v203 = vunpack.c.l.b16 %v66
    %v204 = vunpack.c.l.b16 %v67
    %v205 = vunpack.c.l.b16 %v68
    %v206 = vunpack.c.l.b16 %v69
    %v207 = vunpack.c.l.b16 %v70
    %v208 = vunpack.c.l.b16 %v71
    %v209 = vunpack.c.l.b16 %v72
    %v210 = vunpack.c.l.b16 %v73
    %v211 = vunpack.c.l.b16 %v74
    %v212 = vunpack.c.l.b16 %v75
    %v213 = vunpack.c.l.b16 %v76
    %v214 = vunpack.c.l.b16 %v77
    %v215 = vunpack.c.l.b16 %v78
    %v216 = vunpack.c.l.b16 %v79
    %v217 = vunpack.c.l.b16 %v80
    %v218 = vunpack.c.l.b16 %v81
    %v219 = vunpack.c.l.b16 %v82
    %v220 = vunpack.c.l.b16 %v83
    %v221 = vunpack.c.l.b16 %v84
    %v222 = vunpack.c.l.b16 %v85
    %v223 = vunpack.c.l.b16 %v86
    %v224 = vunpack.c.l.b16 %v87
    %v225 = vunpack.c.l.b16 %v88
    %v226 = vunpack.c.l.b16 %v89
    %v227 = vunpack.c.l.b16 %v90
    %v228 = vunpack.c.l.b16 %v91
    %v229 = vunpack.c.l.b16 %v92
    %v230 = vunpack.c.l.b16 %v93
    %v231 = vunpack.c.l.b16 %v94
    %v232 = vunpack.c.l.b16 %v95
    %v233 = vunpack.c.l.b16 %v96
    %v234 = vunpack.c.l.b16 %v97
    %v235 = vunpack.c.l.b16 %v98
    %v236 = vunpack.c.l.b16 %v99
    %v237 = vunpack.c.l.b16 %v100
    %v238 = vunpack.c.l.b16 %v101
    %v239 = vunpack.c.l.b16 %v102
    %v240 = vunpack.c.l.b16 %v103
    %v241 = vunpack.c.l.b16 %v104
    %v242 = vunpack.c.l.b16 %v105
    %v243 = vunpack.c.l.b16 %v106
    %v244 = vunpack.c.l.b16 %v107
    %v245 = vunpack.c.l.b16 %v108
    %v246 = vpack.c.b16 %v183, %v182
    %v247 = vpack.c.b16 %v185, %v184
    %v248 = vpack.c.b16 %v187, %v186
    %v249 = vpack.c.b16 %v189, %v188
    %v250 = vpack.c.b16 %v191, %v190
    %v251 = vpack.c.b16 %v193, %v192
    %v252 = vpack.c.b16 %v195, %v194
    %v253 = vpack.c.b16 %v197, %v196
    %v254 = vpack.c.b16 %v199, %v198
    %v255 = vpack.c.b16 %v201, %v200
    %v256 = vpack.c.b16 %v203, %v202
    %v257 = vpack.c.b16 %v205, %v204
    %v258 = vpack.c.b16 %v207, %v206
    %v259 = vpack.c.b16 %v209, %v208
    %v260 = vpack.c.b16 %v211, %v210
    %v261 = vpack.c.b16 %v213, %v212
    %v262 = vpack.c.b16 %v215, %v214
    %v263 = vpack.c.b16 %v217, %v216
    %v264 = vpack.c.b16 %v219, %v218
    %v265 = vpack.c.b16 %v221, %v220
    %v266 = vpack.c.b16 %v223, %v222
    %v267 = vpack.c.b16 %v225, %v224
    %v268 = vpack.c.b16 %v227, %v226
    %v269 = vpack.c.b16 %v229, %v228
    %v270 = vpack.c.b16 %v231, %v230
    %v271 = vpack.c.b16 %v233, %v232
    %v272 = vpack.c.b16 %v235, %v234
    %v273 = vpack.c.b16 %v237, %v236
    %v274 = vpack.c.b16 %v239, %v238
    %v275 = vpack.c.b16 %v241, %v240
    %v276 = vpack.c.b16 %v243, %v242
    %v277 = vpack.c.b16 %v245, %v244
    %v280 = vunpack.c.l.b16 %v109
    %v281 = vunpack.c.l.b16 %v110
    %v282 = vpack.c.b16 %v281, %v280
    %vm283 = vcmask 72704
    %v285 = vsel %vm283, %v246, 0
    %v288 = vsel %vm283, %v247, 0
    %v291 = vsel %vm283, %v248, 0
    %v294 = vsel %vm283, %v249, 0
    %v297 = vsel %vm283, %v250, 0
    %v300 = vsel %vm283, %v251, 0
    %v303 = vsel %vm283, %v252, 0
    %v306 = vsel %vm283, %v253, 0
    %v309 = vsel %vm283, %v254, 0
    %v312 = vsel %vm283, %v255, 0
    %v315 = vsel %vm283, %v256, 0
    %v318 = vsel %vm283, %v257, 0
    %v321 = vsel %vm283, %v258, 0
    %v324 = vsel %vm283, %v259, 0
    %v327 = vsel %vm283, %v260, 0
    %v330 = vsel %vm283, %v261, 0
    %v333 = vsel %vm283, %v262, 0
    %v336 = vsel %vm283, %v263, 0
    %v339 = vsel %vm283, %v264, 0
    %v342 = vsel %vm283, %v265, 0
    %v345 = vsel %vm283, %v266, 0
    %v348 = vsel %vm283, %v267, 0
    %v351 = vsel %vm283, %v268, 0
    %v354 = vsel %vm283, %v269, 0
    %v357 = vsel %vm283, %v270, 0
    %v360 = vsel %vm283, %v271, 0
    %v363 = vsel %vm283, %v272, 0
    %v366 = vsel %vm283, %v273, 0
    %v369 = vsel %vm283, %v274, 0
    %v372 = vsel %vm283, %v275, 0
    %v375 = vsel %vm283, %v276, 0
    %v378 = vsel %vm283, %v277, 0
    %vm380 = vcmask 1043456
    %vm381 = vcmask 1044480
    %v382 = vsel %vm380, 4294967295, 65535
    %v383 = vsel %vm381, %v382, 0
    %v385 = vand.u32 %v282, %v383
    %387 = vmatprep.subr.bf16.mxu0 0
    %388 = vmatpush1.bf16.msra.mxu0 0
    %389 = vmatprep.subr.bf16.mxu0 0
    %390 = vmatpush1.bf16.msra.mxu0 0
    %391 = vmatprep.subr.bf16.mxu0 0
    %392 = vmatpush1.bf16.msra.mxu0 0
    %393 = vmatprep.subr.bf16.mxu0 0
    %394 = vmatpush1.bf16.msra.mxu0 0
    %395 = vmatprep.subr.bf16.mxu0 0
    %396 = vmatpush1.bf16.msra.mxu0 0
    %397 = vmatprep.subr.bf16.mxu0 0
    %398 = vmatpush1.bf16.msra.mxu0 0
    %399 = vmatprep.subr.bf16.mxu0 0
    %400 = vmatpush1.bf16.msra.mxu0 0
    %401 = vmatprep.subr.bf16.mxu0 0
    %402 = vmatpush1.bf16.msra.mxu0 %v385
    %403 = vmatprep.subr.bf16.mxu0 0
    %404 = vmatpush2.bf16.msra.mxu0 0
    %405 = vmatprep.subr.bf16.mxu0 0
    %406 = vmatpush2.bf16.msra.mxu0 0
    %407 = vmatprep.subr.bf16.mxu0 0
    %408 = vmatpush2.bf16.msra.mxu0 0
    %409 = vmatprep.subr.bf16.mxu0 0
    %410 = vmatpush2.bf16.msra.mxu0 0
    %411 = vmatprep.subr.bf16.mxu0 0
    %412 = vmatpush2.bf16.msra.mxu0 0
    %413 = vmatprep.subr.bf16.mxu0 0
    %414 = vmatpush2.bf16.msra.mxu0 0
    %415 = vmatprep.subr.bf16.mxu0 0
    %416 = vmatpush2.bf16.msra.mxu0 0
    %417 = vmatprep.subr.bf16.mxu0 0
    %418 = vmatpush2.bf16.msra.mxu0 0
    %419 = vmatprep.mubr.bf16.mxu0 0
    %420 = vmatmul.mubr.bf16.gmra.mxu0 %v285
    %v421 = vpop.f32.mrf.mxu0
    %v422 = vadd.f32 %v116, %v421
    %v423 = vpop.f32.mrf.mxu0
    %v424 = vpop.f32.mrf.mxu0
    %v425 = vadd.f32 %v116, %v424
    %v426 = vpop.f32.mrf.mxu0
    %427 = vmatprep.mubr.bf16.mxu0 0
    %428 = vmatmul.mubr.bf16.gmra.mxu0 %v288
    %v429 = vpop.f32.mrf.mxu0
    %v430 = vadd.f32 %v116, %v429
    %v431 = vpop.f32.mrf.mxu0
    %v432 = vpop.f32.mrf.mxu0
    %v433 = vadd.f32 %v116, %v432
    %v434 = vpop.f32.mrf.mxu0
    %435 = vmatprep.mubr.bf16.mxu0 0
    %436 = vmatmul.mubr.bf16.gmra.mxu0 %v291
    %v437 = vpop.f32.mrf.mxu0
    %v438 = vadd.f32 %v116, %v437
    %v439 = vpop.f32.mrf.mxu0
    %v440 = vpop.f32.mrf.mxu0
    %v441 = vadd.f32 %v116, %v440
    %v442 = vpop.f32.mrf.mxu0
    %443 = vmatprep.mubr.bf16.mxu0 0
    %444 = vmatmul.mubr.bf16.gmra.mxu0 %v294
    %v445 = vpop.f32.mrf.mxu0
    %v446 = vadd.f32 %v116, %v445
    %v447 = vpop.f32.mrf.mxu0
    %v448 = vpop.f32.mrf.mxu0
    %v449 = vadd.f32 %v116, %v448
    %v450 = vpop.f32.mrf.mxu0
    %451 = vmatprep.mubr.bf16.mxu0 0
    %452 = vmatmul.mubr.bf16.gmra.mxu0 %v297
    %v453 = vpop.f32.mrf.mxu0
    %v454 = vadd.f32 %v116, %v453
    %v455 = vpop.f32.mrf.mxu0
    %v456 = vpop.f32.mrf.mxu0
    %v457 = vadd.f32 %v116, %v456
    %v458 = vpop.f32.mrf.mxu0
    %459 = vmatprep.mubr.bf16.mxu0 0
    %460 = vmatmul.mubr.bf16.gmra.mxu0 %v300
    %v461 = vpop.f32.mrf.mxu0
    %v462 = vadd.f32 %v116, %v461
    %v463 = vpop.f32.mrf.mxu0
    %v464 = vpop.f32.mrf.mxu0
    %v465 = vadd.f32 %v116, %v464
    %v466 = vpop.f32.mrf.mxu0
    %467 = vmatprep.mubr.bf16.mxu0 0
    %468 = vmatmul.mubr.bf16.gmra.mxu0 %v303
    %v469 = vpop.f32.mrf.mxu0
    %v470 = vadd.f32 %v116, %v469
    %v471 = vpop.f32.mrf.mxu0
    %v472 = vpop.f32.mrf.mxu0
    %v473 = vadd.f32 %v116, %v472
    %v474 = vpop.f32.mrf.mxu0
    %475 = vmatprep.mubr.bf16.mxu0 0
    %476 = vmatmul.mubr.bf16.gmra.mxu0 %v306
    %v477 = vpop.f32.mrf.mxu0
    %v478 = vadd.f32 %v116, %v477
    %v479 = vpop.f32.mrf.mxu0
    %v480 = vpop.f32.mrf.mxu0
    %v481 = vadd.f32 %v116, %v480
    %v482 = vpop.f32.mrf.mxu0
    %483 = vmatprep.mubr.bf16.mxu0 0
    %484 = vmatmul.mubr.bf16.gmra.mxu0 %v309
    %v485 = vpop.f32.mrf.mxu0
    %v486 = vadd.f32 %v116, %v485
    %v487 = vpop.f32.mrf.mxu0
    %v488 = vpop.f32.mrf.mxu0
    %v489 = vadd.f32 %v116, %v488
    %v490 = vpop.f32.mrf.mxu0
    %491 = vmatprep.mubr.bf16.mxu0 0
    %492 = vmatmul.mubr.bf16.gmra.mxu0 %v312
    %v493 = vpop.f32.mrf.mxu0
    %v494 = vadd.f32 %v116, %v493
    %v495 = vpop.f32.mrf.mxu0
    %v496 = vpop.f32.mrf.mxu0
    %v497 = vadd.f32 %v116, %v496
    %v498 = vpop.f32.mrf.mxu0
    %499 = vmatprep.mubr.bf16.mxu0 0
    %500 = vmatmul.mubr.bf16.gmra.mxu0 %v315
    %v501 = vpop.f32.mrf.mxu0
    %v502 = vadd.f32 %v116, %v501
    %v503 = vpop.f32.mrf.mxu0
    %v504 = vpop.f32.mrf.mxu0
    %v505 = vadd.f32 %v116, %v504
    %v506 = vpop.f32.mrf.mxu0
    %507 = vmatprep.mubr.bf16.mxu0 0
    %508 = vmatmul.mubr.bf16.gmra.mxu0 %v318
    %v509 = vpop.f32.mrf.mxu0
    %v510 = vadd.f32 %v116, %v509
    %v511 = vpop.f32.mrf.mxu0
    %v512 = vpop.f32.mrf.mxu0
    %v513 = vadd.f32 %v116, %v512
    %v514 = vpop.f32.mrf.mxu0
    %515 = vmatprep.mubr.bf16.mxu0 0
    %516 = vmatmul.mubr.bf16.gmra.mxu0 %v321
    %v517 = vpop.f32.mrf.mxu0
    %v518 = vadd.f32 %v116, %v517
    %v519 = vpop.f32.mrf.mxu0
    %v520 = vpop.f32.mrf.mxu0
    %v521 = vadd.f32 %v116, %v520
    %v522 = vpop.f32.mrf.mxu0
    %523 = vmatprep.mubr.bf16.mxu0 0
    %524 = vmatmul.mubr.bf16.gmra.mxu0 %v324
    %v525 = vpop.f32.mrf.mxu0
    %v526 = vadd.f32 %v116, %v525
    %v527 = vpop.f32.mrf.mxu0
    %v528 = vpop.f32.mrf.mxu0
    %v529 = vadd.f32 %v116, %v528
    %v530 = vpop.f32.mrf.mxu0
    %531 = vmatprep.mubr.bf16.mxu0 0
    %532 = vmatmul.mubr.bf16.gmra.mxu0 %v327
    %v533 = vpop.f32.mrf.mxu0
    %v534 = vadd.f32 %v116, %v533
    %v535 = vpop.f32.mrf.mxu0
    %v536 = vpop.f32.mrf.mxu0
    %v537 = vadd.f32 %v116, %v536
    %v538 = vpop.f32.mrf.mxu0
    %539 = vmatprep.mubr.bf16.mxu0 0
    %540 = vmatmul.mubr.bf16.gmra.mxu0 %v330
    %v541 = vpop.f32.mrf.mxu0
    %v542 = vadd.f32 %v116, %v541
    %v543 = vpop.f32.mrf.mxu0
    %v544 = vpop.f32.mrf.mxu0
    %v545 = vadd.f32 %v116, %v544
    %v546 = vpop.f32.mrf.mxu0
    %547 = vmatprep.mubr.bf16.mxu0 0
    %548 = vmatmul.mubr.bf16.gmra.mxu0 %v333
    %v549 = vpop.f32.mrf.mxu0
    %v550 = vadd.f32 %v116, %v549
    %v551 = vpop.f32.mrf.mxu0
    %v552 = vpop.f32.mrf.mxu0
    %v553 = vadd.f32 %v116, %v552
    %v554 = vpop.f32.mrf.mxu0
    %555 = vmatprep.mubr.bf16.mxu0 0
    %556 = vmatmul.mubr.bf16.gmra.mxu0 %v336
    %v557 = vpop.f32.mrf.mxu0
    %v558 = vadd.f32 %v116, %v557
    %v559 = vpop.f32.mrf.mxu0
    %v560 = vpop.f32.mrf.mxu0
    %v561 = vadd.f32 %v116, %v560
    %v562 = vpop.f32.mrf.mxu0
    %563 = vmatprep.mubr.bf16.mxu0 0
    %564 = vmatmul.mubr.bf16.gmra.mxu0 %v339
    %v565 = vpop.f32.mrf.mxu0
    %v566 = vadd.f32 %v116, %v565
    %v567 = vpop.f32.mrf.mxu0
    %v568 = vpop.f32.mrf.mxu0
    %v569 = vadd.f32 %v116, %v568
    %v570 = vpop.f32.mrf.mxu0
    %571 = vmatprep.mubr.bf16.mxu0 0
    %572 = vmatmul.mubr.bf16.gmra.mxu0 %v342
    %v573 = vpop.f32.mrf.mxu0
    %v574 = vadd.f32 %v116, %v573
    %v575 = vpop.f32.mrf.mxu0
    %v576 = vpop.f32.mrf.mxu0
    %v577 = vadd.f32 %v116, %v576
    %v578 = vpop.f32.mrf.mxu0
    %579 = vmatprep.mubr.bf16.mxu0 0
    %580 = vmatmul.mubr.bf16.gmra.mxu0 %v345
    %v581 = vpop.f32.mrf.mxu0
    %v582 = vadd.f32 %v116, %v581
    %v583 = vpop.f32.mrf.mxu0
    %v584 = vpop.f32.mrf.mxu0
    %v585 = vadd.f32 %v116, %v584
    %v586 = vpop.f32.mrf.mxu0
    %587 = vmatprep.mubr.bf16.mxu0 0
    %588 = vmatmul.mubr.bf16.gmra.mxu0 %v348
    %v589 = vpop.f32.mrf.mxu0
    %v590 = vadd.f32 %v116, %v589
    %v591 = vpop.f32.mrf.mxu0
    %v592 = vpop.f32.mrf.mxu0
    %v593 = vadd.f32 %v116, %v592
    %v594 = vpop.f32.mrf.mxu0
    %595 = vmatprep.mubr.bf16.mxu0 0
    %596 = vmatmul.mubr.bf16.gmra.mxu0 %v351
    %v597 = vpop.f32.mrf.mxu0
    %v598 = vadd.f32 %v116, %v597
    %v599 = vpop.f32.mrf.mxu0
    %v600 = vpop.f32.mrf.mxu0
    %v601 = vadd.f32 %v116, %v600
    %v602 = vpop.f32.mrf.mxu0
    %603 = vmatprep.mubr.bf16.mxu0 0
    %604 = vmatmul.mubr.bf16.gmra.mxu0 %v354
    %v605 = vpop.f32.mrf.mxu0
    %v606 = vadd.f32 %v116, %v605
    %v607 = vpop.f32.mrf.mxu0
    %v608 = vpop.f32.mrf.mxu0
    %v609 = vadd.f32 %v116, %v608
    %v610 = vpop.f32.mrf.mxu0
    %611 = vmatprep.mubr.bf16.mxu0 0
    %612 = vmatmul.mubr.bf16.gmra.mxu0 %v357
    %v613 = vpop.f32.mrf.mxu0
    %v614 = vadd.f32 %v116, %v613
    %v615 = vpop.f32.mrf.mxu0
    %v616 = vpop.f32.mrf.mxu0
    %v617 = vadd.f32 %v116, %v616
    %v618 = vpop.f32.mrf.mxu0
    %619 = vmatprep.mubr.bf16.mxu0 0
    %620 = vmatmul.mubr.bf16.gmra.mxu0 %v360
    %v621 = vpop.f32.mrf.mxu0
    %v622 = vadd.f32 %v116, %v621
    %v623 = vpop.f32.mrf.mxu0
    %v624 = vpop.f32.mrf.mxu0
    %v625 = vadd.f32 %v116, %v624
    %v626 = vpop.f32.mrf.mxu0
    %627 = vmatprep.mubr.bf16.mxu0 0
    %628 = vmatmul.mubr.bf16.gmra.mxu0 %v363
    %v629 = vpop.f32.mrf.mxu0
    %v630 = vadd.f32 %v116, %v629
    %v631 = vpop.f32.mrf.mxu0
    %v632 = vpop.f32.mrf.mxu0
    %v633 = vadd.f32 %v116, %v632
    %v634 = vpop.f32.mrf.mxu0
    %635 = vmatprep.mubr.bf16.mxu0 0
    %636 = vmatmul.mubr.bf16.gmra.mxu0 %v366
    %v637 = vpop.f32.mrf.mxu0
    %v638 = vadd.f32 %v116, %v637
    %v639 = vpop.f32.mrf.mxu0
    %v640 = vpop.f32.mrf.mxu0
    %v641 = vadd.f32 %v116, %v640
    %v642 = vpop.f32.mrf.mxu0
    %643 = vmatprep.mubr.bf16.mxu0 0
    %644 = vmatmul.mubr.bf16.gmra.mxu0 %v369
    %v645 = vpop.f32.mrf.mxu0
    %v646 = vadd.f32 %v116, %v645
    %v647 = vpop.f32.mrf.mxu0
    %v648 = vpop.f32.mrf.mxu0
    %v649 = vadd.f32 %v116, %v648
    %v650 = vpop.f32.mrf.mxu0
    %651 = vmatprep.mubr.bf16.mxu0 0
    %652 = vmatmul.mubr.bf16.gmra.mxu0 %v372
    %v653 = vpop.f32.mrf.mxu0
    %v654 = vadd.f32 %v116, %v653
    %v655 = vpop.f32.mrf.mxu0
    %v656 = vpop.f32.mrf.mxu0
    %v657 = vadd.f32 %v116, %v656
    %v658 = vpop.f32.mrf.mxu0
    %659 = vmatprep.mubr.bf16.mxu0 0
    %660 = vmatmul.mubr.bf16.gmra.mxu0 %v375
    %v661 = vpop.f32.mrf.mxu0
    %v662 = vadd.f32 %v116, %v661
    %v663 = vpop.f32.mrf.mxu0
    %v664 = vpop.f32.mrf.mxu0
    %v665 = vadd.f32 %v116, %v664
    %v666 = vpop.f32.mrf.mxu0
    %667 = vmatprep.mubr.bf16.mxu0 0
    %668 = vmatmul.mubr.bf16.gmra.mxu0 %v378
    %v669 = vpop.f32.mrf.mxu0
    %v670 = vadd.f32 %v116, %v669
    %v671 = vpop.f32.mrf.mxu0
    %v672 = vpop.f32.mrf.mxu0
    %v673 = vadd.f32 %v116, %v672
    %v674 = vpop.f32.mrf.mxu0
    %675 = vdwg.mxu0
    %v676 = vmax.f32 %v422, 0.0
    %v677 = vmax.f32 %v425, 0.0
    %v678 = vmax.f32 %v430, 0.0
    %v679 = vmax.f32 %v433, 0.0
    %v680 = vmax.f32 %v438, 0.0
    %v681 = vmax.f32 %v441, 0.0
    %v682 = vmax.f32 %v446, 0.0
    %v683 = vmax.f32 %v449, 0.0
    %v684 = vmax.f32 %v454, 0.0
    %v685 = vmax.f32 %v457, 0.0
    %v686 = vmax.f32 %v462, 0.0
    %v687 = vmax.f32 %v465, 0.0
    %v688 = vmax.f32 %v470, 0.0
    %v689 = vmax.f32 %v473, 0.0
    %v690 = vmax.f32 %v478, 0.0
    %v691 = vmax.f32 %v481, 0.0
    %v692 = vmax.f32 %v486, 0.0
    %v693 = vmax.f32 %v489, 0.0
    %v694 = vmax.f32 %v494, 0.0
    %v695 = vmax.f32 %v497, 0.0
    %v696 = vmax.f32 %v502, 0.0
    %v697 = vmax.f32 %v505, 0.0
    %v698 = vmax.f32 %v510, 0.0
    %v699 = vmax.f32 %v513, 0.0
    %v700 = vmax.f32 %v518, 0.0
    %v701 = vmax.f32 %v521, 0.0
    %v702 = vmax.f32 %v526, 0.0
    %v703 = vmax.f32 %v529, 0.0
    %v704 = vmax.f32 %v534, 0.0
    %v705 = vmax.f32 %v537, 0.0
    %v706 = vmax.f32 %v542, 0.0
    %v707 = vmax.f32 %v545, 0.0
    %v708 = vmax.f32 %v550, 0.0
    %v709 = vmax.f32 %v553, 0.0
    %v710 = vmax.f32 %v558, 0.0
    %v711 = vmax.f32 %v561, 0.0
    %v712 = vmax.f32 %v566, 0.0
    %v713 = vmax.f32 %v569, 0.0
    %v714 = vmax.f32 %v574, 0.0
    %v715 = vmax.f32 %v577, 0.0
    %v716 = vmax.f32 %v582, 0.0
    %v717 = vmax.f32 %v585, 0.0
    %v718 = vmax.f32 %v590, 0.0
    %v719 = vmax.f32 %v593, 0.0
    %v720 = vmax.f32 %v598, 0.0
    %v721 = vmax.f32 %v601, 0.0
    %v722 = vmax.f32 %v606, 0.0
    %v723 = vmax.f32 %v609, 0.0
    %v724 = vmax.f32 %v614, 0.0
    %v725 = vmax.f32 %v617, 0.0
    %v726 = vmax.f32 %v622, 0.0
    %v727 = vmax.f32 %v625, 0.0
    %v728 = vmax.f32 %v630, 0.0
    %v729 = vmax.f32 %v633, 0.0
    %v730 = vmax.f32 %v638, 0.0
    %v731 = vmax.f32 %v641, 0.0
    %v732 = vmax.f32 %v646, 0.0
    %v733 = vmax.f32 %v649, 0.0
    %v734 = vmax.f32 %v654, 0.0
    %v735 = vmax.f32 %v657, 0.0
    %v736 = vmax.f32 %v662, 0.0
    %v737 = vmax.f32 %v665, 0.0
    %v738 = vmax.f32 %v670, 0.0
    %v739 = vmax.f32 %v673, 0.0
    %v740 = vpack.c.bf16 %v677, %v676
    %v741 = vpack.c.bf16 %v679, %v678
    %v742 = vpack.c.bf16 %v681, %v680
    %v743 = vpack.c.bf16 %v683, %v682
    %v744 = vpack.c.bf16 %v685, %v684
    %v745 = vpack.c.bf16 %v687, %v686
    %v746 = vpack.c.bf16 %v689, %v688
    %v747 = vpack.c.bf16 %v691, %v690
    %v748 = vpack.c.bf16 %v693, %v692
    %v749 = vpack.c.bf16 %v695, %v694
    %v750 = vpack.c.bf16 %v697, %v696
    %v751 = vpack.c.bf16 %v699, %v698
    %v752 = vpack.c.bf16 %v701, %v700
    %v753 = vpack.c.bf16 %v703, %v702
    %v754 = vpack.c.bf16 %v705, %v704
    %v755 = vpack.c.bf16 %v707, %v706
    %v756 = vpack.c.bf16 %v709, %v708
    %v757 = vpack.c.bf16 %v711, %v710
    %v758 = vpack.c.bf16 %v713, %v712
    %v759 = vpack.c.bf16 %v715, %v714
    %v760 = vpack.c.bf16 %v717, %v716
    %v761 = vpack.c.bf16 %v719, %v718
    %v762 = vpack.c.bf16 %v721, %v720
    %v763 = vpack.c.bf16 %v723, %v722
    %v764 = vpack.c.bf16 %v725, %v724
    %v765 = vpack.c.bf16 %v727, %v726
    %v766 = vpack.c.bf16 %v729, %v728
    %v767 = vpack.c.bf16 %v731, %v730
    %v768 = vpack.c.bf16 %v733, %v732
    %v769 = vpack.c.bf16 %v735, %v734
    %v770 = vpack.c.bf16 %v737, %v736
    %v771 = vpack.c.bf16 %v739, %v738
    %v772 = vld [vmem:[%s3] sm:$0xff]
    %v773 = vld [vmem:[%s3 + $0x8] sm:$0xff]
    %v774 = vld [vmem:[%s3 + $0x10] sm:$0xff]
    %v775 = vld [vmem:[%s3 + $0x18] sm:$0xff]
    %v776 = vld [vmem:[%s3 + $0x20] sm:$0xff]
    %v777 = vld [vmem:[%s3 + $0x28] sm:$0xff]
    %v778 = vld [vmem:[%s3 + $0x30] sm:$0xff]
    %v779 = vld [vmem:[%s3 + $0x38] sm:$0xff]
    %v780 = vld [vmem:[%s3 + $0x40] sm:$0xff]
    %v781 = vld [vmem:[%s3 + $0x48] sm:$0xff]
    %v782 = vld [vmem:[%s3 + $0x50] sm:$0xff]
    %v783 = vld [vmem:[%s3 + $0x58] sm:$0xff]
    %v784 = vld [vmem:[%s3 + $0x60] sm:$0xff]
    %v785 = vld [vmem:[%s3 + $0x68] sm:$0xff]
    %v786 = vld [vmem:[%s3 + $0x70] sm:$0xff]
    %v787 = vld [vmem:[%s3 + $0x78] sm:$0xff]
    %v788 = vld [vmem:[%s3 + $0x80] sm:$0xff]
    %v789 = vld [vmem:[%s3 + $0x88] sm:$0xff]
    %v790 = vld [vmem:[%s3 + $0x90] sm:$0xff]
    %v791 = vld [vmem:[%s3 + $0x98] sm:$0xff]
    %v792 = vld [vmem:[%s3 + $0xa0] sm:$0xff]
    %v793 = vld [vmem:[%s3 + $0xa8] sm:$0xff]
    %v794 = vld [vmem:[%s3 + $0xb0] sm:$0xff]
    %v795 = vld [vmem:[%s3 + $0xb8] sm:$0xff]
    %v796 = vld [vmem:[%s3 + $0xc0] sm:$0xff]
    %v797 = vld [vmem:[%s3 + $0xc8] sm:$0xff]
    %v798 = vld [vmem:[%s3 + $0xd0] sm:$0xff]
    %v799 = vld [vmem:[%s3 + $0xd8] sm:$0xff]
    %v800 = vld [vmem:[%s3 + $0xe0] sm:$0xff]
    %v801 = vld [vmem:[%s3 + $0xe8] sm:$0xff]
    %v802 = vld [vmem:[%s3 + $0xf0] sm:$0xff]
    %v803 = vld [vmem:[%s3 + $0xf8] sm:$0xff]
    %v804 = vld [vmem:[%s4] sm:$0xff]
    %v805 = vld [vmem:[%s4 + $0x8] sm:$0xff]
    %v808 = vlaneseq
    %v809 = vshrl.u32 %v808, 7
    %v810 = vsub.s32 0, %v809
    %v811 = vrot.slane %v804, %v810
    %v812 = vlaneseq
    %v813 = vshrl.u32 %v812, 7
    %v814 = vsub.s32 1, %v813
    %v815 = vrot.slane %v804, %v814
    %v816 = vlaneseq
    %v817 = vshrl.u32 %v816, 7
    %v818 = vsub.s32 2, %v817
    %v819 = vrot.slane %v804, %v818
    %v820 = vlaneseq
    %v821 = vshrl.u32 %v820, 7
    %v822 = vsub.s32 3, %v821
    %v823 = vrot.slane %v804, %v822
    %v824 = vlaneseq
    %v825 = vshrl.u32 %v824, 7
    %v826 = vsub.s32 4, %v825
    %v827 = vrot.slane %v804, %v826
    %v828 = vlaneseq
    %v829 = vshrl.u32 %v828, 7
    %v830 = vsub.s32 5, %v829
    %v831 = vrot.slane %v804, %v830
    %v832 = vlaneseq
    %v833 = vshrl.u32 %v832, 7
    %v834 = vsub.s32 6, %v833
    %v835 = vrot.slane %v804, %v834
    %v836 = vlaneseq
    %v837 = vshrl.u32 %v836, 7
    %v838 = vsub.s32 7, %v837
    %v839 = vrot.slane %v804, %v838
    %v840 = vlaneseq
    %v841 = vshrl.u32 %v840, 7
    %v842 = vsub.s32 0, %v841
    %v843 = vrot.slane %v805, %v842
    %v844 = vlaneseq
    %v845 = vshrl.u32 %v844, 7
    %v846 = vsub.s32 1, %v845
    %v847 = vrot.slane %v805, %v846
    %v848 = vlaneseq
    %v849 = vshrl.u32 %v848, 7
    %v850 = vsub.s32 2, %v849
    %v851 = vrot.slane %v805, %v850
    %v852 = vlaneseq
    %v853 = vshrl.u32 %v852, 7
    %v854 = vsub.s32 3, %v853
    %v855 = vrot.slane %v805, %v854
    %v856 = vlaneseq
    %v857 = vshrl.u32 %v856, 7
    %v858 = vsub.s32 4, %v857
    %v859 = vrot.slane %v805, %v858
    %v860 = vlaneseq
    %v861 = vshrl.u32 %v860, 7
    %v862 = vsub.s32 5, %v861
    %v863 = vrot.slane %v805, %v862
    %v864 = vlaneseq
    %v865 = vshrl.u32 %v864, 7
    %v866 = vsub.s32 6, %v865
    %v867 = vrot.slane %v805, %v866
    %v868 = vlaneseq
    %v869 = vshrl.u32 %v868, 7
    %v870 = vsub.s32 7, %v869
    %v871 = vrot.slane %v805, %v870
    %v920 = vunpack.c.l.b16 %v772
    %v921 = vunpack.c.h.b16 %v772
    %v922 = vunpack.c.l.b16 %v773
    %v923 = vunpack.c.h.b16 %v773
    %v924 = vunpack.c.l.b16 %v774
    %v925 = vunpack.c.h.b16 %v774
    %v926 = vunpack.c.l.b16 %v775
    %v927 = vunpack.c.h.b16 %v775
    %v928 = vunpack.c.l.b16 %v776
    %v929 = vunpack.c.h.b16 %v776
    %v930 = vunpack.c.l.b16 %v777
    %v931 = vunpack.c.h.b16 %v777
    %v932 = vunpack.c.l.b16 %v778
    %v933 = vunpack.c.h.b16 %v778
    %v934 = vunpack.c.l.b16 %v779
    %v935 = vunpack.c.h.b16 %v779
    %v936 = vunpack.c.l.b16 %v780
    %v937 = vunpack.c.h.b16 %v780
    %v938 = vunpack.c.l.b16 %v781
    %v939 = vunpack.c.h.b16 %v781
    %v940 = vunpack.c.l.b16 %v782
    %v941 = vunpack.c.h.b16 %v782
    %v942 = vunpack.c.l.b16 %v783
    %v943 = vunpack.c.h.b16 %v783
    %v944 = vunpack.c.l.b16 %v784
    %v945 = vunpack.c.h.b16 %v784
    %v946 = vunpack.c.l.b16 %v785
    %v947 = vunpack.c.h.b16 %v785
    %v948 = vunpack.c.l.b16 %v786
    %v949 = vunpack.c.h.b16 %v786
    %v950 = vunpack.c.l.b16 %v787
    %v951 = vunpack.c.h.b16 %v787
    %v952 = vunpack.c.l.b16 %v788
    %v953 = vunpack.c.h.b16 %v788
    %v954 = vunpack.c.l.b16 %v789
    %v955 = vunpack.c.h.b16 %v789
    %v956 = vunpack.c.l.b16 %v790
    %v957 = vunpack.c.h.b16 %v790
    %v958 = vunpack.c.l.b16 %v791
    %v959 = vunpack.c.h.b16 %v791
    %v960 = vunpack.c.l.b16 %v792
    %v961 = vunpack.c.h.b16 %v792
    %v962 = vunpack.c.l.b16 %v793
    %v963 = vunpack.c.h.b16 %v793
    %v964 = vunpack.c.l.b16 %v794
    %v965 = vunpack.c.h.b16 %v794
    %v966 = vunpack.c.l.b16 %v795
    %v967 = vunpack.c.h.b16 %v795
    %v968 = vunpack.c.l.b16 %v796
    %v969 = vunpack.c.h.b16 %v796
    %v970 = vunpack.c.l.b16 %v797
    %v971 = vunpack.c.h.b16 %v797
    %v972 = vunpack.c.l.b16 %v798
    %v973 = vunpack.c.h.b16 %v798
    %v974 = vunpack.c.l.b16 %v799
    %v975 = vunpack.c.h.b16 %v799
    %v976 = vunpack.c.l.b16 %v800
    %v977 = vunpack.c.h.b16 %v800
    %v978 = vunpack.c.l.b16 %v801
    %v979 = vunpack.c.h.b16 %v801
    %v980 = vunpack.c.l.b16 %v802
    %v981 = vunpack.c.h.b16 %v802
    %v982 = vunpack.c.l.b16 %v803
    %v983 = vunpack.c.h.b16 %v803
    %v984 = vpack.c.b16 %v936, %v920
    %v985 = vpack.c.b16 %v937, %v921
    %v986 = vpack.c.b16 %v938, %v922
    %v987 = vpack.c.b16 %v939, %v923
    %v988 = vpack.c.b16 %v940, %v924
    %v989 = vpack.c.b16 %v941, %v925
    %v990 = vpack.c.b16 %v942, %v926
    %v991 = vpack.c.b16 %v943, %v927
    %v992 = vpack.c.b16 %v944, %v928
    %v993 = vpack.c.b16 %v945, %v929
    %v994 = vpack.c.b16 %v946, %v930
    %v995 = vpack.c.b16 %v947, %v931
    %v996 = vpack.c.b16 %v948, %v932
    %v997 = vpack.c.b16 %v949, %v933
    %v998 = vpack.c.b16 %v950, %v934
    %v999 = vpack.c.b16 %v951, %v935
    %v1000 = vpack.c.b16 %v968, %v952
    %v1001 = vpack.c.b16 %v969, %v953
    %v1002 = vpack.c.b16 %v970, %v954
    %v1003 = vpack.c.b16 %v971, %v955
    %v1004 = vpack.c.b16 %v972, %v956
    %v1005 = vpack.c.b16 %v973, %v957
    %v1006 = vpack.c.b16 %v974, %v958
    %v1007 = vpack.c.b16 %v975, %v959
    %v1008 = vpack.c.b16 %v976, %v960
    %v1009 = vpack.c.b16 %v977, %v961
    %v1010 = vpack.c.b16 %v978, %v962
    %v1011 = vpack.c.b16 %v979, %v963
    %v1012 = vpack.c.b16 %v980, %v964
    %v1013 = vpack.c.b16 %v981, %v965
    %v1014 = vpack.c.b16 %v982, %v966
    %v1015 = vpack.c.b16 %v983, %v967
    %vm1048 = vcmask 261120
    %v1050 = vsel %vm1048, %v740, 0
    %v1053 = vsel %vm1048, %v741, 0
    %v1056 = vsel %vm1048, %v742, 0
    %v1059 = vsel %vm1048, %v743, 0
    %v1062 = vsel %vm1048, %v744, 0
    %v1065 = vsel %vm1048, %v745, 0
    %v1068 = vsel %vm1048, %v746, 0
    %v1071 = vsel %vm1048, %v747, 0
    %v1074 = vsel %vm1048, %v748, 0
    %v1077 = vsel %vm1048, %v749, 0
    %v1080 = vsel %vm1048, %v750, 0
    %v1083 = vsel %vm1048, %v751, 0
    %v1086 = vsel %vm1048, %v752, 0
    %v1089 = vsel %vm1048, %v753, 0
    %v1092 = vsel %vm1048, %v754, 0
    %v1095 = vsel %vm1048, %v755, 0
    %v1098 = vsel %vm1048, %v756, 0
    %v1101 = vsel %vm1048, %v757, 0
    %v1104 = vsel %vm1048, %v758, 0
    %v1107 = vsel %vm1048, %v759, 0
    %v1110 = vsel %vm1048, %v760, 0
    %v1113 = vsel %vm1048, %v761, 0
    %v1116 = vsel %vm1048, %v762, 0
    %v1119 = vsel %vm1048, %v763, 0
    %v1122 = vsel %vm1048, %v764, 0
    %v1125 = vsel %vm1048, %v765, 0
    %v1128 = vsel %vm1048, %v766, 0
    %v1131 = vsel %vm1048, %v767, 0
    %v1134 = vsel %vm1048, %v768, 0
    %v1137 = vsel %vm1048, %v769, 0
    %v1140 = vsel %vm1048, %v770, 0
    %v1143 = vsel %vm1048, %v771, 0
    %1145 = vmatprep.subr.bf16.mxu0 0
    %1146 = vmatpush1.bf16.msra.mxu0 0
    %1147 = vmatprep.subr.bf16.mxu0 0
    %1148 = vmatpush1.bf16.msra.mxu0 0
    %1149 = vmatprep.subr.bf16.mxu0 0
    %1150 = vmatpush1.bf16.msra.mxu0 0
    %1151 = vmatprep.subr.bf16.mxu0 0
    %1152 = vmatpush1.bf16.msra.mxu0 0
    %1153 = vmatprep.subr.bf16.mxu0 0
    %1154 = vmatpush1.bf16.msra.mxu0 0
    %1155 = vmatprep.subr.bf16.mxu0 0
    %1156 = vmatpush1.bf16.msra.mxu0 0
    %1157 = vmatprep.subr.bf16.mxu0 %v1001
    %1158 = vmatpush1.bf16.msra.mxu0 %v1000
    %1159 = vmatprep.subr.bf16.mxu0 %v985
    %1160 = vmatpush1.bf16.msra.mxu0 %v984
    %1161 = vmatprep.subr.bf16.mxu0 0
    %1162 = vmatpush2.bf16.msra.mxu0 0
    %1163 = vmatprep.subr.bf16.mxu0 0
    %1164 = vmatpush2.bf16.msra.mxu0 0
    %1165 = vmatprep.subr.bf16.mxu0 0
    %1166 = vmatpush2.bf16.msra.mxu0 0
    %1167 = vmatprep.subr.bf16.mxu0 0
    %1168 = vmatpush2.bf16.msra.mxu0 0
    %1169 = vmatprep.subr.bf16.mxu0 0
    %1170 = vmatpush2.bf16.msra.mxu0 0
    %1171 = vmatprep.subr.bf16.mxu0 0
    %1172 = vmatpush2.bf16.msra.mxu0 0
    %1173 = vmatprep.subr.bf16.mxu0 0
    %1174 = vmatpush2.bf16.msra.mxu0 0
    %1175 = vmatprep.subr.bf16.mxu0 0
    %1176 = vmatpush2.bf16.msra.mxu0 0
    %1177 = vmatprep.mubr.bf16.mxu0 0
    %1178 = vmatmul.mubr.bf16.gmra.mxu0 %v1050
    %v1179 = vpop.f32.mrf.mxu0
    %v1180 = vadd.f32 %v811, %v1179
    %v1181 = vpop.f32.mrf.mxu0
    %v1182 = vadd.f32 %v815, %v1181
    %v1183 = vpop.f32.mrf.mxu0
    %v1184 = vadd.f32 %v811, %v1183
    %v1185 = vpop.f32.mrf.mxu0
    %v1186 = vadd.f32 %v815, %v1185
    %1187 = vmatprep.mubr.bf16.mxu0 0
    %1188 = vmatmul.mubr.bf16.gmra.mxu0 %v1053
    %v1189 = vpop.f32.mrf.mxu0
    %v1190 = vadd.f32 %v811, %v1189
    %v1191 = vpop.f32.mrf.mxu0
    %v1192 = vadd.f32 %v815, %v1191
    %v1193 = vpop.f32.mrf.mxu0
    %v1194 = vadd.f32 %v811, %v1193
    %v1195 = vpop.f32.mrf.mxu0
    %v1196 = vadd.f32 %v815, %v1195
    %1197 = vmatprep.mubr.bf16.mxu0 0
    %1198 = vmatmul.mubr.bf16.gmra.mxu0 %v1056
    %v1199 = vpop.f32.mrf.mxu0
    %v1200 = vadd.f32 %v811, %v1199
    %v1201 = vpop.f32.mrf.mxu0
    %v1202 = vadd.f32 %v815, %v1201
    %v1203 = vpop.f32.mrf.mxu0
    %v1204 = vadd.f32 %v811, %v1203
    %v1205 = vpop.f32.mrf.mxu0
    %v1206 = vadd.f32 %v815, %v1205
    %1207 = vmatprep.mubr.bf16.mxu0 0
    %1208 = vmatmul.mubr.bf16.gmra.mxu0 %v1059
    %v1209 = vpop.f32.mrf.mxu0
    %v1210 = vadd.f32 %v811, %v1209
    %v1211 = vpop.f32.mrf.mxu0
    %v1212 = vadd.f32 %v815, %v1211
    %v1213 = vpop.f32.mrf.mxu0
    %v1214 = vadd.f32 %v811, %v1213
    %v1215 = vpop.f32.mrf.mxu0
    %v1216 = vadd.f32 %v815, %v1215
    %1217 = vmatprep.mubr.bf16.mxu0 0
    %1218 = vmatmul.mubr.bf16.gmra.mxu0 %v1062
    %v1219 = vpop.f32.mrf.mxu0
    %v1220 = vadd.f32 %v811, %v1219
    %v1221 = vpop.f32.mrf.mxu0
    %v1222 = vadd.f32 %v815, %v1221
    %v1223 = vpop.f32.mrf.mxu0
    %v1224 = vadd.f32 %v811, %v1223
    %v1225 = vpop.f32.mrf.mxu0
    %v1226 = vadd.f32 %v815, %v1225
    %1227 = vmatprep.mubr.bf16.mxu0 0
    %1228 = vmatmul.mubr.bf16.gmra.mxu0 %v1065
    %v1229 = vpop.f32.mrf.mxu0
    %v1230 = vadd.f32 %v811, %v1229
    %v1231 = vpop.f32.mrf.mxu0
    %v1232 = vadd.f32 %v815, %v1231
    %v1233 = vpop.f32.mrf.mxu0
    %v1234 = vadd.f32 %v811, %v1233
    %v1235 = vpop.f32.mrf.mxu0
    %v1236 = vadd.f32 %v815, %v1235
    %1237 = vmatprep.mubr.bf16.mxu0 0
    %1238 = vmatmul.mubr.bf16.gmra.mxu0 %v1068
    %v1239 = vpop.f32.mrf.mxu0
    %v1240 = vadd.f32 %v811, %v1239
    %v1241 = vpop.f32.mrf.mxu0
    %v1242 = vadd.f32 %v815, %v1241
    %v1243 = vpop.f32.mrf.mxu0
    %v1244 = vadd.f32 %v811, %v1243
    %v1245 = vpop.f32.mrf.mxu0
    %v1246 = vadd.f32 %v815, %v1245
    %1247 = vmatprep.mubr.bf16.mxu0 0
    %1248 = vmatmul.mubr.bf16.gmra.mxu0 %v1071
    %v1249 = vpop.f32.mrf.mxu0
    %v1250 = vadd.f32 %v811, %v1249
    %v1251 = vpop.f32.mrf.mxu0
    %v1252 = vadd.f32 %v815, %v1251
    %v1253 = vpop.f32.mrf.mxu0
    %v1254 = vadd.f32 %v811, %v1253
    %v1255 = vpop.f32.mrf.mxu0
    %v1256 = vadd.f32 %v815, %v1255
    %1257 = vmatprep.mubr.bf16.mxu0 0
    %1258 = vmatmul.mubr.bf16.gmra.mxu0 %v1074
    %v1259 = vpop.f32.mrf.mxu0
    %v1260 = vadd.f32 %v811, %v1259
    %v1261 = vpop.f32.mrf.mxu0
    %v1262 = vadd.f32 %v815, %v1261
    %v1263 = vpop.f32.mrf.mxu0
    %v1264 = vadd.f32 %v811, %v1263
    %v1265 = vpop.f32.mrf.mxu0
    %v1266 = vadd.f32 %v815, %v1265
    %1267 = vmatprep.mubr.bf16.mxu0 0
    %1268 = vmatmul.mubr.bf16.gmra.mxu0 %v1077
    %v1269 = vpop.f32.mrf.mxu0
    %v1270 = vadd.f32 %v811, %v1269
    %v1271 = vpop.f32.mrf.mxu0
    %v1272 = vadd.f32 %v815, %v1271
    %v1273 = vpop.f32.mrf.mxu0
    %v1274 = vadd.f32 %v811, %v1273
    %v1275 = vpop.f32.mrf.mxu0
    %v1276 = vadd.f32 %v815, %v1275
    %1277 = vmatprep.mubr.bf16.mxu0 0
    %1278 = vmatmul.mubr.bf16.gmra.mxu0 %v1080
    %v1279 = vpop.f32.mrf.mxu0
    %v1280 = vadd.f32 %v811, %v1279
    %v1281 = vpop.f32.mrf.mxu0
    %v1282 = vadd.f32 %v815, %v1281
    %v1283 = vpop.f32.mrf.mxu0
    %v1284 = vadd.f32 %v811, %v1283
    %v1285 = vpop.f32.mrf.mxu0
    %v1286 = vadd.f32 %v815, %v1285
    %1287 = vmatprep.mubr.bf16.mxu0 0
    %1288 = vmatmul.mubr.bf16.gmra.mxu0 %v1083
    %v1289 = vpop.f32.mrf.mxu0
    %v1290 = vadd.f32 %v811, %v1289
    %v1291 = vpop.f32.mrf.mxu0
    %v1292 = vadd.f32 %v815, %v1291
    %v1293 = vpop.f32.mrf.mxu0
    %v1294 = vadd.f32 %v811, %v1293
    %v1295 = vpop.f32.mrf.mxu0
    %v1296 = vadd.f32 %v815, %v1295
    %1297 = vmatprep.mubr.bf16.mxu0 0
    %1298 = vmatmul.mubr.bf16.gmra.mxu0 %v1086
    %v1299 = vpop.f32.mrf.mxu0
    %v1300 = vadd.f32 %v811, %v1299
    %v1301 = vpop.f32.mrf.mxu0
    %v1302 = vadd.f32 %v815, %v1301
    %v1303 = vpop.f32.mrf.mxu0
    %v1304 = vadd.f32 %v811, %v1303
    %v1305 = vpop.f32.mrf.mxu0
    %v1306 = vadd.f32 %v815, %v1305
    %1307 = vmatprep.mubr.bf16.mxu0 0
    %1308 = vmatmul.mubr.bf16.gmra.mxu0 %v1089
    %v1309 = vpop.f32.mrf.mxu0
    %v1310 = vadd.f32 %v811, %v1309
    %v1311 = vpop.f32.mrf.mxu0
    %v1312 = vadd.f32 %v815, %v1311
    %v1313 = vpop.f32.mrf.mxu0
    %v1314 = vadd.f32 %v811, %v1313
    %v1315 = vpop.f32.mrf.mxu0
    %v1316 = vadd.f32 %v815, %v1315
    %1317 = vmatprep.mubr.bf16.mxu0 0
    %1318 = vmatmul.mubr.bf16.gmra.mxu0 %v1092
    %v1319 = vpop.f32.mrf.mxu0
    %v1320 = vadd.f32 %v811, %v1319
    %v1321 = vpop.f32.mrf.mxu0
    %v1322 = vadd.f32 %v815, %v1321
    %v1323 = vpop.f32.mrf.mxu0
    %v1324 = vadd.f32 %v811, %v1323
    %v1325 = vpop.f32.mrf.mxu0
    %v1326 = vadd.f32 %v815, %v1325
    %1327 = vmatprep.mubr.bf16.mxu0 0
    %1328 = vmatmul.mubr.bf16.gmra.mxu0 %v1095
    %v1329 = vpop.f32.mrf.mxu0
    %v1330 = vadd.f32 %v811, %v1329
    %v1331 = vpop.f32.mrf.mxu0
    %v1332 = vadd.f32 %v815, %v1331
    %v1333 = vpop.f32.mrf.mxu0
    %v1334 = vadd.f32 %v811, %v1333
    %v1335 = vpop.f32.mrf.mxu0
    %v1336 = vadd.f32 %v815, %v1335
    %1337 = vmatprep.mubr.bf16.mxu0 0
    %1338 = vmatmul.mubr.bf16.gmra.mxu0 %v1098
    %v1339 = vpop.f32.mrf.mxu0
    %v1340 = vadd.f32 %v811, %v1339
    %v1341 = vpop.f32.mrf.mxu0
    %v1342 = vadd.f32 %v815, %v1341
    %v1343 = vpop.f32.mrf.mxu0
    %v1344 = vadd.f32 %v811, %v1343
    %v1345 = vpop.f32.mrf.mxu0
    %v1346 = vadd.f32 %v815, %v1345
    %1347 = vmatprep.mubr.bf16.mxu0 0
    %1348 = vmatmul.mubr.bf16.gmra.mxu0 %v1101
    %v1349 = vpop.f32.mrf.mxu0
    %v1350 = vadd.f32 %v811, %v1349
    %v1351 = vpop.f32.mrf.mxu0
    %v1352 = vadd.f32 %v815, %v1351
    %v1353 = vpop.f32.mrf.mxu0
    %v1354 = vadd.f32 %v811, %v1353
    %v1355 = vpop.f32.mrf.mxu0
    %v1356 = vadd.f32 %v815, %v1355
    %1357 = vmatprep.mubr.bf16.mxu0 0
    %1358 = vmatmul.mubr.bf16.gmra.mxu0 %v1104
    %v1359 = vpop.f32.mrf.mxu0
    %v1360 = vadd.f32 %v811, %v1359
    %v1361 = vpop.f32.mrf.mxu0
    %v1362 = vadd.f32 %v815, %v1361
    %v1363 = vpop.f32.mrf.mxu0
    %v1364 = vadd.f32 %v811, %v1363
    %v1365 = vpop.f32.mrf.mxu0
    %v1366 = vadd.f32 %v815, %v1365
    %1367 = vmatprep.mubr.bf16.mxu0 0
    %1368 = vmatmul.mubr.bf16.gmra.mxu0 %v1107
    %v1369 = vpop.f32.mrf.mxu0
    %v1370 = vadd.f32 %v811, %v1369
    %v1371 = vpop.f32.mrf.mxu0
    %v1372 = vadd.f32 %v815, %v1371
    %v1373 = vpop.f32.mrf.mxu0
    %v1374 = vadd.f32 %v811, %v1373
    %v1375 = vpop.f32.mrf.mxu0
    %v1376 = vadd.f32 %v815, %v1375
    %1377 = vmatprep.mubr.bf16.mxu0 0
    %1378 = vmatmul.mubr.bf16.gmra.mxu0 %v1110
    %v1379 = vpop.f32.mrf.mxu0
    %v1380 = vadd.f32 %v811, %v1379
    %v1381 = vpop.f32.mrf.mxu0
    %v1382 = vadd.f32 %v815, %v1381
    %v1383 = vpop.f32.mrf.mxu0
    %v1384 = vadd.f32 %v811, %v1383
    %v1385 = vpop.f32.mrf.mxu0
    %v1386 = vadd.f32 %v815, %v1385
    %1387 = vmatprep.mubr.bf16.mxu0 0
    %1388 = vmatmul.mubr.bf16.gmra.mxu0 %v1113
    %v1389 = vpop.f32.mrf.mxu0
    %v1390 = vadd.f32 %v811, %v1389
    %v1391 = vpop.f32.mrf.mxu0
    %v1392 = vadd.f32 %v815, %v1391
    %v1393 = vpop.f32.mrf.mxu0
    %v1394 = vadd.f32 %v811, %v1393
    %v1395 = vpop.f32.mrf.mxu0
    %v1396 = vadd.f32 %v815, %v1395
    %1397 = vmatprep.mubr.bf16.mxu0 0
    %1398 = vmatmul.mubr.bf16.gmra.mxu0 %v1116
    %v1399 = vpop.f32.mrf.mxu0
    %v1400 = vadd.f32 %v811, %v1399
    %v1401 = vpop.f32.mrf.mxu0
    %v1402 = vadd.f32 %v815, %v1401
    %v1403 = vpop.f32.mrf.mxu0
    %v1404 = vadd.f32 %v811, %v1403
    %v1405 = vpop.f32.mrf.mxu0
    %v1406 = vadd.f32 %v815, %v1405
    %1407 = vmatprep.mubr.bf16.mxu0 0
    %1408 = vmatmul.mubr.bf16.gmra.mxu0 %v1119
    %v1409 = vpop.f32.mrf.mxu0
    %v1410 = vadd.f32 %v811, %v1409
    %v1411 = vpop.f32.mrf.mxu0
    %v1412 = vadd.f32 %v815, %v1411
    %v1413 = vpop.f32.mrf.mxu0
    %v1414 = vadd.f32 %v811, %v1413
    %v1415 = vpop.f32.mrf.mxu0
    %v1416 = vadd.f32 %v815, %v1415
    %1417 = vmatprep.mubr.bf16.mxu0 0
    %1418 = vmatmul.mubr.bf16.gmra.mxu0 %v1122
    %v1419 = vpop.f32.mrf.mxu0
    %v1420 = vadd.f32 %v811, %v1419
    %v1421 = vpop.f32.mrf.mxu0
    %v1422 = vadd.f32 %v815, %v1421
    %v1423 = vpop.f32.mrf.mxu0
    %v1424 = vadd.f32 %v811, %v1423
    %v1425 = vpop.f32.mrf.mxu0
    %v1426 = vadd.f32 %v815, %v1425
    %1427 = vmatprep.mubr.bf16.mxu0 0
    %1428 = vmatmul.mubr.bf16.gmra.mxu0 %v1125
    %v1429 = vpop.f32.mrf.mxu0
    %v1430 = vadd.f32 %v811, %v1429
    %v1431 = vpop.f32.mrf.mxu0
    %v1432 = vadd.f32 %v815, %v1431
    %v1433 = vpop.f32.mrf.mxu0
    %v1434 = vadd.f32 %v811, %v1433
    %v1435 = vpop.f32.mrf.mxu0
    %v1436 = vadd.f32 %v815, %v1435
    %1437 = vmatprep.mubr.bf16.mxu0 0
    %1438 = vmatmul.mubr.bf16.gmra.mxu0 %v1128
    %v1439 = vpop.f32.mrf.mxu0
    %v1440 = vadd.f32 %v811, %v1439
    %v1441 = vpop.f32.mrf.mxu0
    %v1442 = vadd.f32 %v815, %v1441
    %v1443 = vpop.f32.mrf.mxu0
    %v1444 = vadd.f32 %v811, %v1443
    %v1445 = vpop.f32.mrf.mxu0
    %v1446 = vadd.f32 %v815, %v1445
    %1447 = vmatprep.mubr.bf16.mxu0 0
    %1448 = vmatmul.mubr.bf16.gmra.mxu0 %v1131
    %v1449 = vpop.f32.mrf.mxu0
    %v1450 = vadd.f32 %v811, %v1449
    %v1451 = vpop.f32.mrf.mxu0
    %v1452 = vadd.f32 %v815, %v1451
    %v1453 = vpop.f32.mrf.mxu0
    %v1454 = vadd.f32 %v811, %v1453
    %v1455 = vpop.f32.mrf.mxu0
    %v1456 = vadd.f32 %v815, %v1455
    %1457 = vmatprep.mubr.bf16.mxu0 0
    %1458 = vmatmul.mubr.bf16.gmra.mxu0 %v1134
    %v1459 = vpop.f32.mrf.mxu0
    %v1460 = vadd.f32 %v811, %v1459
    %v1461 = vpop.f32.mrf.mxu0
    %v1462 = vadd.f32 %v815, %v1461
    %v1463 = vpop.f32.mrf.mxu0
    %v1464 = vadd.f32 %v811, %v1463
    %v1465 = vpop.f32.mrf.mxu0
    %v1466 = vadd.f32 %v815, %v1465
    %1467 = vmatprep.mubr.bf16.mxu0 0
    %1468 = vmatmul.mubr.bf16.gmra.mxu0 %v1137
    %v1469 = vpop.f32.mrf.mxu0
    %v1470 = vadd.f32 %v811, %v1469
    %v1471 = vpop.f32.mrf.mxu0
    %v1472 = vadd.f32 %v815, %v1471
    %v1473 = vpop.f32.mrf.mxu0
    %v1474 = vadd.f32 %v811, %v1473
    %v1475 = vpop.f32.mrf.mxu0
    %v1476 = vadd.f32 %v815, %v1475
    %1477 = vmatprep.mubr.bf16.mxu0 0
    %1478 = vmatmul.mubr.bf16.gmra.mxu0 %v1140
    %v1479 = vpop.f32.mrf.mxu0
    %v1480 = vadd.f32 %v811, %v1479
    %v1481 = vpop.f32.mrf.mxu0
    %v1482 = vadd.f32 %v815, %v1481
    %v1483 = vpop.f32.mrf.mxu0
    %v1484 = vadd.f32 %v811, %v1483
    %v1485 = vpop.f32.mrf.mxu0
    %v1486 = vadd.f32 %v815, %v1485
    %1487 = vmatprep.mubr.bf16.mxu0 0
    %1488 = vmatmul.mubr.bf16.gmra.mxu0 %v1143
    %v1489 = vpop.f32.mrf.mxu0
    %v1490 = vadd.f32 %v811, %v1489
    %v1491 = vpop.f32.mrf.mxu0
    %v1492 = vadd.f32 %v815, %v1491
    %v1493 = vpop.f32.mrf.mxu0
    %v1494 = vadd.f32 %v811, %v1493
    %v1495 = vpop.f32.mrf.mxu0
    %v1496 = vadd.f32 %v815, %v1495
    %1497 = vdwg.mxu0
    %1498 = vmatprep.subr.bf16.mxu0 0
    %1499 = vmatpush1.bf16.msra.mxu0 0
    %1500 = vmatprep.subr.bf16.mxu0 0
    %1501 = vmatpush1.bf16.msra.mxu0 0
    %1502 = vmatprep.subr.bf16.mxu0 0
    %1503 = vmatpush1.bf16.msra.mxu0 0
    %1504 = vmatprep.subr.bf16.mxu0 0
    %1505 = vmatpush1.bf16.msra.mxu0 0
    %1506 = vmatprep.subr.bf16.mxu0 0
    %1507 = vmatpush1.bf16.msra.mxu0 0
    %1508 = vmatprep.subr.bf16.mxu0 0
    %1509 = vmatpush1.bf16.msra.mxu0 0
    %1510 = vmatprep.subr.bf16.mxu0 %v1003
    %1511 = vmatpush1.bf16.msra.mxu0 %v1002
    %1512 = vmatprep.subr.bf16.mxu0 %v987
    %1513 = vmatpush1.bf16.msra.mxu0 %v986
    %1514 = vmatprep.subr.bf16.mxu0 0
    %1515 = vmatpush2.bf16.msra.mxu0 0
    %1516 = vmatprep.subr.bf16.mxu0 0
    %1517 = vmatpush2.bf16.msra.mxu0 0
    %1518 = vmatprep.subr.bf16.mxu0 0
    %1519 = vmatpush2.bf16.msra.mxu0 0
    %1520 = vmatprep.subr.bf16.mxu0 0
    %1521 = vmatpush2.bf16.msra.mxu0 0
    %1522 = vmatprep.subr.bf16.mxu0 0
    %1523 = vmatpush2.bf16.msra.mxu0 0
    %1524 = vmatprep.subr.bf16.mxu0 0
    %1525 = vmatpush2.bf16.msra.mxu0 0
    %1526 = vmatprep.subr.bf16.mxu0 0
    %1527 = vmatpush2.bf16.msra.mxu0 0
    %1528 = vmatprep.subr.bf16.mxu0 0
    %1529 = vmatpush2.bf16.msra.mxu0 0
    %1530 = vmatprep.mubr.bf16.mxu0 0
    %1531 = vmatmul.mubr.bf16.gmra.mxu0 %v1050
    %v1532 = vpop.f32.mrf.mxu0
    %v1533 = vadd.f32 %v819, %v1532
    %v1534 = vpop.f32.mrf.mxu0
    %v1535 = vadd.f32 %v823, %v1534
    %v1536 = vpop.f32.mrf.mxu0
    %v1537 = vadd.f32 %v819, %v1536
    %v1538 = vpop.f32.mrf.mxu0
    %v1539 = vadd.f32 %v823, %v1538
    %1540 = vmatprep.mubr.bf16.mxu0 0
    %1541 = vmatmul.mubr.bf16.gmra.mxu0 %v1053
    %v1542 = vpop.f32.mrf.mxu0
    %v1543 = vadd.f32 %v819, %v1542
    %v1544 = vpop.f32.mrf.mxu0
    %v1545 = vadd.f32 %v823, %v1544
    %v1546 = vpop.f32.mrf.mxu0
    %v1547 = vadd.f32 %v819, %v1546
    %v1548 = vpop.f32.mrf.mxu0
    %v1549 = vadd.f32 %v823, %v1548
    %1550 = vmatprep.mubr.bf16.mxu0 0
    %1551 = vmatmul.mubr.bf16.gmra.mxu0 %v1056
    %v1552 = vpop.f32.mrf.mxu0
    %v1553 = vadd.f32 %v819, %v1552
    %v1554 = vpop.f32.mrf.mxu0
    %v1555 = vadd.f32 %v823, %v1554
    %v1556 = vpop.f32.mrf.mxu0
    %v1557 = vadd.f32 %v819, %v1556
    %v1558 = vpop.f32.mrf.mxu0
    %v1559 = vadd.f32 %v823, %v1558
    %1560 = vmatprep.mubr.bf16.mxu0 0
    %1561 = vmatmul.mubr.bf16.gmra.mxu0 %v1059
    %v1562 = vpop.f32.mrf.mxu0
    %v1563 = vadd.f32 %v819, %v1562
    %v1564 = vpop.f32.mrf.mxu0
    %v1565 = vadd.f32 %v823, %v1564
    %v1566 = vpop.f32.mrf.mxu0
    %v1567 = vadd.f32 %v819, %v1566
    %v1568 = vpop.f32.mrf.mxu0
    %v1569 = vadd.f32 %v823, %v1568
    %1570 = vmatprep.mubr.bf16.mxu0 0
    %1571 = vmatmul.mubr.bf16.gmra.mxu0 %v1062
    %v1572 = vpop.f32.mrf.mxu0
    %v1573 = vadd.f32 %v819, %v1572
    %v1574 = vpop.f32.mrf.mxu0
    %v1575 = vadd.f32 %v823, %v1574
    %v1576 = vpop.f32.mrf.mxu0
    %v1577 = vadd.f32 %v819, %v1576
    %v1578 = vpop.f32.mrf.mxu0
    %v1579 = vadd.f32 %v823, %v1578
    %1580 = vmatprep.mubr.bf16.mxu0 0
    %1581 = vmatmul.mubr.bf16.gmra.mxu0 %v1065
    %v1582 = vpop.f32.mrf.mxu0
    %v1583 = vadd.f32 %v819, %v1582
    %v1584 = vpop.f32.mrf.mxu0
    %v1585 = vadd.f32 %v823, %v1584
    %v1586 = vpop.f32.mrf.mxu0
    %v1587 = vadd.f32 %v819, %v1586
    %v1588 = vpop.f32.mrf.mxu0
    %v1589 = vadd.f32 %v823, %v1588
    %1590 = vmatprep.mubr.bf16.mxu0 0
    %1591 = vmatmul.mubr.bf16.gmra.mxu0 %v1068
    %v1592 = vpop.f32.mrf.mxu0
    %v1593 = vadd.f32 %v819, %v1592
    %v1594 = vpop.f32.mrf.mxu0
    %v1595 = vadd.f32 %v823, %v1594
    %v1596 = vpop.f32.mrf.mxu0
    %v1597 = vadd.f32 %v819, %v1596
    %v1598 = vpop.f32.mrf.mxu0
    %v1599 = vadd.f32 %v823, %v1598
    %1600 = vmatprep.mubr.bf16.mxu0 0
    %1601 = vmatmul.mubr.bf16.gmra.mxu0 %v1071
    %v1602 = vpop.f32.mrf.mxu0
    %v1603 = vadd.f32 %v819, %v1602
    %v1604 = vpop.f32.mrf.mxu0
    %v1605 = vadd.f32 %v823, %v1604
    %v1606 = vpop.f32.mrf.mxu0
    %v1607 = vadd.f32 %v819, %v1606
    %v1608 = vpop.f32.mrf.mxu0
    %v1609 = vadd.f32 %v823, %v1608
    %1610 = vmatprep.mubr.bf16.mxu0 0
    %1611 = vmatmul.mubr.bf16.gmra.mxu0 %v1074
    %v1612 = vpop.f32.mrf.mxu0
    %v1613 = vadd.f32 %v819, %v1612
    %v1614 = vpop.f32.mrf.mxu0
    %v1615 = vadd.f32 %v823, %v1614
    %v1616 = vpop.f32.mrf.mxu0
    %v1617 = vadd.f32 %v819, %v1616
    %v1618 = vpop.f32.mrf.mxu0
    %v1619 = vadd.f32 %v823, %v1618
    %1620 = vmatprep.mubr.bf16.mxu0 0
    %1621 = vmatmul.mubr.bf16.gmra.mxu0 %v1077
    %v1622 = vpop.f32.mrf.mxu0
    %v1623 = vadd.f32 %v819, %v1622
    %v1624 = vpop.f32.mrf.mxu0
    %v1625 = vadd.f32 %v823, %v1624
    %v1626 = vpop.f32.mrf.mxu0
    %v1627 = vadd.f32 %v819, %v1626
    %v1628 = vpop.f32.mrf.mxu0
    %v1629 = vadd.f32 %v823, %v1628
    %1630 = vmatprep.mubr.bf16.mxu0 0
    %1631 = vmatmul.mubr.bf16.gmra.mxu0 %v1080
    %v1632 = vpop.f32.mrf.mxu0
    %v1633 = vadd.f32 %v819, %v1632
    %v1634 = vpop.f32.mrf.mxu0
    %v1635 = vadd.f32 %v823, %v1634
    %v1636 = vpop.f32.mrf.mxu0
    %v1637 = vadd.f32 %v819, %v1636
    %v1638 = vpop.f32.mrf.mxu0
    %v1639 = vadd.f32 %v823, %v1638
    %1640 = vmatprep.mubr.bf16.mxu0 0
    %1641 = vmatmul.mubr.bf16.gmra.mxu0 %v1083
    %v1642 = vpop.f32.mrf.mxu0
    %v1643 = vadd.f32 %v819, %v1642
    %v1644 = vpop.f32.mrf.mxu0
    %v1645 = vadd.f32 %v823, %v1644
    %v1646 = vpop.f32.mrf.mxu0
    %v1647 = vadd.f32 %v819, %v1646
    %v1648 = vpop.f32.mrf.mxu0
    %v1649 = vadd.f32 %v823, %v1648
    %1650 = vmatprep.mubr.bf16.mxu0 0
    %1651 = vmatmul.mubr.bf16.gmra.mxu0 %v1086
    %v1652 = vpop.f32.mrf.mxu0
    %v1653 = vadd.f32 %v819, %v1652
    %v1654 = vpop.f32.mrf.mxu0
    %v1655 = vadd.f32 %v823, %v1654
    %v1656 = vpop.f32.mrf.mxu0
    %v1657 = vadd.f32 %v819, %v1656
    %v1658 = vpop.f32.mrf.mxu0
    %v1659 = vadd.f32 %v823, %v1658
    %1660 = vmatprep.mubr.bf16.mxu0 0
    %1661 = vmatmul.mubr.bf16.gmra.mxu0 %v1089
    %v1662 = vpop.f32.mrf.mxu0
    %v1663 = vadd.f32 %v819, %v1662
    %v1664 = vpop.f32.mrf.mxu0
    %v1665 = vadd.f32 %v823, %v1664
    %v1666 = vpop.f32.mrf.mxu0
    %v1667 = vadd.f32 %v819, %v1666
    %v1668 = vpop.f32.mrf.mxu0
    %v1669 = vadd.f32 %v823, %v1668
    %1670 = vmatprep.mubr.bf16.mxu0 0
    %1671 = vmatmul.mubr.bf16.gmra.mxu0 %v1092
    %v1672 = vpop.f32.mrf.mxu0
    %v1673 = vadd.f32 %v819, %v1672
    %v1674 = vpop.f32.mrf.mxu0
    %v1675 = vadd.f32 %v823, %v1674
    %v1676 = vpop.f32.mrf.mxu0
    %v1677 = vadd.f32 %v819, %v1676
    %v1678 = vpop.f32.mrf.mxu0
    %v1679 = vadd.f32 %v823, %v1678
    %1680 = vmatprep.mubr.bf16.mxu0 0
    %1681 = vmatmul.mubr.bf16.gmra.mxu0 %v1095
    %v1682 = vpop.f32.mrf.mxu0
    %v1683 = vadd.f32 %v819, %v1682
    %v1684 = vpop.f32.mrf.mxu0
    %v1685 = vadd.f32 %v823, %v1684
    %v1686 = vpop.f32.mrf.mxu0
    %v1687 = vadd.f32 %v819, %v1686
    %v1688 = vpop.f32.mrf.mxu0
    %v1689 = vadd.f32 %v823, %v1688
    %1690 = vmatprep.mubr.bf16.mxu0 0
    %1691 = vmatmul.mubr.bf16.gmra.mxu0 %v1098
    %v1692 = vpop.f32.mrf.mxu0
    %v1693 = vadd.f32 %v819, %v1692
    %v1694 = vpop.f32.mrf.mxu0
    %v1695 = vadd.f32 %v823, %v1694
    %v1696 = vpop.f32.mrf.mxu0
    %v1697 = vadd.f32 %v819, %v1696
    %v1698 = vpop.f32.mrf.mxu0
    %v1699 = vadd.f32 %v823, %v1698
    %1700 = vmatprep.mubr.bf16.mxu0 0
    %1701 = vmatmul.mubr.bf16.gmra.mxu0 %v1101
    %v1702 = vpop.f32.mrf.mxu0
    %v1703 = vadd.f32 %v819, %v1702
    %v1704 = vpop.f32.mrf.mxu0
    %v1705 = vadd.f32 %v823, %v1704
    %v1706 = vpop.f32.mrf.mxu0
    %v1707 = vadd.f32 %v819, %v1706
    %v1708 = vpop.f32.mrf.mxu0
    %v1709 = vadd.f32 %v823, %v1708
    %1710 = vmatprep.mubr.bf16.mxu0 0
    %1711 = vmatmul.mubr.bf16.gmra.mxu0 %v1104
    %v1712 = vpop.f32.mrf.mxu0
    %v1713 = vadd.f32 %v819, %v1712
    %v1714 = vpop.f32.mrf.mxu0
    %v1715 = vadd.f32 %v823, %v1714
    %v1716 = vpop.f32.mrf.mxu0
    %v1717 = vadd.f32 %v819, %v1716
    %v1718 = vpop.f32.mrf.mxu0
    %v1719 = vadd.f32 %v823, %v1718
    %1720 = vmatprep.mubr.bf16.mxu0 0
    %1721 = vmatmul.mubr.bf16.gmra.mxu0 %v1107
    %v1722 = vpop.f32.mrf.mxu0
    %v1723 = vadd.f32 %v819, %v1722
    %v1724 = vpop.f32.mrf.mxu0
    %v1725 = vadd.f32 %v823, %v1724
    %v1726 = vpop.f32.mrf.mxu0
    %v1727 = vadd.f32 %v819, %v1726
    %v1728 = vpop.f32.mrf.mxu0
    %v1729 = vadd.f32 %v823, %v1728
    %1730 = vmatprep.mubr.bf16.mxu0 0
    %1731 = vmatmul.mubr.bf16.gmra.mxu0 %v1110
    %v1732 = vpop.f32.mrf.mxu0
    %v1733 = vadd.f32 %v819, %v1732
    %v1734 = vpop.f32.mrf.mxu0
    %v1735 = vadd.f32 %v823, %v1734
    %v1736 = vpop.f32.mrf.mxu0
    %v1737 = vadd.f32 %v819, %v1736
    %v1738 = vpop.f32.mrf.mxu0
    %v1739 = vadd.f32 %v823, %v1738
    %1740 = vmatprep.mubr.bf16.mxu0 0
    %1741 = vmatmul.mubr.bf16.gmra.mxu0 %v1113
    %v1742 = vpop.f32.mrf.mxu0
    %v1743 = vadd.f32 %v819, %v1742
    %v1744 = vpop.f32.mrf.mxu0
    %v1745 = vadd.f32 %v823, %v1744
    %v1746 = vpop.f32.mrf.mxu0
    %v1747 = vadd.f32 %v819, %v1746
    %v1748 = vpop.f32.mrf.mxu0
    %v1749 = vadd.f32 %v823, %v1748
    %1750 = vmatprep.mubr.bf16.mxu0 0
    %1751 = vmatmul.mubr.bf16.gmra.mxu0 %v1116
    %v1752 = vpop.f32.mrf.mxu0
    %v1753 = vadd.f32 %v819, %v1752
    %v1754 = vpop.f32.mrf.mxu0
    %v1755 = vadd.f32 %v823, %v1754
    %v1756 = vpop.f32.mrf.mxu0
    %v1757 = vadd.f32 %v819, %v1756
    %v1758 = vpop.f32.mrf.mxu0
    %v1759 = vadd.f32 %v823, %v1758
    %1760 = vmatprep.mubr.bf16.mxu0 0
    %1761 = vmatmul.mubr.bf16.gmra.mxu0 %v1119
    %v1762 = vpop.f32.mrf.mxu0
    %v1763 = vadd.f32 %v819, %v1762
    %v1764 = vpop.f32.mrf.mxu0
    %v1765 = vadd.f32 %v823, %v1764
    %v1766 = vpop.f32.mrf.mxu0
    %v1767 = vadd.f32 %v819, %v1766
    %v1768 = vpop.f32.mrf.mxu0
    %v1769 = vadd.f32 %v823, %v1768
    %1770 = vmatprep.mubr.bf16.mxu0 0
    %1771 = vmatmul.mubr.bf16.gmra.mxu0 %v1122
    %v1772 = vpop.f32.mrf.mxu0
    %v1773 = vadd.f32 %v819, %v1772
    %v1774 = vpop.f32.mrf.mxu0
    %v1775 = vadd.f32 %v823, %v1774
    %v1776 = vpop.f32.mrf.mxu0
    %v1777 = vadd.f32 %v819, %v1776
    %v1778 = vpop.f32.mrf.mxu0
    %v1779 = vadd.f32 %v823, %v1778
    %1780 = vmatprep.mubr.bf16.mxu0 0
    %1781 = vmatmul.mubr.bf16.gmra.mxu0 %v1125
    %v1782 = vpop.f32.mrf.mxu0
    %v1783 = vadd.f32 %v819, %v1782
    %v1784 = vpop.f32.mrf.mxu0
    %v1785 = vadd.f32 %v823, %v1784
    %v1786 = vpop.f32.mrf.mxu0
    %v1787 = vadd.f32 %v819, %v1786
    %v1788 = vpop.f32.mrf.mxu0
    %v1789 = vadd.f32 %v823, %v1788
    %1790 = vmatprep.mubr.bf16.mxu0 0
    %1791 = vmatmul.mubr.bf16.gmra.mxu0 %v1128
    %v1792 = vpop.f32.mrf.mxu0
    %v1793 = vadd.f32 %v819, %v1792
    %v1794 = vpop.f32.mrf.mxu0
    %v1795 = vadd.f32 %v823, %v1794
    %v1796 = vpop.f32.mrf.mxu0
    %v1797 = vadd.f32 %v819, %v1796
    %v1798 = vpop.f32.mrf.mxu0
    %v1799 = vadd.f32 %v823, %v1798
    %1800 = vmatprep.mubr.bf16.mxu0 0
    %1801 = vmatmul.mubr.bf16.gmra.mxu0 %v1131
    %v1802 = vpop.f32.mrf.mxu0
    %v1803 = vadd.f32 %v819, %v1802
    %v1804 = vpop.f32.mrf.mxu0
    %v1805 = vadd.f32 %v823, %v1804
    %v1806 = vpop.f32.mrf.mxu0
    %v1807 = vadd.f32 %v819, %v1806
    %v1808 = vpop.f32.mrf.mxu0
    %v1809 = vadd.f32 %v823, %v1808
    %1810 = vmatprep.mubr.bf16.mxu0 0
    %1811 = vmatmul.mubr.bf16.gmra.mxu0 %v1134
    %v1812 = vpop.f32.mrf.mxu0
    %v1813 = vadd.f32 %v819, %v1812
    %v1814 = vpop.f32.mrf.mxu0
    %v1815 = vadd.f32 %v823, %v1814
    %v1816 = vpop.f32.mrf.mxu0
    %v1817 = vadd.f32 %v819, %v1816
    %v1818 = vpop.f32.mrf.mxu0
    %v1819 = vadd.f32 %v823, %v1818
    %1820 = vmatprep.mubr.bf16.mxu0 0
    %1821 = vmatmul.mubr.bf16.gmra.mxu0 %v1137
    %v1822 = vpop.f32.mrf.mxu0
    %v1823 = vadd.f32 %v819, %v1822
    %v1824 = vpop.f32.mrf.mxu0
    %v1825 = vadd.f32 %v823, %v1824
    %v1826 = vpop.f32.mrf.mxu0
    %v1827 = vadd.f32 %v819, %v1826
    %v1828 = vpop.f32.mrf.mxu0
    %v1829 = vadd.f32 %v823, %v1828
    %1830 = vmatprep.mubr.bf16.mxu0 0
    %1831 = vmatmul.mubr.bf16.gmra.mxu0 %v1140
    %v1832 = vpop.f32.mrf.mxu0
    %v1833 = vadd.f32 %v819, %v1832
    %v1834 = vpop.f32.mrf.mxu0
    %v1835 = vadd.f32 %v823, %v1834
    %v1836 = vpop.f32.mrf.mxu0
    %v1837 = vadd.f32 %v819, %v1836
    %v1838 = vpop.f32.mrf.mxu0
    %v1839 = vadd.f32 %v823, %v1838
    %1840 = vmatprep.mubr.bf16.mxu0 0
    %1841 = vmatmul.mubr.bf16.gmra.mxu0 %v1143
    %v1842 = vpop.f32.mrf.mxu0
    %v1843 = vadd.f32 %v819, %v1842
    %v1844 = vpop.f32.mrf.mxu0
    %v1845 = vadd.f32 %v823, %v1844
    %v1846 = vpop.f32.mrf.mxu0
    %v1847 = vadd.f32 %v819, %v1846
    %v1848 = vpop.f32.mrf.mxu0
    %v1849 = vadd.f32 %v823, %v1848
    %1850 = vdwg.mxu0
    %1851 = vmatprep.subr.bf16.mxu0 0
    %1852 = vmatpush1.bf16.msra.mxu0 0
    %1853 = vmatprep.subr.bf16.mxu0 0
    %1854 = vmatpush1.bf16.msra.mxu0 0
    %1855 = vmatprep.subr.bf16.mxu0 0
    %1856 = vmatpush1.bf16.msra.mxu0 0
    %1857 = vmatprep.subr.bf16.mxu0 0
    %1858 = vmatpush1.bf16.msra.mxu0 0
    %1859 = vmatprep.subr.bf16.mxu0 0
    %1860 = vmatpush1.bf16.msra.mxu0 0
    %1861 = vmatprep.subr.bf16.mxu0 0
    %1862 = vmatpush1.bf16.msra.mxu0 0
    %1863 = vmatprep.subr.bf16.mxu0 %v1005
    %1864 = vmatpush1.bf16.msra.mxu0 %v1004
    %1865 = vmatprep.subr.bf16.mxu0 %v989
    %1866 = vmatpush1.bf16.msra.mxu0 %v988
    %1867 = vmatprep.subr.bf16.mxu0 0
    %1868 = vmatpush2.bf16.msra.mxu0 0
    %1869 = vmatprep.subr.bf16.mxu0 0
    %1870 = vmatpush2.bf16.msra.mxu0 0
    %1871 = vmatprep.subr.bf16.mxu0 0
    %1872 = vmatpush2.bf16.msra.mxu0 0
    %1873 = vmatprep.subr.bf16.mxu0 0
    %1874 = vmatpush2.bf16.msra.mxu0 0
    %1875 = vmatprep.subr.bf16.mxu0 0
    %1876 = vmatpush2.bf16.msra.mxu0 0
    %1877 = vmatprep.subr.bf16.mxu0 0
    %1878 = vmatpush2.bf16.msra.mxu0 0
    %1879 = vmatprep.subr.bf16.mxu0 0
    %1880 = vmatpush2.bf16.msra.mxu0 0
    %1881 = vmatprep.subr.bf16.mxu0 0
    %1882 = vmatpush2.bf16.msra.mxu0 0
    %1883 = vmatprep.mubr.bf16.mxu0 0
    %1884 = vmatmul.mubr.bf16.gmra.mxu0 %v1050
    %v1885 = vpop.f32.mrf.mxu0
    %v1886 = vadd.f32 %v827, %v1885
    %v1887 = vpop.f32.mrf.mxu0
    %v1888 = vadd.f32 %v831, %v1887
    %v1889 = vpop.f32.mrf.mxu0
    %v1890 = vadd.f32 %v827, %v1889
    %v1891 = vpop.f32.mrf.mxu0
    %v1892 = vadd.f32 %v831, %v1891
    %1893 = vmatprep.mubr.bf16.mxu0 0
    %1894 = vmatmul.mubr.bf16.gmra.mxu0 %v1053
    %v1895 = vpop.f32.mrf.mxu0
    %v1896 = vadd.f32 %v827, %v1895
    %v1897 = vpop.f32.mrf.mxu0
    %v1898 = vadd.f32 %v831, %v1897
    %v1899 = vpop.f32.mrf.mxu0
    %v1900 = vadd.f32 %v827, %v1899
    %v1901 = vpop.f32.mrf.mxu0
    %v1902 = vadd.f32 %v831, %v1901
    %1903 = vmatprep.mubr.bf16.mxu0 0
    %1904 = vmatmul.mubr.bf16.gmra.mxu0 %v1056
    %v1905 = vpop.f32.mrf.mxu0
    %v1906 = vadd.f32 %v827, %v1905
    %v1907 = vpop.f32.mrf.mxu0
    %v1908 = vadd.f32 %v831, %v1907
    %v1909 = vpop.f32.mrf.mxu0
    %v1910 = vadd.f32 %v827, %v1909
    %v1911 = vpop.f32.mrf.mxu0
    %v1912 = vadd.f32 %v831, %v1911
    %1913 = vmatprep.mubr.bf16.mxu0 0
    %1914 = vmatmul.mubr.bf16.gmra.mxu0 %v1059
    %v1915 = vpop.f32.mrf.mxu0
    %v1916 = vadd.f32 %v827, %v1915
    %v1917 = vpop.f32.mrf.mxu0
    %v1918 = vadd.f32 %v831, %v1917
    %v1919 = vpop.f32.mrf.mxu0
    %v1920 = vadd.f32 %v827, %v1919
    %v1921 = vpop.f32.mrf.mxu0
    %v1922 = vadd.f32 %v831, %v1921
    %1923 = vmatprep.mubr.bf16.mxu0 0
    %1924 = vmatmul.mubr.bf16.gmra.mxu0 %v1062
    %v1925 = vpop.f32.mrf.mxu0
    %v1926 = vadd.f32 %v827, %v1925
    %v1927 = vpop.f32.mrf.mxu0
    %v1928 = vadd.f32 %v831, %v1927
    %v1929 = vpop.f32.mrf.mxu0
    %v1930 = vadd.f32 %v827, %v1929
    %v1931 = vpop.f32.mrf.mxu0
    %v1932 = vadd.f32 %v831, %v1931
    %1933 = vmatprep.mubr.bf16.mxu0 0
    %1934 = vmatmul.mubr.bf16.gmra.mxu0 %v1065
    %v1935 = vpop.f32.mrf.mxu0
    %v1936 = vadd.f32 %v827, %v1935
    %v1937 = vpop.f32.mrf.mxu0
    %v1938 = vadd.f32 %v831, %v1937
    %v1939 = vpop.f32.mrf.mxu0
    %v1940 = vadd.f32 %v827, %v1939
    %v1941 = vpop.f32.mrf.mxu0
    %v1942 = vadd.f32 %v831, %v1941
    %1943 = vmatprep.mubr.bf16.mxu0 0
    %1944 = vmatmul.mubr.bf16.gmra.mxu0 %v1068
    %v1945 = vpop.f32.mrf.mxu0
    %v1946 = vadd.f32 %v827, %v1945
    %v1947 = vpop.f32.mrf.mxu0
    %v1948 = vadd.f32 %v831, %v1947
    %v1949 = vpop.f32.mrf.mxu0
    %v1950 = vadd.f32 %v827, %v1949
    %v1951 = vpop.f32.mrf.mxu0
    %v1952 = vadd.f32 %v831, %v1951
    %1953 = vmatprep.mubr.bf16.mxu0 0
    %1954 = vmatmul.mubr.bf16.gmra.mxu0 %v1071
    %v1955 = vpop.f32.mrf.mxu0
    %v1956 = vadd.f32 %v827, %v1955
    %v1957 = vpop.f32.mrf.mxu0
    %v1958 = vadd.f32 %v831, %v1957
    %v1959 = vpop.f32.mrf.mxu0
    %v1960 = vadd.f32 %v827, %v1959
    %v1961 = vpop.f32.mrf.mxu0
    %v1962 = vadd.f32 %v831, %v1961
    %1963 = vmatprep.mubr.bf16.mxu0 0
    %1964 = vmatmul.mubr.bf16.gmra.mxu0 %v1074
    %v1965 = vpop.f32.mrf.mxu0
    %v1966 = vadd.f32 %v827, %v1965
    %v1967 = vpop.f32.mrf.mxu0
    %v1968 = vadd.f32 %v831, %v1967
    %v1969 = vpop.f32.mrf.mxu0
    %v1970 = vadd.f32 %v827, %v1969
    %v1971 = vpop.f32.mrf.mxu0
    %v1972 = vadd.f32 %v831, %v1971
    %1973 = vmatprep.mubr.bf16.mxu0 0
    %1974 = vmatmul.mubr.bf16.gmra.mxu0 %v1077
    %v1975 = vpop.f32.mrf.mxu0
    %v1976 = vadd.f32 %v827, %v1975
    %v1977 = vpop.f32.mrf.mxu0
    %v1978 = vadd.f32 %v831, %v1977
    %v1979 = vpop.f32.mrf.mxu0
    %v1980 = vadd.f32 %v827, %v1979
    %v1981 = vpop.f32.mrf.mxu0
    %v1982 = vadd.f32 %v831, %v1981
    %1983 = vmatprep.mubr.bf16.mxu0 0
    %1984 = vmatmul.mubr.bf16.gmra.mxu0 %v1080
    %v1985 = vpop.f32.mrf.mxu0
    %v1986 = vadd.f32 %v827, %v1985
    %v1987 = vpop.f32.mrf.mxu0
    %v1988 = vadd.f32 %v831, %v1987
    %v1989 = vpop.f32.mrf.mxu0
    %v1990 = vadd.f32 %v827, %v1989
    %v1991 = vpop.f32.mrf.mxu0
    %v1992 = vadd.f32 %v831, %v1991
    %1993 = vmatprep.mubr.bf16.mxu0 0
    %1994 = vmatmul.mubr.bf16.gmra.mxu0 %v1083
    %v1995 = vpop.f32.mrf.mxu0
    %v1996 = vadd.f32 %v827, %v1995
    %v1997 = vpop.f32.mrf.mxu0
    %v1998 = vadd.f32 %v831, %v1997
    %v1999 = vpop.f32.mrf.mxu0
    %v2000 = vadd.f32 %v827, %v1999
    %v2001 = vpop.f32.mrf.mxu0
    %v2002 = vadd.f32 %v831, %v2001
    %2003 = vmatprep.mubr.bf16.mxu0 0
    %2004 = vmatmul.mubr.bf16.gmra.mxu0 %v1086
    %v2005 = vpop.f32.mrf.mxu0
    %v2006 = vadd.f32 %v827, %v2005
    %v2007 = vpop.f32.mrf.mxu0
    %v2008 = vadd.f32 %v831, %v2007
    %v2009 = vpop.f32.mrf.mxu0
    %v2010 = vadd.f32 %v827, %v2009
    %v2011 = vpop.f32.mrf.mxu0
    %v2012 = vadd.f32 %v831, %v2011
    %2013 = vmatprep.mubr.bf16.mxu0 0
    %2014 = vmatmul.mubr.bf16.gmra.mxu0 %v1089
    %v2015 = vpop.f32.mrf.mxu0
    %v2016 = vadd.f32 %v827, %v2015
    %v2017 = vpop.f32.mrf.mxu0
    %v2018 = vadd.f32 %v831, %v2017
    %v2019 = vpop.f32.mrf.mxu0
    %v2020 = vadd.f32 %v827, %v2019
    %v2021 = vpop.f32.mrf.mxu0
    %v2022 = vadd.f32 %v831, %v2021
    %2023 = vmatprep.mubr.bf16.mxu0 0
    %2024 = vmatmul.mubr.bf16.gmra.mxu0 %v1092
    %v2025 = vpop.f32.mrf.mxu0
    %v2026 = vadd.f32 %v827, %v2025
    %v2027 = vpop.f32.mrf.mxu0
    %v2028 = vadd.f32 %v831, %v2027
    %v2029 = vpop.f32.mrf.mxu0
    %v2030 = vadd.f32 %v827, %v2029
    %v2031 = vpop.f32.mrf.mxu0
    %v2032 = vadd.f32 %v831, %v2031
    %2033 = vmatprep.mubr.bf16.mxu0 0
    %2034 = vmatmul.mubr.bf16.gmra.mxu0 %v1095
    %v2035 = vpop.f32.mrf.mxu0
    %v2036 = vadd.f32 %v827, %v2035
    %v2037 = vpop.f32.mrf.mxu0
    %v2038 = vadd.f32 %v831, %v2037
    %v2039 = vpop.f32.mrf.mxu0
    %v2040 = vadd.f32 %v827, %v2039
    %v2041 = vpop.f32.mrf.mxu0
    %v2042 = vadd.f32 %v831, %v2041
    %2043 = vmatprep.mubr.bf16.mxu0 0
    %2044 = vmatmul.mubr.bf16.gmra.mxu0 %v1098
    %v2045 = vpop.f32.mrf.mxu0
    %v2046 = vadd.f32 %v827, %v2045
    %v2047 = vpop.f32.mrf.mxu0
    %v2048 = vadd.f32 %v831, %v2047
    %v2049 = vpop.f32.mrf.mxu0
    %v2050 = vadd.f32 %v827, %v2049
    %v2051 = vpop.f32.mrf.mxu0
    %v2052 = vadd.f32 %v831, %v2051
    %2053 = vmatprep.mubr.bf16.mxu0 0
    %2054 = vmatmul.mubr.bf16.gmra.mxu0 %v1101
    %v2055 = vpop.f32.mrf.mxu0
    %v2056 = vadd.f32 %v827, %v2055
    %v2057 = vpop.f32.mrf.mxu0
    %v2058 = vadd.f32 %v831, %v2057
    %v2059 = vpop.f32.mrf.mxu0
    %v2060 = vadd.f32 %v827, %v2059
    %v2061 = vpop.f32.mrf.mxu0
    %v2062 = vadd.f32 %v831, %v2061
    %2063 = vmatprep.mubr.bf16.mxu0 0
    %2064 = vmatmul.mubr.bf16.gmra.mxu0 %v1104
    %v2065 = vpop.f32.mrf.mxu0
    %v2066 = vadd.f32 %v827, %v2065
    %v2067 = vpop.f32.mrf.mxu0
    %v2068 = vadd.f32 %v831, %v2067
    %v2069 = vpop.f32.mrf.mxu0
    %v2070 = vadd.f32 %v827, %v2069
    %v2071 = vpop.f32.mrf.mxu0
    %v2072 = vadd.f32 %v831, %v2071
    %2073 = vmatprep.mubr.bf16.mxu0 0
    %2074 = vmatmul.mubr.bf16.gmra.mxu0 %v1107
    %v2075 = vpop.f32.mrf.mxu0
    %v2076 = vadd.f32 %v827, %v2075
    %v2077 = vpop.f32.mrf.mxu0
    %v2078 = vadd.f32 %v831, %v2077
    %v2079 = vpop.f32.mrf.mxu0
    %v2080 = vadd.f32 %v827, %v2079
    %v2081 = vpop.f32.mrf.mxu0
    %v2082 = vadd.f32 %v831, %v2081
    %2083 = vmatprep.mubr.bf16.mxu0 0
    %2084 = vmatmul.mubr.bf16.gmra.mxu0 %v1110
    %v2085 = vpop.f32.mrf.mxu0
    %v2086 = vadd.f32 %v827, %v2085
    %v2087 = vpop.f32.mrf.mxu0
    %v2088 = vadd.f32 %v831, %v2087
    %v2089 = vpop.f32.mrf.mxu0
    %v2090 = vadd.f32 %v827, %v2089
    %v2091 = vpop.f32.mrf.mxu0
    %v2092 = vadd.f32 %v831, %v2091
    %2093 = vmatprep.mubr.bf16.mxu0 0
    %2094 = vmatmul.mubr.bf16.gmra.mxu0 %v1113
    %v2095 = vpop.f32.mrf.mxu0
    %v2096 = vadd.f32 %v827, %v2095
    %v2097 = vpop.f32.mrf.mxu0
    %v2098 = vadd.f32 %v831, %v2097
    %v2099 = vpop.f32.mrf.mxu0
    %v2100 = vadd.f32 %v827, %v2099
    %v2101 = vpop.f32.mrf.mxu0
    %v2102 = vadd.f32 %v831, %v2101
    %2103 = vmatprep.mubr.bf16.mxu0 0
    %2104 = vmatmul.mubr.bf16.gmra.mxu0 %v1116
    %v2105 = vpop.f32.mrf.mxu0
    %v2106 = vadd.f32 %v827, %v2105
    %v2107 = vpop.f32.mrf.mxu0
    %v2108 = vadd.f32 %v831, %v2107
    %v2109 = vpop.f32.mrf.mxu0
    %v2110 = vadd.f32 %v827, %v2109
    %v2111 = vpop.f32.mrf.mxu0
    %v2112 = vadd.f32 %v831, %v2111
    %2113 = vmatprep.mubr.bf16.mxu0 0
    %2114 = vmatmul.mubr.bf16.gmra.mxu0 %v1119
    %v2115 = vpop.f32.mrf.mxu0
    %v2116 = vadd.f32 %v827, %v2115
    %v2117 = vpop.f32.mrf.mxu0
    %v2118 = vadd.f32 %v831, %v2117
    %v2119 = vpop.f32.mrf.mxu0
    %v2120 = vadd.f32 %v827, %v2119
    %v2121 = vpop.f32.mrf.mxu0
    %v2122 = vadd.f32 %v831, %v2121
    %2123 = vmatprep.mubr.bf16.mxu0 0
    %2124 = vmatmul.mubr.bf16.gmra.mxu0 %v1122
    %v2125 = vpop.f32.mrf.mxu0
    %v2126 = vadd.f32 %v827, %v2125
    %v2127 = vpop.f32.mrf.mxu0
    %v2128 = vadd.f32 %v831, %v2127
    %v2129 = vpop.f32.mrf.mxu0
    %v2130 = vadd.f32 %v827, %v2129
    %v2131 = vpop.f32.mrf.mxu0
    %v2132 = vadd.f32 %v831, %v2131
    %2133 = vmatprep.mubr.bf16.mxu0 0
    %2134 = vmatmul.mubr.bf16.gmra.mxu0 %v1125
    %v2135 = vpop.f32.mrf.mxu0
    %v2136 = vadd.f32 %v827, %v2135
    %v2137 = vpop.f32.mrf.mxu0
    %v2138 = vadd.f32 %v831, %v2137
    %v2139 = vpop.f32.mrf.mxu0
    %v2140 = vadd.f32 %v827, %v2139
    %v2141 = vpop.f32.mrf.mxu0
    %v2142 = vadd.f32 %v831, %v2141
    %2143 = vmatprep.mubr.bf16.mxu0 0
    %2144 = vmatmul.mubr.bf16.gmra.mxu0 %v1128
    %v2145 = vpop.f32.mrf.mxu0
    %v2146 = vadd.f32 %v827, %v2145
    %v2147 = vpop.f32.mrf.mxu0
    %v2148 = vadd.f32 %v831, %v2147
    %v2149 = vpop.f32.mrf.mxu0
    %v2150 = vadd.f32 %v827, %v2149
    %v2151 = vpop.f32.mrf.mxu0
    %v2152 = vadd.f32 %v831, %v2151
    %2153 = vmatprep.mubr.bf16.mxu0 0
    %2154 = vmatmul.mubr.bf16.gmra.mxu0 %v1131
    %v2155 = vpop.f32.mrf.mxu0
    %v2156 = vadd.f32 %v827, %v2155
    %v2157 = vpop.f32.mrf.mxu0
    %v2158 = vadd.f32 %v831, %v2157
    %v2159 = vpop.f32.mrf.mxu0
    %v2160 = vadd.f32 %v827, %v2159
    %v2161 = vpop.f32.mrf.mxu0
    %v2162 = vadd.f32 %v831, %v2161
    %2163 = vmatprep.mubr.bf16.mxu0 0
    %2164 = vmatmul.mubr.bf16.gmra.mxu0 %v1134
    %v2165 = vpop.f32.mrf.mxu0
    %v2166 = vadd.f32 %v827, %v2165
    %v2167 = vpop.f32.mrf.mxu0
    %v2168 = vadd.f32 %v831, %v2167
    %v2169 = vpop.f32.mrf.mxu0
    %v2170 = vadd.f32 %v827, %v2169
    %v2171 = vpop.f32.mrf.mxu0
    %v2172 = vadd.f32 %v831, %v2171
    %2173 = vmatprep.mubr.bf16.mxu0 0
    %2174 = vmatmul.mubr.bf16.gmra.mxu0 %v1137
    %v2175 = vpop.f32.mrf.mxu0
    %v2176 = vadd.f32 %v827, %v2175
    %v2177 = vpop.f32.mrf.mxu0
    %v2178 = vadd.f32 %v831, %v2177
    %v2179 = vpop.f32.mrf.mxu0
    %v2180 = vadd.f32 %v827, %v2179
    %v2181 = vpop.f32.mrf.mxu0
    %v2182 = vadd.f32 %v831, %v2181
    %2183 = vmatprep.mubr.bf16.mxu0 0
    %2184 = vmatmul.mubr.bf16.gmra.mxu0 %v1140
    %v2185 = vpop.f32.mrf.mxu0
    %v2186 = vadd.f32 %v827, %v2185
    %v2187 = vpop.f32.mrf.mxu0
    %v2188 = vadd.f32 %v831, %v2187
    %v2189 = vpop.f32.mrf.mxu0
    %v2190 = vadd.f32 %v827, %v2189
    %v2191 = vpop.f32.mrf.mxu0
    %v2192 = vadd.f32 %v831, %v2191
    %2193 = vmatprep.mubr.bf16.mxu0 0
    %2194 = vmatmul.mubr.bf16.gmra.mxu0 %v1143
    %v2195 = vpop.f32.mrf.mxu0
    %v2196 = vadd.f32 %v827, %v2195
    %v2197 = vpop.f32.mrf.mxu0
    %v2198 = vadd.f32 %v831, %v2197
    %v2199 = vpop.f32.mrf.mxu0
    %v2200 = vadd.f32 %v827, %v2199
    %v2201 = vpop.f32.mrf.mxu0
    %v2202 = vadd.f32 %v831, %v2201
    %2203 = vdwg.mxu0
    %2204 = vmatprep.subr.bf16.mxu0 0
    %2205 = vmatpush1.bf16.msra.mxu0 0
    %2206 = vmatprep.subr.bf16.mxu0 0
    %2207 = vmatpush1.bf16.msra.mxu0 0
    %2208 = vmatprep.subr.bf16.mxu0 0
    %2209 = vmatpush1.bf16.msra.mxu0 0
    %2210 = vmatprep.subr.bf16.mxu0 0
    %2211 = vmatpush1.bf16.msra.mxu0 0
    %2212 = vmatprep.subr.bf16.mxu0 0
    %2213 = vmatpush1.bf16.msra.mxu0 0
    %2214 = vmatprep.subr.bf16.mxu0 0
    %2215 = vmatpush1.bf16.msra.mxu0 0
    %2216 = vmatprep.subr.bf16.mxu0 %v1007
    %2217 = vmatpush1.bf16.msra.mxu0 %v1006
    %2218 = vmatprep.subr.bf16.mxu0 %v991
    %2219 = vmatpush1.bf16.msra.mxu0 %v990
    %2220 = vmatprep.subr.bf16.mxu0 0
    %2221 = vmatpush2.bf16.msra.mxu0 0
    %2222 = vmatprep.subr.bf16.mxu0 0
    %2223 = vmatpush2.bf16.msra.mxu0 0
    %2224 = vmatprep.subr.bf16.mxu0 0
    %2225 = vmatpush2.bf16.msra.mxu0 0
    %2226 = vmatprep.subr.bf16.mxu0 0
    %2227 = vmatpush2.bf16.msra.mxu0 0
    %2228 = vmatprep.subr.bf16.mxu0 0
    %2229 = vmatpush2.bf16.msra.mxu0 0
    %2230 = vmatprep.subr.bf16.mxu0 0
    %2231 = vmatpush2.bf16.msra.mxu0 0
    %2232 = vmatprep.subr.bf16.mxu0 0
    %2233 = vmatpush2.bf16.msra.mxu0 0
    %2234 = vmatprep.subr.bf16.mxu0 0
    %2235 = vmatpush2.bf16.msra.mxu0 0
    %2236 = vmatprep.mubr.bf16.mxu0 0
    %2237 = vmatmul.mubr.bf16.gmra.mxu0 %v1050
    %v2238 = vpop.f32.mrf.mxu0
    %v2239 = vadd.f32 %v835, %v2238
    %v2240 = vpop.f32.mrf.mxu0
    %v2241 = vadd.f32 %v839, %v2240
    %v2242 = vpop.f32.mrf.mxu0
    %v2243 = vadd.f32 %v835, %v2242
    %v2244 = vpop.f32.mrf.mxu0
    %v2245 = vadd.f32 %v839, %v2244
    %2246 = vmatprep.mubr.bf16.mxu0 0
    %2247 = vmatmul.mubr.bf16.gmra.mxu0 %v1053
    %v2248 = vpop.f32.mrf.mxu0
    %v2249 = vadd.f32 %v835, %v2248
    %v2250 = vpop.f32.mrf.mxu0
    %v2251 = vadd.f32 %v839, %v2250
    %v2252 = vpop.f32.mrf.mxu0
    %v2253 = vadd.f32 %v835, %v2252
    %v2254 = vpop.f32.mrf.mxu0
    %v2255 = vadd.f32 %v839, %v2254
    %2256 = vmatprep.mubr.bf16.mxu0 0
    %2257 = vmatmul.mubr.bf16.gmra.mxu0 %v1056
    %v2258 = vpop.f32.mrf.mxu0
    %v2259 = vadd.f32 %v835, %v2258
    %v2260 = vpop.f32.mrf.mxu0
    %v2261 = vadd.f32 %v839, %v2260
    %v2262 = vpop.f32.mrf.mxu0
    %v2263 = vadd.f32 %v835, %v2262
    %v2264 = vpop.f32.mrf.mxu0
    %v2265 = vadd.f32 %v839, %v2264
    %2266 = vmatprep.mubr.bf16.mxu0 0
    %2267 = vmatmul.mubr.bf16.gmra.mxu0 %v1059
    %v2268 = vpop.f32.mrf.mxu0
    %v2269 = vadd.f32 %v835, %v2268
    %v2270 = vpop.f32.mrf.mxu0
    %v2271 = vadd.f32 %v839, %v2270
    %v2272 = vpop.f32.mrf.mxu0
    %v2273 = vadd.f32 %v835, %v2272
    %v2274 = vpop.f32.mrf.mxu0
    %v2275 = vadd.f32 %v839, %v2274
    %2276 = vmatprep.mubr.bf16.mxu0 0
    %2277 = vmatmul.mubr.bf16.gmra.mxu0 %v1062
    %v2278 = vpop.f32.mrf.mxu0
    %v2279 = vadd.f32 %v835, %v2278
    %v2280 = vpop.f32.mrf.mxu0
    %v2281 = vadd.f32 %v839, %v2280
    %v2282 = vpop.f32.mrf.mxu0
    %v2283 = vadd.f32 %v835, %v2282
    %v2284 = vpop.f32.mrf.mxu0
    %v2285 = vadd.f32 %v839, %v2284
    %2286 = vmatprep.mubr.bf16.mxu0 0
    %2287 = vmatmul.mubr.bf16.gmra.mxu0 %v1065
    %v2288 = vpop.f32.mrf.mxu0
    %v2289 = vadd.f32 %v835, %v2288
    %v2290 = vpop.f32.mrf.mxu0
    %v2291 = vadd.f32 %v839, %v2290
    %v2292 = vpop.f32.mrf.mxu0
    %v2293 = vadd.f32 %v835, %v2292
    %v2294 = vpop.f32.mrf.mxu0
    %v2295 = vadd.f32 %v839, %v2294
    %2296 = vmatprep.mubr.bf16.mxu0 0
    %2297 = vmatmul.mubr.bf16.gmra.mxu0 %v1068
    %v2298 = vpop.f32.mrf.mxu0
    %v2299 = vadd.f32 %v835, %v2298
    %v2300 = vpop.f32.mrf.mxu0
    %v2301 = vadd.f32 %v839, %v2300
    %v2302 = vpop.f32.mrf.mxu0
    %v2303 = vadd.f32 %v835, %v2302
    %v2304 = vpop.f32.mrf.mxu0
    %v2305 = vadd.f32 %v839, %v2304
    %2306 = vmatprep.mubr.bf16.mxu0 0
    %2307 = vmatmul.mubr.bf16.gmra.mxu0 %v1071
    %v2308 = vpop.f32.mrf.mxu0
    %v2309 = vadd.f32 %v835, %v2308
    %v2310 = vpop.f32.mrf.mxu0
    %v2311 = vadd.f32 %v839, %v2310
    %v2312 = vpop.f32.mrf.mxu0
    %v2313 = vadd.f32 %v835, %v2312
    %v2314 = vpop.f32.mrf.mxu0
    %v2315 = vadd.f32 %v839, %v2314
    %2316 = vmatprep.mubr.bf16.mxu0 0
    %2317 = vmatmul.mubr.bf16.gmra.mxu0 %v1074
    %v2318 = vpop.f32.mrf.mxu0
    %v2319 = vadd.f32 %v835, %v2318
    %v2320 = vpop.f32.mrf.mxu0
    %v2321 = vadd.f32 %v839, %v2320
    %v2322 = vpop.f32.mrf.mxu0
    %v2323 = vadd.f32 %v835, %v2322
    %v2324 = vpop.f32.mrf.mxu0
    %v2325 = vadd.f32 %v839, %v2324
    %2326 = vmatprep.mubr.bf16.mxu0 0
    %2327 = vmatmul.mubr.bf16.gmra.mxu0 %v1077
    %v2328 = vpop.f32.mrf.mxu0
    %v2329 = vadd.f32 %v835, %v2328
    %v2330 = vpop.f32.mrf.mxu0
    %v2331 = vadd.f32 %v839, %v2330
    %v2332 = vpop.f32.mrf.mxu0
    %v2333 = vadd.f32 %v835, %v2332
    %v2334 = vpop.f32.mrf.mxu0
    %v2335 = vadd.f32 %v839, %v2334
    %2336 = vmatprep.mubr.bf16.mxu0 0
    %2337 = vmatmul.mubr.bf16.gmra.mxu0 %v1080
    %v2338 = vpop.f32.mrf.mxu0
    %v2339 = vadd.f32 %v835, %v2338
    %v2340 = vpop.f32.mrf.mxu0
    %v2341 = vadd.f32 %v839, %v2340
    %v2342 = vpop.f32.mrf.mxu0
    %v2343 = vadd.f32 %v835, %v2342
    %v2344 = vpop.f32.mrf.mxu0
    %v2345 = vadd.f32 %v839, %v2344
    %2346 = vmatprep.mubr.bf16.mxu0 0
    %2347 = vmatmul.mubr.bf16.gmra.mxu0 %v1083
    %v2348 = vpop.f32.mrf.mxu0
    %v2349 = vadd.f32 %v835, %v2348
    %v2350 = vpop.f32.mrf.mxu0
    %v2351 = vadd.f32 %v839, %v2350
    %v2352 = vpop.f32.mrf.mxu0
    %v2353 = vadd.f32 %v835, %v2352
    %v2354 = vpop.f32.mrf.mxu0
    %v2355 = vadd.f32 %v839, %v2354
    %2356 = vmatprep.mubr.bf16.mxu0 0
    %2357 = vmatmul.mubr.bf16.gmra.mxu0 %v1086
    %v2358 = vpop.f32.mrf.mxu0
    %v2359 = vadd.f32 %v835, %v2358
    %v2360 = vpop.f32.mrf.mxu0
    %v2361 = vadd.f32 %v839, %v2360
    %v2362 = vpop.f32.mrf.mxu0
    %v2363 = vadd.f32 %v835, %v2362
    %v2364 = vpop.f32.mrf.mxu0
    %v2365 = vadd.f32 %v839, %v2364
    %2366 = vmatprep.mubr.bf16.mxu0 0
    %2367 = vmatmul.mubr.bf16.gmra.mxu0 %v1089
    %v2368 = vpop.f32.mrf.mxu0
    %v2369 = vadd.f32 %v835, %v2368
    %v2370 = vpop.f32.mrf.mxu0
    %v2371 = vadd.f32 %v839, %v2370
    %v2372 = vpop.f32.mrf.mxu0
    %v2373 = vadd.f32 %v835, %v2372
    %v2374 = vpop.f32.mrf.mxu0
    %v2375 = vadd.f32 %v839, %v2374
    %2376 = vmatprep.mubr.bf16.mxu0 0
    %2377 = vmatmul.mubr.bf16.gmra.mxu0 %v1092
    %v2378 = vpop.f32.mrf.mxu0
    %v2379 = vadd.f32 %v835, %v2378
    %v2380 = vpop.f32.mrf.mxu0
    %v2381 = vadd.f32 %v839, %v2380
    %v2382 = vpop.f32.mrf.mxu0
    %v2383 = vadd.f32 %v835, %v2382
    %v2384 = vpop.f32.mrf.mxu0
    %v2385 = vadd.f32 %v839, %v2384
    %2386 = vmatprep.mubr.bf16.mxu0 0
    %2387 = vmatmul.mubr.bf16.gmra.mxu0 %v1095
    %v2388 = vpop.f32.mrf.mxu0
    %v2389 = vadd.f32 %v835, %v2388
    %v2390 = vpop.f32.mrf.mxu0
    %v2391 = vadd.f32 %v839, %v2390
    %v2392 = vpop.f32.mrf.mxu0
    %v2393 = vadd.f32 %v835, %v2392
    %v2394 = vpop.f32.mrf.mxu0
    %v2395 = vadd.f32 %v839, %v2394
    %2396 = vmatprep.mubr.bf16.mxu0 0
    %2397 = vmatmul.mubr.bf16.gmra.mxu0 %v1098
    %v2398 = vpop.f32.mrf.mxu0
    %v2399 = vadd.f32 %v835, %v2398
    %v2400 = vpop.f32.mrf.mxu0
    %v2401 = vadd.f32 %v839, %v2400
    %v2402 = vpop.f32.mrf.mxu0
    %v2403 = vadd.f32 %v835, %v2402
    %v2404 = vpop.f32.mrf.mxu0
    %v2405 = vadd.f32 %v839, %v2404
    %2406 = vmatprep.mubr.bf16.mxu0 0
    %2407 = vmatmul.mubr.bf16.gmra.mxu0 %v1101
    %v2408 = vpop.f32.mrf.mxu0
    %v2409 = vadd.f32 %v835, %v2408
    %v2410 = vpop.f32.mrf.mxu0
    %v2411 = vadd.f32 %v839, %v2410
    %v2412 = vpop.f32.mrf.mxu0
    %v2413 = vadd.f32 %v835, %v2412
    %v2414 = vpop.f32.mrf.mxu0
    %v2415 = vadd.f32 %v839, %v2414
    %2416 = vmatprep.mubr.bf16.mxu0 0
    %2417 = vmatmul.mubr.bf16.gmra.mxu0 %v1104
    %v2418 = vpop.f32.mrf.mxu0
    %v2419 = vadd.f32 %v835, %v2418
    %v2420 = vpop.f32.mrf.mxu0
    %v2421 = vadd.f32 %v839, %v2420
    %v2422 = vpop.f32.mrf.mxu0
    %v2423 = vadd.f32 %v835, %v2422
    %v2424 = vpop.f32.mrf.mxu0
    %v2425 = vadd.f32 %v839, %v2424
    %2426 = vmatprep.mubr.bf16.mxu0 0
    %2427 = vmatmul.mubr.bf16.gmra.mxu0 %v1107
    %v2428 = vpop.f32.mrf.mxu0
    %v2429 = vadd.f32 %v835, %v2428
    %v2430 = vpop.f32.mrf.mxu0
    %v2431 = vadd.f32 %v839, %v2430
    %v2432 = vpop.f32.mrf.mxu0
    %v2433 = vadd.f32 %v835, %v2432
    %v2434 = vpop.f32.mrf.mxu0
    %v2435 = vadd.f32 %v839, %v2434
    %2436 = vmatprep.mubr.bf16.mxu0 0
    %2437 = vmatmul.mubr.bf16.gmra.mxu0 %v1110
    %v2438 = vpop.f32.mrf.mxu0
    %v2439 = vadd.f32 %v835, %v2438
    %v2440 = vpop.f32.mrf.mxu0
    %v2441 = vadd.f32 %v839, %v2440
    %v2442 = vpop.f32.mrf.mxu0
    %v2443 = vadd.f32 %v835, %v2442
    %v2444 = vpop.f32.mrf.mxu0
    %v2445 = vadd.f32 %v839, %v2444
    %2446 = vmatprep.mubr.bf16.mxu0 0
    %2447 = vmatmul.mubr.bf16.gmra.mxu0 %v1113
    %v2448 = vpop.f32.mrf.mxu0
    %v2449 = vadd.f32 %v835, %v2448
    %v2450 = vpop.f32.mrf.mxu0
    %v2451 = vadd.f32 %v839, %v2450
    %v2452 = vpop.f32.mrf.mxu0
    %v2453 = vadd.f32 %v835, %v2452
    %v2454 = vpop.f32.mrf.mxu0
    %v2455 = vadd.f32 %v839, %v2454
    %2456 = vmatprep.mubr.bf16.mxu0 0
    %2457 = vmatmul.mubr.bf16.gmra.mxu0 %v1116
    %v2458 = vpop.f32.mrf.mxu0
    %v2459 = vadd.f32 %v835, %v2458
    %v2460 = vpop.f32.mrf.mxu0
    %v2461 = vadd.f32 %v839, %v2460
    %v2462 = vpop.f32.mrf.mxu0
    %v2463 = vadd.f32 %v835, %v2462
    %v2464 = vpop.f32.mrf.mxu0
    %v2465 = vadd.f32 %v839, %v2464
    %2466 = vmatprep.mubr.bf16.mxu0 0
    %2467 = vmatmul.mubr.bf16.gmra.mxu0 %v1119
    %v2468 = vpop.f32.mrf.mxu0
    %v2469 = vadd.f32 %v835, %v2468
    %v2470 = vpop.f32.mrf.mxu0
    %v2471 = vadd.f32 %v839, %v2470
    %v2472 = vpop.f32.mrf.mxu0
    %v2473 = vadd.f32 %v835, %v2472
    %v2474 = vpop.f32.mrf.mxu0
    %v2475 = vadd.f32 %v839, %v2474
    %2476 = vmatprep.mubr.bf16.mxu0 0
    %2477 = vmatmul.mubr.bf16.gmra.mxu0 %v1122
    %v2478 = vpop.f32.mrf.mxu0
    %v2479 = vadd.f32 %v835, %v2478
    %v2480 = vpop.f32.mrf.mxu0
    %v2481 = vadd.f32 %v839, %v2480
    %v2482 = vpop.f32.mrf.mxu0
    %v2483 = vadd.f32 %v835, %v2482
    %v2484 = vpop.f32.mrf.mxu0
    %v2485 = vadd.f32 %v839, %v2484
    %2486 = vmatprep.mubr.bf16.mxu0 0
    %2487 = vmatmul.mubr.bf16.gmra.mxu0 %v1125
    %v2488 = vpop.f32.mrf.mxu0
    %v2489 = vadd.f32 %v835, %v2488
    %v2490 = vpop.f32.mrf.mxu0
    %v2491 = vadd.f32 %v839, %v2490
    %v2492 = vpop.f32.mrf.mxu0
    %v2493 = vadd.f32 %v835, %v2492
    %v2494 = vpop.f32.mrf.mxu0
    %v2495 = vadd.f32 %v839, %v2494
    %2496 = vmatprep.mubr.bf16.mxu0 0
    %2497 = vmatmul.mubr.bf16.gmra.mxu0 %v1128
    %v2498 = vpop.f32.mrf.mxu0
    %v2499 = vadd.f32 %v835, %v2498
    %v2500 = vpop.f32.mrf.mxu0
    %v2501 = vadd.f32 %v839, %v2500
    %v2502 = vpop.f32.mrf.mxu0
    %v2503 = vadd.f32 %v835, %v2502
    %v2504 = vpop.f32.mrf.mxu0
    %v2505 = vadd.f32 %v839, %v2504
    %2506 = vmatprep.mubr.bf16.mxu0 0
    %2507 = vmatmul.mubr.bf16.gmra.mxu0 %v1131
    %v2508 = vpop.f32.mrf.mxu0
    %v2509 = vadd.f32 %v835, %v2508
    %v2510 = vpop.f32.mrf.mxu0
    %v2511 = vadd.f32 %v839, %v2510
    %v2512 = vpop.f32.mrf.mxu0
    %v2513 = vadd.f32 %v835, %v2512
    %v2514 = vpop.f32.mrf.mxu0
    %v2515 = vadd.f32 %v839, %v2514
    %2516 = vmatprep.mubr.bf16.mxu0 0
    %2517 = vmatmul.mubr.bf16.gmra.mxu0 %v1134
    %v2518 = vpop.f32.mrf.mxu0
    %v2519 = vadd.f32 %v835, %v2518
    %v2520 = vpop.f32.mrf.mxu0
    %v2521 = vadd.f32 %v839, %v2520
    %v2522 = vpop.f32.mrf.mxu0
    %v2523 = vadd.f32 %v835, %v2522
    %v2524 = vpop.f32.mrf.mxu0
    %v2525 = vadd.f32 %v839, %v2524
    %2526 = vmatprep.mubr.bf16.mxu0 0
    %2527 = vmatmul.mubr.bf16.gmra.mxu0 %v1137
    %v2528 = vpop.f32.mrf.mxu0
    %v2529 = vadd.f32 %v835, %v2528
    %v2530 = vpop.f32.mrf.mxu0
    %v2531 = vadd.f32 %v839, %v2530
    %v2532 = vpop.f32.mrf.mxu0
    %v2533 = vadd.f32 %v835, %v2532
    %v2534 = vpop.f32.mrf.mxu0
    %v2535 = vadd.f32 %v839, %v2534
    %2536 = vmatprep.mubr.bf16.mxu0 0
    %2537 = vmatmul.mubr.bf16.gmra.mxu0 %v1140
    %v2538 = vpop.f32.mrf.mxu0
    %v2539 = vadd.f32 %v835, %v2538
    %v2540 = vpop.f32.mrf.mxu0
    %v2541 = vadd.f32 %v839, %v2540
    %v2542 = vpop.f32.mrf.mxu0
    %v2543 = vadd.f32 %v835, %v2542
    %v2544 = vpop.f32.mrf.mxu0
    %v2545 = vadd.f32 %v839, %v2544
    %2546 = vmatprep.mubr.bf16.mxu0 0
    %2547 = vmatmul.mubr.bf16.gmra.mxu0 %v1143
    %v2548 = vpop.f32.mrf.mxu0
    %v2549 = vadd.f32 %v835, %v2548
    %v2550 = vpop.f32.mrf.mxu0
    %v2551 = vadd.f32 %v839, %v2550
    %v2552 = vpop.f32.mrf.mxu0
    %v2553 = vadd.f32 %v835, %v2552
    %v2554 = vpop.f32.mrf.mxu0
    %v2555 = vadd.f32 %v839, %v2554
    %2556 = vdwg.mxu0
    %2557 = vmatprep.subr.bf16.mxu0 0
    %2558 = vmatpush1.bf16.msra.mxu0 0
    %2559 = vmatprep.subr.bf16.mxu0 0
    %2560 = vmatpush1.bf16.msra.mxu0 0
    %2561 = vmatprep.subr.bf16.mxu0 0
    %2562 = vmatpush1.bf16.msra.mxu0 0
    %2563 = vmatprep.subr.bf16.mxu0 0
    %2564 = vmatpush1.bf16.msra.mxu0 0
    %2565 = vmatprep.subr.bf16.mxu0 0
    %2566 = vmatpush1.bf16.msra.mxu0 0
    %2567 = vmatprep.subr.bf16.mxu0 0
    %2568 = vmatpush1.bf16.msra.mxu0 0
    %2569 = vmatprep.subr.bf16.mxu0 %v1009
    %2570 = vmatpush1.bf16.msra.mxu0 %v1008
    %2571 = vmatprep.subr.bf16.mxu0 %v993
    %2572 = vmatpush1.bf16.msra.mxu0 %v992
    %2573 = vmatprep.subr.bf16.mxu0 0
    %2574 = vmatpush2.bf16.msra.mxu0 0
    %2575 = vmatprep.subr.bf16.mxu0 0
    %2576 = vmatpush2.bf16.msra.mxu0 0
    %2577 = vmatprep.subr.bf16.mxu0 0
    %2578 = vmatpush2.bf16.msra.mxu0 0
    %2579 = vmatprep.subr.bf16.mxu0 0
    %2580 = vmatpush2.bf16.msra.mxu0 0
    %2581 = vmatprep.subr.bf16.mxu0 0
    %2582 = vmatpush2.bf16.msra.mxu0 0
    %2583 = vmatprep.subr.bf16.mxu0 0
    %2584 = vmatpush2.bf16.msra.mxu0 0
    %2585 = vmatprep.subr.bf16.mxu0 0
    %2586 = vmatpush2.bf16.msra.mxu0 0
    %2587 = vmatprep.subr.bf16.mxu0 0
    %2588 = vmatpush2.bf16.msra.mxu0 0
    %2589 = vmatprep.mubr.bf16.mxu0 0
    %2590 = vmatmul.mubr.bf16.gmra.mxu0 %v1050
    %v2591 = vpop.f32.mrf.mxu0
    %v2592 = vadd.f32 %v843, %v2591
    %v2593 = vpop.f32.mrf.mxu0
    %v2594 = vadd.f32 %v847, %v2593
    %v2595 = vpop.f32.mrf.mxu0
    %v2596 = vadd.f32 %v843, %v2595
    %v2597 = vpop.f32.mrf.mxu0
    %v2598 = vadd.f32 %v847, %v2597
    %2599 = vmatprep.mubr.bf16.mxu0 0
    %2600 = vmatmul.mubr.bf16.gmra.mxu0 %v1053
    %v2601 = vpop.f32.mrf.mxu0
    %v2602 = vadd.f32 %v843, %v2601
    %v2603 = vpop.f32.mrf.mxu0
    %v2604 = vadd.f32 %v847, %v2603
    %v2605 = vpop.f32.mrf.mxu0
    %v2606 = vadd.f32 %v843, %v2605
    %v2607 = vpop.f32.mrf.mxu0
    %v2608 = vadd.f32 %v847, %v2607
    %2609 = vmatprep.mubr.bf16.mxu0 0
    %2610 = vmatmul.mubr.bf16.gmra.mxu0 %v1056
    %v2611 = vpop.f32.mrf.mxu0
    %v2612 = vadd.f32 %v843, %v2611
    %v2613 = vpop.f32.mrf.mxu0
    %v2614 = vadd.f32 %v847, %v2613
    %v2615 = vpop.f32.mrf.mxu0
    %v2616 = vadd.f32 %v843, %v2615
    %v2617 = vpop.f32.mrf.mxu0
    %v2618 = vadd.f32 %v847, %v2617
    %2619 = vmatprep.mubr.bf16.mxu0 0
    %2620 = vmatmul.mubr.bf16.gmra.mxu0 %v1059
    %v2621 = vpop.f32.mrf.mxu0
    %v2622 = vadd.f32 %v843, %v2621
    %v2623 = vpop.f32.mrf.mxu0
    %v2624 = vadd.f32 %v847, %v2623
    %v2625 = vpop.f32.mrf.mxu0
    %v2626 = vadd.f32 %v843, %v2625
    %v2627 = vpop.f32.mrf.mxu0
    %v2628 = vadd.f32 %v847, %v2627
    %2629 = vmatprep.mubr.bf16.mxu0 0
    %2630 = vmatmul.mubr.bf16.gmra.mxu0 %v1062
    %v2631 = vpop.f32.mrf.mxu0
    %v2632 = vadd.f32 %v843, %v2631
    %v2633 = vpop.f32.mrf.mxu0
    %v2634 = vadd.f32 %v847, %v2633
    %v2635 = vpop.f32.mrf.mxu0
    %v2636 = vadd.f32 %v843, %v2635
    %v2637 = vpop.f32.mrf.mxu0
    %v2638 = vadd.f32 %v847, %v2637
    %2639 = vmatprep.mubr.bf16.mxu0 0
    %2640 = vmatmul.mubr.bf16.gmra.mxu0 %v1065
    %v2641 = vpop.f32.mrf.mxu0
    %v2642 = vadd.f32 %v843, %v2641
    %v2643 = vpop.f32.mrf.mxu0
    %v2644 = vadd.f32 %v847, %v2643
    %v2645 = vpop.f32.mrf.mxu0
    %v2646 = vadd.f32 %v843, %v2645
    %v2647 = vpop.f32.mrf.mxu0
    %v2648 = vadd.f32 %v847, %v2647
    %2649 = vmatprep.mubr.bf16.mxu0 0
    %2650 = vmatmul.mubr.bf16.gmra.mxu0 %v1068
    %v2651 = vpop.f32.mrf.mxu0
    %v2652 = vadd.f32 %v843, %v2651
    %v2653 = vpop.f32.mrf.mxu0
    %v2654 = vadd.f32 %v847, %v2653
    %v2655 = vpop.f32.mrf.mxu0
    %v2656 = vadd.f32 %v843, %v2655
    %v2657 = vpop.f32.mrf.mxu0
    %v2658 = vadd.f32 %v847, %v2657
    %2659 = vmatprep.mubr.bf16.mxu0 0
    %2660 = vmatmul.mubr.bf16.gmra.mxu0 %v1071
    %v2661 = vpop.f32.mrf.mxu0
    %v2662 = vadd.f32 %v843, %v2661
    %v2663 = vpop.f32.mrf.mxu0
    %v2664 = vadd.f32 %v847, %v2663
    %v2665 = vpop.f32.mrf.mxu0
    %v2666 = vadd.f32 %v843, %v2665
    %v2667 = vpop.f32.mrf.mxu0
    %v2668 = vadd.f32 %v847, %v2667
    %2669 = vmatprep.mubr.bf16.mxu0 0
    %2670 = vmatmul.mubr.bf16.gmra.mxu0 %v1074
    %v2671 = vpop.f32.mrf.mxu0
    %v2672 = vadd.f32 %v843, %v2671
    %v2673 = vpop.f32.mrf.mxu0
    %v2674 = vadd.f32 %v847, %v2673
    %v2675 = vpop.f32.mrf.mxu0
    %v2676 = vadd.f32 %v843, %v2675
    %v2677 = vpop.f32.mrf.mxu0
    %v2678 = vadd.f32 %v847, %v2677
    %2679 = vmatprep.mubr.bf16.mxu0 0
    %2680 = vmatmul.mubr.bf16.gmra.mxu0 %v1077
    %v2681 = vpop.f32.mrf.mxu0
    %v2682 = vadd.f32 %v843, %v2681
    %v2683 = vpop.f32.mrf.mxu0
    %v2684 = vadd.f32 %v847, %v2683
    %v2685 = vpop.f32.mrf.mxu0
    %v2686 = vadd.f32 %v843, %v2685
    %v2687 = vpop.f32.mrf.mxu0
    %v2688 = vadd.f32 %v847, %v2687
    %2689 = vmatprep.mubr.bf16.mxu0 0
    %2690 = vmatmul.mubr.bf16.gmra.mxu0 %v1080
    %v2691 = vpop.f32.mrf.mxu0
    %v2692 = vadd.f32 %v843, %v2691
    %v2693 = vpop.f32.mrf.mxu0
    %v2694 = vadd.f32 %v847, %v2693
    %v2695 = vpop.f32.mrf.mxu0
    %v2696 = vadd.f32 %v843, %v2695
    %v2697 = vpop.f32.mrf.mxu0
    %v2698 = vadd.f32 %v847, %v2697
    %2699 = vmatprep.mubr.bf16.mxu0 0
    %2700 = vmatmul.mubr.bf16.gmra.mxu0 %v1083
    %v2701 = vpop.f32.mrf.mxu0
    %v2702 = vadd.f32 %v843, %v2701
    %v2703 = vpop.f32.mrf.mxu0
    %v2704 = vadd.f32 %v847, %v2703
    %v2705 = vpop.f32.mrf.mxu0
    %v2706 = vadd.f32 %v843, %v2705
    %v2707 = vpop.f32.mrf.mxu0
    %v2708 = vadd.f32 %v847, %v2707
    %2709 = vmatprep.mubr.bf16.mxu0 0
    %2710 = vmatmul.mubr.bf16.gmra.mxu0 %v1086
    %v2711 = vpop.f32.mrf.mxu0
    %v2712 = vadd.f32 %v843, %v2711
    %v2713 = vpop.f32.mrf.mxu0
    %v2714 = vadd.f32 %v847, %v2713
    %v2715 = vpop.f32.mrf.mxu0
    %v2716 = vadd.f32 %v843, %v2715
    %v2717 = vpop.f32.mrf.mxu0
    %v2718 = vadd.f32 %v847, %v2717
    %2719 = vmatprep.mubr.bf16.mxu0 0
    %2720 = vmatmul.mubr.bf16.gmra.mxu0 %v1089
    %v2721 = vpop.f32.mrf.mxu0
    %v2722 = vadd.f32 %v843, %v2721
    %v2723 = vpop.f32.mrf.mxu0
    %v2724 = vadd.f32 %v847, %v2723
    %v2725 = vpop.f32.mrf.mxu0
    %v2726 = vadd.f32 %v843, %v2725
    %v2727 = vpop.f32.mrf.mxu0
    %v2728 = vadd.f32 %v847, %v2727
    %2729 = vmatprep.mubr.bf16.mxu0 0
    %2730 = vmatmul.mubr.bf16.gmra.mxu0 %v1092
    %v2731 = vpop.f32.mrf.mxu0
    %v2732 = vadd.f32 %v843, %v2731
    %v2733 = vpop.f32.mrf.mxu0
    %v2734 = vadd.f32 %v847, %v2733
    %v2735 = vpop.f32.mrf.mxu0
    %v2736 = vadd.f32 %v843, %v2735
    %v2737 = vpop.f32.mrf.mxu0
    %v2738 = vadd.f32 %v847, %v2737
    %2739 = vmatprep.mubr.bf16.mxu0 0
    %2740 = vmatmul.mubr.bf16.gmra.mxu0 %v1095
    %v2741 = vpop.f32.mrf.mxu0
    %v2742 = vadd.f32 %v843, %v2741
    %v2743 = vpop.f32.mrf.mxu0
    %v2744 = vadd.f32 %v847, %v2743
    %v2745 = vpop.f32.mrf.mxu0
    %v2746 = vadd.f32 %v843, %v2745
    %v2747 = vpop.f32.mrf.mxu0
    %v2748 = vadd.f32 %v847, %v2747
    %2749 = vmatprep.mubr.bf16.mxu0 0
    %2750 = vmatmul.mubr.bf16.gmra.mxu0 %v1098
    %v2751 = vpop.f32.mrf.mxu0
    %v2752 = vadd.f32 %v843, %v2751
    %v2753 = vpop.f32.mrf.mxu0
    %v2754 = vadd.f32 %v847, %v2753
    %v2755 = vpop.f32.mrf.mxu0
    %v2756 = vadd.f32 %v843, %v2755
    %v2757 = vpop.f32.mrf.mxu0
    %v2758 = vadd.f32 %v847, %v2757
    %2759 = vmatprep.mubr.bf16.mxu0 0
    %2760 = vmatmul.mubr.bf16.gmra.mxu0 %v1101
    %v2761 = vpop.f32.mrf.mxu0
    %v2762 = vadd.f32 %v843, %v2761
    %v2763 = vpop.f32.mrf.mxu0
    %v2764 = vadd.f32 %v847, %v2763
    %v2765 = vpop.f32.mrf.mxu0
    %v2766 = vadd.f32 %v843, %v2765
    %v2767 = vpop.f32.mrf.mxu0
    %v2768 = vadd.f32 %v847, %v2767
    %2769 = vmatprep.mubr.bf16.mxu0 0
    %2770 = vmatmul.mubr.bf16.gmra.mxu0 %v1104
    %v2771 = vpop.f32.mrf.mxu0
    %v2772 = vadd.f32 %v843, %v2771
    %v2773 = vpop.f32.mrf.mxu0
    %v2774 = vadd.f32 %v847, %v2773
    %v2775 = vpop.f32.mrf.mxu0
    %v2776 = vadd.f32 %v843, %v2775
    %v2777 = vpop.f32.mrf.mxu0
    %v2778 = vadd.f32 %v847, %v2777
    %2779 = vmatprep.mubr.bf16.mxu0 0
    %2780 = vmatmul.mubr.bf16.gmra.mxu0 %v1107
    %v2781 = vpop.f32.mrf.mxu0
    %v2782 = vadd.f32 %v843, %v2781
    %v2783 = vpop.f32.mrf.mxu0
    %v2784 = vadd.f32 %v847, %v2783
    %v2785 = vpop.f32.mrf.mxu0
    %v2786 = vadd.f32 %v843, %v2785
    %v2787 = vpop.f32.mrf.mxu0
    %v2788 = vadd.f32 %v847, %v2787
    %2789 = vmatprep.mubr.bf16.mxu0 0
    %2790 = vmatmul.mubr.bf16.gmra.mxu0 %v1110
    %v2791 = vpop.f32.mrf.mxu0
    %v2792 = vadd.f32 %v843, %v2791
    %v2793 = vpop.f32.mrf.mxu0
    %v2794 = vadd.f32 %v847, %v2793
    %v2795 = vpop.f32.mrf.mxu0
    %v2796 = vadd.f32 %v843, %v2795
    %v2797 = vpop.f32.mrf.mxu0
    %v2798 = vadd.f32 %v847, %v2797
    %2799 = vmatprep.mubr.bf16.mxu0 0
    %2800 = vmatmul.mubr.bf16.gmra.mxu0 %v1113
    %v2801 = vpop.f32.mrf.mxu0
    %v2802 = vadd.f32 %v843, %v2801
    %v2803 = vpop.f32.mrf.mxu0
    %v2804 = vadd.f32 %v847, %v2803
    %v2805 = vpop.f32.mrf.mxu0
    %v2806 = vadd.f32 %v843, %v2805
    %v2807 = vpop.f32.mrf.mxu0
    %v2808 = vadd.f32 %v847, %v2807
    %2809 = vmatprep.mubr.bf16.mxu0 0
    %2810 = vmatmul.mubr.bf16.gmra.mxu0 %v1116
    %v2811 = vpop.f32.mrf.mxu0
    %v2812 = vadd.f32 %v843, %v2811
    %v2813 = vpop.f32.mrf.mxu0
    %v2814 = vadd.f32 %v847, %v2813
    %v2815 = vpop.f32.mrf.mxu0
    %v2816 = vadd.f32 %v843, %v2815
    %v2817 = vpop.f32.mrf.mxu0
    %v2818 = vadd.f32 %v847, %v2817
    %2819 = vmatprep.mubr.bf16.mxu0 0
    %2820 = vmatmul.mubr.bf16.gmra.mxu0 %v1119
    %v2821 = vpop.f32.mrf.mxu0
    %v2822 = vadd.f32 %v843, %v2821
    %v2823 = vpop.f32.mrf.mxu0
    %v2824 = vadd.f32 %v847, %v2823
    %v2825 = vpop.f32.mrf.mxu0
    %v2826 = vadd.f32 %v843, %v2825
    %v2827 = vpop.f32.mrf.mxu0
    %v2828 = vadd.f32 %v847, %v2827
    %2829 = vmatprep.mubr.bf16.mxu0 0
    %2830 = vmatmul.mubr.bf16.gmra.mxu0 %v1122
    %v2831 = vpop.f32.mrf.mxu0
    %v2832 = vadd.f32 %v843, %v2831
    %v2833 = vpop.f32.mrf.mxu0
    %v2834 = vadd.f32 %v847, %v2833
    %v2835 = vpop.f32.mrf.mxu0
    %v2836 = vadd.f32 %v843, %v2835
    %v2837 = vpop.f32.mrf.mxu0
    %v2838 = vadd.f32 %v847, %v2837
    %2839 = vmatprep.mubr.bf16.mxu0 0
    %2840 = vmatmul.mubr.bf16.gmra.mxu0 %v1125
    %v2841 = vpop.f32.mrf.mxu0
    %v2842 = vadd.f32 %v843, %v2841
    %v2843 = vpop.f32.mrf.mxu0
    %v2844 = vadd.f32 %v847, %v2843
    %v2845 = vpop.f32.mrf.mxu0
    %v2846 = vadd.f32 %v843, %v2845
    %v2847 = vpop.f32.mrf.mxu0
    %v2848 = vadd.f32 %v847, %v2847
    %2849 = vmatprep.mubr.bf16.mxu0 0
    %2850 = vmatmul.mubr.bf16.gmra.mxu0 %v1128
    %v2851 = vpop.f32.mrf.mxu0
    %v2852 = vadd.f32 %v843, %v2851
    %v2853 = vpop.f32.mrf.mxu0
    %v2854 = vadd.f32 %v847, %v2853
    %v2855 = vpop.f32.mrf.mxu0
    %v2856 = vadd.f32 %v843, %v2855
    %v2857 = vpop.f32.mrf.mxu0
    %v2858 = vadd.f32 %v847, %v2857
    %2859 = vmatprep.mubr.bf16.mxu0 0
    %2860 = vmatmul.mubr.bf16.gmra.mxu0 %v1131
    %v2861 = vpop.f32.mrf.mxu0
    %v2862 = vadd.f32 %v843, %v2861
    %v2863 = vpop.f32.mrf.mxu0
    %v2864 = vadd.f32 %v847, %v2863
    %v2865 = vpop.f32.mrf.mxu0
    %v2866 = vadd.f32 %v843, %v2865
    %v2867 = vpop.f32.mrf.mxu0
    %v2868 = vadd.f32 %v847, %v2867
    %2869 = vmatprep.mubr.bf16.mxu0 0
    %2870 = vmatmul.mubr.bf16.gmra.mxu0 %v1134
    %v2871 = vpop.f32.mrf.mxu0
    %v2872 = vadd.f32 %v843, %v2871
    %v2873 = vpop.f32.mrf.mxu0
    %v2874 = vadd.f32 %v847, %v2873
    %v2875 = vpop.f32.mrf.mxu0
    %v2876 = vadd.f32 %v843, %v2875
    %v2877 = vpop.f32.mrf.mxu0
    %v2878 = vadd.f32 %v847, %v2877
    %2879 = vmatprep.mubr.bf16.mxu0 0
    %2880 = vmatmul.mubr.bf16.gmra.mxu0 %v1137
    %v2881 = vpop.f32.mrf.mxu0
    %v2882 = vadd.f32 %v843, %v2881
    %v2883 = vpop.f32.mrf.mxu0
    %v2884 = vadd.f32 %v847, %v2883
    %v2885 = vpop.f32.mrf.mxu0
    %v2886 = vadd.f32 %v843, %v2885
    %v2887 = vpop.f32.mrf.mxu0
    %v2888 = vadd.f32 %v847, %v2887
    %2889 = vmatprep.mubr.bf16.mxu0 0
    %2890 = vmatmul.mubr.bf16.gmra.mxu0 %v1140
    %v2891 = vpop.f32.mrf.mxu0
    %v2892 = vadd.f32 %v843, %v2891
    %v2893 = vpop.f32.mrf.mxu0
    %v2894 = vadd.f32 %v847, %v2893
    %v2895 = vpop.f32.mrf.mxu0
    %v2896 = vadd.f32 %v843, %v2895
    %v2897 = vpop.f32.mrf.mxu0
    %v2898 = vadd.f32 %v847, %v2897
    %2899 = vmatprep.mubr.bf16.mxu0 0
    %2900 = vmatmul.mubr.bf16.gmra.mxu0 %v1143
    %v2901 = vpop.f32.mrf.mxu0
    %v2902 = vadd.f32 %v843, %v2901
    %v2903 = vpop.f32.mrf.mxu0
    %v2904 = vadd.f32 %v847, %v2903
    %v2905 = vpop.f32.mrf.mxu0
    %v2906 = vadd.f32 %v843, %v2905
    %v2907 = vpop.f32.mrf.mxu0
    %v2908 = vadd.f32 %v847, %v2907
    %2909 = vdwg.mxu0
    %2910 = vmatprep.subr.bf16.mxu0 0
    %2911 = vmatpush1.bf16.msra.mxu0 0
    %2912 = vmatprep.subr.bf16.mxu0 0
    %2913 = vmatpush1.bf16.msra.mxu0 0
    %2914 = vmatprep.subr.bf16.mxu0 0
    %2915 = vmatpush1.bf16.msra.mxu0 0
    %2916 = vmatprep.subr.bf16.mxu0 0
    %2917 = vmatpush1.bf16.msra.mxu0 0
    %2918 = vmatprep.subr.bf16.mxu0 0
    %2919 = vmatpush1.bf16.msra.mxu0 0
    %2920 = vmatprep.subr.bf16.mxu0 0
    %2921 = vmatpush1.bf16.msra.mxu0 0
    %2922 = vmatprep.subr.bf16.mxu0 %v1011
    %2923 = vmatpush1.bf16.msra.mxu0 %v1010
    %2924 = vmatprep.subr.bf16.mxu0 %v995
    %2925 = vmatpush1.bf16.msra.mxu0 %v994
    %2926 = vmatprep.subr.bf16.mxu0 0
    %2927 = vmatpush2.bf16.msra.mxu0 0
    %2928 = vmatprep.subr.bf16.mxu0 0
    %2929 = vmatpush2.bf16.msra.mxu0 0
    %2930 = vmatprep.subr.bf16.mxu0 0
    %2931 = vmatpush2.bf16.msra.mxu0 0
    %2932 = vmatprep.subr.bf16.mxu0 0
    %2933 = vmatpush2.bf16.msra.mxu0 0
    %2934 = vmatprep.subr.bf16.mxu0 0
    %2935 = vmatpush2.bf16.msra.mxu0 0
    %2936 = vmatprep.subr.bf16.mxu0 0
    %2937 = vmatpush2.bf16.msra.mxu0 0
    %2938 = vmatprep.subr.bf16.mxu0 0
    %2939 = vmatpush2.bf16.msra.mxu0 0
    %2940 = vmatprep.subr.bf16.mxu0 0
    %2941 = vmatpush2.bf16.msra.mxu0 0
    %2942 = vmatprep.mubr.bf16.mxu0 0
    %2943 = vmatmul.mubr.bf16.gmra.mxu0 %v1050
    %v2944 = vpop.f32.mrf.mxu0
    %v2945 = vadd.f32 %v851, %v2944
    %v2946 = vpop.f32.mrf.mxu0
    %v2947 = vadd.f32 %v855, %v2946
    %v2948 = vpop.f32.mrf.mxu0
    %v2949 = vadd.f32 %v851, %v2948
    %v2950 = vpop.f32.mrf.mxu0
    %v2951 = vadd.f32 %v855, %v2950
    %2952 = vmatprep.mubr.bf16.mxu0 0
    %2953 = vmatmul.mubr.bf16.gmra.mxu0 %v1053
    %v2954 = vpop.f32.mrf.mxu0
    %v2955 = vadd.f32 %v851, %v2954
    %v2956 = vpop.f32.mrf.mxu0
    %v2957 = vadd.f32 %v855, %v2956
    %v2958 = vpop.f32.mrf.mxu0
    %v2959 = vadd.f32 %v851, %v2958
    %v2960 = vpop.f32.mrf.mxu0
    %v2961 = vadd.f32 %v855, %v2960
    %2962 = vmatprep.mubr.bf16.mxu0 0
    %2963 = vmatmul.mubr.bf16.gmra.mxu0 %v1056
    %v2964 = vpop.f32.mrf.mxu0
    %v2965 = vadd.f32 %v851, %v2964
    %v2966 = vpop.f32.mrf.mxu0
    %v2967 = vadd.f32 %v855, %v2966
    %v2968 = vpop.f32.mrf.mxu0
    %v2969 = vadd.f32 %v851, %v2968
    %v2970 = vpop.f32.mrf.mxu0
    %v2971 = vadd.f32 %v855, %v2970
    %2972 = vmatprep.mubr.bf16.mxu0 0
    %2973 = vmatmul.mubr.bf16.gmra.mxu0 %v1059
    %v2974 = vpop.f32.mrf.mxu0
    %v2975 = vadd.f32 %v851, %v2974
    %v2976 = vpop.f32.mrf.mxu0
    %v2977 = vadd.f32 %v855, %v2976
    %v2978 = vpop.f32.mrf.mxu0
    %v2979 = vadd.f32 %v851, %v2978
    %v2980 = vpop.f32.mrf.mxu0
    %v2981 = vadd.f32 %v855, %v2980
    %2982 = vmatprep.mubr.bf16.mxu0 0
    %2983 = vmatmul.mubr.bf16.gmra.mxu0 %v1062
    %v2984 = vpop.f32.mrf.mxu0
    %v2985 = vadd.f32 %v851, %v2984
    %v2986 = vpop.f32.mrf.mxu0
    %v2987 = vadd.f32 %v855, %v2986
    %v2988 = vpop.f32.mrf.mxu0
    %v2989 = vadd.f32 %v851, %v2988
    %v2990 = vpop.f32.mrf.mxu0
    %v2991 = vadd.f32 %v855, %v2990
    %2992 = vmatprep.mubr.bf16.mxu0 0
    %2993 = vmatmul.mubr.bf16.gmra.mxu0 %v1065
    %v2994 = vpop.f32.mrf.mxu0
    %v2995 = vadd.f32 %v851, %v2994
    %v2996 = vpop.f32.mrf.mxu0
    %v2997 = vadd.f32 %v855, %v2996
    %v2998 = vpop.f32.mrf.mxu0
    %v2999 = vadd.f32 %v851, %v2998
    %v3000 = vpop.f32.mrf.mxu0
    %v3001 = vadd.f32 %v855, %v3000
    %3002 = vmatprep.mubr.bf16.mxu0 0
    %3003 = vmatmul.mubr.bf16.gmra.mxu0 %v1068
    %v3004 = vpop.f32.mrf.mxu0
    %v3005 = vadd.f32 %v851, %v3004
    %v3006 = vpop.f32.mrf.mxu0
    %v3007 = vadd.f32 %v855, %v3006
    %v3008 = vpop.f32.mrf.mxu0
    %v3009 = vadd.f32 %v851, %v3008
    %v3010 = vpop.f32.mrf.mxu0
    %v3011 = vadd.f32 %v855, %v3010
    %3012 = vmatprep.mubr.bf16.mxu0 0
    %3013 = vmatmul.mubr.bf16.gmra.mxu0 %v1071
    %v3014 = vpop.f32.mrf.mxu0
    %v3015 = vadd.f32 %v851, %v3014
    %v3016 = vpop.f32.mrf.mxu0
    %v3017 = vadd.f32 %v855, %v3016
    %v3018 = vpop.f32.mrf.mxu0
    %v3019 = vadd.f32 %v851, %v3018
    %v3020 = vpop.f32.mrf.mxu0
    %v3021 = vadd.f32 %v855, %v3020
    %3022 = vmatprep.mubr.bf16.mxu0 0
    %3023 = vmatmul.mubr.bf16.gmra.mxu0 %v1074
    %v3024 = vpop.f32.mrf.mxu0
    %v3025 = vadd.f32 %v851, %v3024
    %v3026 = vpop.f32.mrf.mxu0
    %v3027 = vadd.f32 %v855, %v3026
    %v3028 = vpop.f32.mrf.mxu0
    %v3029 = vadd.f32 %v851, %v3028
    %v3030 = vpop.f32.mrf.mxu0
    %v3031 = vadd.f32 %v855, %v3030
    %3032 = vmatprep.mubr.bf16.mxu0 0
    %3033 = vmatmul.mubr.bf16.gmra.mxu0 %v1077
    %v3034 = vpop.f32.mrf.mxu0
    %v3035 = vadd.f32 %v851, %v3034
    %v3036 = vpop.f32.mrf.mxu0
    %v3037 = vadd.f32 %v855, %v3036
    %v3038 = vpop.f32.mrf.mxu0
    %v3039 = vadd.f32 %v851, %v3038
    %v3040 = vpop.f32.mrf.mxu0
    %v3041 = vadd.f32 %v855, %v3040
    %3042 = vmatprep.mubr.bf16.mxu0 0
    %3043 = vmatmul.mubr.bf16.gmra.mxu0 %v1080
    %v3044 = vpop.f32.mrf.mxu0
    %v3045 = vadd.f32 %v851, %v3044
    %v3046 = vpop.f32.mrf.mxu0
    %v3047 = vadd.f32 %v855, %v3046
    %v3048 = vpop.f32.mrf.mxu0
    %v3049 = vadd.f32 %v851, %v3048
    %v3050 = vpop.f32.mrf.mxu0
    %v3051 = vadd.f32 %v855, %v3050
    %3052 = vmatprep.mubr.bf16.mxu0 0
    %3053 = vmatmul.mubr.bf16.gmra.mxu0 %v1083
    %v3054 = vpop.f32.mrf.mxu0
    %v3055 = vadd.f32 %v851, %v3054
    %v3056 = vpop.f32.mrf.mxu0
    %v3057 = vadd.f32 %v855, %v3056
    %v3058 = vpop.f32.mrf.mxu0
    %v3059 = vadd.f32 %v851, %v3058
    %v3060 = vpop.f32.mrf.mxu0
    %v3061 = vadd.f32 %v855, %v3060
    %3062 = vmatprep.mubr.bf16.mxu0 0
    %3063 = vmatmul.mubr.bf16.gmra.mxu0 %v1086
    %v3064 = vpop.f32.mrf.mxu0
    %v3065 = vadd.f32 %v851, %v3064
    %v3066 = vpop.f32.mrf.mxu0
    %v3067 = vadd.f32 %v855, %v3066
    %v3068 = vpop.f32.mrf.mxu0
    %v3069 = vadd.f32 %v851, %v3068
    %v3070 = vpop.f32.mrf.mxu0
    %v3071 = vadd.f32 %v855, %v3070
    %3072 = vmatprep.mubr.bf16.mxu0 0
    %3073 = vmatmul.mubr.bf16.gmra.mxu0 %v1089
    %v3074 = vpop.f32.mrf.mxu0
    %v3075 = vadd.f32 %v851, %v3074
    %v3076 = vpop.f32.mrf.mxu0
    %v3077 = vadd.f32 %v855, %v3076
    %v3078 = vpop.f32.mrf.mxu0
    %v3079 = vadd.f32 %v851, %v3078
    %v3080 = vpop.f32.mrf.mxu0
    %v3081 = vadd.f32 %v855, %v3080
    %3082 = vmatprep.mubr.bf16.mxu0 0
    %3083 = vmatmul.mubr.bf16.gmra.mxu0 %v1092
    %v3084 = vpop.f32.mrf.mxu0
    %v3085 = vadd.f32 %v851, %v3084
    %v3086 = vpop.f32.mrf.mxu0
    %v3087 = vadd.f32 %v855, %v3086
    %v3088 = vpop.f32.mrf.mxu0
    %v3089 = vadd.f32 %v851, %v3088
    %v3090 = vpop.f32.mrf.mxu0
    %v3091 = vadd.f32 %v855, %v3090
    %3092 = vmatprep.mubr.bf16.mxu0 0
    %3093 = vmatmul.mubr.bf16.gmra.mxu0 %v1095
    %v3094 = vpop.f32.mrf.mxu0
    %v3095 = vadd.f32 %v851, %v3094
    %v3096 = vpop.f32.mrf.mxu0
    %v3097 = vadd.f32 %v855, %v3096
    %v3098 = vpop.f32.mrf.mxu0
    %v3099 = vadd.f32 %v851, %v3098
    %v3100 = vpop.f32.mrf.mxu0
    %v3101 = vadd.f32 %v855, %v3100
    %3102 = vmatprep.mubr.bf16.mxu0 0
    %3103 = vmatmul.mubr.bf16.gmra.mxu0 %v1098
    %v3104 = vpop.f32.mrf.mxu0
    %v3105 = vadd.f32 %v851, %v3104
    %v3106 = vpop.f32.mrf.mxu0
    %v3107 = vadd.f32 %v855, %v3106
    %v3108 = vpop.f32.mrf.mxu0
    %v3109 = vadd.f32 %v851, %v3108
    %v3110 = vpop.f32.mrf.mxu0
    %v3111 = vadd.f32 %v855, %v3110
    %3112 = vmatprep.mubr.bf16.mxu0 0
    %3113 = vmatmul.mubr.bf16.gmra.mxu0 %v1101
    %v3114 = vpop.f32.mrf.mxu0
    %v3115 = vadd.f32 %v851, %v3114
    %v3116 = vpop.f32.mrf.mxu0
    %v3117 = vadd.f32 %v855, %v3116
    %v3118 = vpop.f32.mrf.mxu0
    %v3119 = vadd.f32 %v851, %v3118
    %v3120 = vpop.f32.mrf.mxu0
    %v3121 = vadd.f32 %v855, %v3120
    %3122 = vmatprep.mubr.bf16.mxu0 0
    %3123 = vmatmul.mubr.bf16.gmra.mxu0 %v1104
    %v3124 = vpop.f32.mrf.mxu0
    %v3125 = vadd.f32 %v851, %v3124
    %v3126 = vpop.f32.mrf.mxu0
    %v3127 = vadd.f32 %v855, %v3126
    %v3128 = vpop.f32.mrf.mxu0
    %v3129 = vadd.f32 %v851, %v3128
    %v3130 = vpop.f32.mrf.mxu0
    %v3131 = vadd.f32 %v855, %v3130
    %3132 = vmatprep.mubr.bf16.mxu0 0
    %3133 = vmatmul.mubr.bf16.gmra.mxu0 %v1107
    %v3134 = vpop.f32.mrf.mxu0
    %v3135 = vadd.f32 %v851, %v3134
    %v3136 = vpop.f32.mrf.mxu0
    %v3137 = vadd.f32 %v855, %v3136
    %v3138 = vpop.f32.mrf.mxu0
    %v3139 = vadd.f32 %v851, %v3138
    %v3140 = vpop.f32.mrf.mxu0
    %v3141 = vadd.f32 %v855, %v3140
    %3142 = vmatprep.mubr.bf16.mxu0 0
    %3143 = vmatmul.mubr.bf16.gmra.mxu0 %v1110
    %v3144 = vpop.f32.mrf.mxu0
    %v3145 = vadd.f32 %v851, %v3144
    %v3146 = vpop.f32.mrf.mxu0
    %v3147 = vadd.f32 %v855, %v3146
    %v3148 = vpop.f32.mrf.mxu0
    %v3149 = vadd.f32 %v851, %v3148
    %v3150 = vpop.f32.mrf.mxu0
    %v3151 = vadd.f32 %v855, %v3150
    %3152 = vmatprep.mubr.bf16.mxu0 0
    %3153 = vmatmul.mubr.bf16.gmra.mxu0 %v1113
    %v3154 = vpop.f32.mrf.mxu0
    %v3155 = vadd.f32 %v851, %v3154
    %v3156 = vpop.f32.mrf.mxu0
    %v3157 = vadd.f32 %v855, %v3156
    %v3158 = vpop.f32.mrf.mxu0
    %v3159 = vadd.f32 %v851, %v3158
    %v3160 = vpop.f32.mrf.mxu0
    %v3161 = vadd.f32 %v855, %v3160
    %3162 = vmatprep.mubr.bf16.mxu0 0
    %3163 = vmatmul.mubr.bf16.gmra.mxu0 %v1116
    %v3164 = vpop.f32.mrf.mxu0
    %v3165 = vadd.f32 %v851, %v3164
    %v3166 = vpop.f32.mrf.mxu0
    %v3167 = vadd.f32 %v855, %v3166
    %v3168 = vpop.f32.mrf.mxu0
    %v3169 = vadd.f32 %v851, %v3168
    %v3170 = vpop.f32.mrf.mxu0
    %v3171 = vadd.f32 %v855, %v3170
    %3172 = vmatprep.mubr.bf16.mxu0 0
    %3173 = vmatmul.mubr.bf16.gmra.mxu0 %v1119
    %v3174 = vpop.f32.mrf.mxu0
    %v3175 = vadd.f32 %v851, %v3174
    %v3176 = vpop.f32.mrf.mxu0
    %v3177 = vadd.f32 %v855, %v3176
    %v3178 = vpop.f32.mrf.mxu0
    %v3179 = vadd.f32 %v851, %v3178
    %v3180 = vpop.f32.mrf.mxu0
    %v3181 = vadd.f32 %v855, %v3180
    %3182 = vmatprep.mubr.bf16.mxu0 0
    %3183 = vmatmul.mubr.bf16.gmra.mxu0 %v1122
    %v3184 = vpop.f32.mrf.mxu0
    %v3185 = vadd.f32 %v851, %v3184
    %v3186 = vpop.f32.mrf.mxu0
    %v3187 = vadd.f32 %v855, %v3186
    %v3188 = vpop.f32.mrf.mxu0
    %v3189 = vadd.f32 %v851, %v3188
    %v3190 = vpop.f32.mrf.mxu0
    %v3191 = vadd.f32 %v855, %v3190
    %3192 = vmatprep.mubr.bf16.mxu0 0
    %3193 = vmatmul.mubr.bf16.gmra.mxu0 %v1125
    %v3194 = vpop.f32.mrf.mxu0
    %v3195 = vadd.f32 %v851, %v3194
    %v3196 = vpop.f32.mrf.mxu0
    %v3197 = vadd.f32 %v855, %v3196
    %v3198 = vpop.f32.mrf.mxu0
    %v3199 = vadd.f32 %v851, %v3198
    %v3200 = vpop.f32.mrf.mxu0
    %v3201 = vadd.f32 %v855, %v3200
    %3202 = vmatprep.mubr.bf16.mxu0 0
    %3203 = vmatmul.mubr.bf16.gmra.mxu0 %v1128
    %v3204 = vpop.f32.mrf.mxu0
    %v3205 = vadd.f32 %v851, %v3204
    %v3206 = vpop.f32.mrf.mxu0
    %v3207 = vadd.f32 %v855, %v3206
    %v3208 = vpop.f32.mrf.mxu0
    %v3209 = vadd.f32 %v851, %v3208
    %v3210 = vpop.f32.mrf.mxu0
    %v3211 = vadd.f32 %v855, %v3210
    %3212 = vmatprep.mubr.bf16.mxu0 0
    %3213 = vmatmul.mubr.bf16.gmra.mxu0 %v1131
    %v3214 = vpop.f32.mrf.mxu0
    %v3215 = vadd.f32 %v851, %v3214
    %v3216 = vpop.f32.mrf.mxu0
    %v3217 = vadd.f32 %v855, %v3216
    %v3218 = vpop.f32.mrf.mxu0
    %v3219 = vadd.f32 %v851, %v3218
    %v3220 = vpop.f32.mrf.mxu0
    %v3221 = vadd.f32 %v855, %v3220
    %3222 = vmatprep.mubr.bf16.mxu0 0
    %3223 = vmatmul.mubr.bf16.gmra.mxu0 %v1134
    %v3224 = vpop.f32.mrf.mxu0
    %v3225 = vadd.f32 %v851, %v3224
    %v3226 = vpop.f32.mrf.mxu0
    %v3227 = vadd.f32 %v855, %v3226
    %v3228 = vpop.f32.mrf.mxu0
    %v3229 = vadd.f32 %v851, %v3228
    %v3230 = vpop.f32.mrf.mxu0
    %v3231 = vadd.f32 %v855, %v3230
    %3232 = vmatprep.mubr.bf16.mxu0 0
    %3233 = vmatmul.mubr.bf16.gmra.mxu0 %v1137
    %v3234 = vpop.f32.mrf.mxu0
    %v3235 = vadd.f32 %v851, %v3234
    %v3236 = vpop.f32.mrf.mxu0
    %v3237 = vadd.f32 %v855, %v3236
    %v3238 = vpop.f32.mrf.mxu0
    %v3239 = vadd.f32 %v851, %v3238
    %v3240 = vpop.f32.mrf.mxu0
    %v3241 = vadd.f32 %v855, %v3240
    %3242 = vmatprep.mubr.bf16.mxu0 0
    %3243 = vmatmul.mubr.bf16.gmra.mxu0 %v1140
    %v3244 = vpop.f32.mrf.mxu0
    %v3245 = vadd.f32 %v851, %v3244
    %v3246 = vpop.f32.mrf.mxu0
    %v3247 = vadd.f32 %v855, %v3246
    %v3248 = vpop.f32.mrf.mxu0
    %v3249 = vadd.f32 %v851, %v3248
    %v3250 = vpop.f32.mrf.mxu0
    %v3251 = vadd.f32 %v855, %v3250
    %3252 = vmatprep.mubr.bf16.mxu0 0
    %3253 = vmatmul.mubr.bf16.gmra.mxu0 %v1143
    %v3254 = vpop.f32.mrf.mxu0
    %v3255 = vadd.f32 %v851, %v3254
    %v3256 = vpop.f32.mrf.mxu0
    %v3257 = vadd.f32 %v855, %v3256
    %v3258 = vpop.f32.mrf.mxu0
    %v3259 = vadd.f32 %v851, %v3258
    %v3260 = vpop.f32.mrf.mxu0
    %v3261 = vadd.f32 %v855, %v3260
    %3262 = vdwg.mxu0
    %3263 = vmatprep.subr.bf16.mxu0 0
    %3264 = vmatpush1.bf16.msra.mxu0 0
    %3265 = vmatprep.subr.bf16.mxu0 0
    %3266 = vmatpush1.bf16.msra.mxu0 0
    %3267 = vmatprep.subr.bf16.mxu0 0
    %3268 = vmatpush1.bf16.msra.mxu0 0
    %3269 = vmatprep.subr.bf16.mxu0 0
    %3270 = vmatpush1.bf16.msra.mxu0 0
    %3271 = vmatprep.subr.bf16.mxu0 0
    %3272 = vmatpush1.bf16.msra.mxu0 0
    %3273 = vmatprep.subr.bf16.mxu0 0
    %3274 = vmatpush1.bf16.msra.mxu0 0
    %3275 = vmatprep.subr.bf16.mxu0 %v1013
    %3276 = vmatpush1.bf16.msra.mxu0 %v1012
    %3277 = vmatprep.subr.bf16.mxu0 %v997
    %3278 = vmatpush1.bf16.msra.mxu0 %v996
    %3279 = vmatprep.subr.bf16.mxu0 0
    %3280 = vmatpush2.bf16.msra.mxu0 0
    %3281 = vmatprep.subr.bf16.mxu0 0
    %3282 = vmatpush2.bf16.msra.mxu0 0
    %3283 = vmatprep.subr.bf16.mxu0 0
    %3284 = vmatpush2.bf16.msra.mxu0 0
    %3285 = vmatprep.subr.bf16.mxu0 0
    %3286 = vmatpush2.bf16.msra.mxu0 0
    %3287 = vmatprep.subr.bf16.mxu0 0
    %3288 = vmatpush2.bf16.msra.mxu0 0
    %3289 = vmatprep.subr.bf16.mxu0 0
    %3290 = vmatpush2.bf16.msra.mxu0 0
    %3291 = vmatprep.subr.bf16.mxu0 0
    %3292 = vmatpush2.bf16.msra.mxu0 0
    %3293 = vmatprep.subr.bf16.mxu0 0
    %3294 = vmatpush2.bf16.msra.mxu0 0
    %3295 = vmatprep.mubr.bf16.mxu0 0
    %3296 = vmatmul.mubr.bf16.gmra.mxu0 %v1050
    %v3297 = vpop.f32.mrf.mxu0
    %v3298 = vadd.f32 %v859, %v3297
    %v3299 = vpop.f32.mrf.mxu0
    %v3300 = vadd.f32 %v863, %v3299
    %v3301 = vpop.f32.mrf.mxu0
    %v3302 = vadd.f32 %v859, %v3301
    %v3303 = vpop.f32.mrf.mxu0
    %v3304 = vadd.f32 %v863, %v3303
    %3305 = vmatprep.mubr.bf16.mxu0 0
    %3306 = vmatmul.mubr.bf16.gmra.mxu0 %v1053
    %v3307 = vpop.f32.mrf.mxu0
    %v3308 = vadd.f32 %v859, %v3307
    %v3309 = vpop.f32.mrf.mxu0
    %v3310 = vadd.f32 %v863, %v3309
    %v3311 = vpop.f32.mrf.mxu0
    %v3312 = vadd.f32 %v859, %v3311
    %v3313 = vpop.f32.mrf.mxu0
    %v3314 = vadd.f32 %v863, %v3313
    %3315 = vmatprep.mubr.bf16.mxu0 0
    %3316 = vmatmul.mubr.bf16.gmra.mxu0 %v1056
    %v3317 = vpop.f32.mrf.mxu0
    %v3318 = vadd.f32 %v859, %v3317
    %v3319 = vpop.f32.mrf.mxu0
    %v3320 = vadd.f32 %v863, %v3319
    %v3321 = vpop.f32.mrf.mxu0
    %v3322 = vadd.f32 %v859, %v3321
    %v3323 = vpop.f32.mrf.mxu0
    %v3324 = vadd.f32 %v863, %v3323
    %3325 = vmatprep.mubr.bf16.mxu0 0
    %3326 = vmatmul.mubr.bf16.gmra.mxu0 %v1059
    %v3327 = vpop.f32.mrf.mxu0
    %v3328 = vadd.f32 %v859, %v3327
    %v3329 = vpop.f32.mrf.mxu0
    %v3330 = vadd.f32 %v863, %v3329
    %v3331 = vpop.f32.mrf.mxu0
    %v3332 = vadd.f32 %v859, %v3331
    %v3333 = vpop.f32.mrf.mxu0
    %v3334 = vadd.f32 %v863, %v3333
    %3335 = vmatprep.mubr.bf16.mxu0 0
    %3336 = vmatmul.mubr.bf16.gmra.mxu0 %v1062
    %v3337 = vpop.f32.mrf.mxu0
    %v3338 = vadd.f32 %v859, %v3337
    %v3339 = vpop.f32.mrf.mxu0
    %v3340 = vadd.f32 %v863, %v3339
    %v3341 = vpop.f32.mrf.mxu0
    %v3342 = vadd.f32 %v859, %v3341
    %v3343 = vpop.f32.mrf.mxu0
    %v3344 = vadd.f32 %v863, %v3343
    %3345 = vmatprep.mubr.bf16.mxu0 0
    %3346 = vmatmul.mubr.bf16.gmra.mxu0 %v1065
    %v3347 = vpop.f32.mrf.mxu0
    %v3348 = vadd.f32 %v859, %v3347
    %v3349 = vpop.f32.mrf.mxu0
    %v3350 = vadd.f32 %v863, %v3349
    %v3351 = vpop.f32.mrf.mxu0
    %v3352 = vadd.f32 %v859, %v3351
    %v3353 = vpop.f32.mrf.mxu0
    %v3354 = vadd.f32 %v863, %v3353
    %3355 = vmatprep.mubr.bf16.mxu0 0
    %3356 = vmatmul.mubr.bf16.gmra.mxu0 %v1068
    %v3357 = vpop.f32.mrf.mxu0
    %v3358 = vadd.f32 %v859, %v3357
    %v3359 = vpop.f32.mrf.mxu0
    %v3360 = vadd.f32 %v863, %v3359
    %v3361 = vpop.f32.mrf.mxu0
    %v3362 = vadd.f32 %v859, %v3361
    %v3363 = vpop.f32.mrf.mxu0
    %v3364 = vadd.f32 %v863, %v3363
    %3365 = vmatprep.mubr.bf16.mxu0 0
    %3366 = vmatmul.mubr.bf16.gmra.mxu0 %v1071
    %v3367 = vpop.f32.mrf.mxu0
    %v3368 = vadd.f32 %v859, %v3367
    %v3369 = vpop.f32.mrf.mxu0
    %v3370 = vadd.f32 %v863, %v3369
    %v3371 = vpop.f32.mrf.mxu0
    %v3372 = vadd.f32 %v859, %v3371
    %v3373 = vpop.f32.mrf.mxu0
    %v3374 = vadd.f32 %v863, %v3373
    %3375 = vmatprep.mubr.bf16.mxu0 0
    %3376 = vmatmul.mubr.bf16.gmra.mxu0 %v1074
    %v3377 = vpop.f32.mrf.mxu0
    %v3378 = vadd.f32 %v859, %v3377
    %v3379 = vpop.f32.mrf.mxu0
    %v3380 = vadd.f32 %v863, %v3379
    %v3381 = vpop.f32.mrf.mxu0
    %v3382 = vadd.f32 %v859, %v3381
    %v3383 = vpop.f32.mrf.mxu0
    %v3384 = vadd.f32 %v863, %v3383
    %3385 = vmatprep.mubr.bf16.mxu0 0
    %3386 = vmatmul.mubr.bf16.gmra.mxu0 %v1077
    %v3387 = vpop.f32.mrf.mxu0
    %v3388 = vadd.f32 %v859, %v3387
    %v3389 = vpop.f32.mrf.mxu0
    %v3390 = vadd.f32 %v863, %v3389
    %v3391 = vpop.f32.mrf.mxu0
    %v3392 = vadd.f32 %v859, %v3391
    %v3393 = vpop.f32.mrf.mxu0
    %v3394 = vadd.f32 %v863, %v3393
    %3395 = vmatprep.mubr.bf16.mxu0 0
    %3396 = vmatmul.mubr.bf16.gmra.mxu0 %v1080
    %v3397 = vpop.f32.mrf.mxu0
    %v3398 = vadd.f32 %v859, %v3397
    %v3399 = vpop.f32.mrf.mxu0
    %v3400 = vadd.f32 %v863, %v3399
    %v3401 = vpop.f32.mrf.mxu0
    %v3402 = vadd.f32 %v859, %v3401
    %v3403 = vpop.f32.mrf.mxu0
    %v3404 = vadd.f32 %v863, %v3403
    %3405 = vmatprep.mubr.bf16.mxu0 0
    %3406 = vmatmul.mubr.bf16.gmra.mxu0 %v1083
    %v3407 = vpop.f32.mrf.mxu0
    %v3408 = vadd.f32 %v859, %v3407
    %v3409 = vpop.f32.mrf.mxu0
    %v3410 = vadd.f32 %v863, %v3409
    %v3411 = vpop.f32.mrf.mxu0
    %v3412 = vadd.f32 %v859, %v3411
    %v3413 = vpop.f32.mrf.mxu0
    %v3414 = vadd.f32 %v863, %v3413
    %3415 = vmatprep.mubr.bf16.mxu0 0
    %3416 = vmatmul.mubr.bf16.gmra.mxu0 %v1086
    %v3417 = vpop.f32.mrf.mxu0
    %v3418 = vadd.f32 %v859, %v3417
    %v3419 = vpop.f32.mrf.mxu0
    %v3420 = vadd.f32 %v863, %v3419
    %v3421 = vpop.f32.mrf.mxu0
    %v3422 = vadd.f32 %v859, %v3421
    %v3423 = vpop.f32.mrf.mxu0
    %v3424 = vadd.f32 %v863, %v3423
    %3425 = vmatprep.mubr.bf16.mxu0 0
    %3426 = vmatmul.mubr.bf16.gmra.mxu0 %v1089
    %v3427 = vpop.f32.mrf.mxu0
    %v3428 = vadd.f32 %v859, %v3427
    %v3429 = vpop.f32.mrf.mxu0
    %v3430 = vadd.f32 %v863, %v3429
    %v3431 = vpop.f32.mrf.mxu0
    %v3432 = vadd.f32 %v859, %v3431
    %v3433 = vpop.f32.mrf.mxu0
    %v3434 = vadd.f32 %v863, %v3433
    %3435 = vmatprep.mubr.bf16.mxu0 0
    %3436 = vmatmul.mubr.bf16.gmra.mxu0 %v1092
    %v3437 = vpop.f32.mrf.mxu0
    %v3438 = vadd.f32 %v859, %v3437
    %v3439 = vpop.f32.mrf.mxu0
    %v3440 = vadd.f32 %v863, %v3439
    %v3441 = vpop.f32.mrf.mxu0
    %v3442 = vadd.f32 %v859, %v3441
    %v3443 = vpop.f32.mrf.mxu0
    %v3444 = vadd.f32 %v863, %v3443
    %3445 = vmatprep.mubr.bf16.mxu0 0
    %3446 = vmatmul.mubr.bf16.gmra.mxu0 %v1095
    %v3447 = vpop.f32.mrf.mxu0
    %v3448 = vadd.f32 %v859, %v3447
    %v3449 = vpop.f32.mrf.mxu0
    %v3450 = vadd.f32 %v863, %v3449
    %v3451 = vpop.f32.mrf.mxu0
    %v3452 = vadd.f32 %v859, %v3451
    %v3453 = vpop.f32.mrf.mxu0
    %v3454 = vadd.f32 %v863, %v3453
    %3455 = vmatprep.mubr.bf16.mxu0 0
    %3456 = vmatmul.mubr.bf16.gmra.mxu0 %v1098
    %v3457 = vpop.f32.mrf.mxu0
    %v3458 = vadd.f32 %v859, %v3457
    %v3459 = vpop.f32.mrf.mxu0
    %v3460 = vadd.f32 %v863, %v3459
    %v3461 = vpop.f32.mrf.mxu0
    %v3462 = vadd.f32 %v859, %v3461
    %v3463 = vpop.f32.mrf.mxu0
    %v3464 = vadd.f32 %v863, %v3463
    %3465 = vmatprep.mubr.bf16.mxu0 0
    %3466 = vmatmul.mubr.bf16.gmra.mxu0 %v1101
    %v3467 = vpop.f32.mrf.mxu0
    %v3468 = vadd.f32 %v859, %v3467
    %v3469 = vpop.f32.mrf.mxu0
    %v3470 = vadd.f32 %v863, %v3469
    %v3471 = vpop.f32.mrf.mxu0
    %v3472 = vadd.f32 %v859, %v3471
    %v3473 = vpop.f32.mrf.mxu0
    %v3474 = vadd.f32 %v863, %v3473
    %3475 = vmatprep.mubr.bf16.mxu0 0
    %3476 = vmatmul.mubr.bf16.gmra.mxu0 %v1104
    %v3477 = vpop.f32.mrf.mxu0
    %v3478 = vadd.f32 %v859, %v3477
    %v3479 = vpop.f32.mrf.mxu0
    %v3480 = vadd.f32 %v863, %v3479
    %v3481 = vpop.f32.mrf.mxu0
    %v3482 = vadd.f32 %v859, %v3481
    %v3483 = vpop.f32.mrf.mxu0
    %v3484 = vadd.f32 %v863, %v3483
    %3485 = vmatprep.mubr.bf16.mxu0 0
    %3486 = vmatmul.mubr.bf16.gmra.mxu0 %v1107
    %v3487 = vpop.f32.mrf.mxu0
    %v3488 = vadd.f32 %v859, %v3487
    %v3489 = vpop.f32.mrf.mxu0
    %v3490 = vadd.f32 %v863, %v3489
    %v3491 = vpop.f32.mrf.mxu0
    %v3492 = vadd.f32 %v859, %v3491
    %v3493 = vpop.f32.mrf.mxu0
    %v3494 = vadd.f32 %v863, %v3493
    %3495 = vmatprep.mubr.bf16.mxu0 0
    %3496 = vmatmul.mubr.bf16.gmra.mxu0 %v1110
    %v3497 = vpop.f32.mrf.mxu0
    %v3498 = vadd.f32 %v859, %v3497
    %v3499 = vpop.f32.mrf.mxu0
    %v3500 = vadd.f32 %v863, %v3499
    %v3501 = vpop.f32.mrf.mxu0
    %v3502 = vadd.f32 %v859, %v3501
    %v3503 = vpop.f32.mrf.mxu0
    %v3504 = vadd.f32 %v863, %v3503
    %3505 = vmatprep.mubr.bf16.mxu0 0
    %3506 = vmatmul.mubr.bf16.gmra.mxu0 %v1113
    %v3507 = vpop.f32.mrf.mxu0
    %v3508 = vadd.f32 %v859, %v3507
    %v3509 = vpop.f32.mrf.mxu0
    %v3510 = vadd.f32 %v863, %v3509
    %v3511 = vpop.f32.mrf.mxu0
    %v3512 = vadd.f32 %v859, %v3511
    %v3513 = vpop.f32.mrf.mxu0
    %v3514 = vadd.f32 %v863, %v3513
    %3515 = vmatprep.mubr.bf16.mxu0 0
    %3516 = vmatmul.mubr.bf16.gmra.mxu0 %v1116
    %v3517 = vpop.f32.mrf.mxu0
    %v3518 = vadd.f32 %v859, %v3517
    %v3519 = vpop.f32.mrf.mxu0
    %v3520 = vadd.f32 %v863, %v3519
    %v3521 = vpop.f32.mrf.mxu0
    %v3522 = vadd.f32 %v859, %v3521
    %v3523 = vpop.f32.mrf.mxu0
    %v3524 = vadd.f32 %v863, %v3523
    %3525 = vmatprep.mubr.bf16.mxu0 0
    %3526 = vmatmul.mubr.bf16.gmra.mxu0 %v1119
    %v3527 = vpop.f32.mrf.mxu0
    %v3528 = vadd.f32 %v859, %v3527
    %v3529 = vpop.f32.mrf.mxu0
    %v3530 = vadd.f32 %v863, %v3529
    %v3531 = vpop.f32.mrf.mxu0
    %v3532 = vadd.f32 %v859, %v3531
    %v3533 = vpop.f32.mrf.mxu0
    %v3534 = vadd.f32 %v863, %v3533
    %3535 = vmatprep.mubr.bf16.mxu0 0
    %3536 = vmatmul.mubr.bf16.gmra.mxu0 %v1122
    %v3537 = vpop.f32.mrf.mxu0
    %v3538 = vadd.f32 %v859, %v3537
    %v3539 = vpop.f32.mrf.mxu0
    %v3540 = vadd.f32 %v863, %v3539
    %v3541 = vpop.f32.mrf.mxu0
    %v3542 = vadd.f32 %v859, %v3541
    %v3543 = vpop.f32.mrf.mxu0
    %v3544 = vadd.f32 %v863, %v3543
    %3545 = vmatprep.mubr.bf16.mxu0 0
    %3546 = vmatmul.mubr.bf16.gmra.mxu0 %v1125
    %v3547 = vpop.f32.mrf.mxu0
    %v3548 = vadd.f32 %v859, %v3547
    %v3549 = vpop.f32.mrf.mxu0
    %v3550 = vadd.f32 %v863, %v3549
    %v3551 = vpop.f32.mrf.mxu0
    %v3552 = vadd.f32 %v859, %v3551
    %v3553 = vpop.f32.mrf.mxu0
    %v3554 = vadd.f32 %v863, %v3553
    %3555 = vmatprep.mubr.bf16.mxu0 0
    %3556 = vmatmul.mubr.bf16.gmra.mxu0 %v1128
    %v3557 = vpop.f32.mrf.mxu0
    %v3558 = vadd.f32 %v859, %v3557
    %v3559 = vpop.f32.mrf.mxu0
    %v3560 = vadd.f32 %v863, %v3559
    %v3561 = vpop.f32.mrf.mxu0
    %v3562 = vadd.f32 %v859, %v3561
    %v3563 = vpop.f32.mrf.mxu0
    %v3564 = vadd.f32 %v863, %v3563
    %3565 = vmatprep.mubr.bf16.mxu0 0
    %3566 = vmatmul.mubr.bf16.gmra.mxu0 %v1131
    %v3567 = vpop.f32.mrf.mxu0
    %v3568 = vadd.f32 %v859, %v3567
    %v3569 = vpop.f32.mrf.mxu0
    %v3570 = vadd.f32 %v863, %v3569
    %v3571 = vpop.f32.mrf.mxu0
    %v3572 = vadd.f32 %v859, %v3571
    %v3573 = vpop.f32.mrf.mxu0
    %v3574 = vadd.f32 %v863, %v3573
    %3575 = vmatprep.mubr.bf16.mxu0 0
    %3576 = vmatmul.mubr.bf16.gmra.mxu0 %v1134
    %v3577 = vpop.f32.mrf.mxu0
    %v3578 = vadd.f32 %v859, %v3577
    %v3579 = vpop.f32.mrf.mxu0
    %v3580 = vadd.f32 %v863, %v3579
    %v3581 = vpop.f32.mrf.mxu0
    %v3582 = vadd.f32 %v859, %v3581
    %v3583 = vpop.f32.mrf.mxu0
    %v3584 = vadd.f32 %v863, %v3583
    %3585 = vmatprep.mubr.bf16.mxu0 0
    %3586 = vmatmul.mubr.bf16.gmra.mxu0 %v1137
    %v3587 = vpop.f32.mrf.mxu0
    %v3588 = vadd.f32 %v859, %v3587
    %v3589 = vpop.f32.mrf.mxu0
    %v3590 = vadd.f32 %v863, %v3589
    %v3591 = vpop.f32.mrf.mxu0
    %v3592 = vadd.f32 %v859, %v3591
    %v3593 = vpop.f32.mrf.mxu0
    %v3594 = vadd.f32 %v863, %v3593
    %3595 = vmatprep.mubr.bf16.mxu0 0
    %3596 = vmatmul.mubr.bf16.gmra.mxu0 %v1140
    %v3597 = vpop.f32.mrf.mxu0
    %v3598 = vadd.f32 %v859, %v3597
    %v3599 = vpop.f32.mrf.mxu0
    %v3600 = vadd.f32 %v863, %v3599
    %v3601 = vpop.f32.mrf.mxu0
    %v3602 = vadd.f32 %v859, %v3601
    %v3603 = vpop.f32.mrf.mxu0
    %v3604 = vadd.f32 %v863, %v3603
    %3605 = vmatprep.mubr.bf16.mxu0 0
    %3606 = vmatmul.mubr.bf16.gmra.mxu0 %v1143
    %v3607 = vpop.f32.mrf.mxu0
    %v3608 = vadd.f32 %v859, %v3607
    %v3609 = vpop.f32.mrf.mxu0
    %v3610 = vadd.f32 %v863, %v3609
    %v3611 = vpop.f32.mrf.mxu0
    %v3612 = vadd.f32 %v859, %v3611
    %v3613 = vpop.f32.mrf.mxu0
    %v3614 = vadd.f32 %v863, %v3613
    %3615 = vdwg.mxu0
    %3616 = vmatprep.subr.bf16.mxu0 0
    %3617 = vmatpush1.bf16.msra.mxu0 0
    %3618 = vmatprep.subr.bf16.mxu0 0
    %3619 = vmatpush1.bf16.msra.mxu0 0
    %3620 = vmatprep.subr.bf16.mxu0 0
    %3621 = vmatpush1.bf16.msra.mxu0 0
    %3622 = vmatprep.subr.bf16.mxu0 0
    %3623 = vmatpush1.bf16.msra.mxu0 0
    %3624 = vmatprep.subr.bf16.mxu0 0
    %3625 = vmatpush1.bf16.msra.mxu0 0
    %3626 = vmatprep.subr.bf16.mxu0 0
    %3627 = vmatpush1.bf16.msra.mxu0 0
    %3628 = vmatprep.subr.bf16.mxu0 %v1015
    %3629 = vmatpush1.bf16.msra.mxu0 %v1014
    %3630 = vmatprep.subr.bf16.mxu0 %v999
    %3631 = vmatpush1.bf16.msra.mxu0 %v998
    %3632 = vmatprep.subr.bf16.mxu0 0
    %3633 = vmatpush2.bf16.msra.mxu0 0
    %3634 = vmatprep.subr.bf16.mxu0 0
    %3635 = vmatpush2.bf16.msra.mxu0 0
    %3636 = vmatprep.subr.bf16.mxu0 0
    %3637 = vmatpush2.bf16.msra.mxu0 0
    %3638 = vmatprep.subr.bf16.mxu0 0
    %3639 = vmatpush2.bf16.msra.mxu0 0
    %3640 = vmatprep.subr.bf16.mxu0 0
    %3641 = vmatpush2.bf16.msra.mxu0 0
    %3642 = vmatprep.subr.bf16.mxu0 0
    %3643 = vmatpush2.bf16.msra.mxu0 0
    %3644 = vmatprep.subr.bf16.mxu0 0
    %3645 = vmatpush2.bf16.msra.mxu0 0
    %3646 = vmatprep.subr.bf16.mxu0 0
    %3647 = vmatpush2.bf16.msra.mxu0 0
    %3648 = vmatprep.mubr.bf16.mxu0 0
    %3649 = vmatmul.mubr.bf16.gmra.mxu0 %v1050
    %v3650 = vpop.f32.mrf.mxu0
    %v3651 = vadd.f32 %v867, %v3650
    %v3652 = vpop.f32.mrf.mxu0
    %v3653 = vadd.f32 %v871, %v3652
    %v3654 = vpop.f32.mrf.mxu0
    %v3655 = vadd.f32 %v867, %v3654
    %v3656 = vpop.f32.mrf.mxu0
    %v3657 = vadd.f32 %v871, %v3656
    %3658 = vmatprep.mubr.bf16.mxu0 0
    %3659 = vmatmul.mubr.bf16.gmra.mxu0 %v1053
    %v3660 = vpop.f32.mrf.mxu0
    %v3661 = vadd.f32 %v867, %v3660
    %v3662 = vpop.f32.mrf.mxu0
    %v3663 = vadd.f32 %v871, %v3662
    %v3664 = vpop.f32.mrf.mxu0
    %v3665 = vadd.f32 %v867, %v3664
    %v3666 = vpop.f32.mrf.mxu0
    %v3667 = vadd.f32 %v871, %v3666
    %3668 = vmatprep.mubr.bf16.mxu0 0
    %3669 = vmatmul.mubr.bf16.gmra.mxu0 %v1056
    %v3670 = vpop.f32.mrf.mxu0
    %v3671 = vadd.f32 %v867, %v3670
    %v3672 = vpop.f32.mrf.mxu0
    %v3673 = vadd.f32 %v871, %v3672
    %v3674 = vpop.f32.mrf.mxu0
    %v3675 = vadd.f32 %v867, %v3674
    %v3676 = vpop.f32.mrf.mxu0
    %v3677 = vadd.f32 %v871, %v3676
    %3678 = vmatprep.mubr.bf16.mxu0 0
    %3679 = vmatmul.mubr.bf16.gmra.mxu0 %v1059
    %v3680 = vpop.f32.mrf.mxu0
    %v3681 = vadd.f32 %v867, %v3680
    %v3682 = vpop.f32.mrf.mxu0
    %v3683 = vadd.f32 %v871, %v3682
    %v3684 = vpop.f32.mrf.mxu0
    %v3685 = vadd.f32 %v867, %v3684
    %v3686 = vpop.f32.mrf.mxu0
    %v3687 = vadd.f32 %v871, %v3686
    %3688 = vmatprep.mubr.bf16.mxu0 0
    %3689 = vmatmul.mubr.bf16.gmra.mxu0 %v1062
    %v3690 = vpop.f32.mrf.mxu0
    %v3691 = vadd.f32 %v867, %v3690
    %v3692 = vpop.f32.mrf.mxu0
    %v3693 = vadd.f32 %v871, %v3692
    %v3694 = vpop.f32.mrf.mxu0
    %v3695 = vadd.f32 %v867, %v3694
    %v3696 = vpop.f32.mrf.mxu0
    %v3697 = vadd.f32 %v871, %v3696
    %3698 = vmatprep.mubr.bf16.mxu0 0
    %3699 = vmatmul.mubr.bf16.gmra.mxu0 %v1065
    %v3700 = vpop.f32.mrf.mxu0
    %v3701 = vadd.f32 %v867, %v3700
    %v3702 = vpop.f32.mrf.mxu0
    %v3703 = vadd.f32 %v871, %v3702
    %v3704 = vpop.f32.mrf.mxu0
    %v3705 = vadd.f32 %v867, %v3704
    %v3706 = vpop.f32.mrf.mxu0
    %v3707 = vadd.f32 %v871, %v3706
    %3708 = vmatprep.mubr.bf16.mxu0 0
    %3709 = vmatmul.mubr.bf16.gmra.mxu0 %v1068
    %v3710 = vpop.f32.mrf.mxu0
    %v3711 = vadd.f32 %v867, %v3710
    %v3712 = vpop.f32.mrf.mxu0
    %v3713 = vadd.f32 %v871, %v3712
    %v3714 = vpop.f32.mrf.mxu0
    %v3715 = vadd.f32 %v867, %v3714
    %v3716 = vpop.f32.mrf.mxu0
    %v3717 = vadd.f32 %v871, %v3716
    %3718 = vmatprep.mubr.bf16.mxu0 0
    %3719 = vmatmul.mubr.bf16.gmra.mxu0 %v1071
    %v3720 = vpop.f32.mrf.mxu0
    %v3721 = vadd.f32 %v867, %v3720
    %v3722 = vpop.f32.mrf.mxu0
    %v3723 = vadd.f32 %v871, %v3722
    %v3724 = vpop.f32.mrf.mxu0
    %v3725 = vadd.f32 %v867, %v3724
    %v3726 = vpop.f32.mrf.mxu0
    %v3727 = vadd.f32 %v871, %v3726
    %3728 = vmatprep.mubr.bf16.mxu0 0
    %3729 = vmatmul.mubr.bf16.gmra.mxu0 %v1074
    %v3730 = vpop.f32.mrf.mxu0
    %v3731 = vadd.f32 %v867, %v3730
    %v3732 = vpop.f32.mrf.mxu0
    %v3733 = vadd.f32 %v871, %v3732
    %v3734 = vpop.f32.mrf.mxu0
    %v3735 = vadd.f32 %v867, %v3734
    %v3736 = vpop.f32.mrf.mxu0
    %v3737 = vadd.f32 %v871, %v3736
    %3738 = vmatprep.mubr.bf16.mxu0 0
    %3739 = vmatmul.mubr.bf16.gmra.mxu0 %v1077
    %v3740 = vpop.f32.mrf.mxu0
    %v3741 = vadd.f32 %v867, %v3740
    %v3742 = vpop.f32.mrf.mxu0
    %v3743 = vadd.f32 %v871, %v3742
    %v3744 = vpop.f32.mrf.mxu0
    %v3745 = vadd.f32 %v867, %v3744
    %v3746 = vpop.f32.mrf.mxu0
    %v3747 = vadd.f32 %v871, %v3746
    %3748 = vmatprep.mubr.bf16.mxu0 0
    %3749 = vmatmul.mubr.bf16.gmra.mxu0 %v1080
    %v3750 = vpop.f32.mrf.mxu0
    %v3751 = vadd.f32 %v867, %v3750
    %v3752 = vpop.f32.mrf.mxu0
    %v3753 = vadd.f32 %v871, %v3752
    %v3754 = vpop.f32.mrf.mxu0
    %v3755 = vadd.f32 %v867, %v3754
    %v3756 = vpop.f32.mrf.mxu0
    %v3757 = vadd.f32 %v871, %v3756
    %3758 = vmatprep.mubr.bf16.mxu0 0
    %3759 = vmatmul.mubr.bf16.gmra.mxu0 %v1083
    %v3760 = vpop.f32.mrf.mxu0
    %v3761 = vadd.f32 %v867, %v3760
    %v3762 = vpop.f32.mrf.mxu0
    %v3763 = vadd.f32 %v871, %v3762
    %v3764 = vpop.f32.mrf.mxu0
    %v3765 = vadd.f32 %v867, %v3764
    %v3766 = vpop.f32.mrf.mxu0
    %v3767 = vadd.f32 %v871, %v3766
    %3768 = vmatprep.mubr.bf16.mxu0 0
    %3769 = vmatmul.mubr.bf16.gmra.mxu0 %v1086
    %v3770 = vpop.f32.mrf.mxu0
    %v3771 = vadd.f32 %v867, %v3770
    %v3772 = vpop.f32.mrf.mxu0
    %v3773 = vadd.f32 %v871, %v3772
    %v3774 = vpop.f32.mrf.mxu0
    %v3775 = vadd.f32 %v867, %v3774
    %v3776 = vpop.f32.mrf.mxu0
    %v3777 = vadd.f32 %v871, %v3776
    %3778 = vmatprep.mubr.bf16.mxu0 0
    %3779 = vmatmul.mubr.bf16.gmra.mxu0 %v1089
    %v3780 = vpop.f32.mrf.mxu0
    %v3781 = vadd.f32 %v867, %v3780
    %v3782 = vpop.f32.mrf.mxu0
    %v3783 = vadd.f32 %v871, %v3782
    %v3784 = vpop.f32.mrf.mxu0
    %v3785 = vadd.f32 %v867, %v3784
    %v3786 = vpop.f32.mrf.mxu0
    %v3787 = vadd.f32 %v871, %v3786
    %3788 = vmatprep.mubr.bf16.mxu0 0
    %3789 = vmatmul.mubr.bf16.gmra.mxu0 %v1092
    %v3790 = vpop.f32.mrf.mxu0
    %v3791 = vadd.f32 %v867, %v3790
    %v3792 = vpop.f32.mrf.mxu0
    %v3793 = vadd.f32 %v871, %v3792
    %v3794 = vpop.f32.mrf.mxu0
    %v3795 = vadd.f32 %v867, %v3794
    %v3796 = vpop.f32.mrf.mxu0
    %v3797 = vadd.f32 %v871, %v3796
    %3798 = vmatprep.mubr.bf16.mxu0 0
    %3799 = vmatmul.mubr.bf16.gmra.mxu0 %v1095
    %v3800 = vpop.f32.mrf.mxu0
    %v3801 = vadd.f32 %v867, %v3800
    %v3802 = vpop.f32.mrf.mxu0
    %v3803 = vadd.f32 %v871, %v3802
    %v3804 = vpop.f32.mrf.mxu0
    %v3805 = vadd.f32 %v867, %v3804
    %v3806 = vpop.f32.mrf.mxu0
    %v3807 = vadd.f32 %v871, %v3806
    %3808 = vmatprep.mubr.bf16.mxu0 0
    %3809 = vmatmul.mubr.bf16.gmra.mxu0 %v1098
    %v3810 = vpop.f32.mrf.mxu0
    %v3811 = vadd.f32 %v867, %v3810
    %v3812 = vpop.f32.mrf.mxu0
    %v3813 = vadd.f32 %v871, %v3812
    %v3814 = vpop.f32.mrf.mxu0
    %v3815 = vadd.f32 %v867, %v3814
    %v3816 = vpop.f32.mrf.mxu0
    %v3817 = vadd.f32 %v871, %v3816
    %3818 = vmatprep.mubr.bf16.mxu0 0
    %3819 = vmatmul.mubr.bf16.gmra.mxu0 %v1101
    %v3820 = vpop.f32.mrf.mxu0
    %v3821 = vadd.f32 %v867, %v3820
    %v3822 = vpop.f32.mrf.mxu0
    %v3823 = vadd.f32 %v871, %v3822
    %v3824 = vpop.f32.mrf.mxu0
    %v3825 = vadd.f32 %v867, %v3824
    %v3826 = vpop.f32.mrf.mxu0
    %v3827 = vadd.f32 %v871, %v3826
    %3828 = vmatprep.mubr.bf16.mxu0 0
    %3829 = vmatmul.mubr.bf16.gmra.mxu0 %v1104
    %v3830 = vpop.f32.mrf.mxu0
    %v3831 = vadd.f32 %v867, %v3830
    %v3832 = vpop.f32.mrf.mxu0
    %v3833 = vadd.f32 %v871, %v3832
    %v3834 = vpop.f32.mrf.mxu0
    %v3835 = vadd.f32 %v867, %v3834
    %v3836 = vpop.f32.mrf.mxu0
    %v3837 = vadd.f32 %v871, %v3836
    %3838 = vmatprep.mubr.bf16.mxu0 0
    %3839 = vmatmul.mubr.bf16.gmra.mxu0 %v1107
    %v3840 = vpop.f32.mrf.mxu0
    %v3841 = vadd.f32 %v867, %v3840
    %v3842 = vpop.f32.mrf.mxu0
    %v3843 = vadd.f32 %v871, %v3842
    %v3844 = vpop.f32.mrf.mxu0
    %v3845 = vadd.f32 %v867, %v3844
    %v3846 = vpop.f32.mrf.mxu0
    %v3847 = vadd.f32 %v871, %v3846
    %3848 = vmatprep.mubr.bf16.mxu0 0
    %3849 = vmatmul.mubr.bf16.gmra.mxu0 %v1110
    %v3850 = vpop.f32.mrf.mxu0
    %v3851 = vadd.f32 %v867, %v3850
    %v3852 = vpop.f32.mrf.mxu0
    %v3853 = vadd.f32 %v871, %v3852
    %v3854 = vpop.f32.mrf.mxu0
    %v3855 = vadd.f32 %v867, %v3854
    %v3856 = vpop.f32.mrf.mxu0
    %v3857 = vadd.f32 %v871, %v3856
    %3858 = vmatprep.mubr.bf16.mxu0 0
    %3859 = vmatmul.mubr.bf16.gmra.mxu0 %v1113
    %v3860 = vpop.f32.mrf.mxu0
    %v3861 = vadd.f32 %v867, %v3860
    %v3862 = vpop.f32.mrf.mxu0
    %v3863 = vadd.f32 %v871, %v3862
    %v3864 = vpop.f32.mrf.mxu0
    %v3865 = vadd.f32 %v867, %v3864
    %v3866 = vpop.f32.mrf.mxu0
    %v3867 = vadd.f32 %v871, %v3866
    %3868 = vmatprep.mubr.bf16.mxu0 0
    %3869 = vmatmul.mubr.bf16.gmra.mxu0 %v1116
    %v3870 = vpop.f32.mrf.mxu0
    %v3871 = vadd.f32 %v867, %v3870
    %v3872 = vpop.f32.mrf.mxu0
    %v3873 = vadd.f32 %v871, %v3872
    %v3874 = vpop.f32.mrf.mxu0
    %v3875 = vadd.f32 %v867, %v3874
    %v3876 = vpop.f32.mrf.mxu0
    %v3877 = vadd.f32 %v871, %v3876
    %3878 = vmatprep.mubr.bf16.mxu0 0
    %3879 = vmatmul.mubr.bf16.gmra.mxu0 %v1119
    %v3880 = vpop.f32.mrf.mxu0
    %v3881 = vadd.f32 %v867, %v3880
    %v3882 = vpop.f32.mrf.mxu0
    %v3883 = vadd.f32 %v871, %v3882
    %v3884 = vpop.f32.mrf.mxu0
    %v3885 = vadd.f32 %v867, %v3884
    %v3886 = vpop.f32.mrf.mxu0
    %v3887 = vadd.f32 %v871, %v3886
    %3888 = vmatprep.mubr.bf16.mxu0 0
    %3889 = vmatmul.mubr.bf16.gmra.mxu0 %v1122
    %v3890 = vpop.f32.mrf.mxu0
    %v3891 = vadd.f32 %v867, %v3890
    %v3892 = vpop.f32.mrf.mxu0
    %v3893 = vadd.f32 %v871, %v3892
    %v3894 = vpop.f32.mrf.mxu0
    %v3895 = vadd.f32 %v867, %v3894
    %v3896 = vpop.f32.mrf.mxu0
    %v3897 = vadd.f32 %v871, %v3896
    %3898 = vmatprep.mubr.bf16.mxu0 0
    %3899 = vmatmul.mubr.bf16.gmra.mxu0 %v1125
    %v3900 = vpop.f32.mrf.mxu0
    %v3901 = vadd.f32 %v867, %v3900
    %v3902 = vpop.f32.mrf.mxu0
    %v3903 = vadd.f32 %v871, %v3902
    %v3904 = vpop.f32.mrf.mxu0
    %v3905 = vadd.f32 %v867, %v3904
    %v3906 = vpop.f32.mrf.mxu0
    %v3907 = vadd.f32 %v871, %v3906
    %3908 = vmatprep.mubr.bf16.mxu0 0
    %3909 = vmatmul.mubr.bf16.gmra.mxu0 %v1128
    %v3910 = vpop.f32.mrf.mxu0
    %v3911 = vadd.f32 %v867, %v3910
    %v3912 = vpop.f32.mrf.mxu0
    %v3913 = vadd.f32 %v871, %v3912
    %v3914 = vpop.f32.mrf.mxu0
    %v3915 = vadd.f32 %v867, %v3914
    %v3916 = vpop.f32.mrf.mxu0
    %v3917 = vadd.f32 %v871, %v3916
    %3918 = vmatprep.mubr.bf16.mxu0 0
    %3919 = vmatmul.mubr.bf16.gmra.mxu0 %v1131
    %v3920 = vpop.f32.mrf.mxu0
    %v3921 = vadd.f32 %v867, %v3920
    %v3922 = vpop.f32.mrf.mxu0
    %v3923 = vadd.f32 %v871, %v3922
    %v3924 = vpop.f32.mrf.mxu0
    %v3925 = vadd.f32 %v867, %v3924
    %v3926 = vpop.f32.mrf.mxu0
    %v3927 = vadd.f32 %v871, %v3926
    %3928 = vmatprep.mubr.bf16.mxu0 0
    %3929 = vmatmul.mubr.bf16.gmra.mxu0 %v1134
    %v3930 = vpop.f32.mrf.mxu0
    %v3931 = vadd.f32 %v867, %v3930
    %v3932 = vpop.f32.mrf.mxu0
    %v3933 = vadd.f32 %v871, %v3932
    %v3934 = vpop.f32.mrf.mxu0
    %v3935 = vadd.f32 %v867, %v3934
    %v3936 = vpop.f32.mrf.mxu0
    %v3937 = vadd.f32 %v871, %v3936
    %3938 = vmatprep.mubr.bf16.mxu0 0
    %3939 = vmatmul.mubr.bf16.gmra.mxu0 %v1137
    %v3940 = vpop.f32.mrf.mxu0
    %v3941 = vadd.f32 %v867, %v3940
    %v3942 = vpop.f32.mrf.mxu0
    %v3943 = vadd.f32 %v871, %v3942
    %v3944 = vpop.f32.mrf.mxu0
    %v3945 = vadd.f32 %v867, %v3944
    %v3946 = vpop.f32.mrf.mxu0
    %v3947 = vadd.f32 %v871, %v3946
    %3948 = vmatprep.mubr.bf16.mxu0 0
    %3949 = vmatmul.mubr.bf16.gmra.mxu0 %v1140
    %v3950 = vpop.f32.mrf.mxu0
    %v3951 = vadd.f32 %v867, %v3950
    %v3952 = vpop.f32.mrf.mxu0
    %v3953 = vadd.f32 %v871, %v3952
    %v3954 = vpop.f32.mrf.mxu0
    %v3955 = vadd.f32 %v867, %v3954
    %v3956 = vpop.f32.mrf.mxu0
    %v3957 = vadd.f32 %v871, %v3956
    %3958 = vmatprep.mubr.bf16.mxu0 0
    %3959 = vmatmul.mubr.bf16.gmra.mxu0 %v1143
    %v3960 = vpop.f32.mrf.mxu0
    %v3961 = vadd.f32 %v867, %v3960
    %v3962 = vpop.f32.mrf.mxu0
    %v3963 = vadd.f32 %v871, %v3962
    %v3964 = vpop.f32.mrf.mxu0
    %v3965 = vadd.f32 %v867, %v3964
    %v3966 = vpop.f32.mrf.mxu0
    %v3967 = vadd.f32 %v871, %v3966
    %3968 = vdwg.mxu0
    %v3969 = vmax.f32 %v1180, 0.0
    %v3970 = vmax.f32 %v1182, 0.0
    %v3971 = vmax.f32 %v1533, 0.0
    %v3972 = vmax.f32 %v1535, 0.0
    %v3973 = vmax.f32 %v1886, 0.0
    %v3974 = vmax.f32 %v1888, 0.0
    %v3975 = vmax.f32 %v2239, 0.0
    %v3976 = vmax.f32 %v2241, 0.0
    %v3977 = vmax.f32 %v2592, 0.0
    %v3978 = vmax.f32 %v2594, 0.0
    %v3979 = vmax.f32 %v2945, 0.0
    %v3980 = vmax.f32 %v2947, 0.0
    %v3981 = vmax.f32 %v3298, 0.0
    %v3982 = vmax.f32 %v3300, 0.0
    %v3983 = vmax.f32 %v3651, 0.0
    %v3984 = vmax.f32 %v3653, 0.0
    %v3985 = vmax.f32 %v1184, 0.0
    %v3986 = vmax.f32 %v1186, 0.0
    %v3987 = vmax.f32 %v1537, 0.0
    %v3988 = vmax.f32 %v1539, 0.0
    %v3989 = vmax.f32 %v1890, 0.0
    %v3990 = vmax.f32 %v1892, 0.0
    %v3991 = vmax.f32 %v2243, 0.0
    %v3992 = vmax.f32 %v2245, 0.0
    %v3993 = vmax.f32 %v2596, 0.0
    %v3994 = vmax.f32 %v2598, 0.0
    %v3995 = vmax.f32 %v2949, 0.0
    %v3996 = vmax.f32 %v2951, 0.0
    %v3997 = vmax.f32 %v3302, 0.0
    %v3998 = vmax.f32 %v3304, 0.0
    %v3999 = vmax.f32 %v3655, 0.0
    %v4000 = vmax.f32 %v3657, 0.0
    %v4001 = vmax.f32 %v1190, 0.0
    %v4002 = vmax.f32 %v1192, 0.0
    %v4003 = vmax.f32 %v1543, 0.0
    %v4004 = vmax.f32 %v1545, 0.0
    %v4005 = vmax.f32 %v1896, 0.0
    %v4006 = vmax.f32 %v1898, 0.0
    %v4007 = vmax.f32 %v2249, 0.0
    %v4008 = vmax.f32 %v2251, 0.0
    %v4009 = vmax.f32 %v2602, 0.0
    %v4010 = vmax.f32 %v2604, 0.0
    %v4011 = vmax.f32 %v2955, 0.0
    %v4012 = vmax.f32 %v2957, 0.0
    %v4013 = vmax.f32 %v3308, 0.0
    %v4014 = vmax.f32 %v3310, 0.0
    %v4015 = vmax.f32 %v3661, 0.0
    %v4016 = vmax.f32 %v3663, 0.0
    %v4017 = vmax.f32 %v1194, 0.0
    %v4018 = vmax.f32 %v1196, 0.0
    %v4019 = vmax.f32 %v1547, 0.0
    %v4020 = vmax.f32 %v1549, 0.0
    %v4021 = vmax.f32 %v1900, 0.0
    %v4022 = vmax.f32 %v1902, 0.0
    %v4023 = vmax.f32 %v2253, 0.0
    %v4024 = vmax.f32 %v2255, 0.0
    %v4025 = vmax.f32 %v2606, 0.0
    %v4026 = vmax.f32 %v2608, 0.0
    %v4027 = vmax.f32 %v2959, 0.0
    %v4028 = vmax.f32 %v2961, 0.0
    %v4029 = vmax.f32 %v3312, 0.0
    %v4030 = vmax.f32 %v3314, 0.0
    %v4031 = vmax.f32 %v3665, 0.0
    %v4032 = vmax.f32 %v3667, 0.0
    %v4033 = vmax.f32 %v1200, 0.0
    %v4034 = vmax.f32 %v1202, 0.0
    %v4035 = vmax.f32 %v1553, 0.0
    %v4036 = vmax.f32 %v1555, 0.0
    %v4037 = vmax.f32 %v1906, 0.0
    %v4038 = vmax.f32 %v1908, 0.0
    %v4039 = vmax.f32 %v2259, 0.0
    %v4040 = vmax.f32 %v2261, 0.0
    %v4041 = vmax.f32 %v2612, 0.0
    %v4042 = vmax.f32 %v2614, 0.0
    %v4043 = vmax.f32 %v2965, 0.0
    %v4044 = vmax.f32 %v2967, 0.0
    %v4045 = vmax.f32 %v3318, 0.0
    %v4046 = vmax.f32 %v3320, 0.0
    %v4047 = vmax.f32 %v3671, 0.0
    %v4048 = vmax.f32 %v3673, 0.0
    %v4049 = vmax.f32 %v1204, 0.0
    %v4050 = vmax.f32 %v1206, 0.0
    %v4051 = vmax.f32 %v1557, 0.0
    %v4052 = vmax.f32 %v1559, 0.0
    %v4053 = vmax.f32 %v1910, 0.0
    %v4054 = vmax.f32 %v1912, 0.0
    %v4055 = vmax.f32 %v2263, 0.0
    %v4056 = vmax.f32 %v2265, 0.0
    %v4057 = vmax.f32 %v2616, 0.0
    %v4058 = vmax.f32 %v2618, 0.0
    %v4059 = vmax.f32 %v2969, 0.0
    %v4060 = vmax.f32 %v2971, 0.0
    %v4061 = vmax.f32 %v3322, 0.0
    %v4062 = vmax.f32 %v3324, 0.0
    %v4063 = vmax.f32 %v3675, 0.0
    %v4064 = vmax.f32 %v3677, 0.0
    %v4065 = vmax.f32 %v1210, 0.0
    %v4066 = vmax.f32 %v1212, 0.0
    %v4067 = vmax.f32 %v1563, 0.0
    %v4068 = vmax.f32 %v1565, 0.0
    %v4069 = vmax.f32 %v1916, 0.0
    %v4070 = vmax.f32 %v1918, 0.0
    %v4071 = vmax.f32 %v2269, 0.0
    %v4072 = vmax.f32 %v2271, 0.0
    %v4073 = vmax.f32 %v2622, 0.0
    %v4074 = vmax.f32 %v2624, 0.0
    %v4075 = vmax.f32 %v2975, 0.0
    %v4076 = vmax.f32 %v2977, 0.0
    %v4077 = vmax.f32 %v3328, 0.0
    %v4078 = vmax.f32 %v3330, 0.0
    %v4079 = vmax.f32 %v3681, 0.0
    %v4080 = vmax.f32 %v3683, 0.0
    %v4081 = vmax.f32 %v1214, 0.0
    %v4082 = vmax.f32 %v1216, 0.0
    %v4083 = vmax.f32 %v1567, 0.0
    %v4084 = vmax.f32 %v1569, 0.0
    %v4085 = vmax.f32 %v1920, 0.0
    %v4086 = vmax.f32 %v1922, 0.0
    %v4087 = vmax.f32 %v2273, 0.0
    %v4088 = vmax.f32 %v2275, 0.0
    %v4089 = vmax.f32 %v2626, 0.0
    %v4090 = vmax.f32 %v2628, 0.0
    %v4091 = vmax.f32 %v2979, 0.0
    %v4092 = vmax.f32 %v2981, 0.0
    %v4093 = vmax.f32 %v3332, 0.0
    %v4094 = vmax.f32 %v3334, 0.0
    %v4095 = vmax.f32 %v3685, 0.0
    %v4096 = vmax.f32 %v3687, 0.0
    %v4097 = vmax.f32 %v1220, 0.0
    %v4098 = vmax.f32 %v1222, 0.0
    %v4099 = vmax.f32 %v1573, 0.0
    %v4100 = vmax.f32 %v1575, 0.0
    %v4101 = vmax.f32 %v1926, 0.0
    %v4102 = vmax.f32 %v1928, 0.0
    %v4103 = vmax.f32 %v2279, 0.0
    %v4104 = vmax.f32 %v2281, 0.0
    %v4105 = vmax.f32 %v2632, 0.0
    %v4106 = vmax.f32 %v2634, 0.0
    %v4107 = vmax.f32 %v2985, 0.0
    %v4108 = vmax.f32 %v2987, 0.0
    %v4109 = vmax.f32 %v3338, 0.0
    %v4110 = vmax.f32 %v3340, 0.0
    %v4111 = vmax.f32 %v3691, 0.0
    %v4112 = vmax.f32 %v3693, 0.0
    %v4113 = vmax.f32 %v1224, 0.0
    %v4114 = vmax.f32 %v1226, 0.0
    %v4115 = vmax.f32 %v1577, 0.0
    %v4116 = vmax.f32 %v1579, 0.0
    %v4117 = vmax.f32 %v1930, 0.0
    %v4118 = vmax.f32 %v1932, 0.0
    %v4119 = vmax.f32 %v2283, 0.0
    %v4120 = vmax.f32 %v2285, 0.0
    %v4121 = vmax.f32 %v2636, 0.0
    %v4122 = vmax.f32 %v2638, 0.0
    %v4123 = vmax.f32 %v2989, 0.0
    %v4124 = vmax.f32 %v2991, 0.0
    %v4125 = vmax.f32 %v3342, 0.0
    %v4126 = vmax.f32 %v3344, 0.0
    %v4127 = vmax.f32 %v3695, 0.0
    %v4128 = vmax.f32 %v3697, 0.0
    %v4129 = vmax.f32 %v1230, 0.0
    %v4130 = vmax.f32 %v1232, 0.0
    %v4131 = vmax.f32 %v1583, 0.0
    %v4132 = vmax.f32 %v1585, 0.0
    %v4133 = vmax.f32 %v1936, 0.0
    %v4134 = vmax.f32 %v1938, 0.0
    %v4135 = vmax.f32 %v2289, 0.0
    %v4136 = vmax.f32 %v2291, 0.0
    %v4137 = vmax.f32 %v2642, 0.0
    %v4138 = vmax.f32 %v2644, 0.0
    %v4139 = vmax.f32 %v2995, 0.0
    %v4140 = vmax.f32 %v2997, 0.0
    %v4141 = vmax.f32 %v3348, 0.0
    %v4142 = vmax.f32 %v3350, 0.0
    %v4143 = vmax.f32 %v3701, 0.0
    %v4144 = vmax.f32 %v3703, 0.0
    %v4145 = vmax.f32 %v1234, 0.0
    %v4146 = vmax.f32 %v1236, 0.0
    %v4147 = vmax.f32 %v1587, 0.0
    %v4148 = vmax.f32 %v1589, 0.0
    %v4149 = vmax.f32 %v1940, 0.0
    %v4150 = vmax.f32 %v1942, 0.0
    %v4151 = vmax.f32 %v2293, 0.0
    %v4152 = vmax.f32 %v2295, 0.0
    %v4153 = vmax.f32 %v2646, 0.0
    %v4154 = vmax.f32 %v2648, 0.0
    %v4155 = vmax.f32 %v2999, 0.0
    %v4156 = vmax.f32 %v3001, 0.0
    %v4157 = vmax.f32 %v3352, 0.0
    %v4158 = vmax.f32 %v3354, 0.0
    %v4159 = vmax.f32 %v3705, 0.0
    %v4160 = vmax.f32 %v3707, 0.0
    %v4161 = vmax.f32 %v1240, 0.0
    %v4162 = vmax.f32 %v1242, 0.0
    %v4163 = vmax.f32 %v1593, 0.0
    %v4164 = vmax.f32 %v1595, 0.0
    %v4165 = vmax.f32 %v1946, 0.0
    %v4166 = vmax.f32 %v1948, 0.0
    %v4167 = vmax.f32 %v2299, 0.0
    %v4168 = vmax.f32 %v2301, 0.0
    %v4169 = vmax.f32 %v2652, 0.0
    %v4170 = vmax.f32 %v2654, 0.0
    %v4171 = vmax.f32 %v3005, 0.0
    %v4172 = vmax.f32 %v3007, 0.0
    %v4173 = vmax.f32 %v3358, 0.0
    %v4174 = vmax.f32 %v3360, 0.0
    %v4175 = vmax.f32 %v3711, 0.0
    %v4176 = vmax.f32 %v3713, 0.0
    %v4177 = vmax.f32 %v1244, 0.0
    %v4178 = vmax.f32 %v1246, 0.0
    %v4179 = vmax.f32 %v1597, 0.0
    %v4180 = vmax.f32 %v1599, 0.0
    %v4181 = vmax.f32 %v1950, 0.0
    %v4182 = vmax.f32 %v1952, 0.0
    %v4183 = vmax.f32 %v2303, 0.0
    %v4184 = vmax.f32 %v2305, 0.0
    %v4185 = vmax.f32 %v2656, 0.0
    %v4186 = vmax.f32 %v2658, 0.0
    %v4187 = vmax.f32 %v3009, 0.0
    %v4188 = vmax.f32 %v3011, 0.0
    %v4189 = vmax.f32 %v3362, 0.0
    %v4190 = vmax.f32 %v3364, 0.0
    %v4191 = vmax.f32 %v3715, 0.0
    %v4192 = vmax.f32 %v3717, 0.0
    %v4193 = vmax.f32 %v1250, 0.0
    %v4194 = vmax.f32 %v1252, 0.0
    %v4195 = vmax.f32 %v1603, 0.0
    %v4196 = vmax.f32 %v1605, 0.0
    %v4197 = vmax.f32 %v1956, 0.0
    %v4198 = vmax.f32 %v1958, 0.0
    %v4199 = vmax.f32 %v2309, 0.0
    %v4200 = vmax.f32 %v2311, 0.0
    %v4201 = vmax.f32 %v2662, 0.0
    %v4202 = vmax.f32 %v2664, 0.0
    %v4203 = vmax.f32 %v3015, 0.0
    %v4204 = vmax.f32 %v3017, 0.0
    %v4205 = vmax.f32 %v3368, 0.0
    %v4206 = vmax.f32 %v3370, 0.0
    %v4207 = vmax.f32 %v3721, 0.0
    %v4208 = vmax.f32 %v3723, 0.0
    %v4209 = vmax.f32 %v1254, 0.0
    %v4210 = vmax.f32 %v1256, 0.0
    %v4211 = vmax.f32 %v1607, 0.0
    %v4212 = vmax.f32 %v1609, 0.0
    %v4213 = vmax.f32 %v1960, 0.0
    %v4214 = vmax.f32 %v1962, 0.0
    %v4215 = vmax.f32 %v2313, 0.0
    %v4216 = vmax.f32 %v2315, 0.0
    %v4217 = vmax.f32 %v2666, 0.0
    %v4218 = vmax.f32 %v2668, 0.0
    %v4219 = vmax.f32 %v3019, 0.0
    %v4220 = vmax.f32 %v3021, 0.0
    %v4221 = vmax.f32 %v3372, 0.0
    %v4222 = vmax.f32 %v3374, 0.0
    %v4223 = vmax.f32 %v3725, 0.0
    %v4224 = vmax.f32 %v3727, 0.0
    %v4225 = vmax.f32 %v1260, 0.0
    %v4226 = vmax.f32 %v1262, 0.0
    %v4227 = vmax.f32 %v1613, 0.0
    %v4228 = vmax.f32 %v1615, 0.0
    %v4229 = vmax.f32 %v1966, 0.0
    %v4230 = vmax.f32 %v1968, 0.0
    %v4231 = vmax.f32 %v2319, 0.0
    %v4232 = vmax.f32 %v2321, 0.0
    %v4233 = vmax.f32 %v2672, 0.0
    %v4234 = vmax.f32 %v2674, 0.0
    %v4235 = vmax.f32 %v3025, 0.0
    %v4236 = vmax.f32 %v3027, 0.0
    %v4237 = vmax.f32 %v3378, 0.0
    %v4238 = vmax.f32 %v3380, 0.0
    %v4239 = vmax.f32 %v3731, 0.0
    %v4240 = vmax.f32 %v3733, 0.0
    %v4241 = vmax.f32 %v1264, 0.0
    %v4242 = vmax.f32 %v1266, 0.0
    %v4243 = vmax.f32 %v1617, 0.0
    %v4244 = vmax.f32 %v1619, 0.0
    %v4245 = vmax.f32 %v1970, 0.0
    %v4246 = vmax.f32 %v1972, 0.0
    %v4247 = vmax.f32 %v2323, 0.0
    %v4248 = vmax.f32 %v2325, 0.0
    %v4249 = vmax.f32 %v2676, 0.0
    %v4250 = vmax.f32 %v2678, 0.0
    %v4251 = vmax.f32 %v3029, 0.0
    %v4252 = vmax.f32 %v3031, 0.0
    %v4253 = vmax.f32 %v3382, 0.0
    %v4254 = vmax.f32 %v3384, 0.0
    %v4255 = vmax.f32 %v3735, 0.0
    %v4256 = vmax.f32 %v3737, 0.0
    %v4257 = vmax.f32 %v1270, 0.0
    %v4258 = vmax.f32 %v1272, 0.0
    %v4259 = vmax.f32 %v1623, 0.0
    %v4260 = vmax.f32 %v1625, 0.0
    %v4261 = vmax.f32 %v1976, 0.0
    %v4262 = vmax.f32 %v1978, 0.0
    %v4263 = vmax.f32 %v2329, 0.0
    %v4264 = vmax.f32 %v2331, 0.0
    %v4265 = vmax.f32 %v2682, 0.0
    %v4266 = vmax.f32 %v2684, 0.0
    %v4267 = vmax.f32 %v3035, 0.0
    %v4268 = vmax.f32 %v3037, 0.0
    %v4269 = vmax.f32 %v3388, 0.0
    %v4270 = vmax.f32 %v3390, 0.0
    %v4271 = vmax.f32 %v3741, 0.0
    %v4272 = vmax.f32 %v3743, 0.0
    %v4273 = vmax.f32 %v1274, 0.0
    %v4274 = vmax.f32 %v1276, 0.0
    %v4275 = vmax.f32 %v1627, 0.0
    %v4276 = vmax.f32 %v1629, 0.0
    %v4277 = vmax.f32 %v1980, 0.0
    %v4278 = vmax.f32 %v1982, 0.0
    %v4279 = vmax.f32 %v2333, 0.0
    %v4280 = vmax.f32 %v2335, 0.0
    %v4281 = vmax.f32 %v2686, 0.0
    %v4282 = vmax.f32 %v2688, 0.0
    %v4283 = vmax.f32 %v3039, 0.0
    %v4284 = vmax.f32 %v3041, 0.0
    %v4285 = vmax.f32 %v3392, 0.0
    %v4286 = vmax.f32 %v3394, 0.0
    %v4287 = vmax.f32 %v3745, 0.0
    %v4288 = vmax.f32 %v3747, 0.0
    %v4289 = vmax.f32 %v1280, 0.0
    %v4290 = vmax.f32 %v1282, 0.0
    %v4291 = vmax.f32 %v1633, 0.0
    %v4292 = vmax.f32 %v1635, 0.0
    %v4293 = vmax.f32 %v1986, 0.0
    %v4294 = vmax.f32 %v1988, 0.0
    %v4295 = vmax.f32 %v2339, 0.0
    %v4296 = vmax.f32 %v2341, 0.0
    %v4297 = vmax.f32 %v2692, 0.0
    %v4298 = vmax.f32 %v2694, 0.0
    %v4299 = vmax.f32 %v3045, 0.0
    %v4300 = vmax.f32 %v3047, 0.0
    %v4301 = vmax.f32 %v3398, 0.0
    %v4302 = vmax.f32 %v3400, 0.0
    %v4303 = vmax.f32 %v3751, 0.0
    %v4304 = vmax.f32 %v3753, 0.0
    %v4305 = vmax.f32 %v1284, 0.0
    %v4306 = vmax.f32 %v1286, 0.0
    %v4307 = vmax.f32 %v1637, 0.0
    %v4308 = vmax.f32 %v1639, 0.0
    %v4309 = vmax.f32 %v1990, 0.0
    %v4310 = vmax.f32 %v1992, 0.0
    %v4311 = vmax.f32 %v2343, 0.0
    %v4312 = vmax.f32 %v2345, 0.0
    %v4313 = vmax.f32 %v2696, 0.0
    %v4314 = vmax.f32 %v2698, 0.0
    %v4315 = vmax.f32 %v3049, 0.0
    %v4316 = vmax.f32 %v3051, 0.0
    %v4317 = vmax.f32 %v3402, 0.0
    %v4318 = vmax.f32 %v3404, 0.0
    %v4319 = vmax.f32 %v3755, 0.0
    %v4320 = vmax.f32 %v3757, 0.0
    %v4321 = vmax.f32 %v1290, 0.0
    %v4322 = vmax.f32 %v1292, 0.0
    %v4323 = vmax.f32 %v1643, 0.0
    %v4324 = vmax.f32 %v1645, 0.0
    %v4325 = vmax.f32 %v1996, 0.0
    %v4326 = vmax.f32 %v1998, 0.0
    %v4327 = vmax.f32 %v2349, 0.0
    %v4328 = vmax.f32 %v2351, 0.0
    %v4329 = vmax.f32 %v2702, 0.0
    %v4330 = vmax.f32 %v2704, 0.0
    %v4331 = vmax.f32 %v3055, 0.0
    %v4332 = vmax.f32 %v3057, 0.0
    %v4333 = vmax.f32 %v3408, 0.0
    %v4334 = vmax.f32 %v3410, 0.0
    %v4335 = vmax.f32 %v3761, 0.0
    %v4336 = vmax.f32 %v3763, 0.0
    %v4337 = vmax.f32 %v1294, 0.0
    %v4338 = vmax.f32 %v1296, 0.0
    %v4339 = vmax.f32 %v1647, 0.0
    %v4340 = vmax.f32 %v1649, 0.0
    %v4341 = vmax.f32 %v2000, 0.0
    %v4342 = vmax.f32 %v2002, 0.0
    %v4343 = vmax.f32 %v2353, 0.0
    %v4344 = vmax.f32 %v2355, 0.0
    %v4345 = vmax.f32 %v2706, 0.0
    %v4346 = vmax.f32 %v2708, 0.0
    %v4347 = vmax.f32 %v3059, 0.0
    %v4348 = vmax.f32 %v3061, 0.0
    %v4349 = vmax.f32 %v3412, 0.0
    %v4350 = vmax.f32 %v3414, 0.0
    %v4351 = vmax.f32 %v3765, 0.0
    %v4352 = vmax.f32 %v3767, 0.0
    %v4353 = vmax.f32 %v1300, 0.0
    %v4354 = vmax.f32 %v1302, 0.0
    %v4355 = vmax.f32 %v1653, 0.0
    %v4356 = vmax.f32 %v1655, 0.0
    %v4357 = vmax.f32 %v2006, 0.0
    %v4358 = vmax.f32 %v2008, 0.0
    %v4359 = vmax.f32 %v2359, 0.0
    %v4360 = vmax.f32 %v2361, 0.0
    %v4361 = vmax.f32 %v2712, 0.0
    %v4362 = vmax.f32 %v2714, 0.0
    %v4363 = vmax.f32 %v3065, 0.0
    %v4364 = vmax.f32 %v3067, 0.0
    %v4365 = vmax.f32 %v3418, 0.0
    %v4366 = vmax.f32 %v3420, 0.0
    %v4367 = vmax.f32 %v3771, 0.0
    %v4368 = vmax.f32 %v3773, 0.0
    %v4369 = vmax.f32 %v1304, 0.0
    %v4370 = vmax.f32 %v1306, 0.0
    %v4371 = vmax.f32 %v1657, 0.0
    %v4372 = vmax.f32 %v1659, 0.0
    %v4373 = vmax.f32 %v2010, 0.0
    %v4374 = vmax.f32 %v2012, 0.0
    %v4375 = vmax.f32 %v2363, 0.0
    %v4376 = vmax.f32 %v2365, 0.0
    %v4377 = vmax.f32 %v2716, 0.0
    %v4378 = vmax.f32 %v2718, 0.0
    %v4379 = vmax.f32 %v3069, 0.0
    %v4380 = vmax.f32 %v3071, 0.0
    %v4381 = vmax.f32 %v3422, 0.0
    %v4382 = vmax.f32 %v3424, 0.0
    %v4383 = vmax.f32 %v3775, 0.0
    %v4384 = vmax.f32 %v3777, 0.0
    %v4385 = vmax.f32 %v1310, 0.0
    %v4386 = vmax.f32 %v1312, 0.0
    %v4387 = vmax.f32 %v1663, 0.0
    %v4388 = vmax.f32 %v1665, 0.0
    %v4389 = vmax.f32 %v2016, 0.0
    %v4390 = vmax.f32 %v2018, 0.0
    %v4391 = vmax.f32 %v2369, 0.0
    %v4392 = vmax.f32 %v2371, 0.0
    %v4393 = vmax.f32 %v2722, 0.0
    %v4394 = vmax.f32 %v2724, 0.0
    %v4395 = vmax.f32 %v3075, 0.0
    %v4396 = vmax.f32 %v3077, 0.0
    %v4397 = vmax.f32 %v3428, 0.0
    %v4398 = vmax.f32 %v3430, 0.0
    %v4399 = vmax.f32 %v3781, 0.0
    %v4400 = vmax.f32 %v3783, 0.0
    %v4401 = vmax.f32 %v1314, 0.0
    %v4402 = vmax.f32 %v1316, 0.0
    %v4403 = vmax.f32 %v1667, 0.0
    %v4404 = vmax.f32 %v1669, 0.0
    %v4405 = vmax.f32 %v2020, 0.0
    %v4406 = vmax.f32 %v2022, 0.0
    %v4407 = vmax.f32 %v2373, 0.0
    %v4408 = vmax.f32 %v2375, 0.0
    %v4409 = vmax.f32 %v2726, 0.0
    %v4410 = vmax.f32 %v2728, 0.0
    %v4411 = vmax.f32 %v3079, 0.0
    %v4412 = vmax.f32 %v3081, 0.0
    %v4413 = vmax.f32 %v3432, 0.0
    %v4414 = vmax.f32 %v3434, 0.0
    %v4415 = vmax.f32 %v3785, 0.0
    %v4416 = vmax.f32 %v3787, 0.0
    %v4417 = vmax.f32 %v1320, 0.0
    %v4418 = vmax.f32 %v1322, 0.0
    %v4419 = vmax.f32 %v1673, 0.0
    %v4420 = vmax.f32 %v1675, 0.0
    %v4421 = vmax.f32 %v2026, 0.0
    %v4422 = vmax.f32 %v2028, 0.0
    %v4423 = vmax.f32 %v2379, 0.0
    %v4424 = vmax.f32 %v2381, 0.0
    %v4425 = vmax.f32 %v2732, 0.0
    %v4426 = vmax.f32 %v2734, 0.0
    %v4427 = vmax.f32 %v3085, 0.0
    %v4428 = vmax.f32 %v3087, 0.0
    %v4429 = vmax.f32 %v3438, 0.0
    %v4430 = vmax.f32 %v3440, 0.0
    %v4431 = vmax.f32 %v3791, 0.0
    %v4432 = vmax.f32 %v3793, 0.0
    %v4433 = vmax.f32 %v1324, 0.0
    %v4434 = vmax.f32 %v1326, 0.0
    %v4435 = vmax.f32 %v1677, 0.0
    %v4436 = vmax.f32 %v1679, 0.0
    %v4437 = vmax.f32 %v2030, 0.0
    %v4438 = vmax.f32 %v2032, 0.0
    %v4439 = vmax.f32 %v2383, 0.0
    %v4440 = vmax.f32 %v2385, 0.0
    %v4441 = vmax.f32 %v2736, 0.0
    %v4442 = vmax.f32 %v2738, 0.0
    %v4443 = vmax.f32 %v3089, 0.0
    %v4444 = vmax.f32 %v3091, 0.0
    %v4445 = vmax.f32 %v3442, 0.0
    %v4446 = vmax.f32 %v3444, 0.0
    %v4447 = vmax.f32 %v3795, 0.0
    %v4448 = vmax.f32 %v3797, 0.0
    %v4449 = vmax.f32 %v1330, 0.0
    %v4450 = vmax.f32 %v1332, 0.0
    %v4451 = vmax.f32 %v1683, 0.0
    %v4452 = vmax.f32 %v1685, 0.0
    %v4453 = vmax.f32 %v2036, 0.0
    %v4454 = vmax.f32 %v2038, 0.0
    %v4455 = vmax.f32 %v2389, 0.0
    %v4456 = vmax.f32 %v2391, 0.0
    %v4457 = vmax.f32 %v2742, 0.0
    %v4458 = vmax.f32 %v2744, 0.0
    %v4459 = vmax.f32 %v3095, 0.0
    %v4460 = vmax.f32 %v3097, 0.0
    %v4461 = vmax.f32 %v3448, 0.0
    %v4462 = vmax.f32 %v3450, 0.0
    %v4463 = vmax.f32 %v3801, 0.0
    %v4464 = vmax.f32 %v3803, 0.0
    %v4465 = vmax.f32 %v1334, 0.0
    %v4466 = vmax.f32 %v1336, 0.0
    %v4467 = vmax.f32 %v1687, 0.0
    %v4468 = vmax.f32 %v1689, 0.0
    %v4469 = vmax.f32 %v2040, 0.0
    %v4470 = vmax.f32 %v2042, 0.0
    %v4471 = vmax.f32 %v2393, 0.0
    %v4472 = vmax.f32 %v2395, 0.0
    %v4473 = vmax.f32 %v2746, 0.0
    %v4474 = vmax.f32 %v2748, 0.0
    %v4475 = vmax.f32 %v3099, 0.0
    %v4476 = vmax.f32 %v3101, 0.0
    %v4477 = vmax.f32 %v3452, 0.0
    %v4478 = vmax.f32 %v3454, 0.0
    %v4479 = vmax.f32 %v3805, 0.0
    %v4480 = vmax.f32 %v3807, 0.0
    %v4481 = vmax.f32 %v1340, 0.0
    %v4482 = vmax.f32 %v1342, 0.0
    %v4483 = vmax.f32 %v1693, 0.0
    %v4484 = vmax.f32 %v1695, 0.0
    %v4485 = vmax.f32 %v2046, 0.0
    %v4486 = vmax.f32 %v2048, 0.0
    %v4487 = vmax.f32 %v2399, 0.0
    %v4488 = vmax.f32 %v2401, 0.0
    %v4489 = vmax.f32 %v2752, 0.0
    %v4490 = vmax.f32 %v2754, 0.0
    %v4491 = vmax.f32 %v3105, 0.0
    %v4492 = vmax.f32 %v3107, 0.0
    %v4493 = vmax.f32 %v3458, 0.0
    %v4494 = vmax.f32 %v3460, 0.0
    %v4495 = vmax.f32 %v3811, 0.0
    %v4496 = vmax.f32 %v3813, 0.0
    %v4497 = vmax.f32 %v1344, 0.0
    %v4498 = vmax.f32 %v1346, 0.0
    %v4499 = vmax.f32 %v1697, 0.0
    %v4500 = vmax.f32 %v1699, 0.0
    %v4501 = vmax.f32 %v2050, 0.0
    %v4502 = vmax.f32 %v2052, 0.0
    %v4503 = vmax.f32 %v2403, 0.0
    %v4504 = vmax.f32 %v2405, 0.0
    %v4505 = vmax.f32 %v2756, 0.0
    %v4506 = vmax.f32 %v2758, 0.0
    %v4507 = vmax.f32 %v3109, 0.0
    %v4508 = vmax.f32 %v3111, 0.0
    %v4509 = vmax.f32 %v3462, 0.0
    %v4510 = vmax.f32 %v3464, 0.0
    %v4511 = vmax.f32 %v3815, 0.0
    %v4512 = vmax.f32 %v3817, 0.0
    %v4513 = vmax.f32 %v1350, 0.0
    %v4514 = vmax.f32 %v1352, 0.0
    %v4515 = vmax.f32 %v1703, 0.0
    %v4516 = vmax.f32 %v1705, 0.0
    %v4517 = vmax.f32 %v2056, 0.0
    %v4518 = vmax.f32 %v2058, 0.0
    %v4519 = vmax.f32 %v2409, 0.0
    %v4520 = vmax.f32 %v2411, 0.0
    %v4521 = vmax.f32 %v2762, 0.0
    %v4522 = vmax.f32 %v2764, 0.0
    %v4523 = vmax.f32 %v3115, 0.0
    %v4524 = vmax.f32 %v3117, 0.0
    %v4525 = vmax.f32 %v3468, 0.0
    %v4526 = vmax.f32 %v3470, 0.0
    %v4527 = vmax.f32 %v3821, 0.0
    %v4528 = vmax.f32 %v3823, 0.0
    %v4529 = vmax.f32 %v1354, 0.0
    %v4530 = vmax.f32 %v1356, 0.0
    %v4531 = vmax.f32 %v1707, 0.0
    %v4532 = vmax.f32 %v1709, 0.0
    %v4533 = vmax.f32 %v2060, 0.0
    %v4534 = vmax.f32 %v2062, 0.0
    %v4535 = vmax.f32 %v2413, 0.0
    %v4536 = vmax.f32 %v2415, 0.0
    %v4537 = vmax.f32 %v2766, 0.0
    %v4538 = vmax.f32 %v2768, 0.0
    %v4539 = vmax.f32 %v3119, 0.0
    %v4540 = vmax.f32 %v3121, 0.0
    %v4541 = vmax.f32 %v3472, 0.0
    %v4542 = vmax.f32 %v3474, 0.0
    %v4543 = vmax.f32 %v3825, 0.0
    %v4544 = vmax.f32 %v3827, 0.0
    %v4545 = vmax.f32 %v1360, 0.0
    %v4546 = vmax.f32 %v1362, 0.0
    %v4547 = vmax.f32 %v1713, 0.0
    %v4548 = vmax.f32 %v1715, 0.0
    %v4549 = vmax.f32 %v2066, 0.0
    %v4550 = vmax.f32 %v2068, 0.0
    %v4551 = vmax.f32 %v2419, 0.0
    %v4552 = vmax.f32 %v2421, 0.0
    %v4553 = vmax.f32 %v2772, 0.0
    %v4554 = vmax.f32 %v2774, 0.0
    %v4555 = vmax.f32 %v3125, 0.0
    %v4556 = vmax.f32 %v3127, 0.0
    %v4557 = vmax.f32 %v3478, 0.0
    %v4558 = vmax.f32 %v3480, 0.0
    %v4559 = vmax.f32 %v3831, 0.0
    %v4560 = vmax.f32 %v3833, 0.0
    %v4561 = vmax.f32 %v1364, 0.0
    %v4562 = vmax.f32 %v1366, 0.0
    %v4563 = vmax.f32 %v1717, 0.0
    %v4564 = vmax.f32 %v1719, 0.0
    %v4565 = vmax.f32 %v2070, 0.0
    %v4566 = vmax.f32 %v2072, 0.0
    %v4567 = vmax.f32 %v2423, 0.0
    %v4568 = vmax.f32 %v2425, 0.0
    %v4569 = vmax.f32 %v2776, 0.0
    %v4570 = vmax.f32 %v2778, 0.0
    %v4571 = vmax.f32 %v3129, 0.0
    %v4572 = vmax.f32 %v3131, 0.0
    %v4573 = vmax.f32 %v3482, 0.0
    %v4574 = vmax.f32 %v3484, 0.0
    %v4575 = vmax.f32 %v3835, 0.0
    %v4576 = vmax.f32 %v3837, 0.0
    %v4577 = vmax.f32 %v1370, 0.0
    %v4578 = vmax.f32 %v1372, 0.0
    %v4579 = vmax.f32 %v1723, 0.0
    %v4580 = vmax.f32 %v1725, 0.0
    %v4581 = vmax.f32 %v2076, 0.0
    %v4582 = vmax.f32 %v2078, 0.0
    %v4583 = vmax.f32 %v2429, 0.0
    %v4584 = vmax.f32 %v2431, 0.0
    %v4585 = vmax.f32 %v2782, 0.0
    %v4586 = vmax.f32 %v2784, 0.0
    %v4587 = vmax.f32 %v3135, 0.0
    %v4588 = vmax.f32 %v3137, 0.0
    %v4589 = vmax.f32 %v3488, 0.0
    %v4590 = vmax.f32 %v3490, 0.0
    %v4591 = vmax.f32 %v3841, 0.0
    %v4592 = vmax.f32 %v3843, 0.0
    %v4593 = vmax.f32 %v1374, 0.0
    %v4594 = vmax.f32 %v1376, 0.0
    %v4595 = vmax.f32 %v1727, 0.0
    %v4596 = vmax.f32 %v1729, 0.0
    %v4597 = vmax.f32 %v2080, 0.0
    %v4598 = vmax.f32 %v2082, 0.0
    %v4599 = vmax.f32 %v2433, 0.0
    %v4600 = vmax.f32 %v2435, 0.0
    %v4601 = vmax.f32 %v2786, 0.0
    %v4602 = vmax.f32 %v2788, 0.0
    %v4603 = vmax.f32 %v3139, 0.0
    %v4604 = vmax.f32 %v3141, 0.0
    %v4605 = vmax.f32 %v3492, 0.0
    %v4606 = vmax.f32 %v3494, 0.0
    %v4607 = vmax.f32 %v3845, 0.0
    %v4608 = vmax.f32 %v3847, 0.0
    %v4609 = vmax.f32 %v1380, 0.0
    %v4610 = vmax.f32 %v1382, 0.0
    %v4611 = vmax.f32 %v1733, 0.0
    %v4612 = vmax.f32 %v1735, 0.0
    %v4613 = vmax.f32 %v2086, 0.0
    %v4614 = vmax.f32 %v2088, 0.0
    %v4615 = vmax.f32 %v2439, 0.0
    %v4616 = vmax.f32 %v2441, 0.0
    %v4617 = vmax.f32 %v2792, 0.0
    %v4618 = vmax.f32 %v2794, 0.0
    %v4619 = vmax.f32 %v3145, 0.0
    %v4620 = vmax.f32 %v3147, 0.0
    %v4621 = vmax.f32 %v3498, 0.0
    %v4622 = vmax.f32 %v3500, 0.0
    %v4623 = vmax.f32 %v3851, 0.0
    %v4624 = vmax.f32 %v3853, 0.0
    %v4625 = vmax.f32 %v1384, 0.0
    %v4626 = vmax.f32 %v1386, 0.0
    %v4627 = vmax.f32 %v1737, 0.0
    %v4628 = vmax.f32 %v1739, 0.0
    %v4629 = vmax.f32 %v2090, 0.0
    %v4630 = vmax.f32 %v2092, 0.0
    %v4631 = vmax.f32 %v2443, 0.0
    %v4632 = vmax.f32 %v2445, 0.0
    %v4633 = vmax.f32 %v2796, 0.0
    %v4634 = vmax.f32 %v2798, 0.0
    %v4635 = vmax.f32 %v3149, 0.0
    %v4636 = vmax.f32 %v3151, 0.0
    %v4637 = vmax.f32 %v3502, 0.0
    %v4638 = vmax.f32 %v3504, 0.0
    %v4639 = vmax.f32 %v3855, 0.0
    %v4640 = vmax.f32 %v3857, 0.0
    %v4641 = vmax.f32 %v1390, 0.0
    %v4642 = vmax.f32 %v1392, 0.0
    %v4643 = vmax.f32 %v1743, 0.0
    %v4644 = vmax.f32 %v1745, 0.0
    %v4645 = vmax.f32 %v2096, 0.0
    %v4646 = vmax.f32 %v2098, 0.0
    %v4647 = vmax.f32 %v2449, 0.0
    %v4648 = vmax.f32 %v2451, 0.0
    %v4649 = vmax.f32 %v2802, 0.0
    %v4650 = vmax.f32 %v2804, 0.0
    %v4651 = vmax.f32 %v3155, 0.0
    %v4652 = vmax.f32 %v3157, 0.0
    %v4653 = vmax.f32 %v3508, 0.0
    %v4654 = vmax.f32 %v3510, 0.0
    %v4655 = vmax.f32 %v3861, 0.0
    %v4656 = vmax.f32 %v3863, 0.0
    %v4657 = vmax.f32 %v1394, 0.0
    %v4658 = vmax.f32 %v1396, 0.0
    %v4659 = vmax.f32 %v1747, 0.0
    %v4660 = vmax.f32 %v1749, 0.0
    %v4661 = vmax.f32 %v2100, 0.0
    %v4662 = vmax.f32 %v2102, 0.0
    %v4663 = vmax.f32 %v2453, 0.0
    %v4664 = vmax.f32 %v2455, 0.0
    %v4665 = vmax.f32 %v2806, 0.0
    %v4666 = vmax.f32 %v2808, 0.0
    %v4667 = vmax.f32 %v3159, 0.0
    %v4668 = vmax.f32 %v3161, 0.0
    %v4669 = vmax.f32 %v3512, 0.0
    %v4670 = vmax.f32 %v3514, 0.0
    %v4671 = vmax.f32 %v3865, 0.0
    %v4672 = vmax.f32 %v3867, 0.0
    %v4673 = vmax.f32 %v1400, 0.0
    %v4674 = vmax.f32 %v1402, 0.0
    %v4675 = vmax.f32 %v1753, 0.0
    %v4676 = vmax.f32 %v1755, 0.0
    %v4677 = vmax.f32 %v2106, 0.0
    %v4678 = vmax.f32 %v2108, 0.0
    %v4679 = vmax.f32 %v2459, 0.0
    %v4680 = vmax.f32 %v2461, 0.0
    %v4681 = vmax.f32 %v2812, 0.0
    %v4682 = vmax.f32 %v2814, 0.0
    %v4683 = vmax.f32 %v3165, 0.0
    %v4684 = vmax.f32 %v3167, 0.0
    %v4685 = vmax.f32 %v3518, 0.0
    %v4686 = vmax.f32 %v3520, 0.0
    %v4687 = vmax.f32 %v3871, 0.0
    %v4688 = vmax.f32 %v3873, 0.0
    %v4689 = vmax.f32 %v1404, 0.0
    %v4690 = vmax.f32 %v1406, 0.0
    %v4691 = vmax.f32 %v1757, 0.0
    %v4692 = vmax.f32 %v1759, 0.0
    %v4693 = vmax.f32 %v2110, 0.0
    %v4694 = vmax.f32 %v2112, 0.0
    %v4695 = vmax.f32 %v2463, 0.0
    %v4696 = vmax.f32 %v2465, 0.0
    %v4697 = vmax.f32 %v2816, 0.0
    %v4698 = vmax.f32 %v2818, 0.0
    %v4699 = vmax.f32 %v3169, 0.0
    %v4700 = vmax.f32 %v3171, 0.0
    %v4701 = vmax.f32 %v3522, 0.0
    %v4702 = vmax.f32 %v3524, 0.0
    %v4703 = vmax.f32 %v3875, 0.0
    %v4704 = vmax.f32 %v3877, 0.0
    %v4705 = vmax.f32 %v1410, 0.0
    %v4706 = vmax.f32 %v1412, 0.0
    %v4707 = vmax.f32 %v1763, 0.0
    %v4708 = vmax.f32 %v1765, 0.0
    %v4709 = vmax.f32 %v2116, 0.0
    %v4710 = vmax.f32 %v2118, 0.0
    %v4711 = vmax.f32 %v2469, 0.0
    %v4712 = vmax.f32 %v2471, 0.0
    %v4713 = vmax.f32 %v2822, 0.0
    %v4714 = vmax.f32 %v2824, 0.0
    %v4715 = vmax.f32 %v3175, 0.0
    %v4716 = vmax.f32 %v3177, 0.0
    %v4717 = vmax.f32 %v3528, 0.0
    %v4718 = vmax.f32 %v3530, 0.0
    %v4719 = vmax.f32 %v3881, 0.0
    %v4720 = vmax.f32 %v3883, 0.0
    %v4721 = vmax.f32 %v1414, 0.0
    %v4722 = vmax.f32 %v1416, 0.0
    %v4723 = vmax.f32 %v1767, 0.0
    %v4724 = vmax.f32 %v1769, 0.0
    %v4725 = vmax.f32 %v2120, 0.0
    %v4726 = vmax.f32 %v2122, 0.0
    %v4727 = vmax.f32 %v2473, 0.0
    %v4728 = vmax.f32 %v2475, 0.0
    %v4729 = vmax.f32 %v2826, 0.0
    %v4730 = vmax.f32 %v2828, 0.0
    %v4731 = vmax.f32 %v3179, 0.0
    %v4732 = vmax.f32 %v3181, 0.0
    %v4733 = vmax.f32 %v3532, 0.0
    %v4734 = vmax.f32 %v3534, 0.0
    %v4735 = vmax.f32 %v3885, 0.0
    %v4736 = vmax.f32 %v3887, 0.0
    %v4737 = vmax.f32 %v1420, 0.0
    %v4738 = vmax.f32 %v1422, 0.0
    %v4739 = vmax.f32 %v1773, 0.0
    %v4740 = vmax.f32 %v1775, 0.0
    %v4741 = vmax.f32 %v2126, 0.0
    %v4742 = vmax.f32 %v2128, 0.0
    %v4743 = vmax.f32 %v2479, 0.0
    %v4744 = vmax.f32 %v2481, 0.0
    %v4745 = vmax.f32 %v2832, 0.0
    %v4746 = vmax.f32 %v2834, 0.0
    %v4747 = vmax.f32 %v3185, 0.0
    %v4748 = vmax.f32 %v3187, 0.0
    %v4749 = vmax.f32 %v3538, 0.0
    %v4750 = vmax.f32 %v3540, 0.0
    %v4751 = vmax.f32 %v3891, 0.0
    %v4752 = vmax.f32 %v3893, 0.0
    %v4753 = vmax.f32 %v1424, 0.0
    %v4754 = vmax.f32 %v1426, 0.0
    %v4755 = vmax.f32 %v1777, 0.0
    %v4756 = vmax.f32 %v1779, 0.0
    %v4757 = vmax.f32 %v2130, 0.0
    %v4758 = vmax.f32 %v2132, 0.0
    %v4759 = vmax.f32 %v2483, 0.0
    %v4760 = vmax.f32 %v2485, 0.0
    %v4761 = vmax.f32 %v2836, 0.0
    %v4762 = vmax.f32 %v2838, 0.0
    %v4763 = vmax.f32 %v3189, 0.0
    %v4764 = vmax.f32 %v3191, 0.0
    %v4765 = vmax.f32 %v3542, 0.0
    %v4766 = vmax.f32 %v3544, 0.0
    %v4767 = vmax.f32 %v3895, 0.0
    %v4768 = vmax.f32 %v3897, 0.0
    %v4769 = vmax.f32 %v1430, 0.0
    %v4770 = vmax.f32 %v1432, 0.0
    %v4771 = vmax.f32 %v1783, 0.0
    %v4772 = vmax.f32 %v1785, 0.0
    %v4773 = vmax.f32 %v2136, 0.0
    %v4774 = vmax.f32 %v2138, 0.0
    %v4775 = vmax.f32 %v2489, 0.0
    %v4776 = vmax.f32 %v2491, 0.0
    %v4777 = vmax.f32 %v2842, 0.0
    %v4778 = vmax.f32 %v2844, 0.0
    %v4779 = vmax.f32 %v3195, 0.0
    %v4780 = vmax.f32 %v3197, 0.0
    %v4781 = vmax.f32 %v3548, 0.0
    %v4782 = vmax.f32 %v3550, 0.0
    %v4783 = vmax.f32 %v3901, 0.0
    %v4784 = vmax.f32 %v3903, 0.0
    %v4785 = vmax.f32 %v1434, 0.0
    %v4786 = vmax.f32 %v1436, 0.0
    %v4787 = vmax.f32 %v1787, 0.0
    %v4788 = vmax.f32 %v1789, 0.0
    %v4789 = vmax.f32 %v2140, 0.0
    %v4790 = vmax.f32 %v2142, 0.0
    %v4791 = vmax.f32 %v2493, 0.0
    %v4792 = vmax.f32 %v2495, 0.0
    %v4793 = vmax.f32 %v2846, 0.0
    %v4794 = vmax.f32 %v2848, 0.0
    %v4795 = vmax.f32 %v3199, 0.0
    %v4796 = vmax.f32 %v3201, 0.0
    %v4797 = vmax.f32 %v3552, 0.0
    %v4798 = vmax.f32 %v3554, 0.0
    %v4799 = vmax.f32 %v3905, 0.0
    %v4800 = vmax.f32 %v3907, 0.0
    %v4801 = vmax.f32 %v1440, 0.0
    %v4802 = vmax.f32 %v1442, 0.0
    %v4803 = vmax.f32 %v1793, 0.0
    %v4804 = vmax.f32 %v1795, 0.0
    %v4805 = vmax.f32 %v2146, 0.0
    %v4806 = vmax.f32 %v2148, 0.0
    %v4807 = vmax.f32 %v2499, 0.0
    %v4808 = vmax.f32 %v2501, 0.0
    %v4809 = vmax.f32 %v2852, 0.0
    %v4810 = vmax.f32 %v2854, 0.0
    %v4811 = vmax.f32 %v3205, 0.0
    %v4812 = vmax.f32 %v3207, 0.0
    %v4813 = vmax.f32 %v3558, 0.0
    %v4814 = vmax.f32 %v3560, 0.0
    %v4815 = vmax.f32 %v3911, 0.0
    %v4816 = vmax.f32 %v3913, 0.0
    %v4817 = vmax.f32 %v1444, 0.0
    %v4818 = vmax.f32 %v1446, 0.0
    %v4819 = vmax.f32 %v1797, 0.0
    %v4820 = vmax.f32 %v1799, 0.0
    %v4821 = vmax.f32 %v2150, 0.0
    %v4822 = vmax.f32 %v2152, 0.0
    %v4823 = vmax.f32 %v2503, 0.0
    %v4824 = vmax.f32 %v2505, 0.0
    %v4825 = vmax.f32 %v2856, 0.0
    %v4826 = vmax.f32 %v2858, 0.0
    %v4827 = vmax.f32 %v3209, 0.0
    %v4828 = vmax.f32 %v3211, 0.0
    %v4829 = vmax.f32 %v3562, 0.0
    %v4830 = vmax.f32 %v3564, 0.0
    %v4831 = vmax.f32 %v3915, 0.0
    %v4832 = vmax.f32 %v3917, 0.0
    %v4833 = vmax.f32 %v1450, 0.0
    %v4834 = vmax.f32 %v1452, 0.0
    %v4835 = vmax.f32 %v1803, 0.0
    %v4836 = vmax.f32 %v1805, 0.0
    %v4837 = vmax.f32 %v2156, 0.0
    %v4838 = vmax.f32 %v2158, 0.0
    %v4839 = vmax.f32 %v2509, 0.0
    %v4840 = vmax.f32 %v2511, 0.0
    %v4841 = vmax.f32 %v2862, 0.0
    %v4842 = vmax.f32 %v2864, 0.0
    %v4843 = vmax.f32 %v3215, 0.0
    %v4844 = vmax.f32 %v3217, 0.0
    %v4845 = vmax.f32 %v3568, 0.0
    %v4846 = vmax.f32 %v3570, 0.0
    %v4847 = vmax.f32 %v3921, 0.0
    %v4848 = vmax.f32 %v3923, 0.0
    %v4849 = vmax.f32 %v1454, 0.0
    %v4850 = vmax.f32 %v1456, 0.0
    %v4851 = vmax.f32 %v1807, 0.0
    %v4852 = vmax.f32 %v1809, 0.0
    %v4853 = vmax.f32 %v2160, 0.0
    %v4854 = vmax.f32 %v2162, 0.0
    %v4855 = vmax.f32 %v2513, 0.0
    %v4856 = vmax.f32 %v2515, 0.0
    %v4857 = vmax.f32 %v2866, 0.0
    %v4858 = vmax.f32 %v2868, 0.0
    %v4859 = vmax.f32 %v3219, 0.0
    %v4860 = vmax.f32 %v3221, 0.0
    %v4861 = vmax.f32 %v3572, 0.0
    %v4862 = vmax.f32 %v3574, 0.0
    %v4863 = vmax.f32 %v3925, 0.0
    %v4864 = vmax.f32 %v3927, 0.0
    %v4865 = vmax.f32 %v1460, 0.0
    %v4866 = vmax.f32 %v1462, 0.0
    %v4867 = vmax.f32 %v1813, 0.0
    %v4868 = vmax.f32 %v1815, 0.0
    %v4869 = vmax.f32 %v2166, 0.0
    %v4870 = vmax.f32 %v2168, 0.0
    %v4871 = vmax.f32 %v2519, 0.0
    %v4872 = vmax.f32 %v2521, 0.0
    %v4873 = vmax.f32 %v2872, 0.0
    %v4874 = vmax.f32 %v2874, 0.0
    %v4875 = vmax.f32 %v3225, 0.0
    %v4876 = vmax.f32 %v3227, 0.0
    %v4877 = vmax.f32 %v3578, 0.0
    %v4878 = vmax.f32 %v3580, 0.0
    %v4879 = vmax.f32 %v3931, 0.0
    %v4880 = vmax.f32 %v3933, 0.0
    %v4881 = vmax.f32 %v1464, 0.0
    %v4882 = vmax.f32 %v1466, 0.0
    %v4883 = vmax.f32 %v1817, 0.0
    %v4884 = vmax.f32 %v1819, 0.0
    %v4885 = vmax.f32 %v2170, 0.0
    %v4886 = vmax.f32 %v2172, 0.0
    %v4887 = vmax.f32 %v2523, 0.0
    %v4888 = vmax.f32 %v2525, 0.0
    %v4889 = vmax.f32 %v2876, 0.0
    %v4890 = vmax.f32 %v2878, 0.0
    %v4891 = vmax.f32 %v3229, 0.0
    %v4892 = vmax.f32 %v3231, 0.0
    %v4893 = vmax.f32 %v3582, 0.0
    %v4894 = vmax.f32 %v3584, 0.0
    %v4895 = vmax.f32 %v3935, 0.0
    %v4896 = vmax.f32 %v3937, 0.0
    %v4897 = vmax.f32 %v1470, 0.0
    %v4898 = vmax.f32 %v1472, 0.0
    %v4899 = vmax.f32 %v1823, 0.0
    %v4900 = vmax.f32 %v1825, 0.0
    %v4901 = vmax.f32 %v2176, 0.0
    %v4902 = vmax.f32 %v2178, 0.0
    %v4903 = vmax.f32 %v2529, 0.0
    %v4904 = vmax.f32 %v2531, 0.0
    %v4905 = vmax.f32 %v2882, 0.0
    %v4906 = vmax.f32 %v2884, 0.0
    %v4907 = vmax.f32 %v3235, 0.0
    %v4908 = vmax.f32 %v3237, 0.0
    %v4909 = vmax.f32 %v3588, 0.0
    %v4910 = vmax.f32 %v3590, 0.0
    %v4911 = vmax.f32 %v3941, 0.0
    %v4912 = vmax.f32 %v3943, 0.0
    %v4913 = vmax.f32 %v1474, 0.0
    %v4914 = vmax.f32 %v1476, 0.0
    %v4915 = vmax.f32 %v1827, 0.0
    %v4916 = vmax.f32 %v1829, 0.0
    %v4917 = vmax.f32 %v2180, 0.0
    %v4918 = vmax.f32 %v2182, 0.0
    %v4919 = vmax.f32 %v2533, 0.0
    %v4920 = vmax.f32 %v2535, 0.0
    %v4921 = vmax.f32 %v2886, 0.0
    %v4922 = vmax.f32 %v2888, 0.0
    %v4923 = vmax.f32 %v3239, 0.0
    %v4924 = vmax.f32 %v3241, 0.0
    %v4925 = vmax.f32 %v3592, 0.0
    %v4926 = vmax.f32 %v3594, 0.0
    %v4927 = vmax.f32 %v3945, 0.0
    %v4928 = vmax.f32 %v3947, 0.0
    %v4929 = vmax.f32 %v1480, 0.0
    %v4930 = vmax.f32 %v1482, 0.0
    %v4931 = vmax.f32 %v1833, 0.0
    %v4932 = vmax.f32 %v1835, 0.0
    %v4933 = vmax.f32 %v2186, 0.0
    %v4934 = vmax.f32 %v2188, 0.0
    %v4935 = vmax.f32 %v2539, 0.0
    %v4936 = vmax.f32 %v2541, 0.0
    %v4937 = vmax.f32 %v2892, 0.0
    %v4938 = vmax.f32 %v2894, 0.0
    %v4939 = vmax.f32 %v3245, 0.0
    %v4940 = vmax.f32 %v3247, 0.0
    %v4941 = vmax.f32 %v3598, 0.0
    %v4942 = vmax.f32 %v3600, 0.0
    %v4943 = vmax.f32 %v3951, 0.0
    %v4944 = vmax.f32 %v3953, 0.0
    %v4945 = vmax.f32 %v1484, 0.0
    %v4946 = vmax.f32 %v1486, 0.0
    %v4947 = vmax.f32 %v1837, 0.0
    %v4948 = vmax.f32 %v1839, 0.0
    %v4949 = vmax.f32 %v2190, 0.0
    %v4950 = vmax.f32 %v2192, 0.0
    %v4951 = vmax.f32 %v2543, 0.0
    %v4952 = vmax.f32 %v2545, 0.0
    %v4953 = vmax.f32 %v2896, 0.0
    %v4954 = vmax.f32 %v2898, 0.0
    %v4955 = vmax.f32 %v3249, 0.0
    %v4956 = vmax.f32 %v3251, 0.0
    %v4957 = vmax.f32 %v3602, 0.0
    %v4958 = vmax.f32 %v3604, 0.0
    %v4959 = vmax.f32 %v3955, 0.0
    %v4960 = vmax.f32 %v3957, 0.0
    %v4961 = vmax.f32 %v1490, 0.0
    %v4962 = vmax.f32 %v1492, 0.0
    %v4963 = vmax.f32 %v1843, 0.0
    %v4964 = vmax.f32 %v1845, 0.0
    %v4965 = vmax.f32 %v2196, 0.0
    %v4966 = vmax.f32 %v2198, 0.0
    %v4967 = vmax.f32 %v2549, 0.0
    %v4968 = vmax.f32 %v2551, 0.0
    %v4969 = vmax.f32 %v2902, 0.0
    %v4970 = vmax.f32 %v2904, 0.0
    %v4971 = vmax.f32 %v3255, 0.0
    %v4972 = vmax.f32 %v3257, 0.0
    %v4973 = vmax.f32 %v3608, 0.0
    %v4974 = vmax.f32 %v3610, 0.0
    %v4975 = vmax.f32 %v3961, 0.0
    %v4976 = vmax.f32 %v3963, 0.0
    %v4977 = vmax.f32 %v1494, 0.0
    %v4978 = vmax.f32 %v1496, 0.0
    %v4979 = vmax.f32 %v1847, 0.0
    %v4980 = vmax.f32 %v1849, 0.0
    %v4981 = vmax.f32 %v2200, 0.0
    %v4982 = vmax.f32 %v2202, 0.0
    %v4983 = vmax.f32 %v2553, 0.0
    %v4984 = vmax.f32 %v2555, 0.0
    %v4985 = vmax.f32 %v2906, 0.0
    %v4986 = vmax.f32 %v2908, 0.0
    %v4987 = vmax.f32 %v3259, 0.0
    %v4988 = vmax.f32 %v3261, 0.0
    %v4989 = vmax.f32 %v3612, 0.0
    %v4990 = vmax.f32 %v3614, 0.0
    %v4991 = vmax.f32 %v3965, 0.0
    %v4992 = vmax.f32 %v3967, 0.0
    %v4993 = vadd.f32 %v3969, %v3985
    %v4994 = vadd.f32 %v4993, %v4001
    %v4995 = vadd.f32 %v4994, %v4017
    %v4996 = vadd.f32 %v4995, %v4033
    %v4997 = vadd.f32 %v4996, %v4049
    %v4998 = vadd.f32 %v4997, %v4065
    %v4999 = vadd.f32 %v4998, %v4081
    %v5000 = vadd.f32 %v4999, %v4097
    %v5001 = vadd.f32 %v5000, %v4113
    %v5002 = vadd.f32 %v5001, %v4129
    %v5003 = vadd.f32 %v5002, %v4145
    %v5004 = vadd.f32 %v5003, %v4161
    %v5005 = vadd.f32 %v5004, %v4177
    %v5006 = vadd.f32 %v5005, %v4193
    %v5007 = vadd.f32 %v5006, %v4209
    %v5008 = vadd.f32 %v5007, %v4225
    %v5009 = vadd.f32 %v5008, %v4241
    %v5010 = vadd.f32 %v5009, %v4257
    %v5011 = vadd.f32 %v5010, %v4273
    %v5012 = vadd.f32 %v5011, %v4289
    %v5013 = vadd.f32 %v5012, %v4305
    %v5014 = vadd.f32 %v5013, %v4321
    %v5015 = vadd.f32 %v5014, %v4337
    %v5016 = vadd.f32 %v5015, %v4353
    %v5017 = vadd.f32 %v5016, %v4369
    %v5018 = vadd.f32 %v5017, %v4385
    %v5019 = vadd.f32 %v5018, %v4401
    %v5020 = vadd.f32 %v5019, %v4417
    %v5021 = vadd.f32 %v5020, %v4433
    %v5022 = vadd.f32 %v5021, %v4449
    %v5023 = vadd.f32 %v5022, %v4465
    %v5024 = vrot.slane %v5023, 4
    %v5025 = vadd.f32 %v5023, %v5024
    %v5026 = vrot.slane %v5025, 2
    %v5027 = vadd.f32 %v5025, %v5026
    %v5028 = vrot.slane %v5027, 1
    %v5029 = vadd.f32 %v5027, %v5028
    %v5030 = vadd.f32 %v3970, %v3986
    %v5031 = vadd.f32 %v5030, %v4002
    %v5032 = vadd.f32 %v5031, %v4018
    %v5033 = vadd.f32 %v5032, %v4034
    %v5034 = vadd.f32 %v5033, %v4050
    %v5035 = vadd.f32 %v5034, %v4066
    %v5036 = vadd.f32 %v5035, %v4082
    %v5037 = vadd.f32 %v5036, %v4098
    %v5038 = vadd.f32 %v5037, %v4114
    %v5039 = vadd.f32 %v5038, %v4130
    %v5040 = vadd.f32 %v5039, %v4146
    %v5041 = vadd.f32 %v5040, %v4162
    %v5042 = vadd.f32 %v5041, %v4178
    %v5043 = vadd.f32 %v5042, %v4194
    %v5044 = vadd.f32 %v5043, %v4210
    %v5045 = vadd.f32 %v5044, %v4226
    %v5046 = vadd.f32 %v5045, %v4242
    %v5047 = vadd.f32 %v5046, %v4258
    %v5048 = vadd.f32 %v5047, %v4274
    %v5049 = vadd.f32 %v5048, %v4290
    %v5050 = vadd.f32 %v5049, %v4306
    %v5051 = vadd.f32 %v5050, %v4322
    %v5052 = vadd.f32 %v5051, %v4338
    %v5053 = vadd.f32 %v5052, %v4354
    %v5054 = vadd.f32 %v5053, %v4370
    %v5055 = vadd.f32 %v5054, %v4386
    %v5056 = vadd.f32 %v5055, %v4402
    %v5057 = vadd.f32 %v5056, %v4418
    %v5058 = vadd.f32 %v5057, %v4434
    %v5059 = vadd.f32 %v5058, %v4450
    %v5060 = vadd.f32 %v5059, %v4466
    %v5061 = vrot.slane %v5060, 4
    %v5062 = vadd.f32 %v5060, %v5061
    %v5063 = vrot.slane %v5062, 2
    %v5064 = vadd.f32 %v5062, %v5063
    %v5065 = vrot.slane %v5064, 1
    %v5066 = vadd.f32 %v5064, %v5065
    %v5067 = vadd.f32 %v3971, %v3987
    %v5068 = vadd.f32 %v5067, %v4003
    %v5069 = vadd.f32 %v5068, %v4019
    %v5070 = vadd.f32 %v5069, %v4035
    %v5071 = vadd.f32 %v5070, %v4051
    %v5072 = vadd.f32 %v5071, %v4067
    %v5073 = vadd.f32 %v5072, %v4083
    %v5074 = vadd.f32 %v5073, %v4099
    %v5075 = vadd.f32 %v5074, %v4115
    %v5076 = vadd.f32 %v5075, %v4131
    %v5077 = vadd.f32 %v5076, %v4147
    %v5078 = vadd.f32 %v5077, %v4163
    %v5079 = vadd.f32 %v5078, %v4179
    %v5080 = vadd.f32 %v5079, %v4195
    %v5081 = vadd.f32 %v5080, %v4211
    %v5082 = vadd.f32 %v5081, %v4227
    %v5083 = vadd.f32 %v5082, %v4243
    %v5084 = vadd.f32 %v5083, %v4259
    %v5085 = vadd.f32 %v5084, %v4275
    %v5086 = vadd.f32 %v5085, %v4291
    %v5087 = vadd.f32 %v5086, %v4307
    %v5088 = vadd.f32 %v5087, %v4323
    %v5089 = vadd.f32 %v5088, %v4339
    %v5090 = vadd.f32 %v5089, %v4355
    %v5091 = vadd.f32 %v5090, %v4371
    %v5092 = vadd.f32 %v5091, %v4387
    %v5093 = vadd.f32 %v5092, %v4403
    %v5094 = vadd.f32 %v5093, %v4419
    %v5095 = vadd.f32 %v5094, %v4435
    %v5096 = vadd.f32 %v5095, %v4451
    %v5097 = vadd.f32 %v5096, %v4467
    %v5098 = vrot.slane %v5097, 4
    %v5099 = vadd.f32 %v5097, %v5098
    %v5100 = vrot.slane %v5099, 2
    %v5101 = vadd.f32 %v5099, %v5100
    %v5102 = vrot.slane %v5101, 1
    %v5103 = vadd.f32 %v5101, %v5102
    %v5104 = vadd.f32 %v3972, %v3988
    %v5105 = vadd.f32 %v5104, %v4004
    %v5106 = vadd.f32 %v5105, %v4020
    %v5107 = vadd.f32 %v5106, %v4036
    %v5108 = vadd.f32 %v5107, %v4052
    %v5109 = vadd.f32 %v5108, %v4068
    %v5110 = vadd.f32 %v5109, %v4084
    %v5111 = vadd.f32 %v5110, %v4100
    %v5112 = vadd.f32 %v5111, %v4116
    %v5113 = vadd.f32 %v5112, %v4132
    %v5114 = vadd.f32 %v5113, %v4148
    %v5115 = vadd.f32 %v5114, %v4164
    %v5116 = vadd.f32 %v5115, %v4180
    %v5117 = vadd.f32 %v5116, %v4196
    %v5118 = vadd.f32 %v5117, %v4212
    %v5119 = vadd.f32 %v5118, %v4228
    %v5120 = vadd.f32 %v5119, %v4244
    %v5121 = vadd.f32 %v5120, %v4260
    %v5122 = vadd.f32 %v5121, %v4276
    %v5123 = vadd.f32 %v5122, %v4292
    %v5124 = vadd.f32 %v5123, %v4308
    %v5125 = vadd.f32 %v5124, %v4324
    %v5126 = vadd.f32 %v5125, %v4340
    %v5127 = vadd.f32 %v5126, %v4356
    %v5128 = vadd.f32 %v5127, %v4372
    %v5129 = vadd.f32 %v5128, %v4388
    %v5130 = vadd.f32 %v5129, %v4404
    %v5131 = vadd.f32 %v5130, %v4420
    %v5132 = vadd.f32 %v5131, %v4436
    %v5133 = vadd.f32 %v5132, %v4452
    %v5134 = vadd.f32 %v5133, %v4468
    %v5135 = vrot.slane %v5134, 4
    %v5136 = vadd.f32 %v5134, %v5135
    %v5137 = vrot.slane %v5136, 2
    %v5138 = vadd.f32 %v5136, %v5137
    %v5139 = vrot.slane %v5138, 1
    %v5140 = vadd.f32 %v5138, %v5139
    %v5141 = vadd.f32 %v3973, %v3989
    %v5142 = vadd.f32 %v5141, %v4005
    %v5143 = vadd.f32 %v5142, %v4021
    %v5144 = vadd.f32 %v5143, %v4037
    %v5145 = vadd.f32 %v5144, %v4053
    %v5146 = vadd.f32 %v5145, %v4069
    %v5147 = vadd.f32 %v5146, %v4085
    %v5148 = vadd.f32 %v5147, %v4101
    %v5149 = vadd.f32 %v5148, %v4117
    %v5150 = vadd.f32 %v5149, %v4133
    %v5151 = vadd.f32 %v5150, %v4149
    %v5152 = vadd.f32 %v5151, %v4165
    %v5153 = vadd.f32 %v5152, %v4181
    %v5154 = vadd.f32 %v5153, %v4197
    %v5155 = vadd.f32 %v5154, %v4213
    %v5156 = vadd.f32 %v5155, %v4229
    %v5157 = vadd.f32 %v5156, %v4245
    %v5158 = vadd.f32 %v5157, %v4261
    %v5159 = vadd.f32 %v5158, %v4277
    %v5160 = vadd.f32 %v5159, %v4293
    %v5161 = vadd.f32 %v5160, %v4309
    %v5162 = vadd.f32 %v5161, %v4325
    %v5163 = vadd.f32 %v5162, %v4341
    %v5164 = vadd.f32 %v5163, %v4357
    %v5165 = vadd.f32 %v5164, %v4373
    %v5166 = vadd.f32 %v5165, %v4389
    %v5167 = vadd.f32 %v5166, %v4405
    %v5168 = vadd.f32 %v5167, %v4421
    %v5169 = vadd.f32 %v5168, %v4437
    %v5170 = vadd.f32 %v5169, %v4453
    %v5171 = vadd.f32 %v5170, %v4469
    %v5172 = vrot.slane %v5171, 4
    %v5173 = vadd.f32 %v5171, %v5172
    %v5174 = vrot.slane %v5173, 2
    %v5175 = vadd.f32 %v5173, %v5174
    %v5176 = vrot.slane %v5175, 1
    %v5177 = vadd.f32 %v5175, %v5176
    %v5178 = vadd.f32 %v3974, %v3990
    %v5179 = vadd.f32 %v5178, %v4006
    %v5180 = vadd.f32 %v5179, %v4022
    %v5181 = vadd.f32 %v5180, %v4038
    %v5182 = vadd.f32 %v5181, %v4054
    %v5183 = vadd.f32 %v5182, %v4070
    %v5184 = vadd.f32 %v5183, %v4086
    %v5185 = vadd.f32 %v5184, %v4102
    %v5186 = vadd.f32 %v5185, %v4118
    %v5187 = vadd.f32 %v5186, %v4134
    %v5188 = vadd.f32 %v5187, %v4150
    %v5189 = vadd.f32 %v5188, %v4166
    %v5190 = vadd.f32 %v5189, %v4182
    %v5191 = vadd.f32 %v5190, %v4198
    %v5192 = vadd.f32 %v5191, %v4214
    %v5193 = vadd.f32 %v5192, %v4230
    %v5194 = vadd.f32 %v5193, %v4246
    %v5195 = vadd.f32 %v5194, %v4262
    %v5196 = vadd.f32 %v5195, %v4278
    %v5197 = vadd.f32 %v5196, %v4294
    %v5198 = vadd.f32 %v5197, %v4310
    %v5199 = vadd.f32 %v5198, %v4326
    %v5200 = vadd.f32 %v5199, %v4342
    %v5201 = vadd.f32 %v5200, %v4358
    %v5202 = vadd.f32 %v5201, %v4374
    %v5203 = vadd.f32 %v5202, %v4390
    %v5204 = vadd.f32 %v5203, %v4406
    %v5205 = vadd.f32 %v5204, %v4422
    %v5206 = vadd.f32 %v5205, %v4438
    %v5207 = vadd.f32 %v5206, %v4454
    %v5208 = vadd.f32 %v5207, %v4470
    %v5209 = vrot.slane %v5208, 4
    %v5210 = vadd.f32 %v5208, %v5209
    %v5211 = vrot.slane %v5210, 2
    %v5212 = vadd.f32 %v5210, %v5211
    %v5213 = vrot.slane %v5212, 1
    %v5214 = vadd.f32 %v5212, %v5213
    %v5215 = vadd.f32 %v3975, %v3991
    %v5216 = vadd.f32 %v5215, %v4007
    %v5217 = vadd.f32 %v5216, %v4023
    %v5218 = vadd.f32 %v5217, %v4039
    %v5219 = vadd.f32 %v5218, %v4055
    %v5220 = vadd.f32 %v5219, %v4071
    %v5221 = vadd.f32 %v5220, %v4087
    %v5222 = vadd.f32 %v5221, %v4103
    %v5223 = vadd.f32 %v5222, %v4119
    %v5224 = vadd.f32 %v5223, %v4135
    %v5225 = vadd.f32 %v5224, %v4151
    %v5226 = vadd.f32 %v5225, %v4167
    %v5227 = vadd.f32 %v5226, %v4183
    %v5228 = vadd.f32 %v5227, %v4199
    %v5229 = vadd.f32 %v5228, %v4215
    %v5230 = vadd.f32 %v5229, %v4231
    %v5231 = vadd.f32 %v5230, %v4247
    %v5232 = vadd.f32 %v5231, %v4263
    %v5233 = vadd.f32 %v5232, %v4279
    %v5234 = vadd.f32 %v5233, %v4295
    %v5235 = vadd.f32 %v5234, %v4311
    %v5236 = vadd.f32 %v5235, %v4327
    %v5237 = vadd.f32 %v5236, %v4343
    %v5238 = vadd.f32 %v5237, %v4359
    %v5239 = vadd.f32 %v5238, %v4375
    %v5240 = vadd.f32 %v5239, %v4391
    %v5241 = vadd.f32 %v5240, %v4407
    %v5242 = vadd.f32 %v5241, %v4423
    %v5243 = vadd.f32 %v5242, %v4439
    %v5244 = vadd.f32 %v5243, %v4455
    %v5245 = vadd.f32 %v5244, %v4471
    %v5246 = vrot.slane %v5245, 4
    %v5247 = vadd.f32 %v5245, %v5246
    %v5248 = vrot.slane %v5247, 2
    %v5249 = vadd.f32 %v5247, %v5248
    %v5250 = vrot.slane %v5249, 1
    %v5251 = vadd.f32 %v5249, %v5250
    %v5252 = vadd.f32 %v3976, %v3992
    %v5253 = vadd.f32 %v5252, %v4008
    %v5254 = vadd.f32 %v5253, %v4024
    %v5255 = vadd.f32 %v5254, %v4040
    %v5256 = vadd.f32 %v5255, %v4056
    %v5257 = vadd.f32 %v5256, %v4072
    %v5258 = vadd.f32 %v5257, %v4088
    %v5259 = vadd.f32 %v5258, %v4104
    %v5260 = vadd.f32 %v5259, %v4120
    %v5261 = vadd.f32 %v5260, %v4136
    %v5262 = vadd.f32 %v5261, %v4152
    %v5263 = vadd.f32 %v5262, %v4168
    %v5264 = vadd.f32 %v5263, %v4184
    %v5265 = vadd.f32 %v5264, %v4200
    %v5266 = vadd.f32 %v5265, %v4216
    %v5267 = vadd.f32 %v5266, %v4232
    %v5268 = vadd.f32 %v5267, %v4248
    %v5269 = vadd.f32 %v5268, %v4264
    %v5270 = vadd.f32 %v5269, %v4280
    %v5271 = vadd.f32 %v5270, %v4296
    %v5272 = vadd.f32 %v5271, %v4312
    %v5273 = vadd.f32 %v5272, %v4328
    %v5274 = vadd.f32 %v5273, %v4344
    %v5275 = vadd.f32 %v5274, %v4360
    %v5276 = vadd.f32 %v5275, %v4376
    %v5277 = vadd.f32 %v5276, %v4392
    %v5278 = vadd.f32 %v5277, %v4408
    %v5279 = vadd.f32 %v5278, %v4424
    %v5280 = vadd.f32 %v5279, %v4440
    %v5281 = vadd.f32 %v5280, %v4456
    %v5282 = vadd.f32 %v5281, %v4472
    %v5283 = vrot.slane %v5282, 4
    %v5284 = vadd.f32 %v5282, %v5283
    %v5285 = vrot.slane %v5284, 2
    %v5286 = vadd.f32 %v5284, %v5285
    %v5287 = vrot.slane %v5286, 1
    %v5288 = vadd.f32 %v5286, %v5287
    %v5289 = vadd.f32 %v3977, %v3993
    %v5290 = vadd.f32 %v5289, %v4009
    %v5291 = vadd.f32 %v5290, %v4025
    %v5292 = vadd.f32 %v5291, %v4041
    %v5293 = vadd.f32 %v5292, %v4057
    %v5294 = vadd.f32 %v5293, %v4073
    %v5295 = vadd.f32 %v5294, %v4089
    %v5296 = vadd.f32 %v5295, %v4105
    %v5297 = vadd.f32 %v5296, %v4121
    %v5298 = vadd.f32 %v5297, %v4137
    %v5299 = vadd.f32 %v5298, %v4153
    %v5300 = vadd.f32 %v5299, %v4169
    %v5301 = vadd.f32 %v5300, %v4185
    %v5302 = vadd.f32 %v5301, %v4201
    %v5303 = vadd.f32 %v5302, %v4217
    %v5304 = vadd.f32 %v5303, %v4233
    %v5305 = vadd.f32 %v5304, %v4249
    %v5306 = vadd.f32 %v5305, %v4265
    %v5307 = vadd.f32 %v5306, %v4281
    %v5308 = vadd.f32 %v5307, %v4297
    %v5309 = vadd.f32 %v5308, %v4313
    %v5310 = vadd.f32 %v5309, %v4329
    %v5311 = vadd.f32 %v5310, %v4345
    %v5312 = vadd.f32 %v5311, %v4361
    %v5313 = vadd.f32 %v5312, %v4377
    %v5314 = vadd.f32 %v5313, %v4393
    %v5315 = vadd.f32 %v5314, %v4409
    %v5316 = vadd.f32 %v5315, %v4425
    %v5317 = vadd.f32 %v5316, %v4441
    %v5318 = vadd.f32 %v5317, %v4457
    %v5319 = vadd.f32 %v5318, %v4473
    %v5320 = vrot.slane %v5319, 4
    %v5321 = vadd.f32 %v5319, %v5320
    %v5322 = vrot.slane %v5321, 2
    %v5323 = vadd.f32 %v5321, %v5322
    %v5324 = vrot.slane %v5323, 1
    %v5325 = vadd.f32 %v5323, %v5324
    %v5326 = vadd.f32 %v3978, %v3994
    %v5327 = vadd.f32 %v5326, %v4010
    %v5328 = vadd.f32 %v5327, %v4026
    %v5329 = vadd.f32 %v5328, %v4042
    %v5330 = vadd.f32 %v5329, %v4058
    %v5331 = vadd.f32 %v5330, %v4074
    %v5332 = vadd.f32 %v5331, %v4090
    %v5333 = vadd.f32 %v5332, %v4106
    %v5334 = vadd.f32 %v5333, %v4122
    %v5335 = vadd.f32 %v5334, %v4138
    %v5336 = vadd.f32 %v5335, %v4154
    %v5337 = vadd.f32 %v5336, %v4170
    %v5338 = vadd.f32 %v5337, %v4186
    %v5339 = vadd.f32 %v5338, %v4202
    %v5340 = vadd.f32 %v5339, %v4218
    %v5341 = vadd.f32 %v5340, %v4234
    %v5342 = vadd.f32 %v5341, %v4250
    %v5343 = vadd.f32 %v5342, %v4266
    %v5344 = vadd.f32 %v5343, %v4282
    %v5345 = vadd.f32 %v5344, %v4298
    %v5346 = vadd.f32 %v5345, %v4314
    %v5347 = vadd.f32 %v5346, %v4330
    %v5348 = vadd.f32 %v5347, %v4346
    %v5349 = vadd.f32 %v5348, %v4362
    %v5350 = vadd.f32 %v5349, %v4378
    %v5351 = vadd.f32 %v5350, %v4394
    %v5352 = vadd.f32 %v5351, %v4410
    %v5353 = vadd.f32 %v5352, %v4426
    %v5354 = vadd.f32 %v5353, %v4442
    %v5355 = vadd.f32 %v5354, %v4458
    %v5356 = vadd.f32 %v5355, %v4474
    %v5357 = vrot.slane %v5356, 4
    %v5358 = vadd.f32 %v5356, %v5357
    %v5359 = vrot.slane %v5358, 2
    %v5360 = vadd.f32 %v5358, %v5359
    %v5361 = vrot.slane %v5360, 1
    %v5362 = vadd.f32 %v5360, %v5361
    %v5363 = vadd.f32 %v3979, %v3995
    %v5364 = vadd.f32 %v5363, %v4011
    %v5365 = vadd.f32 %v5364, %v4027
    %v5366 = vadd.f32 %v5365, %v4043
    %v5367 = vadd.f32 %v5366, %v4059
    %v5368 = vadd.f32 %v5367, %v4075
    %v5369 = vadd.f32 %v5368, %v4091
    %v5370 = vadd.f32 %v5369, %v4107
    %v5371 = vadd.f32 %v5370, %v4123
    %v5372 = vadd.f32 %v5371, %v4139
    %v5373 = vadd.f32 %v5372, %v4155
    %v5374 = vadd.f32 %v5373, %v4171
    %v5375 = vadd.f32 %v5374, %v4187
    %v5376 = vadd.f32 %v5375, %v4203
    %v5377 = vadd.f32 %v5376, %v4219
    %v5378 = vadd.f32 %v5377, %v4235
    %v5379 = vadd.f32 %v5378, %v4251
    %v5380 = vadd.f32 %v5379, %v4267
    %v5381 = vadd.f32 %v5380, %v4283
    %v5382 = vadd.f32 %v5381, %v4299
    %v5383 = vadd.f32 %v5382, %v4315
    %v5384 = vadd.f32 %v5383, %v4331
    %v5385 = vadd.f32 %v5384, %v4347
    %v5386 = vadd.f32 %v5385, %v4363
    %v5387 = vadd.f32 %v5386, %v4379
    %v5388 = vadd.f32 %v5387, %v4395
    %v5389 = vadd.f32 %v5388, %v4411
    %v5390 = vadd.f32 %v5389, %v4427
    %v5391 = vadd.f32 %v5390, %v4443
    %v5392 = vadd.f32 %v5391, %v4459
    %v5393 = vadd.f32 %v5392, %v4475
    %v5394 = vrot.slane %v5393, 4
    %v5395 = vadd.f32 %v5393, %v5394
    %v5396 = vrot.slane %v5395, 2
    %v5397 = vadd.f32 %v5395, %v5396
    %v5398 = vrot.slane %v5397, 1
    %v5399 = vadd.f32 %v5397, %v5398
    %v5400 = vadd.f32 %v3980, %v3996
    %v5401 = vadd.f32 %v5400, %v4012
    %v5402 = vadd.f32 %v5401, %v4028
    %v5403 = vadd.f32 %v5402, %v4044
    %v5404 = vadd.f32 %v5403, %v4060
    %v5405 = vadd.f32 %v5404, %v4076
    %v5406 = vadd.f32 %v5405, %v4092
    %v5407 = vadd.f32 %v5406, %v4108
    %v5408 = vadd.f32 %v5407, %v4124
    %v5409 = vadd.f32 %v5408, %v4140
    %v5410 = vadd.f32 %v5409, %v4156
    %v5411 = vadd.f32 %v5410, %v4172
    %v5412 = vadd.f32 %v5411, %v4188
    %v5413 = vadd.f32 %v5412, %v4204
    %v5414 = vadd.f32 %v5413, %v4220
    %v5415 = vadd.f32 %v5414, %v4236
    %v5416 = vadd.f32 %v5415, %v4252
    %v5417 = vadd.f32 %v5416, %v4268
    %v5418 = vadd.f32 %v5417, %v4284
    %v5419 = vadd.f32 %v5418, %v4300
    %v5420 = vadd.f32 %v5419, %v4316
    %v5421 = vadd.f32 %v5420, %v4332
    %v5422 = vadd.f32 %v5421, %v4348
    %v5423 = vadd.f32 %v5422, %v4364
    %v5424 = vadd.f32 %v5423, %v4380
    %v5425 = vadd.f32 %v5424, %v4396
    %v5426 = vadd.f32 %v5425, %v4412
    %v5427 = vadd.f32 %v5426, %v4428
    %v5428 = vadd.f32 %v5427, %v4444
    %v5429 = vadd.f32 %v5428, %v4460
    %v5430 = vadd.f32 %v5429, %v4476
    %v5431 = vrot.slane %v5430, 4
    %v5432 = vadd.f32 %v5430, %v5431
    %v5433 = vrot.slane %v5432, 2
    %v5434 = vadd.f32 %v5432, %v5433
    %v5435 = vrot.slane %v5434, 1
    %v5436 = vadd.f32 %v5434, %v5435
    %v5437 = vadd.f32 %v3981, %v3997
    %v5438 = vadd.f32 %v5437, %v4013
    %v5439 = vadd.f32 %v5438, %v4029
    %v5440 = vadd.f32 %v5439, %v4045
    %v5441 = vadd.f32 %v5440, %v4061
    %v5442 = vadd.f32 %v5441, %v4077
    %v5443 = vadd.f32 %v5442, %v4093
    %v5444 = vadd.f32 %v5443, %v4109
    %v5445 = vadd.f32 %v5444, %v4125
    %v5446 = vadd.f32 %v5445, %v4141
    %v5447 = vadd.f32 %v5446, %v4157
    %v5448 = vadd.f32 %v5447, %v4173
    %v5449 = vadd.f32 %v5448, %v4189
    %v5450 = vadd.f32 %v5449, %v4205
    %v5451 = vadd.f32 %v5450, %v4221
    %v5452 = vadd.f32 %v5451, %v4237
    %v5453 = vadd.f32 %v5452, %v4253
    %v5454 = vadd.f32 %v5453, %v4269
    %v5455 = vadd.f32 %v5454, %v4285
    %v5456 = vadd.f32 %v5455, %v4301
    %v5457 = vadd.f32 %v5456, %v4317
    %v5458 = vadd.f32 %v5457, %v4333
    %v5459 = vadd.f32 %v5458, %v4349
    %v5460 = vadd.f32 %v5459, %v4365
    %v5461 = vadd.f32 %v5460, %v4381
    %v5462 = vadd.f32 %v5461, %v4397
    %v5463 = vadd.f32 %v5462, %v4413
    %v5464 = vadd.f32 %v5463, %v4429
    %v5465 = vadd.f32 %v5464, %v4445
    %v5466 = vadd.f32 %v5465, %v4461
    %v5467 = vadd.f32 %v5466, %v4477
    %v5468 = vrot.slane %v5467, 4
    %v5469 = vadd.f32 %v5467, %v5468
    %v5470 = vrot.slane %v5469, 2
    %v5471 = vadd.f32 %v5469, %v5470
    %v5472 = vrot.slane %v5471, 1
    %v5473 = vadd.f32 %v5471, %v5472
    %v5474 = vadd.f32 %v3982, %v3998
    %v5475 = vadd.f32 %v5474, %v4014
    %v5476 = vadd.f32 %v5475, %v4030
    %v5477 = vadd.f32 %v5476, %v4046
    %v5478 = vadd.f32 %v5477, %v4062
    %v5479 = vadd.f32 %v5478, %v4078
    %v5480 = vadd.f32 %v5479, %v4094
    %v5481 = vadd.f32 %v5480, %v4110
    %v5482 = vadd.f32 %v5481, %v4126
    %v5483 = vadd.f32 %v5482, %v4142
    %v5484 = vadd.f32 %v5483, %v4158
    %v5485 = vadd.f32 %v5484, %v4174
    %v5486 = vadd.f32 %v5485, %v4190
    %v5487 = vadd.f32 %v5486, %v4206
    %v5488 = vadd.f32 %v5487, %v4222
    %v5489 = vadd.f32 %v5488, %v4238
    %v5490 = vadd.f32 %v5489, %v4254
    %v5491 = vadd.f32 %v5490, %v4270
    %v5492 = vadd.f32 %v5491, %v4286
    %v5493 = vadd.f32 %v5492, %v4302
    %v5494 = vadd.f32 %v5493, %v4318
    %v5495 = vadd.f32 %v5494, %v4334
    %v5496 = vadd.f32 %v5495, %v4350
    %v5497 = vadd.f32 %v5496, %v4366
    %v5498 = vadd.f32 %v5497, %v4382
    %v5499 = vadd.f32 %v5498, %v4398
    %v5500 = vadd.f32 %v5499, %v4414
    %v5501 = vadd.f32 %v5500, %v4430
    %v5502 = vadd.f32 %v5501, %v4446
    %v5503 = vadd.f32 %v5502, %v4462
    %v5504 = vadd.f32 %v5503, %v4478
    %v5505 = vrot.slane %v5504, 4
    %v5506 = vadd.f32 %v5504, %v5505
    %v5507 = vrot.slane %v5506, 2
    %v5508 = vadd.f32 %v5506, %v5507
    %v5509 = vrot.slane %v5508, 1
    %v5510 = vadd.f32 %v5508, %v5509
    %v5511 = vadd.f32 %v3983, %v3999
    %v5512 = vadd.f32 %v5511, %v4015
    %v5513 = vadd.f32 %v5512, %v4031
    %v5514 = vadd.f32 %v5513, %v4047
    %v5515 = vadd.f32 %v5514, %v4063
    %v5516 = vadd.f32 %v5515, %v4079
    %v5517 = vadd.f32 %v5516, %v4095
    %v5518 = vadd.f32 %v5517, %v4111
    %v5519 = vadd.f32 %v5518, %v4127
    %v5520 = vadd.f32 %v5519, %v4143
    %v5521 = vadd.f32 %v5520, %v4159
    %v5522 = vadd.f32 %v5521, %v4175
    %v5523 = vadd.f32 %v5522, %v4191
    %v5524 = vadd.f32 %v5523, %v4207
    %v5525 = vadd.f32 %v5524, %v4223
    %v5526 = vadd.f32 %v5525, %v4239
    %v5527 = vadd.f32 %v5526, %v4255
    %v5528 = vadd.f32 %v5527, %v4271
    %v5529 = vadd.f32 %v5528, %v4287
    %v5530 = vadd.f32 %v5529, %v4303
    %v5531 = vadd.f32 %v5530, %v4319
    %v5532 = vadd.f32 %v5531, %v4335
    %v5533 = vadd.f32 %v5532, %v4351
    %v5534 = vadd.f32 %v5533, %v4367
    %v5535 = vadd.f32 %v5534, %v4383
    %v5536 = vadd.f32 %v5535, %v4399
    %v5537 = vadd.f32 %v5536, %v4415
    %v5538 = vadd.f32 %v5537, %v4431
    %v5539 = vadd.f32 %v5538, %v4447
    %v5540 = vadd.f32 %v5539, %v4463
    %v5541 = vadd.f32 %v5540, %v4479
    %v5542 = vrot.slane %v5541, 4
    %v5543 = vadd.f32 %v5541, %v5542
    %v5544 = vrot.slane %v5543, 2
    %v5545 = vadd.f32 %v5543, %v5544
    %v5546 = vrot.slane %v5545, 1
    %v5547 = vadd.f32 %v5545, %v5546
    %v5548 = vadd.f32 %v3984, %v4000
    %v5549 = vadd.f32 %v5548, %v4016
    %v5550 = vadd.f32 %v5549, %v4032
    %v5551 = vadd.f32 %v5550, %v4048
    %v5552 = vadd.f32 %v5551, %v4064
    %v5553 = vadd.f32 %v5552, %v4080
    %v5554 = vadd.f32 %v5553, %v4096
    %v5555 = vadd.f32 %v5554, %v4112
    %v5556 = vadd.f32 %v5555, %v4128
    %v5557 = vadd.f32 %v5556, %v4144
    %v5558 = vadd.f32 %v5557, %v4160
    %v5559 = vadd.f32 %v5558, %v4176
    %v5560 = vadd.f32 %v5559, %v4192
    %v5561 = vadd.f32 %v5560, %v4208
    %v5562 = vadd.f32 %v5561, %v4224
    %v5563 = vadd.f32 %v5562, %v4240
    %v5564 = vadd.f32 %v5563, %v4256
    %v5565 = vadd.f32 %v5564, %v4272
    %v5566 = vadd.f32 %v5565, %v4288
    %v5567 = vadd.f32 %v5566, %v4304
    %v5568 = vadd.f32 %v5567, %v4320
    %v5569 = vadd.f32 %v5568, %v4336
    %v5570 = vadd.f32 %v5569, %v4352
    %v5571 = vadd.f32 %v5570, %v4368
    %v5572 = vadd.f32 %v5571, %v4384
    %v5573 = vadd.f32 %v5572, %v4400
    %v5574 = vadd.f32 %v5573, %v4416
    %v5575 = vadd.f32 %v5574, %v4432
    %v5576 = vadd.f32 %v5575, %v4448
    %v5577 = vadd.f32 %v5576, %v4464
    %v5578 = vadd.f32 %v5577, %v4480
    %v5579 = vrot.slane %v5578, 4
    %v5580 = vadd.f32 %v5578, %v5579
    %v5581 = vrot.slane %v5580, 2
    %v5582 = vadd.f32 %v5580, %v5581
    %v5583 = vrot.slane %v5582, 1
    %v5584 = vadd.f32 %v5582, %v5583
    %v5585 = vadd.f32 %v4481, %v4497
    %v5586 = vadd.f32 %v5585, %v4513
    %v5587 = vadd.f32 %v5586, %v4529
    %v5588 = vadd.f32 %v5587, %v4545
    %v5589 = vadd.f32 %v5588, %v4561
    %v5590 = vadd.f32 %v5589, %v4577
    %v5591 = vadd.f32 %v5590, %v4593
    %v5592 = vadd.f32 %v5591, %v4609
    %v5593 = vadd.f32 %v5592, %v4625
    %v5594 = vadd.f32 %v5593, %v4641
    %v5595 = vadd.f32 %v5594, %v4657
    %v5596 = vadd.f32 %v5595, %v4673
    %v5597 = vadd.f32 %v5596, %v4689
    %v5598 = vadd.f32 %v5597, %v4705
    %v5599 = vadd.f32 %v5598, %v4721
    %v5600 = vadd.f32 %v5599, %v4737
    %v5601 = vadd.f32 %v5600, %v4753
    %v5602 = vadd.f32 %v5601, %v4769
    %v5603 = vadd.f32 %v5602, %v4785
    %v5604 = vadd.f32 %v5603, %v4801
    %v5605 = vadd.f32 %v5604, %v4817
    %v5606 = vadd.f32 %v5605, %v4833
    %v5607 = vadd.f32 %v5606, %v4849
    %v5608 = vadd.f32 %v5607, %v4865
    %v5609 = vadd.f32 %v5608, %v4881
    %v5610 = vadd.f32 %v5609, %v4897
    %v5611 = vadd.f32 %v5610, %v4913
    %v5612 = vadd.f32 %v5611, %v4929
    %v5613 = vadd.f32 %v5612, %v4945
    %v5614 = vadd.f32 %v5613, %v4961
    %v5615 = vadd.f32 %v5614, %v4977
    %v5616 = vrot.slane %v5615, 4
    %v5617 = vadd.f32 %v5615, %v5616
    %v5618 = vrot.slane %v5617, 2
    %v5619 = vadd.f32 %v5617, %v5618
    %v5620 = vrot.slane %v5619, 1
    %v5621 = vadd.f32 %v5619, %v5620
    %v5622 = vadd.f32 %v4482, %v4498
    %v5623 = vadd.f32 %v5622, %v4514
    %v5624 = vadd.f32 %v5623, %v4530
    %v5625 = vadd.f32 %v5624, %v4546
    %v5626 = vadd.f32 %v5625, %v4562
    %v5627 = vadd.f32 %v5626, %v4578
    %v5628 = vadd.f32 %v5627, %v4594
    %v5629 = vadd.f32 %v5628, %v4610
    %v5630 = vadd.f32 %v5629, %v4626
    %v5631 = vadd.f32 %v5630, %v4642
    %v5632 = vadd.f32 %v5631, %v4658
    %v5633 = vadd.f32 %v5632, %v4674
    %v5634 = vadd.f32 %v5633, %v4690
    %v5635 = vadd.f32 %v5634, %v4706
    %v5636 = vadd.f32 %v5635, %v4722
    %v5637 = vadd.f32 %v5636, %v4738
    %v5638 = vadd.f32 %v5637, %v4754
    %v5639 = vadd.f32 %v5638, %v4770
    %v5640 = vadd.f32 %v5639, %v4786
    %v5641 = vadd.f32 %v5640, %v4802
    %v5642 = vadd.f32 %v5641, %v4818
    %v5643 = vadd.f32 %v5642, %v4834
    %v5644 = vadd.f32 %v5643, %v4850
    %v5645 = vadd.f32 %v5644, %v4866
    %v5646 = vadd.f32 %v5645, %v4882
    %v5647 = vadd.f32 %v5646, %v4898
    %v5648 = vadd.f32 %v5647, %v4914
    %v5649 = vadd.f32 %v5648, %v4930
    %v5650 = vadd.f32 %v5649, %v4946
    %v5651 = vadd.f32 %v5650, %v4962
    %v5652 = vadd.f32 %v5651, %v4978
    %v5653 = vrot.slane %v5652, 4
    %v5654 = vadd.f32 %v5652, %v5653
    %v5655 = vrot.slane %v5654, 2
    %v5656 = vadd.f32 %v5654, %v5655
    %v5657 = vrot.slane %v5656, 1
    %v5658 = vadd.f32 %v5656, %v5657
    %v5659 = vadd.f32 %v4483, %v4499
    %v5660 = vadd.f32 %v5659, %v4515
    %v5661 = vadd.f32 %v5660, %v4531
    %v5662 = vadd.f32 %v5661, %v4547
    %v5663 = vadd.f32 %v5662, %v4563
    %v5664 = vadd.f32 %v5663, %v4579
    %v5665 = vadd.f32 %v5664, %v4595
    %v5666 = vadd.f32 %v5665, %v4611
    %v5667 = vadd.f32 %v5666, %v4627
    %v5668 = vadd.f32 %v5667, %v4643
    %v5669 = vadd.f32 %v5668, %v4659
    %v5670 = vadd.f32 %v5669, %v4675
    %v5671 = vadd.f32 %v5670, %v4691
    %v5672 = vadd.f32 %v5671, %v4707
    %v5673 = vadd.f32 %v5672, %v4723
    %v5674 = vadd.f32 %v5673, %v4739
    %v5675 = vadd.f32 %v5674, %v4755
    %v5676 = vadd.f32 %v5675, %v4771
    %v5677 = vadd.f32 %v5676, %v4787
    %v5678 = vadd.f32 %v5677, %v4803
    %v5679 = vadd.f32 %v5678, %v4819
    %v5680 = vadd.f32 %v5679, %v4835
    %v5681 = vadd.f32 %v5680, %v4851
    %v5682 = vadd.f32 %v5681, %v4867
    %v5683 = vadd.f32 %v5682, %v4883
    %v5684 = vadd.f32 %v5683, %v4899
    %v5685 = vadd.f32 %v5684, %v4915
    %v5686 = vadd.f32 %v5685, %v4931
    %v5687 = vadd.f32 %v5686, %v4947
    %v5688 = vadd.f32 %v5687, %v4963
    %v5689 = vadd.f32 %v5688, %v4979
    %v5690 = vrot.slane %v5689, 4
    %v5691 = vadd.f32 %v5689, %v5690
    %v5692 = vrot.slane %v5691, 2
    %v5693 = vadd.f32 %v5691, %v5692
    %v5694 = vrot.slane %v5693, 1
    %v5695 = vadd.f32 %v5693, %v5694
    %v5696 = vadd.f32 %v4484, %v4500
    %v5697 = vadd.f32 %v5696, %v4516
    %v5698 = vadd.f32 %v5697, %v4532
    %v5699 = vadd.f32 %v5698, %v4548
    %v5700 = vadd.f32 %v5699, %v4564
    %v5701 = vadd.f32 %v5700, %v4580
    %v5702 = vadd.f32 %v5701, %v4596
    %v5703 = vadd.f32 %v5702, %v4612
    %v5704 = vadd.f32 %v5703, %v4628
    %v5705 = vadd.f32 %v5704, %v4644
    %v5706 = vadd.f32 %v5705, %v4660
    %v5707 = vadd.f32 %v5706, %v4676
    %v5708 = vadd.f32 %v5707, %v4692
    %v5709 = vadd.f32 %v5708, %v4708
    %v5710 = vadd.f32 %v5709, %v4724
    %v5711 = vadd.f32 %v5710, %v4740
    %v5712 = vadd.f32 %v5711, %v4756
    %v5713 = vadd.f32 %v5712, %v4772
    %v5714 = vadd.f32 %v5713, %v4788
    %v5715 = vadd.f32 %v5714, %v4804
    %v5716 = vadd.f32 %v5715, %v4820
    %v5717 = vadd.f32 %v5716, %v4836
    %v5718 = vadd.f32 %v5717, %v4852
    %v5719 = vadd.f32 %v5718, %v4868
    %v5720 = vadd.f32 %v5719, %v4884
    %v5721 = vadd.f32 %v5720, %v4900
    %v5722 = vadd.f32 %v5721, %v4916
    %v5723 = vadd.f32 %v5722, %v4932
    %v5724 = vadd.f32 %v5723, %v4948
    %v5725 = vadd.f32 %v5724, %v4964
    %v5726 = vadd.f32 %v5725, %v4980
    %v5727 = vrot.slane %v5726, 4
    %v5728 = vadd.f32 %v5726, %v5727
    %v5729 = vrot.slane %v5728, 2
    %v5730 = vadd.f32 %v5728, %v5729
    %v5731 = vrot.slane %v5730, 1
    %v5732 = vadd.f32 %v5730, %v5731
    %v5733 = vadd.f32 %v4485, %v4501
    %v5734 = vadd.f32 %v5733, %v4517
    %v5735 = vadd.f32 %v5734, %v4533
    %v5736 = vadd.f32 %v5735, %v4549
    %v5737 = vadd.f32 %v5736, %v4565
    %v5738 = vadd.f32 %v5737, %v4581
    %v5739 = vadd.f32 %v5738, %v4597
    %v5740 = vadd.f32 %v5739, %v4613
    %v5741 = vadd.f32 %v5740, %v4629
    %v5742 = vadd.f32 %v5741, %v4645
    %v5743 = vadd.f32 %v5742, %v4661
    %v5744 = vadd.f32 %v5743, %v4677
    %v5745 = vadd.f32 %v5744, %v4693
    %v5746 = vadd.f32 %v5745, %v4709
    %v5747 = vadd.f32 %v5746, %v4725
    %v5748 = vadd.f32 %v5747, %v4741
    %v5749 = vadd.f32 %v5748, %v4757
    %v5750 = vadd.f32 %v5749, %v4773
    %v5751 = vadd.f32 %v5750, %v4789
    %v5752 = vadd.f32 %v5751, %v4805
    %v5753 = vadd.f32 %v5752, %v4821
    %v5754 = vadd.f32 %v5753, %v4837
    %v5755 = vadd.f32 %v5754, %v4853
    %v5756 = vadd.f32 %v5755, %v4869
    %v5757 = vadd.f32 %v5756, %v4885
    %v5758 = vadd.f32 %v5757, %v4901
    %v5759 = vadd.f32 %v5758, %v4917
    %v5760 = vadd.f32 %v5759, %v4933
    %v5761 = vadd.f32 %v5760, %v4949
    %v5762 = vadd.f32 %v5761, %v4965
    %v5763 = vadd.f32 %v5762, %v4981
    %v5764 = vrot.slane %v5763, 4
    %v5765 = vadd.f32 %v5763, %v5764
    %v5766 = vrot.slane %v5765, 2
    %v5767 = vadd.f32 %v5765, %v5766
    %v5768 = vrot.slane %v5767, 1
    %v5769 = vadd.f32 %v5767, %v5768
    %v5770 = vadd.f32 %v4486, %v4502
    %v5771 = vadd.f32 %v5770, %v4518
    %v5772 = vadd.f32 %v5771, %v4534
    %v5773 = vadd.f32 %v5772, %v4550
    %v5774 = vadd.f32 %v5773, %v4566
    %v5775 = vadd.f32 %v5774, %v4582
    %v5776 = vadd.f32 %v5775, %v4598
    %v5777 = vadd.f32 %v5776, %v4614
    %v5778 = vadd.f32 %v5777, %v4630
    %v5779 = vadd.f32 %v5778, %v4646
    %v5780 = vadd.f32 %v5779, %v4662
    %v5781 = vadd.f32 %v5780, %v4678
    %v5782 = vadd.f32 %v5781, %v4694
    %v5783 = vadd.f32 %v5782, %v4710
    %v5784 = vadd.f32 %v5783, %v4726
    %v5785 = vadd.f32 %v5784, %v4742
    %v5786 = vadd.f32 %v5785, %v4758
    %v5787 = vadd.f32 %v5786, %v4774
    %v5788 = vadd.f32 %v5787, %v4790
    %v5789 = vadd.f32 %v5788, %v4806
    %v5790 = vadd.f32 %v5789, %v4822
    %v5791 = vadd.f32 %v5790, %v4838
    %v5792 = vadd.f32 %v5791, %v4854
    %v5793 = vadd.f32 %v5792, %v4870
    %v5794 = vadd.f32 %v5793, %v4886
    %v5795 = vadd.f32 %v5794, %v4902
    %v5796 = vadd.f32 %v5795, %v4918
    %v5797 = vadd.f32 %v5796, %v4934
    %v5798 = vadd.f32 %v5797, %v4950
    %v5799 = vadd.f32 %v5798, %v4966
    %v5800 = vadd.f32 %v5799, %v4982
    %v5801 = vrot.slane %v5800, 4
    %v5802 = vadd.f32 %v5800, %v5801
    %v5803 = vrot.slane %v5802, 2
    %v5804 = vadd.f32 %v5802, %v5803
    %v5805 = vrot.slane %v5804, 1
    %v5806 = vadd.f32 %v5804, %v5805
    %v5807 = vadd.f32 %v4487, %v4503
    %v5808 = vadd.f32 %v5807, %v4519
    %v5809 = vadd.f32 %v5808, %v4535
    %v5810 = vadd.f32 %v5809, %v4551
    %v5811 = vadd.f32 %v5810, %v4567
    %v5812 = vadd.f32 %v5811, %v4583
    %v5813 = vadd.f32 %v5812, %v4599
    %v5814 = vadd.f32 %v5813, %v4615
    %v5815 = vadd.f32 %v5814, %v4631
    %v5816 = vadd.f32 %v5815, %v4647
    %v5817 = vadd.f32 %v5816, %v4663
    %v5818 = vadd.f32 %v5817, %v4679
    %v5819 = vadd.f32 %v5818, %v4695
    %v5820 = vadd.f32 %v5819, %v4711
    %v5821 = vadd.f32 %v5820, %v4727
    %v5822 = vadd.f32 %v5821, %v4743
    %v5823 = vadd.f32 %v5822, %v4759
    %v5824 = vadd.f32 %v5823, %v4775
    %v5825 = vadd.f32 %v5824, %v4791
    %v5826 = vadd.f32 %v5825, %v4807
    %v5827 = vadd.f32 %v5826, %v4823
    %v5828 = vadd.f32 %v5827, %v4839
    %v5829 = vadd.f32 %v5828, %v4855
    %v5830 = vadd.f32 %v5829, %v4871
    %v5831 = vadd.f32 %v5830, %v4887
    %v5832 = vadd.f32 %v5831, %v4903
    %v5833 = vadd.f32 %v5832, %v4919
    %v5834 = vadd.f32 %v5833, %v4935
    %v5835 = vadd.f32 %v5834, %v4951
    %v5836 = vadd.f32 %v5835, %v4967
    %v5837 = vadd.f32 %v5836, %v4983
    %v5838 = vrot.slane %v5837, 4
    %v5839 = vadd.f32 %v5837, %v5838
    %v5840 = vrot.slane %v5839, 2
    %v5841 = vadd.f32 %v5839, %v5840
    %v5842 = vrot.slane %v5841, 1
    %v5843 = vadd.f32 %v5841, %v5842
    %v5844 = vadd.f32 %v4488, %v4504
    %v5845 = vadd.f32 %v5844, %v4520
    %v5846 = vadd.f32 %v5845, %v4536
    %v5847 = vadd.f32 %v5846, %v4552
    %v5848 = vadd.f32 %v5847, %v4568
    %v5849 = vadd.f32 %v5848, %v4584
    %v5850 = vadd.f32 %v5849, %v4600
    %v5851 = vadd.f32 %v5850, %v4616
    %v5852 = vadd.f32 %v5851, %v4632
    %v5853 = vadd.f32 %v5852, %v4648
    %v5854 = vadd.f32 %v5853, %v4664
    %v5855 = vadd.f32 %v5854, %v4680
    %v5856 = vadd.f32 %v5855, %v4696
    %v5857 = vadd.f32 %v5856, %v4712
    %v5858 = vadd.f32 %v5857, %v4728
    %v5859 = vadd.f32 %v5858, %v4744
    %v5860 = vadd.f32 %v5859, %v4760
    %v5861 = vadd.f32 %v5860, %v4776
    %v5862 = vadd.f32 %v5861, %v4792
    %v5863 = vadd.f32 %v5862, %v4808
    %v5864 = vadd.f32 %v5863, %v4824
    %v5865 = vadd.f32 %v5864, %v4840
    %v5866 = vadd.f32 %v5865, %v4856
    %v5867 = vadd.f32 %v5866, %v4872
    %v5868 = vadd.f32 %v5867, %v4888
    %v5869 = vadd.f32 %v5868, %v4904
    %v5870 = vadd.f32 %v5869, %v4920
    %v5871 = vadd.f32 %v5870, %v4936
    %v5872 = vadd.f32 %v5871, %v4952
    %v5873 = vadd.f32 %v5872, %v4968
    %v5874 = vadd.f32 %v5873, %v4984
    %v5875 = vrot.slane %v5874, 4
    %v5876 = vadd.f32 %v5874, %v5875
    %v5877 = vrot.slane %v5876, 2
    %v5878 = vadd.f32 %v5876, %v5877
    %v5879 = vrot.slane %v5878, 1
    %v5880 = vadd.f32 %v5878, %v5879
    %v5881 = vadd.f32 %v4489, %v4505
    %v5882 = vadd.f32 %v5881, %v4521
    %v5883 = vadd.f32 %v5882, %v4537
    %v5884 = vadd.f32 %v5883, %v4553
    %v5885 = vadd.f32 %v5884, %v4569
    %v5886 = vadd.f32 %v5885, %v4585
    %v5887 = vadd.f32 %v5886, %v4601
    %v5888 = vadd.f32 %v5887, %v4617
    %v5889 = vadd.f32 %v5888, %v4633
    %v5890 = vadd.f32 %v5889, %v4649
    %v5891 = vadd.f32 %v5890, %v4665
    %v5892 = vadd.f32 %v5891, %v4681
    %v5893 = vadd.f32 %v5892, %v4697
    %v5894 = vadd.f32 %v5893, %v4713
    %v5895 = vadd.f32 %v5894, %v4729
    %v5896 = vadd.f32 %v5895, %v4745
    %v5897 = vadd.f32 %v5896, %v4761
    %v5898 = vadd.f32 %v5897, %v4777
    %v5899 = vadd.f32 %v5898, %v4793
    %v5900 = vadd.f32 %v5899, %v4809
    %v5901 = vadd.f32 %v5900, %v4825
    %v5902 = vadd.f32 %v5901, %v4841
    %v5903 = vadd.f32 %v5902, %v4857
    %v5904 = vadd.f32 %v5903, %v4873
    %v5905 = vadd.f32 %v5904, %v4889
    %v5906 = vadd.f32 %v5905, %v4905
    %v5907 = vadd.f32 %v5906, %v4921
    %v5908 = vadd.f32 %v5907, %v4937
    %v5909 = vadd.f32 %v5908, %v4953
    %v5910 = vadd.f32 %v5909, %v4969
    %v5911 = vadd.f32 %v5910, %v4985
    %v5912 = vrot.slane %v5911, 4
    %v5913 = vadd.f32 %v5911, %v5912
    %v5914 = vrot.slane %v5913, 2
    %v5915 = vadd.f32 %v5913, %v5914
    %v5916 = vrot.slane %v5915, 1
    %v5917 = vadd.f32 %v5915, %v5916
    %v5918 = vadd.f32 %v4490, %v4506
    %v5919 = vadd.f32 %v5918, %v4522
    %v5920 = vadd.f32 %v5919, %v4538
    %v5921 = vadd.f32 %v5920, %v4554
    %v5922 = vadd.f32 %v5921, %v4570
    %v5923 = vadd.f32 %v5922, %v4586
    %v5924 = vadd.f32 %v5923, %v4602
    %v5925 = vadd.f32 %v5924, %v4618
    %v5926 = vadd.f32 %v5925, %v4634
    %v5927 = vadd.f32 %v5926, %v4650
    %v5928 = vadd.f32 %v5927, %v4666
    %v5929 = vadd.f32 %v5928, %v4682
    %v5930 = vadd.f32 %v5929, %v4698
    %v5931 = vadd.f32 %v5930, %v4714
    %v5932 = vadd.f32 %v5931, %v4730
    %v5933 = vadd.f32 %v5932, %v4746
    %v5934 = vadd.f32 %v5933, %v4762
    %v5935 = vadd.f32 %v5934, %v4778
    %v5936 = vadd.f32 %v5935, %v4794
    %v5937 = vadd.f32 %v5936, %v4810
    %v5938 = vadd.f32 %v5937, %v4826
    %v5939 = vadd.f32 %v5938, %v4842
    %v5940 = vadd.f32 %v5939, %v4858
    %v5941 = vadd.f32 %v5940, %v4874
    %v5942 = vadd.f32 %v5941, %v4890
    %v5943 = vadd.f32 %v5942, %v4906
    %v5944 = vadd.f32 %v5943, %v4922
    %v5945 = vadd.f32 %v5944, %v4938
    %v5946 = vadd.f32 %v5945, %v4954
    %v5947 = vadd.f32 %v5946, %v4970
    %v5948 = vadd.f32 %v5947, %v4986
    %v5949 = vrot.slane %v5948, 4
    %v5950 = vadd.f32 %v5948, %v5949
    %v5951 = vrot.slane %v5950, 2
    %v5952 = vadd.f32 %v5950, %v5951
    %v5953 = vrot.slane %v5952, 1
    %v5954 = vadd.f32 %v5952, %v5953
    %v5955 = vadd.f32 %v4491, %v4507
    %v5956 = vadd.f32 %v5955, %v4523
    %v5957 = vadd.f32 %v5956, %v4539
    %v5958 = vadd.f32 %v5957, %v4555
    %v5959 = vadd.f32 %v5958, %v4571
    %v5960 = vadd.f32 %v5959, %v4587
    %v5961 = vadd.f32 %v5960, %v4603
    %v5962 = vadd.f32 %v5961, %v4619
    %v5963 = vadd.f32 %v5962, %v4635
    %v5964 = vadd.f32 %v5963, %v4651
    %v5965 = vadd.f32 %v5964, %v4667
    %v5966 = vadd.f32 %v5965, %v4683
    %v5967 = vadd.f32 %v5966, %v4699
    %v5968 = vadd.f32 %v5967, %v4715
    %v5969 = vadd.f32 %v5968, %v4731
    %v5970 = vadd.f32 %v5969, %v4747
    %v5971 = vadd.f32 %v5970, %v4763
    %v5972 = vadd.f32 %v5971, %v4779
    %v5973 = vadd.f32 %v5972, %v4795
    %v5974 = vadd.f32 %v5973, %v4811
    %v5975 = vadd.f32 %v5974, %v4827
    %v5976 = vadd.f32 %v5975, %v4843
    %v5977 = vadd.f32 %v5976, %v4859
    %v5978 = vadd.f32 %v5977, %v4875
    %v5979 = vadd.f32 %v5978, %v4891
    %v5980 = vadd.f32 %v5979, %v4907
    %v5981 = vadd.f32 %v5980, %v4923
    %v5982 = vadd.f32 %v5981, %v4939
    %v5983 = vadd.f32 %v5982, %v4955
    %v5984 = vadd.f32 %v5983, %v4971
    %v5985 = vadd.f32 %v5984, %v4987
    %v5986 = vrot.slane %v5985, 4
    %v5987 = vadd.f32 %v5985, %v5986
    %v5988 = vrot.slane %v5987, 2
    %v5989 = vadd.f32 %v5987, %v5988
    %v5990 = vrot.slane %v5989, 1
    %v5991 = vadd.f32 %v5989, %v5990
    %v5992 = vadd.f32 %v4492, %v4508
    %v5993 = vadd.f32 %v5992, %v4524
    %v5994 = vadd.f32 %v5993, %v4540
    %v5995 = vadd.f32 %v5994, %v4556
    %v5996 = vadd.f32 %v5995, %v4572
    %v5997 = vadd.f32 %v5996, %v4588
    %v5998 = vadd.f32 %v5997, %v4604
    %v5999 = vadd.f32 %v5998, %v4620
    %v6000 = vadd.f32 %v5999, %v4636
    %v6001 = vadd.f32 %v6000, %v4652
    %v6002 = vadd.f32 %v6001, %v4668
    %v6003 = vadd.f32 %v6002, %v4684
    %v6004 = vadd.f32 %v6003, %v4700
    %v6005 = vadd.f32 %v6004, %v4716
    %v6006 = vadd.f32 %v6005, %v4732
    %v6007 = vadd.f32 %v6006, %v4748
    %v6008 = vadd.f32 %v6007, %v4764
    %v6009 = vadd.f32 %v6008, %v4780
    %v6010 = vadd.f32 %v6009, %v4796
    %v6011 = vadd.f32 %v6010, %v4812
    %v6012 = vadd.f32 %v6011, %v4828
    %v6013 = vadd.f32 %v6012, %v4844
    %v6014 = vadd.f32 %v6013, %v4860
    %v6015 = vadd.f32 %v6014, %v4876
    %v6016 = vadd.f32 %v6015, %v4892
    %v6017 = vadd.f32 %v6016, %v4908
    %v6018 = vadd.f32 %v6017, %v4924
    %v6019 = vadd.f32 %v6018, %v4940
    %v6020 = vadd.f32 %v6019, %v4956
    %v6021 = vadd.f32 %v6020, %v4972
    %v6022 = vadd.f32 %v6021, %v4988
    %v6023 = vrot.slane %v6022, 4
    %v6024 = vadd.f32 %v6022, %v6023
    %v6025 = vrot.slane %v6024, 2
    %v6026 = vadd.f32 %v6024, %v6025
    %v6027 = vrot.slane %v6026, 1
    %v6028 = vadd.f32 %v6026, %v6027
    %v6029 = vadd.f32 %v4493, %v4509
    %v6030 = vadd.f32 %v6029, %v4525
    %v6031 = vadd.f32 %v6030, %v4541
    %v6032 = vadd.f32 %v6031, %v4557
    %v6033 = vadd.f32 %v6032, %v4573
    %v6034 = vadd.f32 %v6033, %v4589
    %v6035 = vadd.f32 %v6034, %v4605
    %v6036 = vadd.f32 %v6035, %v4621
    %v6037 = vadd.f32 %v6036, %v4637
    %v6038 = vadd.f32 %v6037, %v4653
    %v6039 = vadd.f32 %v6038, %v4669
    %v6040 = vadd.f32 %v6039, %v4685
    %v6041 = vadd.f32 %v6040, %v4701
    %v6042 = vadd.f32 %v6041, %v4717
    %v6043 = vadd.f32 %v6042, %v4733
    %v6044 = vadd.f32 %v6043, %v4749
    %v6045 = vadd.f32 %v6044, %v4765
    %v6046 = vadd.f32 %v6045, %v4781
    %v6047 = vadd.f32 %v6046, %v4797
    %v6048 = vadd.f32 %v6047, %v4813
    %v6049 = vadd.f32 %v6048, %v4829
    %v6050 = vadd.f32 %v6049, %v4845
    %v6051 = vadd.f32 %v6050, %v4861
    %v6052 = vadd.f32 %v6051, %v4877
    %v6053 = vadd.f32 %v6052, %v4893
    %v6054 = vadd.f32 %v6053, %v4909
    %v6055 = vadd.f32 %v6054, %v4925
    %v6056 = vadd.f32 %v6055, %v4941
    %v6057 = vadd.f32 %v6056, %v4957
    %v6058 = vadd.f32 %v6057, %v4973
    %v6059 = vadd.f32 %v6058, %v4989
    %v6060 = vrot.slane %v6059, 4
    %v6061 = vadd.f32 %v6059, %v6060
    %v6062 = vrot.slane %v6061, 2
    %v6063 = vadd.f32 %v6061, %v6062
    %v6064 = vrot.slane %v6063, 1
    %v6065 = vadd.f32 %v6063, %v6064
    %v6066 = vadd.f32 %v4494, %v4510
    %v6067 = vadd.f32 %v6066, %v4526
    %v6068 = vadd.f32 %v6067, %v4542
    %v6069 = vadd.f32 %v6068, %v4558
    %v6070 = vadd.f32 %v6069, %v4574
    %v6071 = vadd.f32 %v6070, %v4590
    %v6072 = vadd.f32 %v6071, %v4606
    %v6073 = vadd.f32 %v6072, %v4622
    %v6074 = vadd.f32 %v6073, %v4638
    %v6075 = vadd.f32 %v6074, %v4654
    %v6076 = vadd.f32 %v6075, %v4670
    %v6077 = vadd.f32 %v6076, %v4686
    %v6078 = vadd.f32 %v6077, %v4702
    %v6079 = vadd.f32 %v6078, %v4718
    %v6080 = vadd.f32 %v6079, %v4734
    %v6081 = vadd.f32 %v6080, %v4750
    %v6082 = vadd.f32 %v6081, %v4766
    %v6083 = vadd.f32 %v6082, %v4782
    %v6084 = vadd.f32 %v6083, %v4798
    %v6085 = vadd.f32 %v6084, %v4814
    %v6086 = vadd.f32 %v6085, %v4830
    %v6087 = vadd.f32 %v6086, %v4846
    %v6088 = vadd.f32 %v6087, %v4862
    %v6089 = vadd.f32 %v6088, %v4878
    %v6090 = vadd.f32 %v6089, %v4894
    %v6091 = vadd.f32 %v6090, %v4910
    %v6092 = vadd.f32 %v6091, %v4926
    %v6093 = vadd.f32 %v6092, %v4942
    %v6094 = vadd.f32 %v6093, %v4958
    %v6095 = vadd.f32 %v6094, %v4974
    %v6096 = vadd.f32 %v6095, %v4990
    %v6097 = vrot.slane %v6096, 4
    %v6098 = vadd.f32 %v6096, %v6097
    %v6099 = vrot.slane %v6098, 2
    %v6100 = vadd.f32 %v6098, %v6099
    %v6101 = vrot.slane %v6100, 1
    %v6102 = vadd.f32 %v6100, %v6101
    %v6103 = vadd.f32 %v4495, %v4511
    %v6104 = vadd.f32 %v6103, %v4527
    %v6105 = vadd.f32 %v6104, %v4543
    %v6106 = vadd.f32 %v6105, %v4559
    %v6107 = vadd.f32 %v6106, %v4575
    %v6108 = vadd.f32 %v6107, %v4591
    %v6109 = vadd.f32 %v6108, %v4607
    %v6110 = vadd.f32 %v6109, %v4623
    %v6111 = vadd.f32 %v6110, %v4639
    %v6112 = vadd.f32 %v6111, %v4655
    %v6113 = vadd.f32 %v6112, %v4671
    %v6114 = vadd.f32 %v6113, %v4687
    %v6115 = vadd.f32 %v6114, %v4703
    %v6116 = vadd.f32 %v6115, %v4719
    %v6117 = vadd.f32 %v6116, %v4735
    %v6118 = vadd.f32 %v6117, %v4751
    %v6119 = vadd.f32 %v6118, %v4767
    %v6120 = vadd.f32 %v6119, %v4783
    %v6121 = vadd.f32 %v6120, %v4799
    %v6122 = vadd.f32 %v6121, %v4815
    %v6123 = vadd.f32 %v6122, %v4831
    %v6124 = vadd.f32 %v6123, %v4847
    %v6125 = vadd.f32 %v6124, %v4863
    %v6126 = vadd.f32 %v6125, %v4879
    %v6127 = vadd.f32 %v6126, %v4895
    %v6128 = vadd.f32 %v6127, %v4911
    %v6129 = vadd.f32 %v6128, %v4927
    %v6130 = vadd.f32 %v6129, %v4943
    %v6131 = vadd.f32 %v6130, %v4959
    %v6132 = vadd.f32 %v6131, %v4975
    %v6133 = vadd.f32 %v6132, %v4991
    %v6134 = vrot.slane %v6133, 4
    %v6135 = vadd.f32 %v6133, %v6134
    %v6136 = vrot.slane %v6135, 2
    %v6137 = vadd.f32 %v6135, %v6136
    %v6138 = vrot.slane %v6137, 1
    %v6139 = vadd.f32 %v6137, %v6138
    %v6140 = vadd.f32 %v4496, %v4512
    %v6141 = vadd.f32 %v6140, %v4528
    %v6142 = vadd.f32 %v6141, %v4544
    %v6143 = vadd.f32 %v6142, %v4560
    %v6144 = vadd.f32 %v6143, %v4576
    %v6145 = vadd.f32 %v6144, %v4592
    %v6146 = vadd.f32 %v6145, %v4608
    %v6147 = vadd.f32 %v6146, %v4624
    %v6148 = vadd.f32 %v6147, %v4640
    %v6149 = vadd.f32 %v6148, %v4656
    %v6150 = vadd.f32 %v6149, %v4672
    %v6151 = vadd.f32 %v6150, %v4688
    %v6152 = vadd.f32 %v6151, %v4704
    %v6153 = vadd.f32 %v6152, %v4720
    %v6154 = vadd.f32 %v6153, %v4736
    %v6155 = vadd.f32 %v6154, %v4752
    %v6156 = vadd.f32 %v6155, %v4768
    %v6157 = vadd.f32 %v6156, %v4784
    %v6158 = vadd.f32 %v6157, %v4800
    %v6159 = vadd.f32 %v6158, %v4816
    %v6160 = vadd.f32 %v6159, %v4832
    %v6161 = vadd.f32 %v6160, %v4848
    %v6162 = vadd.f32 %v6161, %v4864
    %v6163 = vadd.f32 %v6162, %v4880
    %v6164 = vadd.f32 %v6163, %v4896
    %v6165 = vadd.f32 %v6164, %v4912
    %v6166 = vadd.f32 %v6165, %v4928
    %v6167 = vadd.f32 %v6166, %v4944
    %v6168 = vadd.f32 %v6167, %v4960
    %v6169 = vadd.f32 %v6168, %v4976
    %v6170 = vadd.f32 %v6169, %v4992
    %v6171 = vrot.slane %v6170, 4
    %v6172 = vadd.f32 %v6170, %v6171
    %v6173 = vrot.slane %v6172, 2
    %v6174 = vadd.f32 %v6172, %v6173
    %v6175 = vrot.slane %v6174, 1
    %v6176 = vadd.f32 %v6174, %v6175
    %v6177 = vrcp.pop 256.0
    %v6178 = vmul.f32 %v5029, %v6177
    %v6179 = vmul.f32 %v5066, %v6177
    %v6180 = vmul.f32 %v5103, %v6177
    %v6181 = vmul.f32 %v5140, %v6177
    %v6182 = vmul.f32 %v5177, %v6177
    %v6183 = vmul.f32 %v5214, %v6177
    %v6184 = vmul.f32 %v5251, %v6177
    %v6185 = vmul.f32 %v5288, %v6177
    %v6186 = vmul.f32 %v5325, %v6177
    %v6187 = vmul.f32 %v5362, %v6177
    %v6188 = vmul.f32 %v5399, %v6177
    %v6189 = vmul.f32 %v5436, %v6177
    %v6190 = vmul.f32 %v5473, %v6177
    %v6191 = vmul.f32 %v5510, %v6177
    %v6192 = vmul.f32 %v5547, %v6177
    %v6193 = vmul.f32 %v5584, %v6177
    %v6194 = vmul.f32 %v5621, %v6177
    %v6195 = vmul.f32 %v5658, %v6177
    %v6196 = vmul.f32 %v5695, %v6177
    %v6197 = vmul.f32 %v5732, %v6177
    %v6198 = vmul.f32 %v5769, %v6177
    %v6199 = vmul.f32 %v5806, %v6177
    %v6200 = vmul.f32 %v5843, %v6177
    %v6201 = vmul.f32 %v5880, %v6177
    %v6202 = vmul.f32 %v5917, %v6177
    %v6203 = vmul.f32 %v5954, %v6177
    %v6204 = vmul.f32 %v5991, %v6177
    %v6205 = vmul.f32 %v6028, %v6177
    %v6206 = vmul.f32 %v6065, %v6177
    %v6207 = vmul.f32 %v6102, %v6177
    %v6208 = vmul.f32 %v6139, %v6177
    %v6209 = vmul.f32 %v6176, %v6177
    %v6242 = vcombine.low %v6178, %v6179
    %v6243 = vcombine.low %v6180, %v6181
    %v6245 = vunpack.c.l.s4 1983009808
    %v6246 = vunpack.c.0.s8 %v6245
    %v6247 = vlaneseq
    %v6248 = vshrl.u32 %v6247, 7
    %v6249 = vsub.s32 %v6246, %v6248
    %v6250 = vrot.slane %v6242, %v6249
    %v6252 = vunpack.c.l.s4 1983009808
    %v6253 = vunpack.c.0.s8 %v6252
    %v6254 = vlaneseq
    %v6255 = vshrl.u32 %v6254, 7
    %v6256 = vsub.s32 %v6253, %v6255
    %v6257 = vrot.slane %v6243, %v6256
    %v6258 = vcombine.low %v6250, %v6257
    %v6259 = vcombine.low %v6182, %v6183
    %v6260 = vcombine.low %v6184, %v6185
    %v6262 = vunpack.c.l.s4 1983009808
    %v6263 = vunpack.c.0.s8 %v6262
    %v6264 = vlaneseq
    %v6265 = vshrl.u32 %v6264, 7
    %v6266 = vsub.s32 %v6263, %v6265
    %v6267 = vrot.slane %v6259, %v6266
    %v6269 = vunpack.c.l.s4 1983009808
    %v6270 = vunpack.c.0.s8 %v6269
    %v6271 = vlaneseq
    %v6272 = vshrl.u32 %v6271, 7
    %v6273 = vsub.s32 %v6270, %v6272
    %v6274 = vrot.slane %v6260, %v6273
    %v6275 = vcombine.low %v6267, %v6274
    %v6276 = vcombine.low %v6186, %v6187
    %v6277 = vcombine.low %v6188, %v6189
    %v6279 = vunpack.c.l.s4 1983009808
    %v6280 = vunpack.c.0.s8 %v6279
    %v6281 = vlaneseq
    %v6282 = vshrl.u32 %v6281, 7
    %v6283 = vsub.s32 %v6280, %v6282
    %v6284 = vrot.slane %v6276, %v6283
    %v6286 = vunpack.c.l.s4 1983009808
    %v6287 = vunpack.c.0.s8 %v6286
    %v6288 = vlaneseq
    %v6289 = vshrl.u32 %v6288, 7
    %v6290 = vsub.s32 %v6287, %v6289
    %v6291 = vrot.slane %v6277, %v6290
    %v6292 = vcombine.low %v6284, %v6291
    %v6293 = vcombine.low %v6190, %v6191
    %v6294 = vcombine.low %v6192, %v6193
    %v6296 = vunpack.c.l.s4 1983009808
    %v6297 = vunpack.c.0.s8 %v6296
    %v6298 = vlaneseq
    %v6299 = vshrl.u32 %v6298, 7
    %v6300 = vsub.s32 %v6297, %v6299
    %v6301 = vrot.slane %v6293, %v6300
    %v6303 = vunpack.c.l.s4 1983009808
    %v6304 = vunpack.c.0.s8 %v6303
    %v6305 = vlaneseq
    %v6306 = vshrl.u32 %v6305, 7
    %v6307 = vsub.s32 %v6304, %v6306
    %v6308 = vrot.slane %v6294, %v6307
    %v6309 = vcombine.low %v6301, %v6308
    %v6310 = vcombine.low %v6194, %v6195
    %v6311 = vcombine.low %v6196, %v6197
    %v6313 = vunpack.c.l.s4 1983009808
    %v6314 = vunpack.c.0.s8 %v6313
    %v6315 = vlaneseq
    %v6316 = vshrl.u32 %v6315, 7
    %v6317 = vsub.s32 %v6314, %v6316
    %v6318 = vrot.slane %v6310, %v6317
    %v6320 = vunpack.c.l.s4 1983009808
    %v6321 = vunpack.c.0.s8 %v6320
    %v6322 = vlaneseq
    %v6323 = vshrl.u32 %v6322, 7
    %v6324 = vsub.s32 %v6321, %v6323
    %v6325 = vrot.slane %v6311, %v6324
    %v6326 = vcombine.low %v6318, %v6325
    %v6327 = vcombine.low %v6198, %v6199
    %v6328 = vcombine.low %v6200, %v6201
    %v6330 = vunpack.c.l.s4 1983009808
    %v6331 = vunpack.c.0.s8 %v6330
    %v6332 = vlaneseq
    %v6333 = vshrl.u32 %v6332, 7
    %v6334 = vsub.s32 %v6331, %v6333
    %v6335 = vrot.slane %v6327, %v6334
    %v6337 = vunpack.c.l.s4 1983009808
    %v6338 = vunpack.c.0.s8 %v6337
    %v6339 = vlaneseq
    %v6340 = vshrl.u32 %v6339, 7
    %v6341 = vsub.s32 %v6338, %v6340
    %v6342 = vrot.slane %v6328, %v6341
    %v6343 = vcombine.low %v6335, %v6342
    %v6344 = vcombine.low %v6202, %v6203
    %v6345 = vcombine.low %v6204, %v6205
    %v6347 = vunpack.c.l.s4 1983009808
    %v6348 = vunpack.c.0.s8 %v6347
    %v6349 = vlaneseq
    %v6350 = vshrl.u32 %v6349, 7
    %v6351 = vsub.s32 %v6348, %v6350
    %v6352 = vrot.slane %v6344, %v6351
    %v6354 = vunpack.c.l.s4 1983009808
    %v6355 = vunpack.c.0.s8 %v6354
    %v6356 = vlaneseq
    %v6357 = vshrl.u32 %v6356, 7
    %v6358 = vsub.s32 %v6355, %v6357
    %v6359 = vrot.slane %v6345, %v6358
    %v6360 = vcombine.low %v6352, %v6359
    %v6361 = vcombine.low %v6206, %v6207
    %v6362 = vcombine.low %v6208, %v6209
    %v6364 = vunpack.c.l.s4 1983009808
    %v6365 = vunpack.c.0.s8 %v6364
    %v6366 = vlaneseq
    %v6367 = vshrl.u32 %v6366, 7
    %v6368 = vsub.s32 %v6365, %v6367
    %v6369 = vrot.slane %v6361, %v6368
    %v6371 = vunpack.c.l.s4 1983009808
    %v6372 = vunpack.c.0.s8 %v6371
    %v6373 = vlaneseq
    %v6374 = vshrl.u32 %v6373, 7
    %v6375 = vsub.s32 %v6372, %v6374
    %v6376 = vrot.slane %v6362, %v6375
    %v6377 = vcombine.low %v6369, %v6376
    %vm6378 = vcmask 1044484
    %v6379 = vsel %vm6378, %v6258, %v6258
    %vm6380 = vcmask 1046534
    %v6381 = vsel %vm6380, %v6258, %v6379
    %v6382 = vrot.slane %v6326, 7
    %vm6383 = vcmask 1041409
    %v6384 = vsel %vm6383, %v6382, %v6381
    %vm6385 = vcmask 1043459
    %v6386 = vsel %vm6385, %v6382, %v6384
    %vm6387 = vcmask 1045509
    %v6388 = vsel %vm6387, %v6382, %v6386
    %vm6389 = vcmask 1047559
    %v6390 = vsel %vm6389, %v6382, %v6388
    %v6391 = vsel %vm6378, %v6275, %v6275
    %v6392 = vsel %vm6380, %v6275, %v6391
    %v6393 = vrot.slane %v6343, 7
    %v6394 = vsel %vm6383, %v6393, %v6392
    %v6395 = vsel %vm6385, %v6393, %v6394
    %v6396 = vsel %vm6387, %v6393, %v6395
    %v6397 = vsel %vm6389, %v6393, %v6396
    %v6398 = vsel %vm6378, %v6292, %v6292
    %v6399 = vsel %vm6380, %v6292, %v6398
    %v6400 = vrot.slane %v6360, 7
    %v6401 = vsel %vm6383, %v6400, %v6399
    %v6402 = vsel %vm6385, %v6400, %v6401
    %v6403 = vsel %vm6387, %v6400, %v6402
    %v6404 = vsel %vm6389, %v6400, %v6403
    %v6405 = vsel %vm6378, %v6309, %v6309
    %v6406 = vsel %vm6380, %v6309, %v6405
    %v6407 = vrot.slane %v6377, 7
    %v6408 = vsel %vm6383, %v6407, %v6406
    %v6409 = vsel %vm6385, %v6407, %v6408
    %v6410 = vsel %vm6387, %v6407, %v6409
    %v6411 = vsel %vm6389, %v6407, %v6410
    %6416 = vst [vmem:[#allocation5] sm:$0xff] %v6390
    %6417 = vst [vmem:[#allocation5 + $0x8] sm:$0xff] %v6397
    %6418 = vst [vmem:[#allocation5 + $0x10] sm:$0xff] %v6404
    %6419 = vst [vmem:[#allocation5 + $0x18] sm:$0xff] %v6411
    %v6420 = vpack.c.bf16 %v6178, %v6178
    %v6421 = vpack.c.bf16 %v6179, %v6179
    %v6422 = vpack.c.bf16 %v6180, %v6180
    %v6423 = vpack.c.bf16 %v6181, %v6181
    %v6424 = vpack.c.bf16 %v6182, %v6182
    %v6425 = vpack.c.bf16 %v6183, %v6183
    %v6426 = vpack.c.bf16 %v6184, %v6184
    %v6427 = vpack.c.bf16 %v6185, %v6185
    %v6428 = vpack.c.bf16 %v6186, %v6186
    %v6429 = vpack.c.bf16 %v6187, %v6187
    %v6430 = vpack.c.bf16 %v6188, %v6188
    %v6431 = vpack.c.bf16 %v6189, %v6189
    %v6432 = vpack.c.bf16 %v6190, %v6190
    %v6433 = vpack.c.bf16 %v6191, %v6191
    %v6434 = vpack.c.bf16 %v6192, %v6192
    %v6435 = vpack.c.bf16 %v6193, %v6193
    %v6436 = vpack.c.bf16 %v6194, %v6194
    %v6437 = vpack.c.bf16 %v6195, %v6195
    %v6438 = vpack.c.bf16 %v6196, %v6196
    %v6439 = vpack.c.bf16 %v6197, %v6197
    %v6440 = vpack.c.bf16 %v6198, %v6198
    %v6441 = vpack.c.bf16 %v6199, %v6199
    %v6442 = vpack.c.bf16 %v6200, %v6200
    %v6443 = vpack.c.bf16 %v6201, %v6201
    %v6444 = vpack.c.bf16 %v6202, %v6202
    %v6445 = vpack.c.bf16 %v6203, %v6203
    %v6446 = vpack.c.bf16 %v6204, %v6204
    %v6447 = vpack.c.bf16 %v6205, %v6205
    %v6448 = vpack.c.bf16 %v6206, %v6206
    %v6449 = vpack.c.bf16 %v6207, %v6207
    %v6450 = vpack.c.bf16 %v6208, %v6208
    %v6451 = vpack.c.bf16 %v6209, %v6209
    %v6452 = vld [vmem:[#allocation2] sm:$0xf]
    %v6453 = vld [vmem:[#allocation2 + $0x4] sm:$0xf]
    %v6454 = vld [vmem:[#allocation2 + $0x8] sm:$0xf]
    %v6455 = vld [vmem:[#allocation2 + $0xc] sm:$0xf]
    %v6456 = vld [vmem:[#allocation2 + $0x10] sm:$0xf]
    %v6457 = vld [vmem:[#allocation2 + $0x14] sm:$0xf]
    %v6458 = vld [vmem:[#allocation2 + $0x18] sm:$0xf]
    %v6459 = vld [vmem:[#allocation2 + $0x1c] sm:$0xf]
    %v6460 = vld [vmem:[#allocation2 + $0x20] sm:$0xf]
    %v6461 = vld [vmem:[#allocation2 + $0x24] sm:$0xf]
    %v6462 = vld [vmem:[#allocation2 + $0x28] sm:$0xf]
    %v6463 = vld [vmem:[#allocation2 + $0x2c] sm:$0xf]
    %v6464 = vld [vmem:[#allocation2 + $0x30] sm:$0xf]
    %v6465 = vld [vmem:[#allocation2 + $0x34] sm:$0xf]
    %v6466 = vld [vmem:[#allocation2 + $0x38] sm:$0xf]
    %v6467 = vld [vmem:[#allocation2 + $0x3c] sm:$0xf]
    %v6468 = vld [vmem:[#allocation2 + $0x40] sm:$0xf]
    %v6469 = vld [vmem:[#allocation2 + $0x44] sm:$0xf]
    %v6470 = vld [vmem:[#allocation2 + $0x48] sm:$0xf]
    %v6471 = vld [vmem:[#allocation2 + $0x4c] sm:$0xf]
    %v6472 = vld [vmem:[#allocation2 + $0x50] sm:$0xf]
    %v6473 = vld [vmem:[#allocation2 + $0x54] sm:$0xf]
    %v6474 = vld [vmem:[#allocation2 + $0x58] sm:$0xf]
    %v6475 = vld [vmem:[#allocation2 + $0x5c] sm:$0xf]
    %v6476 = vld [vmem:[#allocation2 + $0x60] sm:$0xf]
    %v6477 = vld [vmem:[#allocation2 + $0x64] sm:$0xf]
    %v6478 = vld [vmem:[#allocation2 + $0x68] sm:$0xf]
    %v6479 = vld [vmem:[#allocation2 + $0x6c] sm:$0xf]
    %v6480 = vld [vmem:[#allocation2 + $0x70] sm:$0xf]
    %v6481 = vld [vmem:[#allocation2 + $0x74] sm:$0xf]
    %v6482 = vld [vmem:[#allocation2 + $0x78] sm:$0xf]
    %v6483 = vld [vmem:[#allocation2 + $0x7c] sm:$0xf]
    %v6484 = vld [vmem:[#allocation2 + $0x80] sm:$0xf]
    %v6485 = vld [vmem:[#allocation2 + $0x84] sm:$0xf]
    %v6486 = vld [vmem:[#allocation2 + $0x88] sm:$0xf]
    %v6487 = vld [vmem:[#allocation2 + $0x8c] sm:$0xf]
    %v6488 = vld [vmem:[#allocation2 + $0x90] sm:$0xf]
    %v6489 = vld [vmem:[#allocation2 + $0x94] sm:$0xf]
    %v6490 = vld [vmem:[#allocation2 + $0x98] sm:$0xf]
    %v6491 = vld [vmem:[#allocation2 + $0x9c] sm:$0xf]
    %v6492 = vld [vmem:[#allocation2 + $0xa0] sm:$0xf]
    %v6493 = vld [vmem:[#allocation2 + $0xa4] sm:$0xf]
    %v6494 = vld [vmem:[#allocation2 + $0xa8] sm:$0xf]
    %v6495 = vld [vmem:[#allocation2 + $0xac] sm:$0xf]
    %v6496 = vld [vmem:[#allocation2 + $0xb0] sm:$0xf]
    %v6497 = vld [vmem:[#allocation2 + $0xb4] sm:$0xf]
    %v6498 = vld [vmem:[#allocation2 + $0xb8] sm:$0xf]
    %v6499 = vld [vmem:[#allocation2 + $0xbc] sm:$0xf]
    %v6500 = vld [vmem:[#allocation2 + $0xc0] sm:$0xf]
    %v6501 = vld [vmem:[#allocation2 + $0xc4] sm:$0xf]
    %v6502 = vld [vmem:[#allocation2 + $0xc8] sm:$0xf]
    %v6503 = vld [vmem:[#allocation2 + $0xcc] sm:$0xf]
    %v6504 = vld [vmem:[#allocation2 + $0xd0] sm:$0xf]
    %v6505 = vld [vmem:[#allocation2 + $0xd4] sm:$0xf]
    %v6506 = vld [vmem:[#allocation2 + $0xd8] sm:$0xf]
    %v6507 = vld [vmem:[#allocation2 + $0xdc] sm:$0xf]
    %v6508 = vld [vmem:[#allocation2 + $0xe0] sm:$0xf]
    %v6509 = vld [vmem:[#allocation2 + $0xe4] sm:$0xf]
    %v6510 = vld [vmem:[#allocation2 + $0xe8] sm:$0xf]
    %v6511 = vld [vmem:[#allocation2 + $0xec] sm:$0xf]
    %v6512 = vld [vmem:[#allocation2 + $0xf0] sm:$0xf]
    %v6513 = vld [vmem:[#allocation2 + $0xf4] sm:$0xf]
    %v6514 = vld [vmem:[#allocation2 + $0xf8] sm:$0xf]
    %v6515 = vld [vmem:[#allocation2 + $0xfc] sm:$0xf]
    %v6516 = vld [vmem:[#allocation2 + $0x100] sm:$0xf]
    %v6517 = vld [vmem:[#allocation2 + $0x104] sm:$0xf]
    %v6518 = vld [vmem:[#allocation2 + $0x108] sm:$0xf]
    %v6519 = vld [vmem:[#allocation2 + $0x10c] sm:$0xf]
    %v6520 = vld [vmem:[#allocation2 + $0x110] sm:$0xf]
    %v6521 = vld [vmem:[#allocation2 + $0x114] sm:$0xf]
    %v6522 = vld [vmem:[#allocation2 + $0x118] sm:$0xf]
    %v6523 = vld [vmem:[#allocation2 + $0x11c] sm:$0xf]
    %v6524 = vld [vmem:[#allocation2 + $0x120] sm:$0xf]
    %v6525 = vld [vmem:[#allocation2 + $0x124] sm:$0xf]
    %v6526 = vld [vmem:[#allocation2 + $0x128] sm:$0xf]
    %v6527 = vld [vmem:[#allocation2 + $0x12c] sm:$0xf]
    %v6528 = vld [vmem:[#allocation2 + $0x130] sm:$0xf]
    %v6529 = vld [vmem:[#allocation2 + $0x134] sm:$0xf]
    %v6530 = vld [vmem:[#allocation2 + $0x138] sm:$0xf]
    %v6531 = vld [vmem:[#allocation2 + $0x13c] sm:$0xf]
    %v6532 = vld [vmem:[#allocation2 + $0x140] sm:$0xf]
    %v6533 = vld [vmem:[#allocation2 + $0x144] sm:$0xf]
    %v6534 = vld [vmem:[#allocation2 + $0x148] sm:$0xf]
    %v6535 = vld [vmem:[#allocation2 + $0x14c] sm:$0xf]
    %v6536 = vld [vmem:[#allocation2 + $0x150] sm:$0xf]
    %v6537 = vld [vmem:[#allocation2 + $0x154] sm:$0xf]
    %v6538 = vld [vmem:[#allocation2 + $0x158] sm:$0xf]
    %v6539 = vld [vmem:[#allocation2 + $0x15c] sm:$0xf]
    %v6540 = vld [vmem:[#allocation2 + $0x160] sm:$0xf]
    %v6541 = vld [vmem:[#allocation2 + $0x164] sm:$0xf]
    %v6542 = vld [vmem:[#allocation2 + $0x168] sm:$0xf]
    %v6543 = vld [vmem:[#allocation2 + $0x16c] sm:$0xf]
    %v6544 = vld [vmem:[#allocation2 + $0x170] sm:$0xf]
    %v6545 = vld [vmem:[#allocation2 + $0x174] sm:$0xf]
    %v6546 = vld [vmem:[#allocation2 + $0x178] sm:$0xf]
    %v6547 = vld [vmem:[#allocation2 + $0x17c] sm:$0xf]
    %v6548 = vld [vmem:[#allocation2 + $0x180] sm:$0xf]
    %v6549 = vld [vmem:[#allocation2 + $0x184] sm:$0xf]
    %v6550 = vld [vmem:[#allocation2 + $0x188] sm:$0xf]
    %v6551 = vld [vmem:[#allocation2 + $0x18c] sm:$0xf]
    %v6552 = vld [vmem:[#allocation2 + $0x190] sm:$0xf]
    %v6553 = vld [vmem:[#allocation2 + $0x194] sm:$0xf]
    %v6554 = vld [vmem:[#allocation2 + $0x198] sm:$0xf]
    %v6555 = vld [vmem:[#allocation2 + $0x19c] sm:$0xf]
    %v6556 = vld [vmem:[#allocation2 + $0x1a0] sm:$0xf]
    %v6557 = vld [vmem:[#allocation2 + $0x1a4] sm:$0xf]
    %v6558 = vld [vmem:[#allocation2 + $0x1a8] sm:$0xf]
    %v6559 = vld [vmem:[#allocation2 + $0x1ac] sm:$0xf]
    %v6560 = vld [vmem:[#allocation2 + $0x1b0] sm:$0xf]
    %v6561 = vld [vmem:[#allocation2 + $0x1b4] sm:$0xf]
    %v6562 = vld [vmem:[#allocation2 + $0x1b8] sm:$0xf]
    %v6563 = vld [vmem:[#allocation2 + $0x1bc] sm:$0xf]
    %v6564 = vld [vmem:[#allocation2 + $0x1c0] sm:$0xf]
    %v6565 = vld [vmem:[#allocation2 + $0x1c4] sm:$0xf]
    %v6566 = vld [vmem:[#allocation2 + $0x1c8] sm:$0xf]
    %v6567 = vld [vmem:[#allocation2 + $0x1cc] sm:$0xf]
    %v6568 = vld [vmem:[#allocation2 + $0x1d0] sm:$0xf]
    %v6569 = vld [vmem:[#allocation2 + $0x1d4] sm:$0xf]
    %v6570 = vld [vmem:[#allocation2 + $0x1d8] sm:$0xf]
    %v6571 = vld [vmem:[#allocation2 + $0x1dc] sm:$0xf]
    %v6572 = vld [vmem:[#allocation2 + $0x1e0] sm:$0xf]
    %v6573 = vld [vmem:[#allocation2 + $0x1e4] sm:$0xf]
    %v6574 = vld [vmem:[#allocation2 + $0x1e8] sm:$0xf]
    %v6575 = vld [vmem:[#allocation2 + $0x1ec] sm:$0xf]
    %v6576 = vld [vmem:[#allocation2 + $0x1f0] sm:$0xf]
    %v6577 = vld [vmem:[#allocation2 + $0x1f4] sm:$0xf]
    %v6578 = vld [vmem:[#allocation2 + $0x1f8] sm:$0xf]
    %v6579 = vld [vmem:[#allocation2 + $0x1fc] sm:$0xf]
    %v6580 = vld [vmem:[#allocation2 + $0x200] sm:$0xf]
    %v6581 = vld [vmem:[#allocation2 + $0x204] sm:$0xf]
    %v6582 = vld [vmem:[#allocation2 + $0x208] sm:$0xf]
    %v6583 = vld [vmem:[#allocation2 + $0x20c] sm:$0xf]
    %v6584 = vld [vmem:[#allocation2 + $0x210] sm:$0xf]
    %v6585 = vld [vmem:[#allocation2 + $0x214] sm:$0xf]
    %v6586 = vld [vmem:[#allocation2 + $0x218] sm:$0xf]
    %v6587 = vld [vmem:[#allocation2 + $0x21c] sm:$0xf]
    %v6588 = vld [vmem:[#allocation2 + $0x220] sm:$0xf]
    %v6589 = vld [vmem:[#allocation2 + $0x224] sm:$0xf]
    %v6590 = vld [vmem:[#allocation2 + $0x228] sm:$0xf]
    %v6591 = vld [vmem:[#allocation2 + $0x22c] sm:$0xf]
    %v6592 = vld [vmem:[#allocation2 + $0x230] sm:$0xf]
    %v6593 = vld [vmem:[#allocation2 + $0x234] sm:$0xf]
    %v6594 = vld [vmem:[#allocation2 + $0x238] sm:$0xf]
    %v6595 = vld [vmem:[#allocation2 + $0x23c] sm:$0xf]
    %v6596 = vld [vmem:[#allocation2 + $0x240] sm:$0xf]
    %v6597 = vld [vmem:[#allocation2 + $0x244] sm:$0xf]
    %v6598 = vld [vmem:[#allocation2 + $0x248] sm:$0xf]
    %v6599 = vld [vmem:[#allocation2 + $0x24c] sm:$0xf]
    %v6600 = vld [vmem:[#allocation2 + $0x250] sm:$0xf]
    %v6601 = vld [vmem:[#allocation2 + $0x254] sm:$0xf]
    %v6602 = vld [vmem:[#allocation2 + $0x258] sm:$0xf]
    %v6603 = vld [vmem:[#allocation2 + $0x25c] sm:$0xf]
    %v6604 = vld [vmem:[#allocation2 + $0x260] sm:$0xf]
    %v6605 = vld [vmem:[#allocation2 + $0x264] sm:$0xf]
    %v6606 = vld [vmem:[#allocation2 + $0x268] sm:$0xf]
    %v6607 = vld [vmem:[#allocation2 + $0x26c] sm:$0xf]
    %v6608 = vld [vmem:[#allocation2 + $0x270] sm:$0xf]
    %v6609 = vld [vmem:[#allocation2 + $0x274] sm:$0xf]
    %v6610 = vld [vmem:[#allocation2 + $0x278] sm:$0xf]
    %v6611 = vld [vmem:[#allocation2 + $0x27c] sm:$0xf]
    %v6612 = vld [vmem:[#allocation2 + $0x280] sm:$0xf]
    %v6613 = vld [vmem:[#allocation2 + $0x284] sm:$0xf]
    %v6614 = vld [vmem:[#allocation2 + $0x288] sm:$0xf]
    %v6615 = vld [vmem:[#allocation2 + $0x28c] sm:$0xf]
    %v6616 = vld [vmem:[#allocation2 + $0x290] sm:$0xf]
    %v6617 = vld [vmem:[#allocation2 + $0x294] sm:$0xf]
    %v6618 = vld [vmem:[#allocation2 + $0x298] sm:$0xf]
    %v6619 = vld [vmem:[#allocation2 + $0x29c] sm:$0xf]
    %v6620 = vld [vmem:[#allocation2 + $0x2a0] sm:$0xf]
    %v6621 = vld [vmem:[#allocation2 + $0x2a4] sm:$0xf]
    %v6622 = vld [vmem:[#allocation2 + $0x2a8] sm:$0xf]
    %v6623 = vld [vmem:[#allocation2 + $0x2ac] sm:$0xf]
    %v6624 = vld [vmem:[#allocation2 + $0x2b0] sm:$0xf]
    %v6625 = vld [vmem:[#allocation2 + $0x2b4] sm:$0xf]
    %v6626 = vld [vmem:[#allocation2 + $0x2b8] sm:$0xf]
    %v6627 = vld [vmem:[#allocation2 + $0x2bc] sm:$0xf]
    %v6628 = vld [vmem:[#allocation2 + $0x2c0] sm:$0xf]
    %v6629 = vld [vmem:[#allocation2 + $0x2c4] sm:$0xf]
    %v6630 = vld [vmem:[#allocation2 + $0x2c8] sm:$0xf]
    %v6631 = vld [vmem:[#allocation2 + $0x2cc] sm:$0xf]
    %v6632 = vld [vmem:[#allocation2 + $0x2d0] sm:$0xf]
    %v6633 = vld [vmem:[#allocation2 + $0x2d4] sm:$0xf]
    %v6634 = vld [vmem:[#allocation2 + $0x2d8] sm:$0xf]
    %v6635 = vld [vmem:[#allocation2 + $0x2dc] sm:$0xf]
    %v6636 = vld [vmem:[#allocation2 + $0x2e0] sm:$0xf]
    %v6637 = vld [vmem:[#allocation2 + $0x2e4] sm:$0xf]
    %v6638 = vld [vmem:[#allocation2 + $0x2e8] sm:$0xf]
    %v6639 = vld [vmem:[#allocation2 + $0x2ec] sm:$0xf]
    %v6640 = vld [vmem:[#allocation2 + $0x2f0] sm:$0xf]
    %v6641 = vld [vmem:[#allocation2 + $0x2f4] sm:$0xf]
    %v6642 = vld [vmem:[#allocation2 + $0x2f8] sm:$0xf]
    %v6643 = vld [vmem:[#allocation2 + $0x2fc] sm:$0xf]
    %v6644 = vld [vmem:[#allocation2 + $0x300] sm:$0xf]
    %v6645 = vld [vmem:[#allocation2 + $0x304] sm:$0xf]
    %v6646 = vld [vmem:[#allocation2 + $0x308] sm:$0xf]
    %v6647 = vld [vmem:[#allocation2 + $0x30c] sm:$0xf]
    %v6648 = vld [vmem:[#allocation2 + $0x310] sm:$0xf]
    %v6649 = vld [vmem:[#allocation2 + $0x314] sm:$0xf]
    %v6650 = vld [vmem:[#allocation2 + $0x318] sm:$0xf]
    %v6651 = vld [vmem:[#allocation2 + $0x31c] sm:$0xf]
    %v6652 = vld [vmem:[#allocation2 + $0x320] sm:$0xf]
    %v6653 = vld [vmem:[#allocation2 + $0x324] sm:$0xf]
    %v6654 = vld [vmem:[#allocation2 + $0x328] sm:$0xf]
    %v6655 = vld [vmem:[#allocation2 + $0x32c] sm:$0xf]
    %v6656 = vld [vmem:[#allocation2 + $0x330] sm:$0xf]
    %v6657 = vld [vmem:[#allocation2 + $0x334] sm:$0xf]
    %v6658 = vld [vmem:[#allocation2 + $0x338] sm:$0xf]
    %v6659 = vld [vmem:[#allocation2 + $0x33c] sm:$0xf]
    %v6660 = vld [vmem:[#allocation2 + $0x340] sm:$0xf]
    %v6661 = vld [vmem:[#allocation2 + $0x344] sm:$0xf]
    %v6662 = vld [vmem:[#allocation2 + $0x348] sm:$0xf]
    %v6663 = vld [vmem:[#allocation2 + $0x34c] sm:$0xf]
    %v6664 = vld [vmem:[#allocation2 + $0x350] sm:$0xf]
    %v6665 = vld [vmem:[#allocation2 + $0x354] sm:$0xf]
    %v6666 = vld [vmem:[#allocation2 + $0x358] sm:$0xf]
    %v6667 = vld [vmem:[#allocation2 + $0x35c] sm:$0xf]
    %v6668 = vld [vmem:[#allocation2 + $0x360] sm:$0xf]
    %v6669 = vld [vmem:[#allocation2 + $0x364] sm:$0xf]
    %v6670 = vld [vmem:[#allocation2 + $0x368] sm:$0xf]
    %v6671 = vld [vmem:[#allocation2 + $0x36c] sm:$0xf]
    %v6672 = vld [vmem:[#allocation2 + $0x370] sm:$0xf]
    %v6673 = vld [vmem:[#allocation2 + $0x374] sm:$0xf]
    %v6674 = vld [vmem:[#allocation2 + $0x378] sm:$0xf]
    %v6675 = vld [vmem:[#allocation2 + $0x37c] sm:$0xf]
    %v6676 = vld [vmem:[#allocation2 + $0x380] sm:$0xf]
    %v6677 = vld [vmem:[#allocation2 + $0x384] sm:$0xf]
    %v6678 = vld [vmem:[#allocation2 + $0x388] sm:$0xf]
    %v6679 = vld [vmem:[#allocation2 + $0x38c] sm:$0xf]
    %v6680 = vld [vmem:[#allocation2 + $0x390] sm:$0xf]
    %v6681 = vld [vmem:[#allocation2 + $0x394] sm:$0xf]
    %v6682 = vld [vmem:[#allocation2 + $0x398] sm:$0xf]
    %v6683 = vld [vmem:[#allocation2 + $0x39c] sm:$0xf]
    %v6684 = vld [vmem:[#allocation2 + $0x3a0] sm:$0xf]
    %v6685 = vld [vmem:[#allocation2 + $0x3a4] sm:$0xf]
    %v6686 = vld [vmem:[#allocation2 + $0x3a8] sm:$0xf]
    %v6687 = vld [vmem:[#allocation2 + $0x3ac] sm:$0xf]
    %v6688 = vld [vmem:[#allocation2 + $0x3b0] sm:$0xf]
    %v6689 = vld [vmem:[#allocation2 + $0x3b4] sm:$0xf]
    %v6690 = vld [vmem:[#allocation2 + $0x3b8] sm:$0xf]
    %v6691 = vld [vmem:[#allocation2 + $0x3bc] sm:$0xf]
    %v6692 = vld [vmem:[#allocation2 + $0x3c0] sm:$0xf]
    %v6693 = vld [vmem:[#allocation2 + $0x3c4] sm:$0xf]
    %v6694 = vld [vmem:[#allocation2 + $0x3c8] sm:$0xf]
    %v6695 = vld [vmem:[#allocation2 + $0x3cc] sm:$0xf]
    %v6696 = vld [vmem:[#allocation2 + $0x3d0] sm:$0xf]
    %v6697 = vld [vmem:[#allocation2 + $0x3d4] sm:$0xf]
    %v6698 = vld [vmem:[#allocation2 + $0x3d8] sm:$0xf]
    %v6699 = vld [vmem:[#allocation2 + $0x3dc] sm:$0xf]
    %v6700 = vld [vmem:[#allocation2 + $0x3e0] sm:$0xf]
    %v6701 = vld [vmem:[#allocation2 + $0x3e4] sm:$0xf]
    %v6702 = vld [vmem:[#allocation2 + $0x3e8] sm:$0xf]
    %v6703 = vld [vmem:[#allocation2 + $0x3ec] sm:$0xf]
    %v6704 = vld [vmem:[#allocation2 + $0x3f0] sm:$0xf]
    %v6705 = vld [vmem:[#allocation2 + $0x3f4] sm:$0xf]
    %v6706 = vld [vmem:[#allocation2 + $0x3f8] sm:$0xf]
    %v6707 = vld [vmem:[#allocation2 + $0x3fc] sm:$0xf]
    %v6708 = vld [vmem:[%s6] sm:$0x1]
    %v6710 = vlaneseq
    %v6711 = vshrl.u32 %v6710, 7
    %v6712 = vsub.s32 0, %v6711
    %v6713 = vrot.slane %v6708, %v6712
    %v6747 = vunpack.c.l.b16 %v6420
    %v6748 = vunpack.c.l.b16 %v6421
    %v6749 = vunpack.c.l.b16 %v6422
    %v6750 = vunpack.c.l.b16 %v6423
    %v6751 = vunpack.c.l.b16 %v6424
    %v6752 = vunpack.c.l.b16 %v6425
    %v6753 = vunpack.c.l.b16 %v6426
    %v6754 = vunpack.c.l.b16 %v6427
    %v6755 = vunpack.c.l.b16 %v6428
    %v6756 = vunpack.c.l.b16 %v6429
    %v6757 = vunpack.c.l.b16 %v6430
    %v6758 = vunpack.c.l.b16 %v6431
    %v6759 = vunpack.c.l.b16 %v6432
    %v6760 = vunpack.c.l.b16 %v6433
    %v6761 = vunpack.c.l.b16 %v6434
    %v6762 = vunpack.c.l.b16 %v6435
    %v6763 = vunpack.c.l.b16 %v6436
    %v6764 = vunpack.c.l.b16 %v6437
    %v6765 = vunpack.c.l.b16 %v6438
    %v6766 = vunpack.c.l.b16 %v6439
    %v6767 = vunpack.c.l.b16 %v6440
    %v6768 = vunpack.c.l.b16 %v6441
    %v6769 = vunpack.c.l.b16 %v6442
    %v6770 = vunpack.c.l.b16 %v6443
    %v6771 = vunpack.c.l.b16 %v6444
    %v6772 = vunpack.c.l.b16 %v6445
    %v6773 = vunpack.c.l.b16 %v6446
    %v6774 = vunpack.c.l.b16 %v6447
    %v6775 = vunpack.c.l.b16 %v6448
    %v6776 = vunpack.c.l.b16 %v6449
    %v6777 = vunpack.c.l.b16 %v6450
    %v6778 = vunpack.c.l.b16 %v6451
    %v6779 = vsel %vm6383, %v6763, %v6747
    %v6780 = vsel %vm6383, %v6764, %v6748
    %v6781 = vsel %vm6383, %v6765, %v6749
    %v6782 = vsel %vm6383, %v6766, %v6750
    %v6783 = vsel %vm6383, %v6767, %v6751
    %v6784 = vsel %vm6383, %v6768, %v6752
    %v6785 = vsel %vm6383, %v6769, %v6753
    %v6786 = vsel %vm6383, %v6770, %v6754
    %v6787 = vsel %vm6383, %v6771, %v6755
    %v6788 = vsel %vm6383, %v6772, %v6756
    %v6789 = vsel %vm6383, %v6773, %v6757
    %v6790 = vsel %vm6383, %v6774, %v6758
    %v6791 = vsel %vm6383, %v6775, %v6759
    %v6792 = vsel %vm6383, %v6776, %v6760
    %v6793 = vsel %vm6383, %v6777, %v6761
    %v6794 = vsel %vm6383, %v6778, %v6762
    %v6795 = vpack.c.b16 %v6779, %v6779
    %v6796 = vpack.c.b16 %v6780, %v6780
    %v6797 = vpack.c.b16 %v6781, %v6781
    %v6798 = vpack.c.b16 %v6782, %v6782
    %v6799 = vpack.c.b16 %v6783, %v6783
    %v6800 = vpack.c.b16 %v6784, %v6784
    %v6801 = vpack.c.b16 %v6785, %v6785
    %v6802 = vpack.c.b16 %v6786, %v6786
    %v6803 = vpack.c.b16 %v6787, %v6787
    %v6804 = vpack.c.b16 %v6788, %v6788
    %v6805 = vpack.c.b16 %v6789, %v6789
    %v6806 = vpack.c.b16 %v6790, %v6790
    %v6807 = vpack.c.b16 %v6791, %v6791
    %v6808 = vpack.c.b16 %v6792, %v6792
    %v6809 = vpack.c.b16 %v6793, %v6793
    %v6810 = vpack.c.b16 %v6794, %v6794
    %v7083 = vunpack.c.l.b16 %v6452
    %v7084 = vunpack.c.l.b16 %v6453
    %v7085 = vunpack.c.l.b16 %v6454
    %v7086 = vunpack.c.l.b16 %v6455
    %v7087 = vunpack.c.l.b16 %v6456
    %v7088 = vunpack.c.l.b16 %v6457
    %v7089 = vunpack.c.l.b16 %v6458
    %v7090 = vunpack.c.l.b16 %v6459
    %v7091 = vunpack.c.l.b16 %v6460
    %v7092 = vunpack.c.l.b16 %v6461
    %v7093 = vunpack.c.l.b16 %v6462
    %v7094 = vunpack.c.l.b16 %v6463
    %v7095 = vunpack.c.l.b16 %v6464
    %v7096 = vunpack.c.l.b16 %v6465
    %v7097 = vunpack.c.l.b16 %v6466
    %v7098 = vunpack.c.l.b16 %v6467
    %v7099 = vunpack.c.l.b16 %v6468
    %v7100 = vunpack.c.l.b16 %v6469
    %v7101 = vunpack.c.l.b16 %v6470
    %v7102 = vunpack.c.l.b16 %v6471
    %v7103 = vunpack.c.l.b16 %v6472
    %v7104 = vunpack.c.l.b16 %v6473
    %v7105 = vunpack.c.l.b16 %v6474
    %v7106 = vunpack.c.l.b16 %v6475
    %v7107 = vunpack.c.l.b16 %v6476
    %v7108 = vunpack.c.l.b16 %v6477
    %v7109 = vunpack.c.l.b16 %v6478
    %v7110 = vunpack.c.l.b16 %v6479
    %v7111 = vunpack.c.l.b16 %v6480
    %v7112 = vunpack.c.l.b16 %v6481
    %v7113 = vunpack.c.l.b16 %v6482
    %v7114 = vunpack.c.l.b16 %v6483
    %v7115 = vunpack.c.l.b16 %v6484
    %v7116 = vunpack.c.l.b16 %v6485
    %v7117 = vunpack.c.l.b16 %v6486
    %v7118 = vunpack.c.l.b16 %v6487
    %v7119 = vunpack.c.l.b16 %v6488
    %v7120 = vunpack.c.l.b16 %v6489
    %v7121 = vunpack.c.l.b16 %v6490
    %v7122 = vunpack.c.l.b16 %v6491
    %v7123 = vunpack.c.l.b16 %v6492
    %v7124 = vunpack.c.l.b16 %v6493
    %v7125 = vunpack.c.l.b16 %v6494
    %v7126 = vunpack.c.l.b16 %v6495
    %v7127 = vunpack.c.l.b16 %v6496
    %v7128 = vunpack.c.l.b16 %v6497
    %v7129 = vunpack.c.l.b16 %v6498
    %v7130 = vunpack.c.l.b16 %v6499
    %v7131 = vunpack.c.l.b16 %v6500
    %v7132 = vunpack.c.l.b16 %v6501
    %v7133 = vunpack.c.l.b16 %v6502
    %v7134 = vunpack.c.l.b16 %v6503
    %v7135 = vunpack.c.l.b16 %v6504
    %v7136 = vunpack.c.l.b16 %v6505
    %v7137 = vunpack.c.l.b16 %v6506
    %v7138 = vunpack.c.l.b16 %v6507
    %v7139 = vunpack.c.l.b16 %v6508
    %v7140 = vunpack.c.l.b16 %v6509
    %v7141 = vunpack.c.l.b16 %v6510
    %v7142 = vunpack.c.l.b16 %v6511
    %v7143 = vunpack.c.l.b16 %v6512
    %v7144 = vunpack.c.l.b16 %v6513
    %v7145 = vunpack.c.l.b16 %v6514
    %v7146 = vunpack.c.l.b16 %v6515
    %v7147 = vunpack.c.l.b16 %v6516
    %v7148 = vunpack.c.l.b16 %v6517
    %v7149 = vunpack.c.l.b16 %v6518
    %v7150 = vunpack.c.l.b16 %v6519
    %v7151 = vunpack.c.l.b16 %v6520
    %v7152 = vunpack.c.l.b16 %v6521
    %v7153 = vunpack.c.l.b16 %v6522
    %v7154 = vunpack.c.l.b16 %v6523
    %v7155 = vunpack.c.l.b16 %v6524
    %v7156 = vunpack.c.l.b16 %v6525
    %v7157 = vunpack.c.l.b16 %v6526
    %v7158 = vunpack.c.l.b16 %v6527
    %v7159 = vunpack.c.l.b16 %v6528
    %v7160 = vunpack.c.l.b16 %v6529
    %v7161 = vunpack.c.l.b16 %v6530
    %v7162 = vunpack.c.l.b16 %v6531
    %v7163 = vunpack.c.l.b16 %v6532
    %v7164 = vunpack.c.l.b16 %v6533
    %v7165 = vunpack.c.l.b16 %v6534
    %v7166 = vunpack.c.l.b16 %v6535
    %v7167 = vunpack.c.l.b16 %v6536
    %v7168 = vunpack.c.l.b16 %v6537
    %v7169 = vunpack.c.l.b16 %v6538
    %v7170 = vunpack.c.l.b16 %v6539
    %v7171 = vunpack.c.l.b16 %v6540
    %v7172 = vunpack.c.l.b16 %v6541
    %v7173 = vunpack.c.l.b16 %v6542
    %v7174 = vunpack.c.l.b16 %v6543
    %v7175 = vunpack.c.l.b16 %v6544
    %v7176 = vunpack.c.l.b16 %v6545
    %v7177 = vunpack.c.l.b16 %v6546
    %v7178 = vunpack.c.l.b16 %v6547
    %v7179 = vunpack.c.l.b16 %v6548
    %v7180 = vunpack.c.l.b16 %v6549
    %v7181 = vunpack.c.l.b16 %v6550
    %v7182 = vunpack.c.l.b16 %v6551
    %v7183 = vunpack.c.l.b16 %v6552
    %v7184 = vunpack.c.l.b16 %v6553
    %v7185 = vunpack.c.l.b16 %v6554
    %v7186 = vunpack.c.l.b16 %v6555
    %v7187 = vunpack.c.l.b16 %v6556
    %v7188 = vunpack.c.l.b16 %v6557
    %v7189 = vunpack.c.l.b16 %v6558
    %v7190 = vunpack.c.l.b16 %v6559
    %v7191 = vunpack.c.l.b16 %v6560
    %v7192 = vunpack.c.l.b16 %v6561
    %v7193 = vunpack.c.l.b16 %v6562
    %v7194 = vunpack.c.l.b16 %v6563
    %v7195 = vunpack.c.l.b16 %v6564
    %v7196 = vunpack.c.l.b16 %v6565
    %v7197 = vunpack.c.l.b16 %v6566
    %v7198 = vunpack.c.l.b16 %v6567
    %v7199 = vunpack.c.l.b16 %v6568
    %v7200 = vunpack.c.l.b16 %v6569
    %v7201 = vunpack.c.l.b16 %v6570
    %v7202 = vunpack.c.l.b16 %v6571
    %v7203 = vunpack.c.l.b16 %v6572
    %v7204 = vunpack.c.l.b16 %v6573
    %v7205 = vunpack.c.l.b16 %v6574
    %v7206 = vunpack.c.l.b16 %v6575
    %v7207 = vunpack.c.l.b16 %v6576
    %v7208 = vunpack.c.l.b16 %v6577
    %v7209 = vunpack.c.l.b16 %v6578
    %v7210 = vunpack.c.l.b16 %v6579
    %v7211 = vunpack.c.l.b16 %v6580
    %v7212 = vunpack.c.l.b16 %v6581
    %v7213 = vunpack.c.l.b16 %v6582
    %v7214 = vunpack.c.l.b16 %v6583
    %v7215 = vunpack.c.l.b16 %v6584
    %v7216 = vunpack.c.l.b16 %v6585
    %v7217 = vunpack.c.l.b16 %v6586
    %v7218 = vunpack.c.l.b16 %v6587
    %v7219 = vunpack.c.l.b16 %v6588
    %v7220 = vunpack.c.l.b16 %v6589
    %v7221 = vunpack.c.l.b16 %v6590
    %v7222 = vunpack.c.l.b16 %v6591
    %v7223 = vunpack.c.l.b16 %v6592
    %v7224 = vunpack.c.l.b16 %v6593
    %v7225 = vunpack.c.l.b16 %v6594
    %v7226 = vunpack.c.l.b16 %v6595
    %v7227 = vunpack.c.l.b16 %v6596
    %v7228 = vunpack.c.l.b16 %v6597
    %v7229 = vunpack.c.l.b16 %v6598
    %v7230 = vunpack.c.l.b16 %v6599
    %v7231 = vunpack.c.l.b16 %v6600
    %v7232 = vunpack.c.l.b16 %v6601
    %v7233 = vunpack.c.l.b16 %v6602
    %v7234 = vunpack.c.l.b16 %v6603
    %v7235 = vunpack.c.l.b16 %v6604
    %v7236 = vunpack.c.l.b16 %v6605
    %v7237 = vunpack.c.l.b16 %v6606
    %v7238 = vunpack.c.l.b16 %v6607
    %v7239 = vunpack.c.l.b16 %v6608
    %v7240 = vunpack.c.l.b16 %v6609
    %v7241 = vunpack.c.l.b16 %v6610
    %v7242 = vunpack.c.l.b16 %v6611
    %v7243 = vunpack.c.l.b16 %v6612
    %v7244 = vunpack.c.l.b16 %v6613
    %v7245 = vunpack.c.l.b16 %v6614
    %v7246 = vunpack.c.l.b16 %v6615
    %v7247 = vunpack.c.l.b16 %v6616
    %v7248 = vunpack.c.l.b16 %v6617
    %v7249 = vunpack.c.l.b16 %v6618
    %v7250 = vunpack.c.l.b16 %v6619
    %v7251 = vunpack.c.l.b16 %v6620
    %v7252 = vunpack.c.l.b16 %v6621
    %v7253 = vunpack.c.l.b16 %v6622
    %v7254 = vunpack.c.l.b16 %v6623
    %v7255 = vunpack.c.l.b16 %v6624
    %v7256 = vunpack.c.l.b16 %v6625
    %v7257 = vunpack.c.l.b16 %v6626
    %v7258 = vunpack.c.l.b16 %v6627
    %v7259 = vunpack.c.l.b16 %v6628
    %v7260 = vunpack.c.l.b16 %v6629
    %v7261 = vunpack.c.l.b16 %v6630
    %v7262 = vunpack.c.l.b16 %v6631
    %v7263 = vunpack.c.l.b16 %v6632
    %v7264 = vunpack.c.l.b16 %v6633
    %v7265 = vunpack.c.l.b16 %v6634
    %v7266 = vunpack.c.l.b16 %v6635
    %v7267 = vunpack.c.l.b16 %v6636
    %v7268 = vunpack.c.l.b16 %v6637
    %v7269 = vunpack.c.l.b16 %v6638
    %v7270 = vunpack.c.l.b16 %v6639
    %v7271 = vunpack.c.l.b16 %v6640
    %v7272 = vunpack.c.l.b16 %v6641
    %v7273 = vunpack.c.l.b16 %v6642
    %v7274 = vunpack.c.l.b16 %v6643
    %v7275 = vunpack.c.l.b16 %v6644
    %v7276 = vunpack.c.l.b16 %v6645
    %v7277 = vunpack.c.l.b16 %v6646
    %v7278 = vunpack.c.l.b16 %v6647
    %v7279 = vunpack.c.l.b16 %v6648
    %v7280 = vunpack.c.l.b16 %v6649
    %v7281 = vunpack.c.l.b16 %v6650
    %v7282 = vunpack.c.l.b16 %v6651
    %v7283 = vunpack.c.l.b16 %v6652
    %v7284 = vunpack.c.l.b16 %v6653
    %v7285 = vunpack.c.l.b16 %v6654
    %v7286 = vunpack.c.l.b16 %v6655
    %v7287 = vunpack.c.l.b16 %v6656
    %v7288 = vunpack.c.l.b16 %v6657
    %v7289 = vunpack.c.l.b16 %v6658
    %v7290 = vunpack.c.l.b16 %v6659
    %v7291 = vunpack.c.l.b16 %v6660
    %v7292 = vunpack.c.l.b16 %v6661
    %v7293 = vunpack.c.l.b16 %v6662
    %v7294 = vunpack.c.l.b16 %v6663
    %v7295 = vunpack.c.l.b16 %v6664
    %v7296 = vunpack.c.l.b16 %v6665
    %v7297 = vunpack.c.l.b16 %v6666
    %v7298 = vunpack.c.l.b16 %v6667
    %v7299 = vunpack.c.l.b16 %v6668
    %v7300 = vunpack.c.l.b16 %v6669
    %v7301 = vunpack.c.l.b16 %v6670
    %v7302 = vunpack.c.l.b16 %v6671
    %v7303 = vunpack.c.l.b16 %v6672
    %v7304 = vunpack.c.l.b16 %v6673
    %v7305 = vunpack.c.l.b16 %v6674
    %v7306 = vunpack.c.l.b16 %v6675
    %v7307 = vunpack.c.l.b16 %v6676
    %v7308 = vunpack.c.l.b16 %v6677
    %v7309 = vunpack.c.l.b16 %v6678
    %v7310 = vunpack.c.l.b16 %v6679
    %v7311 = vunpack.c.l.b16 %v6680
    %v7312 = vunpack.c.l.b16 %v6681
    %v7313 = vunpack.c.l.b16 %v6682
    %v7314 = vunpack.c.l.b16 %v6683
    %v7315 = vunpack.c.l.b16 %v6684
    %v7316 = vunpack.c.l.b16 %v6685
    %v7317 = vunpack.c.l.b16 %v6686
    %v7318 = vunpack.c.l.b16 %v6687
    %v7319 = vunpack.c.l.b16 %v6688
    %v7320 = vunpack.c.l.b16 %v6689
    %v7321 = vunpack.c.l.b16 %v6690
    %v7322 = vunpack.c.l.b16 %v6691
    %v7323 = vunpack.c.l.b16 %v6692
    %v7324 = vunpack.c.l.b16 %v6693
    %v7325 = vunpack.c.l.b16 %v6694
    %v7326 = vunpack.c.l.b16 %v6695
    %v7327 = vunpack.c.l.b16 %v6696
    %v7328 = vunpack.c.l.b16 %v6697
    %v7329 = vunpack.c.l.b16 %v6698
    %v7330 = vunpack.c.l.b16 %v6699
    %v7331 = vunpack.c.l.b16 %v6700
    %v7332 = vunpack.c.l.b16 %v6701
    %v7333 = vunpack.c.l.b16 %v6702
    %v7334 = vunpack.c.l.b16 %v6703
    %v7335 = vunpack.c.l.b16 %v6704
    %v7336 = vunpack.c.l.b16 %v6705
    %v7337 = vunpack.c.l.b16 %v6706
    %v7338 = vunpack.c.l.b16 %v6707
    %v7339 = vpack.c.b16 %v7084, %v7083
    %v7340 = vpack.c.b16 %v7086, %v7085
    %v7341 = vpack.c.b16 %v7088, %v7087
    %v7342 = vpack.c.b16 %v7090, %v7089
    %v7343 = vpack.c.b16 %v7092, %v7091
    %v7344 = vpack.c.b16 %v7094, %v7093
    %v7345 = vpack.c.b16 %v7096, %v7095
    %v7346 = vpack.c.b16 %v7098, %v7097
    %v7347 = vpack.c.b16 %v7100, %v7099
    %v7348 = vpack.c.b16 %v7102, %v7101
    %v7349 = vpack.c.b16 %v7104, %v7103
    %v7350 = vpack.c.b16 %v7106, %v7105
    %v7351 = vpack.c.b16 %v7108, %v7107
    %v7352 = vpack.c.b16 %v7110, %v7109
    %v7353 = vpack.c.b16 %v7112, %v7111
    %v7354 = vpack.c.b16 %v7114, %v7113
    %v7355 = vpack.c.b16 %v7116, %v7115
    %v7356 = vpack.c.b16 %v7118, %v7117
    %v7357 = vpack.c.b16 %v7120, %v7119
    %v7358 = vpack.c.b16 %v7122, %v7121
    %v7359 = vpack.c.b16 %v7124, %v7123
    %v7360 = vpack.c.b16 %v7126, %v7125
    %v7361 = vpack.c.b16 %v7128, %v7127
    %v7362 = vpack.c.b16 %v7130, %v7129
    %v7363 = vpack.c.b16 %v7132, %v7131
    %v7364 = vpack.c.b16 %v7134, %v7133
    %v7365 = vpack.c.b16 %v7136, %v7135
    %v7366 = vpack.c.b16 %v7138, %v7137
    %v7367 = vpack.c.b16 %v7140, %v7139
    %v7368 = vpack.c.b16 %v7142, %v7141
    %v7369 = vpack.c.b16 %v7144, %v7143
    %v7370 = vpack.c.b16 %v7146, %v7145
    %v7371 = vpack.c.b16 %v7148, %v7147
    %v7372 = vpack.c.b16 %v7150, %v7149
    %v7373 = vpack.c.b16 %v7152, %v7151
    %v7374 = vpack.c.b16 %v7154, %v7153
    %v7375 = vpack.c.b16 %v7156, %v7155
    %v7376 = vpack.c.b16 %v7158, %v7157
    %v7377 = vpack.c.b16 %v7160, %v7159
    %v7378 = vpack.c.b16 %v7162, %v7161
    %v7379 = vpack.c.b16 %v7164, %v7163
    %v7380 = vpack.c.b16 %v7166, %v7165
    %v7381 = vpack.c.b16 %v7168, %v7167
    %v7382 = vpack.c.b16 %v7170, %v7169
    %v7383 = vpack.c.b16 %v7172, %v7171
    %v7384 = vpack.c.b16 %v7174, %v7173
    %v7385 = vpack.c.b16 %v7176, %v7175
    %v7386 = vpack.c.b16 %v7178, %v7177
    %v7387 = vpack.c.b16 %v7180, %v7179
    %v7388 = vpack.c.b16 %v7182, %v7181
    %v7389 = vpack.c.b16 %v7184, %v7183
    %v7390 = vpack.c.b16 %v7186, %v7185
    %v7391 = vpack.c.b16 %v7188, %v7187
    %v7392 = vpack.c.b16 %v7190, %v7189
    %v7393 = vpack.c.b16 %v7192, %v7191
    %v7394 = vpack.c.b16 %v7194, %v7193
    %v7395 = vpack.c.b16 %v7196, %v7195
    %v7396 = vpack.c.b16 %v7198, %v7197
    %v7397 = vpack.c.b16 %v7200, %v7199
    %v7398 = vpack.c.b16 %v7202, %v7201
    %v7399 = vpack.c.b16 %v7204, %v7203
    %v7400 = vpack.c.b16 %v7206, %v7205
    %v7401 = vpack.c.b16 %v7208, %v7207
    %v7402 = vpack.c.b16 %v7210, %v7209
    %v7403 = vpack.c.b16 %v7212, %v7211
    %v7404 = vpack.c.b16 %v7214, %v7213
    %v7405 = vpack.c.b16 %v7216, %v7215
    %v7406 = vpack.c.b16 %v7218, %v7217
    %v7407 = vpack.c.b16 %v7220, %v7219
    %v7408 = vpack.c.b16 %v7222, %v7221
    %v7409 = vpack.c.b16 %v7224, %v7223
    %v7410 = vpack.c.b16 %v7226, %v7225
    %v7411 = vpack.c.b16 %v7228, %v7227
    %v7412 = vpack.c.b16 %v7230, %v7229
    %v7413 = vpack.c.b16 %v7232, %v7231
    %v7414 = vpack.c.b16 %v7234, %v7233
    %v7415 = vpack.c.b16 %v7236, %v7235
    %v7416 = vpack.c.b16 %v7238, %v7237
    %v7417 = vpack.c.b16 %v7240, %v7239
    %v7418 = vpack.c.b16 %v7242, %v7241
    %v7419 = vpack.c.b16 %v7244, %v7243
    %v7420 = vpack.c.b16 %v7246, %v7245
    %v7421 = vpack.c.b16 %v7248, %v7247
    %v7422 = vpack.c.b16 %v7250, %v7249
    %v7423 = vpack.c.b16 %v7252, %v7251
    %v7424 = vpack.c.b16 %v7254, %v7253
    %v7425 = vpack.c.b16 %v7256, %v7255
    %v7426 = vpack.c.b16 %v7258, %v7257
    %v7427 = vpack.c.b16 %v7260, %v7259
    %v7428 = vpack.c.b16 %v7262, %v7261
    %v7429 = vpack.c.b16 %v7264, %v7263
    %v7430 = vpack.c.b16 %v7266, %v7265
    %v7431 = vpack.c.b16 %v7268, %v7267
    %v7432 = vpack.c.b16 %v7270, %v7269
    %v7433 = vpack.c.b16 %v7272, %v7271
    %v7434 = vpack.c.b16 %v7274, %v7273
    %v7435 = vpack.c.b16 %v7276, %v7275
    %v7436 = vpack.c.b16 %v7278, %v7277
    %v7437 = vpack.c.b16 %v7280, %v7279
    %v7438 = vpack.c.b16 %v7282, %v7281
    %v7439 = vpack.c.b16 %v7284, %v7283
    %v7440 = vpack.c.b16 %v7286, %v7285
    %v7441 = vpack.c.b16 %v7288, %v7287
    %v7442 = vpack.c.b16 %v7290, %v7289
    %v7443 = vpack.c.b16 %v7292, %v7291
    %v7444 = vpack.c.b16 %v7294, %v7293
    %v7445 = vpack.c.b16 %v7296, %v7295
    %v7446 = vpack.c.b16 %v7298, %v7297
    %v7447 = vpack.c.b16 %v7300, %v7299
    %v7448 = vpack.c.b16 %v7302, %v7301
    %v7449 = vpack.c.b16 %v7304, %v7303
    %v7450 = vpack.c.b16 %v7306, %v7305
    %v7451 = vpack.c.b16 %v7308, %v7307
    %v7452 = vpack.c.b16 %v7310, %v7309
    %v7453 = vpack.c.b16 %v7312, %v7311
    %v7454 = vpack.c.b16 %v7314, %v7313
    %v7455 = vpack.c.b16 %v7316, %v7315
    %v7456 = vpack.c.b16 %v7318, %v7317
    %v7457 = vpack.c.b16 %v7320, %v7319
    %v7458 = vpack.c.b16 %v7322, %v7321
    %v7459 = vpack.c.b16 %v7324, %v7323
    %v7460 = vpack.c.b16 %v7326, %v7325
    %v7461 = vpack.c.b16 %v7328, %v7327
    %v7462 = vpack.c.b16 %v7330, %v7329
    %v7463 = vpack.c.b16 %v7332, %v7331
    %v7464 = vpack.c.b16 %v7334, %v7333
    %v7465 = vpack.c.b16 %v7336, %v7335
    %v7466 = vpack.c.b16 %v7338, %v7337
    %7595 = vmatprep.subr.bf16.mxu0 0
    %7596 = vmatpush1.bf16.msra.mxu0 %v7346
    %7597 = vmatprep.subr.bf16.mxu0 0
    %7598 = vmatpush1.bf16.msra.mxu0 %v7345
    %7599 = vmatprep.subr.bf16.mxu0 0
    %7600 = vmatpush1.bf16.msra.mxu0 %v7344
    %7601 = vmatprep.subr.bf16.mxu0 0
    %7602 = vmatpush1.bf16.msra.mxu0 %v7343
    %7603 = vmatprep.subr.bf16.mxu0 0
    %7604 = vmatpush1.bf16.msra.mxu0 %v7342
    %7605 = vmatprep.subr.bf16.mxu0 0
    %7606 = vmatpush1.bf16.msra.mxu0 %v7341
    %7607 = vmatprep.subr.bf16.mxu0 0
    %7608 = vmatpush1.bf16.msra.mxu0 %v7340
    %7609 = vmatprep.subr.bf16.mxu0 0
    %7610 = vmatpush1.bf16.msra.mxu0 %v7339
    %7611 = vmatprep.subr.bf16.mxu0 0
    %7612 = vmatpush2.bf16.msra.mxu0 %v7354
    %7613 = vmatprep.subr.bf16.mxu0 0
    %7614 = vmatpush2.bf16.msra.mxu0 %v7353
    %7615 = vmatprep.subr.bf16.mxu0 0
    %7616 = vmatpush2.bf16.msra.mxu0 %v7352
    %7617 = vmatprep.subr.bf16.mxu0 0
    %7618 = vmatpush2.bf16.msra.mxu0 %v7351
    %7619 = vmatprep.subr.bf16.mxu0 0
    %7620 = vmatpush2.bf16.msra.mxu0 %v7350
    %7621 = vmatprep.subr.bf16.mxu0 0
    %7622 = vmatpush2.bf16.msra.mxu0 %v7349
    %7623 = vmatprep.subr.bf16.mxu0 0
    %7624 = vmatpush2.bf16.msra.mxu0 %v7348
    %7625 = vmatprep.subr.bf16.mxu0 0
    %7626 = vmatpush2.bf16.msra.mxu0 %v7347
    %7627 = vmatprep.mubr.bf16.mxu0 %v6796
    %7628 = vmatmul.mubr.bf16.gmra.mxu0 %v6795
    %v7629 = vpop.f32.mrf.mxu0
    %v7630 = vadd.f32 %v6713, %v7629
    %v7631 = vpop.f32.mrf.mxu0
    %v7632 = vpop.f32.mrf.mxu0
    %v7633 = vpop.f32.mrf.mxu0
    %7634 = vdwg.mxu0
    %7635 = vmatprep.subr.bf16.mxu0 0
    %7636 = vmatpush1.bf16.msra.mxu0 %v7362
    %7637 = vmatprep.subr.bf16.mxu0 0
    %7638 = vmatpush1.bf16.msra.mxu0 %v7361
    %7639 = vmatprep.subr.bf16.mxu0 0
    %7640 = vmatpush1.bf16.msra.mxu0 %v7360
    %7641 = vmatprep.subr.bf16.mxu0 0
    %7642 = vmatpush1.bf16.msra.mxu0 %v7359
    %7643 = vmatprep.subr.bf16.mxu0 0
    %7644 = vmatpush1.bf16.msra.mxu0 %v7358
    %7645 = vmatprep.subr.bf16.mxu0 0
    %7646 = vmatpush1.bf16.msra.mxu0 %v7357
    %7647 = vmatprep.subr.bf16.mxu0 0
    %7648 = vmatpush1.bf16.msra.mxu0 %v7356
    %7649 = vmatprep.subr.bf16.mxu0 0
    %7650 = vmatpush1.bf16.msra.mxu0 %v7355
    %7651 = vmatprep.subr.bf16.mxu0 0
    %7652 = vmatpush2.bf16.msra.mxu0 %v7370
    %7653 = vmatprep.subr.bf16.mxu0 0
    %7654 = vmatpush2.bf16.msra.mxu0 %v7369
    %7655 = vmatprep.subr.bf16.mxu0 0
    %7656 = vmatpush2.bf16.msra.mxu0 %v7368
    %7657 = vmatprep.subr.bf16.mxu0 0
    %7658 = vmatpush2.bf16.msra.mxu0 %v7367
    %7659 = vmatprep.subr.bf16.mxu0 0
    %7660 = vmatpush2.bf16.msra.mxu0 %v7366
    %7661 = vmatprep.subr.bf16.mxu0 0
    %7662 = vmatpush2.bf16.msra.mxu0 %v7365
    %7663 = vmatprep.subr.bf16.mxu0 0
    %7664 = vmatpush2.bf16.msra.mxu0 %v7364
    %7665 = vmatprep.subr.bf16.mxu0 0
    %7666 = vmatpush2.bf16.msra.mxu0 %v7363
    %7667 = vmatprep.mubr.bf16.mxu0 %v6798
    %7668 = vmatmul.mubr.bf16.gmra.mxu0 %v6797
    %v7669 = vpop.f32.mrf.mxu0
    %v7670 = vadd.f32 %v7630, %v7669
    %v7671 = vpop.f32.mrf.mxu0
    %v7672 = vpop.f32.mrf.mxu0
    %v7673 = vpop.f32.mrf.mxu0
    %7674 = vdwg.mxu0
    %7675 = vmatprep.subr.bf16.mxu0 0
    %7676 = vmatpush1.bf16.msra.mxu0 %v7378
    %7677 = vmatprep.subr.bf16.mxu0 0
    %7678 = vmatpush1.bf16.msra.mxu0 %v7377
    %7679 = vmatprep.subr.bf16.mxu0 0
    %7680 = vmatpush1.bf16.msra.mxu0 %v7376
    %7681 = vmatprep.subr.bf16.mxu0 0
    %7682 = vmatpush1.bf16.msra.mxu0 %v7375
    %7683 = vmatprep.subr.bf16.mxu0 0
    %7684 = vmatpush1.bf16.msra.mxu0 %v7374
    %7685 = vmatprep.subr.bf16.mxu0 0
    %7686 = vmatpush1.bf16.msra.mxu0 %v7373
    %7687 = vmatprep.subr.bf16.mxu0 0
    %7688 = vmatpush1.bf16.msra.mxu0 %v7372
    %7689 = vmatprep.subr.bf16.mxu0 0
    %7690 = vmatpush1.bf16.msra.mxu0 %v7371
    %7691 = vmatprep.subr.bf16.mxu0 0
    %7692 = vmatpush2.bf16.msra.mxu0 %v7386
    %7693 = vmatprep.subr.bf16.mxu0 0
    %7694 = vmatpush2.bf16.msra.mxu0 %v7385
    %7695 = vmatprep.subr.bf16.mxu0 0
    %7696 = vmatpush2.bf16.msra.mxu0 %v7384
    %7697 = vmatprep.subr.bf16.mxu0 0
    %7698 = vmatpush2.bf16.msra.mxu0 %v7383
    %7699 = vmatprep.subr.bf16.mxu0 0
    %7700 = vmatpush2.bf16.msra.mxu0 %v7382
    %7701 = vmatprep.subr.bf16.mxu0 0
    %7702 = vmatpush2.bf16.msra.mxu0 %v7381
    %7703 = vmatprep.subr.bf16.mxu0 0
    %7704 = vmatpush2.bf16.msra.mxu0 %v7380
    %7705 = vmatprep.subr.bf16.mxu0 0
    %7706 = vmatpush2.bf16.msra.mxu0 %v7379
    %7707 = vmatprep.mubr.bf16.mxu0 %v6800
    %7708 = vmatmul.mubr.bf16.gmra.mxu0 %v6799
    %v7709 = vpop.f32.mrf.mxu0
    %v7710 = vadd.f32 %v7670, %v7709
    %v7711 = vpop.f32.mrf.mxu0
    %v7712 = vpop.f32.mrf.mxu0
    %v7713 = vpop.f32.mrf.mxu0
    %7714 = vdwg.mxu0
    %7715 = vmatprep.subr.bf16.mxu0 0
    %7716 = vmatpush1.bf16.msra.mxu0 %v7394
    %7717 = vmatprep.subr.bf16.mxu0 0
    %7718 = vmatpush1.bf16.msra.mxu0 %v7393
    %7719 = vmatprep.subr.bf16.mxu0 0
    %7720 = vmatpush1.bf16.msra.mxu0 %v7392
    %7721 = vmatprep.subr.bf16.mxu0 0
    %7722 = vmatpush1.bf16.msra.mxu0 %v7391
    %7723 = vmatprep.subr.bf16.mxu0 0
    %7724 = vmatpush1.bf16.msra.mxu0 %v7390
    %7725 = vmatprep.subr.bf16.mxu0 0
    %7726 = vmatpush1.bf16.msra.mxu0 %v7389
    %7727 = vmatprep.subr.bf16.mxu0 0
    %7728 = vmatpush1.bf16.msra.mxu0 %v7388
    %7729 = vmatprep.subr.bf16.mxu0 0
    %7730 = vmatpush1.bf16.msra.mxu0 %v7387
    %7731 = vmatprep.subr.bf16.mxu0 0
    %7732 = vmatpush2.bf16.msra.mxu0 %v7402
    %7733 = vmatprep.subr.bf16.mxu0 0
    %7734 = vmatpush2.bf16.msra.mxu0 %v7401
    %7735 = vmatprep.subr.bf16.mxu0 0
    %7736 = vmatpush2.bf16.msra.mxu0 %v7400
    %7737 = vmatprep.subr.bf16.mxu0 0
    %7738 = vmatpush2.bf16.msra.mxu0 %v7399
    %7739 = vmatprep.subr.bf16.mxu0 0
    %7740 = vmatpush2.bf16.msra.mxu0 %v7398
    %7741 = vmatprep.subr.bf16.mxu0 0
    %7742 = vmatpush2.bf16.msra.mxu0 %v7397
    %7743 = vmatprep.subr.bf16.mxu0 0
    %7744 = vmatpush2.bf16.msra.mxu0 %v7396
    %7745 = vmatprep.subr.bf16.mxu0 0
    %7746 = vmatpush2.bf16.msra.mxu0 %v7395
    %7747 = vmatprep.mubr.bf16.mxu0 %v6802
    %7748 = vmatmul.mubr.bf16.gmra.mxu0 %v6801
    %v7749 = vpop.f32.mrf.mxu0
    %v7750 = vadd.f32 %v7710, %v7749
    %v7751 = vpop.f32.mrf.mxu0
    %v7752 = vpop.f32.mrf.mxu0
    %v7753 = vpop.f32.mrf.mxu0
    %7754 = vdwg.mxu0
    %7755 = vmatprep.subr.bf16.mxu0 0
    %7756 = vmatpush1.bf16.msra.mxu0 %v7410
    %7757 = vmatprep.subr.bf16.mxu0 0
    %7758 = vmatpush1.bf16.msra.mxu0 %v7409
    %7759 = vmatprep.subr.bf16.mxu0 0
    %7760 = vmatpush1.bf16.msra.mxu0 %v7408
    %7761 = vmatprep.subr.bf16.mxu0 0
    %7762 = vmatpush1.bf16.msra.mxu0 %v7407
    %7763 = vmatprep.subr.bf16.mxu0 0
    %7764 = vmatpush1.bf16.msra.mxu0 %v7406
    %7765 = vmatprep.subr.bf16.mxu0 0
    %7766 = vmatpush1.bf16.msra.mxu0 %v7405
    %7767 = vmatprep.subr.bf16.mxu0 0
    %7768 = vmatpush1.bf16.msra.mxu0 %v7404
    %7769 = vmatprep.subr.bf16.mxu0 0
    %7770 = vmatpush1.bf16.msra.mxu0 %v7403
    %7771 = vmatprep.subr.bf16.mxu0 0
    %7772 = vmatpush2.bf16.msra.mxu0 %v7418
    %7773 = vmatprep.subr.bf16.mxu0 0
    %7774 = vmatpush2.bf16.msra.mxu0 %v7417
    %7775 = vmatprep.subr.bf16.mxu0 0
    %7776 = vmatpush2.bf16.msra.mxu0 %v7416
    %7777 = vmatprep.subr.bf16.mxu0 0
    %7778 = vmatpush2.bf16.msra.mxu0 %v7415
    %7779 = vmatprep.subr.bf16.mxu0 0
    %7780 = vmatpush2.bf16.msra.mxu0 %v7414
    %7781 = vmatprep.subr.bf16.mxu0 0
    %7782 = vmatpush2.bf16.msra.mxu0 %v7413
    %7783 = vmatprep.subr.bf16.mxu0 0
    %7784 = vmatpush2.bf16.msra.mxu0 %v7412
    %7785 = vmatprep.subr.bf16.mxu0 0
    %7786 = vmatpush2.bf16.msra.mxu0 %v7411
    %7787 = vmatprep.mubr.bf16.mxu0 %v6804
    %7788 = vmatmul.mubr.bf16.gmra.mxu0 %v6803
    %v7789 = vpop.f32.mrf.mxu0
    %v7790 = vadd.f32 %v7750, %v7789
    %v7791 = vpop.f32.mrf.mxu0
    %v7792 = vpop.f32.mrf.mxu0
    %v7793 = vpop.f32.mrf.mxu0
    %7794 = vdwg.mxu0
    %7795 = vmatprep.subr.bf16.mxu0 0
    %7796 = vmatpush1.bf16.msra.mxu0 %v7426
    %7797 = vmatprep.subr.bf16.mxu0 0
    %7798 = vmatpush1.bf16.msra.mxu0 %v7425
    %7799 = vmatprep.subr.bf16.mxu0 0
    %7800 = vmatpush1.bf16.msra.mxu0 %v7424
    %7801 = vmatprep.subr.bf16.mxu0 0
    %7802 = vmatpush1.bf16.msra.mxu0 %v7423
    %7803 = vmatprep.subr.bf16.mxu0 0
    %7804 = vmatpush1.bf16.msra.mxu0 %v7422
    %7805 = vmatprep.subr.bf16.mxu0 0
    %7806 = vmatpush1.bf16.msra.mxu0 %v7421
    %7807 = vmatprep.subr.bf16.mxu0 0
    %7808 = vmatpush1.bf16.msra.mxu0 %v7420
    %7809 = vmatprep.subr.bf16.mxu0 0
    %7810 = vmatpush1.bf16.msra.mxu0 %v7419
    %7811 = vmatprep.subr.bf16.mxu0 0
    %7812 = vmatpush2.bf16.msra.mxu0 %v7434
    %7813 = vmatprep.subr.bf16.mxu0 0
    %7814 = vmatpush2.bf16.msra.mxu0 %v7433
    %7815 = vmatprep.subr.bf16.mxu0 0
    %7816 = vmatpush2.bf16.msra.mxu0 %v7432
    %7817 = vmatprep.subr.bf16.mxu0 0
    %7818 = vmatpush2.bf16.msra.mxu0 %v7431
    %7819 = vmatprep.subr.bf16.mxu0 0
    %7820 = vmatpush2.bf16.msra.mxu0 %v7430
    %7821 = vmatprep.subr.bf16.mxu0 0
    %7822 = vmatpush2.bf16.msra.mxu0 %v7429
    %7823 = vmatprep.subr.bf16.mxu0 0
    %7824 = vmatpush2.bf16.msra.mxu0 %v7428
    %7825 = vmatprep.subr.bf16.mxu0 0
    %7826 = vmatpush2.bf16.msra.mxu0 %v7427
    %7827 = vmatprep.mubr.bf16.mxu0 %v6806
    %7828 = vmatmul.mubr.bf16.gmra.mxu0 %v6805
    %v7829 = vpop.f32.mrf.mxu0
    %v7830 = vadd.f32 %v7790, %v7829
    %v7831 = vpop.f32.mrf.mxu0
    %v7832 = vpop.f32.mrf.mxu0
    %v7833 = vpop.f32.mrf.mxu0
    %7834 = vdwg.mxu0
    %7835 = vmatprep.subr.bf16.mxu0 0
    %7836 = vmatpush1.bf16.msra.mxu0 %v7442
    %7837 = vmatprep.subr.bf16.mxu0 0
    %7838 = vmatpush1.bf16.msra.mxu0 %v7441
    %7839 = vmatprep.subr.bf16.mxu0 0
    %7840 = vmatpush1.bf16.msra.mxu0 %v7440
    %7841 = vmatprep.subr.bf16.mxu0 0
    %7842 = vmatpush1.bf16.msra.mxu0 %v7439
    %7843 = vmatprep.subr.bf16.mxu0 0
    %7844 = vmatpush1.bf16.msra.mxu0 %v7438
    %7845 = vmatprep.subr.bf16.mxu0 0
    %7846 = vmatpush1.bf16.msra.mxu0 %v7437
    %7847 = vmatprep.subr.bf16.mxu0 0
    %7848 = vmatpush1.bf16.msra.mxu0 %v7436
    %7849 = vmatprep.subr.bf16.mxu0 0
    %7850 = vmatpush1.bf16.msra.mxu0 %v7435
    %7851 = vmatprep.subr.bf16.mxu0 0
    %7852 = vmatpush2.bf16.msra.mxu0 %v7450
    %7853 = vmatprep.subr.bf16.mxu0 0
    %7854 = vmatpush2.bf16.msra.mxu0 %v7449
    %7855 = vmatprep.subr.bf16.mxu0 0
    %7856 = vmatpush2.bf16.msra.mxu0 %v7448
    %7857 = vmatprep.subr.bf16.mxu0 0
    %7858 = vmatpush2.bf16.msra.mxu0 %v7447
    %7859 = vmatprep.subr.bf16.mxu0 0
    %7860 = vmatpush2.bf16.msra.mxu0 %v7446
    %7861 = vmatprep.subr.bf16.mxu0 0
    %7862 = vmatpush2.bf16.msra.mxu0 %v7445
    %7863 = vmatprep.subr.bf16.mxu0 0
    %7864 = vmatpush2.bf16.msra.mxu0 %v7444
    %7865 = vmatprep.subr.bf16.mxu0 0
    %7866 = vmatpush2.bf16.msra.mxu0 %v7443
    %7867 = vmatprep.mubr.bf16.mxu0 %v6808
    %7868 = vmatmul.mubr.bf16.gmra.mxu0 %v6807
    %v7869 = vpop.f32.mrf.mxu0
    %v7870 = vadd.f32 %v7830, %v7869
    %v7871 = vpop.f32.mrf.mxu0
    %v7872 = vpop.f32.mrf.mxu0
    %v7873 = vpop.f32.mrf.mxu0
    %7874 = vdwg.mxu0
    %7875 = vmatprep.subr.bf16.mxu0 0
    %7876 = vmatpush1.bf16.msra.mxu0 %v7458
    %7877 = vmatprep.subr.bf16.mxu0 0
    %7878 = vmatpush1.bf16.msra.mxu0 %v7457
    %7879 = vmatprep.subr.bf16.mxu0 0
    %7880 = vmatpush1.bf16.msra.mxu0 %v7456
    %7881 = vmatprep.subr.bf16.mxu0 0
    %7882 = vmatpush1.bf16.msra.mxu0 %v7455
    %7883 = vmatprep.subr.bf16.mxu0 0
    %7884 = vmatpush1.bf16.msra.mxu0 %v7454
    %7885 = vmatprep.subr.bf16.mxu0 0
    %7886 = vmatpush1.bf16.msra.mxu0 %v7453
    %7887 = vmatprep.subr.bf16.mxu0 0
    %7888 = vmatpush1.bf16.msra.mxu0 %v7452
    %7889 = vmatprep.subr.bf16.mxu0 0
    %7890 = vmatpush1.bf16.msra.mxu0 %v7451
    %7891 = vmatprep.subr.bf16.mxu0 0
    %7892 = vmatpush2.bf16.msra.mxu0 %v7466
    %7893 = vmatprep.subr.bf16.mxu0 0
    %7894 = vmatpush2.bf16.msra.mxu0 %v7465
    %7895 = vmatprep.subr.bf16.mxu0 0
    %7896 = vmatpush2.bf16.msra.mxu0 %v7464
    %7897 = vmatprep.subr.bf16.mxu0 0
    %7898 = vmatpush2.bf16.msra.mxu0 %v7463
    %7899 = vmatprep.subr.bf16.mxu0 0
    %7900 = vmatpush2.bf16.msra.mxu0 %v7462
    %7901 = vmatprep.subr.bf16.mxu0 0
    %7902 = vmatpush2.bf16.msra.mxu0 %v7461
    %7903 = vmatprep.subr.bf16.mxu0 0
    %7904 = vmatpush2.bf16.msra.mxu0 %v7460
    %7905 = vmatprep.subr.bf16.mxu0 0
    %7906 = vmatpush2.bf16.msra.mxu0 %v7459
    %7907 = vmatprep.mubr.bf16.mxu0 %v6810
    %7908 = vmatmul.mubr.bf16.gmra.mxu0 %v6809
    %v7909 = vpop.f32.mrf.mxu0
    %v7910 = vadd.f32 %v7870, %v7909
    %v7911 = vpop.f32.mrf.mxu0
    %v7912 = vpop.f32.mrf.mxu0
    %v7913 = vpop.f32.mrf.mxu0
    %7914 = vdwg.mxu0
    %7915 = vst [vmem:[#allocation6] sm:$0x3] %v7910
    // Predicated region
    $region34: #{hawkears_one_forward.1} parent=1 // pred_check
      _
    $region35: #{hawkears_one_forward.1} parent=1 // pred_check_branch
      %7917 = sbr.rel (0) target = $region37
    $region36: #{hawkears_one_forward.1} parent=1 // pred_region
      %s7919 = ssub.s32 512, 512
      %7920 = vsyncadd [#allocation4], %s7919
      %s7922 = sshll.u32 [#allocation5], 4
      %s7923 = int_to_ptr.vmem [resolvable:$true] %s7922
      %7925 = dma.vmem_to_hbm [thread:$0]  %s7923, 512, %s7, [#allocation4]
    $region37: #{hawkears_one_forward.1} parent=1 // pred_fallthru
      _
    // Predicated region
    $region38: #{hawkears_one_forward.1} parent=1 // pred_check
      _
    $region39: #{hawkears_one_forward.1} parent=1 // pred_check_branch
      %7927 = sbr.rel (0) target = $region41
    $region40: #{hawkears_one_forward.1} parent=1 // pred_region
      %s7929 = ssub.s32 32, 32
      %7930 = vsyncadd [#allocation7], %s7929
      %s7932 = sshll.u32 [#allocation6], 4
      %s7933 = int_to_ptr.vmem [resolvable:$true] %s7932
      %7935 = dma.vmem_to_hbm [thread:$0]  %s7933, 32, %s8, [#allocation7]
    $region41: #{hawkears_one_forward.1} parent=1 // pred_fallthru
      _
    // Predicated region
    $region42: #{hawkears_one_forward.1} parent=1 // pred_check
      _
    $region43: #{hawkears_one_forward.1} parent=1 // pred_check_branch
      %7937 = sbr.rel (0) target = $region45
    $region44: #{hawkears_one_forward.1} parent=1 // pred_region
      %7938 = dma.done [#allocation4], 512
    $region45: #{hawkears_one_forward.1} parent=1 // pred_fallthru
      _
    // Predicated region
    $region46: #{hawkears_one_forward.1} parent=1 // pred_check
      _
    $region47: #{hawkears_one_forward.1} parent=1 // pred_check_branch
      %7940 = sbr.rel (0) target = $region49
    $region48: #{hawkears_one_forward.1} parent=1 // pred_region
      %7941 = dma.done [#allocation7], 32
    $region49: #{hawkears_one_forward.1} parent=1 // pred_fallthru
      _
    %7942 = vsyncpa [#allocation3], 1
    %7943 = vsyncpa [#allocation4], 1
    %7944 = vsyncpa [#allocation7], 1

</llo_original>
